<compile_context>
chip_gen: v7x
topology: tpu7x:2x2x1
jax: 0.10.0
libtpu: 0.0.40
codegen_flags: <defaults>
</compile_context>

<pallas_src>
import jax
import jax.numpy as jnp
from jax.experimental import pallas as pl
from jax.experimental.pallas import tpu as pltpu

C_IN = 3
IMG = 299
GRID_HW = 8                       # Mixed_7c spatial dims are 8x8
PATCH = 37                        # 37 * 8 = 296 (crop 299 -> 296)
PATCH_ROWS = GRID_HW * GRID_HW    # 64 patch rows per image
C_OUT = 2048                      # Mixed_7c channel count
K_RAW = C_IN * PATCH * PATCH      # 4107
K_PAD = 4224                      # next multiple of 128 (lane alignment)
TN = 256                          # output-channel tile (8 tiles of 256)


def _vmem_limit_bytes():
    # Double-buffered per-step footprint: bf16 LHS/RHS tiles + f32 out tile.
    lhs = 2 * PATCH_ROWS * K_PAD * 2
    rhs = 2 * K_PAD * TN * 2
    out = 2 * TN * 4
    need = lhs + rhs + out                       # ~5.4 MB
    # Generous headroom for compiler scratch, stays well under v7x's 64 MiB.
    return int(min(max(4 * need, 24 * 1024 * 1024), 48 * 1024 * 1024))


# ----------------------------- Pallas kernel -------------------------------

def _fused_matmul_pool_kernel(p_ref, w_ref, o_ref):
    # p_ref: (64, K_PAD) bf16 patch rows of ONE image
    # w_ref: (K_PAD, TN)  bf16 weight slab
    # o_ref: (1, 1, TN)   f32 pooled output tile
    acc = jnp.dot(p_ref[...], w_ref[...],
                  preferred_element_type=jnp.float32)          # (64, TN), MXU
    # F.adaptive_avg_pool2d(act, (1, 1)) == mean over the 8x8 spatial grid.
    pooled = jnp.sum(acc, axis=0, keepdims=True) * (1.0 / PATCH_ROWS)
    o_ref[...] = pooled.reshape(1, 1, TN)


# ------------------------------ wrappers ------------------------------------

def _fused_matmul_pool(patches, w, n_images):
    # Channel tiles OUTER, images INNER: the weight block index is constant
    # along the inner axis, so each of the C_OUT//TN weight slabs is DMA'd
    # once (weights read once total) while per-image patch tiles stream.
    return pl.pallas_call(
        _fused_matmul_pool_kernel,
        out_shape=jax.ShapeDtypeStruct((n_images, 1, C_OUT), jnp.float32),
        grid_spec=pltpu.PrefetchScalarGridSpec(
            num_scalar_prefetch=0,
            grid=(C_OUT // TN, n_images),
            in_specs=[
                pl.BlockSpec((PATCH_ROWS, K_PAD), lambda j, i: (i, 0)),
                pl.BlockSpec((K_PAD, TN), lambda j, i: (0, j)),
            ],
            out_specs=pl.BlockSpec((1, 1, TN), lambda j, i: (i, 0, j)),
        ),
        compiler_params=pltpu.CompilerParams(
            dimension_semantics=("parallel", "parallel"),
            vmem_limit_bytes=_vmem_limit_bytes()),
    )(patches, w)


def _extract_patches(x):
    # x: (N, 3, 299, 299) f32 -> (N*64, K_PAD) bf16 patch rows (pure-JAX glue).
    N = x.shape[0]
    xc = x[:, :, :GRID_HW * PATCH, :GRID_HW * PATCH]             # crop 299->296
    xc = xc.reshape(N, C_IN, GRID_HW, PATCH, GRID_HW, PATCH)
    xc = jnp.transpose(xc, (0, 2, 4, 1, 3, 5))                   # (N,8,8,3,37,37)
    rows = xc.reshape(N * PATCH_ROWS, K_RAW).astype(jnp.bfloat16)
    # Build the rows directly at lane-aligned K_PAD width (single fused copy,
    # no unaligned intermediate followed by a second pad pass).
    buf = jnp.zeros((N * PATCH_ROWS, K_PAD), jnp.bfloat16)
    return buf.at[:, :K_RAW].set(rows)


def partial_inception_network(x, w):
    assert x.shape[1:] == (C_IN, IMG, IMG), (
        f"Expected input shape (N, 3, 299, 299) but got {x.shape}")
    assert w.shape == (K_PAD, C_OUT), w.shape
    N = x.shape[0]
    x = x.astype(jnp.float32) * 2.0 - 1.0        # fid_score.py: scale to [-1, 1]
    patches = _extract_patches(x)                # (N*64, K_PAD) bf16
    w = w.astype(jnp.bfloat16)
    pooled = _fused_matmul_pool(patches, w, N)   # (N, 1, 2048) f32
    return pooled.reshape(N, C_OUT)              # == adaptive_avg_pool2d + view


if __name__ == "__main__":
    key = jax.random.PRNGKey(0)
    kx, kw = jax.random.split(key)
    # Deterministic synthetic weights for the feature-extractor stand-in,
    # stored in bf16 with the padded rows explicitly zeroed.
    w = jax.random.normal(kw, (K_PAD, C_OUT), dtype=jnp.float32) * 0.02
    w = w.at[K_RAW:, :].set(0.0).astype(jnp.bfloat16)
    x = jax.random.normal(kx, (2, C_IN, IMG, IMG), dtype=jnp.float32)

    out = jax.jit(partial_inception_network)(x, w)
    out = jax.block_until_ready(out)

    assert out.shape == (2, C_OUT), out.shape
    assert out.dtype == jnp.float32

    # Pure-JAX reference on the same bf16-valued operands (f32 accumulate).
    xs = x.astype(jnp.float32) * 2.0 - 1.0
    p_ref = _extract_patches(xs).astype(jnp.float32)
    feats = jnp.matmul(p_ref, w.astype(jnp.float32),
                       precision=jax.lax.Precision.HIGHEST)
    ref = feats.reshape(2, PATCH_ROWS, C_OUT).mean(axis=1)
    assert bool(jnp.allclose(out, ref, rtol=1e-2, atol=1e-2)), (
        float(jnp.max(jnp.abs(out - ref))))

    print("KERNEL_OK")
</pallas_src>

<mosaic_0001>
module attributes {stable_mosaic.version = 11 : i64} {
  func.func @_fused_matmul_pool_kernel(%arg0: i32, %arg1: i32, %arg2: memref<64x4224xbf16, #tpu.memory_space<vmem>>, %arg3: memref<4224x256xbf16, #tpu.memory_space<vmem>>, %arg4: memref<1x1x256xf32, #tpu.memory_space<vmem>>) attributes {dimension_semantics = [#tpu.dimension_semantics<parallel>, #tpu.dimension_semantics<parallel>], iteration_bounds = array<i64: 8, 2>, scalar_prefetch = 0 : i64, scratch_operands = 0 : i64, tpu.core_type = #tpu.core_type<tc>, window_params = [{transform_indices = @transform_0, window_bounds = array<i64: 64, 4224>}, {transform_indices = @transform_1, window_bounds = array<i64: 4224, 256>}, {transform_indices = @transform_2, window_bounds = array<i64: 1, 1, 256>}]} {
    %c0 = arith.constant 0 : index
    %c0_0 = arith.constant 0 : index
    %0 = vector.load %arg2[%c0, %c0_0] : memref<64x4224xbf16, #tpu.memory_space<vmem>>, vector<64x4224xbf16>
    %c0_1 = arith.constant 0 : index
    %c0_2 = arith.constant 0 : index
    %1 = vector.load %arg3[%c0_1, %c0_2] : memref<4224x256xbf16, #tpu.memory_space<vmem>>, vector<4224x256xbf16>
    %cst = arith.constant dense<0.000000e+00> : vector<64x256xf32>
    %2 = tpu.matmul %0, %1, %cst {dimension_numbers = #tpu.dot_dimension_numbers<[1], [0], [0], [1], [0, 0, 1, 1], [], []>} : vector<64x4224xbf16>, vector<4224x256xbf16>, vector<64x256xf32> -> vector<64x256xf32>
    %cst_3 = arith.constant dense<0.000000e+00> : vector<256xf32>
    %3 = vector.multi_reduction <add>, %2, %cst_3 [0] : vector<64x256xf32> to vector<256xf32>
    %4 = vector.shape_cast %3 : vector<256xf32> to vector<1x256xf32>
    %cst_4 = arith.constant 1.562500e-02 : f32
    %5 = vector.broadcast %cst_4 : f32 to vector<1x256xf32>
    %6 = arith.mulf %4, %5 : vector<1x256xf32>
    %7 = vector.shape_cast %6 : vector<1x256xf32> to vector<1x1x256xf32>
    %c0_5 = arith.constant 0 : index
    %c0_6 = arith.constant 0 : index
    %c0_7 = arith.constant 0 : index
    %8 = vector.load %arg4[%c0_5, %c0_6, %c0_7] : memref<1x1x256xf32, #tpu.memory_space<vmem>>, vector<1x1x256xf32>
    tpu.vector_store %arg4[%c0_5, %c0_6, %c0_7], %7 {strides = array<i32>} : memref<1x1x256xf32, #tpu.memory_space<vmem>>, vector<1x1x256xf32>,
    return
  }
  func.func @transform_0(%arg0: i32, %arg1: i32) -> (i32, i32) {
    %c0_i32 = arith.constant 0 : i32
    %c0_i32_0 = arith.constant 0 : i32
    return %arg1, %c0_i32 : i32, i32
  }
  func.func @transform_1(%arg0: i32, %arg1: i32) -> (i32, i32) {
    %c0_i32 = arith.constant 0 : i32
    %c0_i32_0 = arith.constant 0 : i32
    return %c0_i32, %arg0 : i32, i32
  }
  func.func @transform_2(%arg0: i32, %arg1: i32) -> (i32, i32, i32) {
    %c0_i32 = arith.constant 0 : i32
    %c0_i32_0 = arith.constant 0 : i32
    return %arg1, %c0_i32, %arg0 : i32, i32, i32
  }
}

</mosaic_0001>

<llo_original>
// kernel: partial_inception_network.1
$region0: #{partial_inception_network.1}
  #allocation0 [shape = 'u32[]', space=smem, size = 0x4, offset = 0x4, fixed_abs, tag = 'smem constant byte address 0x4 - core index']
  #allocation1 [shape = 'u32[144,128]{1,0:T(1,128)}', space=vmem, size = 0x12000, scoped, tag = 'internal scratch']
  %s0 = inlined_call_operand.vmem [shape: bf16[128,4224], index: 0, kind: input, shape index: {}]
  %s1 = inlined_call_operand.vmem [shape: bf16[4224,2048], index: 1, kind: input, shape index: {}]
  %s2 = inlined_call_operand.vmem [shape: f32[2,1,2048], index: 2, kind: output, shape index: {}]
  %s3 = sld [smem:[#allocation0]]
  $region93: #{partial_inception_network.1} parent=0
    _
  %s5 = ssub.s32 1, %s3
  %s6 = scalar_select 0, %s5, %s3
  $region1: #{partial_inception_network.1} parent=0
    #allocation2 [shape = 'u8[4325376]{0}', space=vmem, size = 0x420000, scoped, tag = 'input window, operand 1']
    loop: start=0, step=1, limit=18
    $region2: #{partial_inception_network.1} parent=1 // loop_pre_header
      _
    $region3: #{partial_inception_network.1} parent=1 // loop_header
      %s8 = sphi 0, %s12
      %p9 = scmp.ge.s32.totalorder %s8, 18
      %s15 = sphi 0, %s27
      %s16 = sphi 0, %s23
      %s17 = sphi 0, %s15
      %s18 = sphi 0, %s16
      %s19 = sphi 0, %s17
      %s20 = sphi 0, %s18
      %s30 = sphi 0, %s32
      %s33 = sphi 0, %s30
      %s34 = sphi 0, %s33
      %s50 = sphi 0, %s34
      %s56 = sphi 0, %s58
      %s59 = sphi 0, %s56
      %s60 = sphi 0, %s59
      %s76 = sphi 0, %s60
      %s84 = sphi 0, %s86
      %s87 = sphi 0, %s84
      %s88 = sphi 0, %s87
      %s104 = sphi 0, %s88
    $region4: #{partial_inception_network.1} parent=1 // loop_header_branch
      %11 = sbr.rel (%p9) target = $region8
    $region5: #{partial_inception_network.1} parent=1 // loop_body
      %s13 = ssub.s32 %s8, 1
      %s14 = ssub.s32 %s8, 2
      %s21 = sadd.s32 1, %s16
      %p22 = scmp.ge.s32.totalorder %s21, 2
      %s23 = scalar_select %p22, 0, %s21
      %s24 = sadd.s32 1, %s15
      %s25 = scalar_select %p22, %s24, %s15
      %p26 = scmp.ge.s32.totalorder %s25, 8
      %s27 = scalar_select %p26, 0, %s25
      %s28 = ssub.s32 %s16, %s23
      %p29 = scmp.eq.s32.totalorder %s28, 0
      %s31 = sadd.s32 %s30, 1
      %s32 = scalar_select %p29, %s30, %s31
      %p35 = pneg %p29
      %p36 = scmp.eq.s32.totalorder %s8, 15
      %p37 = por %p35, %p36
      %p38 = scmp.ne.s32.totalorder %s30, %s33
      %p39 = scmp.eq.s32.totalorder %s8, 0
      %p40 = por %p38, %p39
      %p41 = scmp.ne.s32.totalorder %s30, %s33
      %p42 = scmp.eq.s32.totalorder %s13, 15
      %p43 = por %p41, %p42
      %p44 = scmp.ne.s32.totalorder %s33, %s34
      %p45 = scmp.eq.s32.totalorder %s13, 0
      %p46 = por %p44, %p45
      %p47 = scmp.ne.s32.totalorder %s33, %s34
      %p48 = scmp.eq.s32.totalorder %s14, 15
      %p49 = por %p47, %p48
      %p51 = scmp.ne.s32.totalorder %s34, %s50
      %p52 = scmp.eq.s32.totalorder %s14, 0
      %p53 = por %p51, %p52
      %s54 = ssub.s32 %s15, %s27
      %p55 = scmp.eq.s32.totalorder %s54, 0
      %s57 = sadd.s32 %s56, 1
      %s58 = scalar_select %p55, %s56, %s57
      %p61 = pneg %p55
      %p62 = scmp.eq.s32.totalorder %s8, 15
      %p63 = por %p61, %p62
      %p64 = scmp.ne.s32.totalorder %s56, %s59
      %p65 = scmp.eq.s32.totalorder %s8, 0
      %p66 = por %p64, %p65
      %p67 = scmp.ne.s32.totalorder %s56, %s59
      %p68 = scmp.eq.s32.totalorder %s13, 15
      %p69 = por %p67, %p68
      %p70 = scmp.ne.s32.totalorder %s59, %s60
      %p71 = scmp.eq.s32.totalorder %s13, 0
      %p72 = por %p70, %p71
      %p73 = scmp.ne.s32.totalorder %s59, %s60
      %p74 = scmp.eq.s32.totalorder %s14, 15
      %p75 = por %p73, %p74
      %p77 = scmp.ne.s32.totalorder %s60, %s76
      %p78 = scmp.eq.s32.totalorder %s14, 0
      %p79 = por %p77, %p78
      %s80 = ssub.s32 %s16, %s23
      %s81 = ssub.s32 %s15, %s27
      %s82 = sor.u32 %s80, %s81
      %p83 = scmp.eq.s32.totalorder %s82, 0
      %s85 = sadd.s32 %s84, 1
      %s86 = scalar_select %p83, %s84, %s85
      %p89 = pneg %p83
      %p90 = scmp.eq.s32.totalorder %s8, 15
      %p91 = por %p89, %p90
      %p92 = scmp.ne.s32.totalorder %s84, %s87
      %p93 = scmp.eq.s32.totalorder %s8, 0
      %p94 = por %p92, %p93
      %p95 = scmp.ne.s32.totalorder %s84, %s87
      %p96 = scmp.eq.s32.totalorder %s13, 15
      %p97 = por %p95, %p96
      %p98 = scmp.ne.s32.totalorder %s87, %s88
      %p99 = scmp.eq.s32.totalorder %s13, 0
      %p100 = por %p98, %p99
      %p101 = scmp.ne.s32.totalorder %s87, %s88
      %p102 = scmp.eq.s32.totalorder %s14, 15
      %p103 = por %p101, %p102
      %p105 = scmp.ne.s32.totalorder %s88, %s104
      %p106 = scmp.eq.s32.totalorder %s14, 0
      %p107 = por %p105, %p106
      %p108 = scmp.le.s32.totalorder 1, %s8
      %p109 = scmp.lt.s32.totalorder %s8, 17
      %p110 = pnand %p108, %p109
      %p111 = pneg %p110
      // Predicated region
      $region9: #{partial_inception_network.1} parent=5 // pred_check
        _
      $region10: #{partial_inception_network.1} parent=5 // pred_check_branch
        %113 = sbr.rel (%p110) target = $region12
      $region11: #{partial_inception_network.1} parent=5 // pred_region
        %s114 = ssub.s32 %s8, 1
      $region12: #{partial_inception_network.1} parent=5 // pred_fallthru
        _
      %p115 = scmp.lt.s32.totalorder %s8, 16
      // Predicated region
      $region13: #{partial_inception_network.1} parent=5 // pred_check
        %p116 = pneg %p115
      $region14: #{partial_inception_network.1} parent=5 // pred_check_branch
        %118 = sbr.rel (%p116) target = $region16
      $region15: #{partial_inception_network.1} parent=5 // pred_region
        // Predicated region
        $region17: #{partial_inception_network.1} parent=15 // pred_check
          %p119 = pneg %p40
        $region18: #{partial_inception_network.1} parent=15 // pred_check_branch
          %121 = sbr.rel (%p119) target = $region20
        $region19: #{partial_inception_network.1} parent=15 // pred_region
          %s122 = smul.u32 8, %s16
          %p123 = scmp.lt.s32.totalorder %s122, 15
          %s124 = scalar_select %p123, %s122, 15
          %s125 = smul.addr %s124, 33
          %s126 = smul.addr %s125, 4
          %s127 = scalar_lea.vmem %s0, %s126
          %s128 = smul.u32 8, %s16
        $region20: #{partial_inception_network.1} parent=15 // pred_fallthru
          _
        // Predicated region
        $region21: #{partial_inception_network.1} parent=15 // pred_check
          %p129 = pneg %p66
        $region22: #{partial_inception_network.1} parent=15 // pred_check_branch
          %131 = sbr.rel (%p129) target = $region24
        $region23: #{partial_inception_network.1} parent=15 // pred_region
          %s132 = sand.u32 %s56, 1
          %s133 = sand.u32 %s56, 1
          %s134 = smul.addr %s133, 4224
          %s135 = scalar_lea.vmem [#allocation2], %s134
          %s136 = smul.u32 2, %s15
          %s137 = smul.addr %s136, 4
          %s138 = scalar_lea.vmem %s1, %s137
          // Predicated region
          $region25: #{partial_inception_network.1} parent=23 // pred_check
            _
          $region26: #{partial_inception_network.1} parent=23 // pred_check_branch
            %140 = sbr.rel (0) target = $region28
          $region27: #{partial_inception_network.1} parent=23 // pred_region
            // Predicated region
            $region29: #{partial_inception_network.1} parent=27 // pred_check
              _
            $region30: #{partial_inception_network.1} parent=27 // pred_check_branch
              %142 = sbr.rel (0) target = $region32
            $region31: #{partial_inception_network.1} parent=27 // pred_region
              // Predicated region
              $region44: #{partial_inception_network.1} parent=31 // pred_check
                _
              $region45: #{partial_inception_network.1} parent=31 // pred_check_branch
                %1211 = sbr.rel (0) target = $region47
              $region46: #{partial_inception_network.1} parent=31 // pred_region
                loop: start=0, step=1, limit=1
                $region48: #{partial_inception_network.1} parent=46 // loop_pre_header
                  _
                $region49: #{partial_inception_network.1} parent=46 // loop_header
                  %s1215 = sphi 0, %s1219
                  %p1216 = scmp.ge.s32.totalorder %s1215, 1
                  %s1220 = sphi 0, %s2281
                  %s1221 = sphi %s138, %s2284
                  %s1222 = sphi %s135, %s2285
                $region50: #{partial_inception_network.1} parent=46 // loop_header_branch
                  %1218 = sbr.rel (%p1216) target = $region54
                $region51: #{partial_inception_network.1} parent=46 // loop_body
                  %v1223 = vld [vmem:[%s1221] sm:$0xff]
                  %1224 = vst [vmem:[%s1222] sm:$0xff] %v1223
                  %v1225 = vld [vmem:[%s1221 + $0x40] sm:$0xff]
                  %1226 = vst [vmem:[%s1222 + $0x8] sm:$0xff] %v1225
                  %v1227 = vld [vmem:[%s1221 + $0x80] sm:$0xff]
                  %1228 = vst [vmem:[%s1222 + $0x10] sm:$0xff] %v1227
                  %v1229 = vld [vmem:[%s1221 + $0xc0] sm:$0xff]
                  %1230 = vst [vmem:[%s1222 + $0x18] sm:$0xff] %v1229
                  %v1231 = vld [vmem:[%s1221 + $0x100] sm:$0xff]
                  %1232 = vst [vmem:[%s1222 + $0x20] sm:$0xff] %v1231
                  %v1233 = vld [vmem:[%s1221 + $0x140] sm:$0xff]
                  %1234 = vst [vmem:[%s1222 + $0x28] sm:$0xff] %v1233
                  %v1235 = vld [vmem:[%s1221 + $0x180] sm:$0xff]
                  %1236 = vst [vmem:[%s1222 + $0x30] sm:$0xff] %v1235
                  %v1237 = vld [vmem:[%s1221 + $0x1c0] sm:$0xff]
                  %1238 = vst [vmem:[%s1222 + $0x38] sm:$0xff] %v1237
                  %v1239 = vld [vmem:[%s1221 + $0x200] sm:$0xff]
                  %1240 = vst [vmem:[%s1222 + $0x40] sm:$0xff] %v1239
                  %v1241 = vld [vmem:[%s1221 + $0x240] sm:$0xff]
                  %1242 = vst [vmem:[%s1222 + $0x48] sm:$0xff] %v1241
                  %v1243 = vld [vmem:[%s1221 + $0x280] sm:$0xff]
                  %1244 = vst [vmem:[%s1222 + $0x50] sm:$0xff] %v1243
                  %v1245 = vld [vmem:[%s1221 + $0x2c0] sm:$0xff]
                  %1246 = vst [vmem:[%s1222 + $0x58] sm:$0xff] %v1245
                  %v1247 = vld [vmem:[%s1221 + $0x300] sm:$0xff]
                  %1248 = vst [vmem:[%s1222 + $0x60] sm:$0xff] %v1247
                  %v1249 = vld [vmem:[%s1221 + $0x340] sm:$0xff]
                  %1250 = vst [vmem:[%s1222 + $0x68] sm:$0xff] %v1249
                  %v1251 = vld [vmem:[%s1221 + $0x380] sm:$0xff]
                  %1252 = vst [vmem:[%s1222 + $0x70] sm:$0xff] %v1251
                  %v1253 = vld [vmem:[%s1221 + $0x3c0] sm:$0xff]
                  %1254 = vst [vmem:[%s1222 + $0x78] sm:$0xff] %v1253
                  %v1255 = vld [vmem:[%s1221 + $0x400] sm:$0xff]
                  %1256 = vst [vmem:[%s1222 + $0x80] sm:$0xff] %v1255
                  %v1257 = vld [vmem:[%s1221 + $0x440] sm:$0xff]
                  %1258 = vst [vmem:[%s1222 + $0x88] sm:$0xff] %v1257
                  %v1259 = vld [vmem:[%s1221 + $0x480] sm:$0xff]
                  %1260 = vst [vmem:[%s1222 + $0x90] sm:$0xff] %v1259
                  %v1261 = vld [vmem:[%s1221 + $0x4c0] sm:$0xff]
                  %1262 = vst [vmem:[%s1222 + $0x98] sm:$0xff] %v1261
                  %v1263 = vld [vmem:[%s1221 + $0x500] sm:$0xff]
                  %1264 = vst [vmem:[%s1222 + $0xa0] sm:$0xff] %v1263
                  %v1265 = vld [vmem:[%s1221 + $0x540] sm:$0xff]
                  %1266 = vst [vmem:[%s1222 + $0xa8] sm:$0xff] %v1265
                  %v1267 = vld [vmem:[%s1221 + $0x580] sm:$0xff]
                  %1268 = vst [vmem:[%s1222 + $0xb0] sm:$0xff] %v1267
                  %v1269 = vld [vmem:[%s1221 + $0x5c0] sm:$0xff]
                  %1270 = vst [vmem:[%s1222 + $0xb8] sm:$0xff] %v1269
                  %v1271 = vld [vmem:[%s1221 + $0x600] sm:$0xff]
                  %1272 = vst [vmem:[%s1222 + $0xc0] sm:$0xff] %v1271
                  %v1273 = vld [vmem:[%s1221 + $0x640] sm:$0xff]
                  %1274 = vst [vmem:[%s1222 + $0xc8] sm:$0xff] %v1273
                  %v1275 = vld [vmem:[%s1221 + $0x680] sm:$0xff]
                  %1276 = vst [vmem:[%s1222 + $0xd0] sm:$0xff] %v1275
                  %v1277 = vld [vmem:[%s1221 + $0x6c0] sm:$0xff]
                  %1278 = vst [vmem:[%s1222 + $0xd8] sm:$0xff] %v1277
                  %v1279 = vld [vmem:[%s1221 + $0x700] sm:$0xff]
                  %1280 = vst [vmem:[%s1222 + $0xe0] sm:$0xff] %v1279
                  %v1281 = vld [vmem:[%s1221 + $0x740] sm:$0xff]
                  %1282 = vst [vmem:[%s1222 + $0xe8] sm:$0xff] %v1281
                  %v1283 = vld [vmem:[%s1221 + $0x780] sm:$0xff]
                  %1284 = vst [vmem:[%s1222 + $0xf0] sm:$0xff] %v1283
                  %v1285 = vld [vmem:[%s1221 + $0x7c0] sm:$0xff]
                  %1286 = vst [vmem:[%s1222 + $0xf8] sm:$0xff] %v1285
                  %v1287 = vld [vmem:[%s1221 + $0x800] sm:$0xff]
                  %1288 = vst [vmem:[%s1222 + $0x100] sm:$0xff] %v1287
                  %v1289 = vld [vmem:[%s1221 + $0x840] sm:$0xff]
                  %1290 = vst [vmem:[%s1222 + $0x108] sm:$0xff] %v1289
                  %v1291 = vld [vmem:[%s1221 + $0x880] sm:$0xff]
                  %1292 = vst [vmem:[%s1222 + $0x110] sm:$0xff] %v1291
                  %v1293 = vld [vmem:[%s1221 + $0x8c0] sm:$0xff]
                  %1294 = vst [vmem:[%s1222 + $0x118] sm:$0xff] %v1293
                  %v1295 = vld [vmem:[%s1221 + $0x900] sm:$0xff]
                  %1296 = vst [vmem:[%s1222 + $0x120] sm:$0xff] %v1295
                  %v1297 = vld [vmem:[%s1221 + $0x940] sm:$0xff]
                  %1298 = vst [vmem:[%s1222 + $0x128] sm:$0xff] %v1297
                  %v1299 = vld [vmem:[%s1221 + $0x980] sm:$0xff]
                  %1300 = vst [vmem:[%s1222 + $0x130] sm:$0xff] %v1299
                  %v1301 = vld [vmem:[%s1221 + $0x9c0] sm:$0xff]
                  %1302 = vst [vmem:[%s1222 + $0x138] sm:$0xff] %v1301
                  %v1303 = vld [vmem:[%s1221 + $0xa00] sm:$0xff]
                  %1304 = vst [vmem:[%s1222 + $0x140] sm:$0xff] %v1303
                  %v1305 = vld [vmem:[%s1221 + $0xa40] sm:$0xff]
                  %1306 = vst [vmem:[%s1222 + $0x148] sm:$0xff] %v1305
                  %v1307 = vld [vmem:[%s1221 + $0xa80] sm:$0xff]
                  %1308 = vst [vmem:[%s1222 + $0x150] sm:$0xff] %v1307
                  %v1309 = vld [vmem:[%s1221 + $0xac0] sm:$0xff]
                  %1310 = vst [vmem:[%s1222 + $0x158] sm:$0xff] %v1309
                  %v1311 = vld [vmem:[%s1221 + $0xb00] sm:$0xff]
                  %1312 = vst [vmem:[%s1222 + $0x160] sm:$0xff] %v1311
                  %v1313 = vld [vmem:[%s1221 + $0xb40] sm:$0xff]
                  %1314 = vst [vmem:[%s1222 + $0x168] sm:$0xff] %v1313
                  %v1315 = vld [vmem:[%s1221 + $0xb80] sm:$0xff]
                  %1316 = vst [vmem:[%s1222 + $0x170] sm:$0xff] %v1315
                  %v1317 = vld [vmem:[%s1221 + $0xbc0] sm:$0xff]
                  %1318 = vst [vmem:[%s1222 + $0x178] sm:$0xff] %v1317
                  %v1319 = vld [vmem:[%s1221 + $0xc00] sm:$0xff]
                  %1320 = vst [vmem:[%s1222 + $0x180] sm:$0xff] %v1319
                  %v1321 = vld [vmem:[%s1221 + $0xc40] sm:$0xff]
                  %1322 = vst [vmem:[%s1222 + $0x188] sm:$0xff] %v1321
                  %v1323 = vld [vmem:[%s1221 + $0xc80] sm:$0xff]
                  %1324 = vst [vmem:[%s1222 + $0x190] sm:$0xff] %v1323
                  %v1325 = vld [vmem:[%s1221 + $0xcc0] sm:$0xff]
                  %1326 = vst [vmem:[%s1222 + $0x198] sm:$0xff] %v1325
                  %v1327 = vld [vmem:[%s1221 + $0xd00] sm:$0xff]
                  %1328 = vst [vmem:[%s1222 + $0x1a0] sm:$0xff] %v1327
                  %v1329 = vld [vmem:[%s1221 + $0xd40] sm:$0xff]
                  %1330 = vst [vmem:[%s1222 + $0x1a8] sm:$0xff] %v1329
                  %v1331 = vld [vmem:[%s1221 + $0xd80] sm:$0xff]
                  %1332 = vst [vmem:[%s1222 + $0x1b0] sm:$0xff] %v1331
                  %v1333 = vld [vmem:[%s1221 + $0xdc0] sm:$0xff]
                  %1334 = vst [vmem:[%s1222 + $0x1b8] sm:$0xff] %v1333
                  %v1335 = vld [vmem:[%s1221 + $0xe00] sm:$0xff]
                  %1336 = vst [vmem:[%s1222 + $0x1c0] sm:$0xff] %v1335
                  %v1337 = vld [vmem:[%s1221 + $0xe40] sm:$0xff]
                  %1338 = vst [vmem:[%s1222 + $0x1c8] sm:$0xff] %v1337
                  %v1339 = vld [vmem:[%s1221 + $0xe80] sm:$0xff]
                  %1340 = vst [vmem:[%s1222 + $0x1d0] sm:$0xff] %v1339
                  %v1341 = vld [vmem:[%s1221 + $0xec0] sm:$0xff]
                  %1342 = vst [vmem:[%s1222 + $0x1d8] sm:$0xff] %v1341
                  %v1343 = vld [vmem:[%s1221 + $0xf00] sm:$0xff]
                  %1344 = vst [vmem:[%s1222 + $0x1e0] sm:$0xff] %v1343
                  %v1345 = vld [vmem:[%s1221 + $0xf40] sm:$0xff]
                  %1346 = vst [vmem:[%s1222 + $0x1e8] sm:$0xff] %v1345
                  %v1347 = vld [vmem:[%s1221 + $0xf80] sm:$0xff]
                  %1348 = vst [vmem:[%s1222 + $0x1f0] sm:$0xff] %v1347
                  %v1349 = vld [vmem:[%s1221 + $0xfc0] sm:$0xff]
                  %1350 = vst [vmem:[%s1222 + $0x1f8] sm:$0xff] %v1349
                  %v1351 = vld [vmem:[%s1221 + $0x1000] sm:$0xff]
                  %1352 = vst [vmem:[%s1222 + $0x200] sm:$0xff] %v1351
                  %v1353 = vld [vmem:[%s1221 + $0x1040] sm:$0xff]
                  %1354 = vst [vmem:[%s1222 + $0x208] sm:$0xff] %v1353
                  %v1355 = vld [vmem:[%s1221 + $0x1080] sm:$0xff]
                  %1356 = vst [vmem:[%s1222 + $0x210] sm:$0xff] %v1355
                  %v1357 = vld [vmem:[%s1221 + $0x10c0] sm:$0xff]
                  %1358 = vst [vmem:[%s1222 + $0x218] sm:$0xff] %v1357
                  %v1359 = vld [vmem:[%s1221 + $0x1100] sm:$0xff]
                  %1360 = vst [vmem:[%s1222 + $0x220] sm:$0xff] %v1359
                  %v1361 = vld [vmem:[%s1221 + $0x1140] sm:$0xff]
                  %1362 = vst [vmem:[%s1222 + $0x228] sm:$0xff] %v1361
                  %v1363 = vld [vmem:[%s1221 + $0x1180] sm:$0xff]
                  %1364 = vst [vmem:[%s1222 + $0x230] sm:$0xff] %v1363
                  %v1365 = vld [vmem:[%s1221 + $0x11c0] sm:$0xff]
                  %1366 = vst [vmem:[%s1222 + $0x238] sm:$0xff] %v1365
                  %v1367 = vld [vmem:[%s1221 + $0x1200] sm:$0xff]
                  %1368 = vst [vmem:[%s1222 + $0x240] sm:$0xff] %v1367
                  %v1369 = vld [vmem:[%s1221 + $0x1240] sm:$0xff]
                  %1370 = vst [vmem:[%s1222 + $0x248] sm:$0xff] %v1369
                  %v1371 = vld [vmem:[%s1221 + $0x1280] sm:$0xff]
                  %1372 = vst [vmem:[%s1222 + $0x250] sm:$0xff] %v1371
                  %v1373 = vld [vmem:[%s1221 + $0x12c0] sm:$0xff]
                  %1374 = vst [vmem:[%s1222 + $0x258] sm:$0xff] %v1373
                  %v1375 = vld [vmem:[%s1221 + $0x1300] sm:$0xff]
                  %1376 = vst [vmem:[%s1222 + $0x260] sm:$0xff] %v1375
                  %v1377 = vld [vmem:[%s1221 + $0x1340] sm:$0xff]
                  %1378 = vst [vmem:[%s1222 + $0x268] sm:$0xff] %v1377
                  %v1379 = vld [vmem:[%s1221 + $0x1380] sm:$0xff]
                  %1380 = vst [vmem:[%s1222 + $0x270] sm:$0xff] %v1379
                  %v1381 = vld [vmem:[%s1221 + $0x13c0] sm:$0xff]
                  %1382 = vst [vmem:[%s1222 + $0x278] sm:$0xff] %v1381
                  %v1383 = vld [vmem:[%s1221 + $0x1400] sm:$0xff]
                  %1384 = vst [vmem:[%s1222 + $0x280] sm:$0xff] %v1383
                  %v1385 = vld [vmem:[%s1221 + $0x1440] sm:$0xff]
                  %1386 = vst [vmem:[%s1222 + $0x288] sm:$0xff] %v1385
                  %v1387 = vld [vmem:[%s1221 + $0x1480] sm:$0xff]
                  %1388 = vst [vmem:[%s1222 + $0x290] sm:$0xff] %v1387
                  %v1389 = vld [vmem:[%s1221 + $0x14c0] sm:$0xff]
                  %1390 = vst [vmem:[%s1222 + $0x298] sm:$0xff] %v1389
                  %v1391 = vld [vmem:[%s1221 + $0x1500] sm:$0xff]
                  %1392 = vst [vmem:[%s1222 + $0x2a0] sm:$0xff] %v1391
                  %v1393 = vld [vmem:[%s1221 + $0x1540] sm:$0xff]
                  %1394 = vst [vmem:[%s1222 + $0x2a8] sm:$0xff] %v1393
                  %v1395 = vld [vmem:[%s1221 + $0x1580] sm:$0xff]
                  %1396 = vst [vmem:[%s1222 + $0x2b0] sm:$0xff] %v1395
                  %v1397 = vld [vmem:[%s1221 + $0x15c0] sm:$0xff]
                  %1398 = vst [vmem:[%s1222 + $0x2b8] sm:$0xff] %v1397
                  %v1399 = vld [vmem:[%s1221 + $0x1600] sm:$0xff]
                  %1400 = vst [vmem:[%s1222 + $0x2c0] sm:$0xff] %v1399
                  %v1401 = vld [vmem:[%s1221 + $0x1640] sm:$0xff]
                  %1402 = vst [vmem:[%s1222 + $0x2c8] sm:$0xff] %v1401
                  %v1403 = vld [vmem:[%s1221 + $0x1680] sm:$0xff]
                  %1404 = vst [vmem:[%s1222 + $0x2d0] sm:$0xff] %v1403
                  %v1405 = vld [vmem:[%s1221 + $0x16c0] sm:$0xff]
                  %1406 = vst [vmem:[%s1222 + $0x2d8] sm:$0xff] %v1405
                  %v1407 = vld [vmem:[%s1221 + $0x1700] sm:$0xff]
                  %1408 = vst [vmem:[%s1222 + $0x2e0] sm:$0xff] %v1407
                  %v1409 = vld [vmem:[%s1221 + $0x1740] sm:$0xff]
                  %1410 = vst [vmem:[%s1222 + $0x2e8] sm:$0xff] %v1409
                  %v1411 = vld [vmem:[%s1221 + $0x1780] sm:$0xff]
                  %1412 = vst [vmem:[%s1222 + $0x2f0] sm:$0xff] %v1411
                  %v1413 = vld [vmem:[%s1221 + $0x17c0] sm:$0xff]
                  %1414 = vst [vmem:[%s1222 + $0x2f8] sm:$0xff] %v1413
                  %v1415 = vld [vmem:[%s1221 + $0x1800] sm:$0xff]
                  %1416 = vst [vmem:[%s1222 + $0x300] sm:$0xff] %v1415
                  %v1417 = vld [vmem:[%s1221 + $0x1840] sm:$0xff]
                  %1418 = vst [vmem:[%s1222 + $0x308] sm:$0xff] %v1417
                  %v1419 = vld [vmem:[%s1221 + $0x1880] sm:$0xff]
                  %1420 = vst [vmem:[%s1222 + $0x310] sm:$0xff] %v1419
                  %v1421 = vld [vmem:[%s1221 + $0x18c0] sm:$0xff]
                  %1422 = vst [vmem:[%s1222 + $0x318] sm:$0xff] %v1421
                  %v1423 = vld [vmem:[%s1221 + $0x1900] sm:$0xff]
                  %1424 = vst [vmem:[%s1222 + $0x320] sm:$0xff] %v1423
                  %v1425 = vld [vmem:[%s1221 + $0x1940] sm:$0xff]
                  %1426 = vst [vmem:[%s1222 + $0x328] sm:$0xff] %v1425
                  %v1427 = vld [vmem:[%s1221 + $0x1980] sm:$0xff]
                  %1428 = vst [vmem:[%s1222 + $0x330] sm:$0xff] %v1427
                  %v1429 = vld [vmem:[%s1221 + $0x19c0] sm:$0xff]
                  %1430 = vst [vmem:[%s1222 + $0x338] sm:$0xff] %v1429
                  %v1431 = vld [vmem:[%s1221 + $0x1a00] sm:$0xff]
                  %1432 = vst [vmem:[%s1222 + $0x340] sm:$0xff] %v1431
                  %v1433 = vld [vmem:[%s1221 + $0x1a40] sm:$0xff]
                  %1434 = vst [vmem:[%s1222 + $0x348] sm:$0xff] %v1433
                  %v1435 = vld [vmem:[%s1221 + $0x1a80] sm:$0xff]
                  %1436 = vst [vmem:[%s1222 + $0x350] sm:$0xff] %v1435
                  %v1437 = vld [vmem:[%s1221 + $0x1ac0] sm:$0xff]
                  %1438 = vst [vmem:[%s1222 + $0x358] sm:$0xff] %v1437
                  %v1439 = vld [vmem:[%s1221 + $0x1b00] sm:$0xff]
                  %1440 = vst [vmem:[%s1222 + $0x360] sm:$0xff] %v1439
                  %v1441 = vld [vmem:[%s1221 + $0x1b40] sm:$0xff]
                  %1442 = vst [vmem:[%s1222 + $0x368] sm:$0xff] %v1441
                  %v1443 = vld [vmem:[%s1221 + $0x1b80] sm:$0xff]
                  %1444 = vst [vmem:[%s1222 + $0x370] sm:$0xff] %v1443
                  %v1445 = vld [vmem:[%s1221 + $0x1bc0] sm:$0xff]
                  %1446 = vst [vmem:[%s1222 + $0x378] sm:$0xff] %v1445
                  %v1447 = vld [vmem:[%s1221 + $0x1c00] sm:$0xff]
                  %1448 = vst [vmem:[%s1222 + $0x380] sm:$0xff] %v1447
                  %v1449 = vld [vmem:[%s1221 + $0x1c40] sm:$0xff]
                  %1450 = vst [vmem:[%s1222 + $0x388] sm:$0xff] %v1449
                  %v1451 = vld [vmem:[%s1221 + $0x1c80] sm:$0xff]
                  %1452 = vst [vmem:[%s1222 + $0x390] sm:$0xff] %v1451
                  %v1453 = vld [vmem:[%s1221 + $0x1cc0] sm:$0xff]
                  %1454 = vst [vmem:[%s1222 + $0x398] sm:$0xff] %v1453
                  %v1455 = vld [vmem:[%s1221 + $0x1d00] sm:$0xff]
                  %1456 = vst [vmem:[%s1222 + $0x3a0] sm:$0xff] %v1455
                  %v1457 = vld [vmem:[%s1221 + $0x1d40] sm:$0xff]
                  %1458 = vst [vmem:[%s1222 + $0x3a8] sm:$0xff] %v1457
                  %v1459 = vld [vmem:[%s1221 + $0x1d80] sm:$0xff]
                  %1460 = vst [vmem:[%s1222 + $0x3b0] sm:$0xff] %v1459
                  %v1461 = vld [vmem:[%s1221 + $0x1dc0] sm:$0xff]
                  %1462 = vst [vmem:[%s1222 + $0x3b8] sm:$0xff] %v1461
                  %v1463 = vld [vmem:[%s1221 + $0x1e00] sm:$0xff]
                  %1464 = vst [vmem:[%s1222 + $0x3c0] sm:$0xff] %v1463
                  %v1465 = vld [vmem:[%s1221 + $0x1e40] sm:$0xff]
                  %1466 = vst [vmem:[%s1222 + $0x3c8] sm:$0xff] %v1465
                  %v1467 = vld [vmem:[%s1221 + $0x1e80] sm:$0xff]
                  %1468 = vst [vmem:[%s1222 + $0x3d0] sm:$0xff] %v1467
                  %v1469 = vld [vmem:[%s1221 + $0x1ec0] sm:$0xff]
                  %1470 = vst [vmem:[%s1222 + $0x3d8] sm:$0xff] %v1469
                  %v1471 = vld [vmem:[%s1221 + $0x1f00] sm:$0xff]
                  %1472 = vst [vmem:[%s1222 + $0x3e0] sm:$0xff] %v1471
                  %v1473 = vld [vmem:[%s1221 + $0x1f40] sm:$0xff]
                  %1474 = vst [vmem:[%s1222 + $0x3e8] sm:$0xff] %v1473
                  %v1475 = vld [vmem:[%s1221 + $0x1f80] sm:$0xff]
                  %1476 = vst [vmem:[%s1222 + $0x3f0] sm:$0xff] %v1475
                  %v1477 = vld [vmem:[%s1221 + $0x1fc0] sm:$0xff]
                  %1478 = vst [vmem:[%s1222 + $0x3f8] sm:$0xff] %v1477
                  %v1479 = vld [vmem:[%s1221 + $0x2000] sm:$0xff]
                  %1480 = vst [vmem:[%s1222 + $0x400] sm:$0xff] %v1479
                  %v1481 = vld [vmem:[%s1221 + $0x2040] sm:$0xff]
                  %1482 = vst [vmem:[%s1222 + $0x408] sm:$0xff] %v1481
                  %v1483 = vld [vmem:[%s1221 + $0x2080] sm:$0xff]
                  %1484 = vst [vmem:[%s1222 + $0x410] sm:$0xff] %v1483
                  %v1485 = vld [vmem:[%s1221 + $0x20c0] sm:$0xff]
                  %1486 = vst [vmem:[%s1222 + $0x418] sm:$0xff] %v1485
                  %v1487 = vld [vmem:[%s1221 + $0x2100] sm:$0xff]
                  %1488 = vst [vmem:[%s1222 + $0x420] sm:$0xff] %v1487
                  %v1489 = vld [vmem:[%s1221 + $0x2140] sm:$0xff]
                  %1490 = vst [vmem:[%s1222 + $0x428] sm:$0xff] %v1489
                  %v1491 = vld [vmem:[%s1221 + $0x2180] sm:$0xff]
                  %1492 = vst [vmem:[%s1222 + $0x430] sm:$0xff] %v1491
                  %v1493 = vld [vmem:[%s1221 + $0x21c0] sm:$0xff]
                  %1494 = vst [vmem:[%s1222 + $0x438] sm:$0xff] %v1493
                  %v1495 = vld [vmem:[%s1221 + $0x2200] sm:$0xff]
                  %1496 = vst [vmem:[%s1222 + $0x440] sm:$0xff] %v1495
                  %v1497 = vld [vmem:[%s1221 + $0x2240] sm:$0xff]
                  %1498 = vst [vmem:[%s1222 + $0x448] sm:$0xff] %v1497
                  %v1499 = vld [vmem:[%s1221 + $0x2280] sm:$0xff]
                  %1500 = vst [vmem:[%s1222 + $0x450] sm:$0xff] %v1499
                  %v1501 = vld [vmem:[%s1221 + $0x22c0] sm:$0xff]
                  %1502 = vst [vmem:[%s1222 + $0x458] sm:$0xff] %v1501
                  %v1503 = vld [vmem:[%s1221 + $0x2300] sm:$0xff]
                  %1504 = vst [vmem:[%s1222 + $0x460] sm:$0xff] %v1503
                  %v1505 = vld [vmem:[%s1221 + $0x2340] sm:$0xff]
                  %1506 = vst [vmem:[%s1222 + $0x468] sm:$0xff] %v1505
                  %v1507 = vld [vmem:[%s1221 + $0x2380] sm:$0xff]
                  %1508 = vst [vmem:[%s1222 + $0x470] sm:$0xff] %v1507
                  %v1509 = vld [vmem:[%s1221 + $0x23c0] sm:$0xff]
                  %1510 = vst [vmem:[%s1222 + $0x478] sm:$0xff] %v1509
                  %v1511 = vld [vmem:[%s1221 + $0x2400] sm:$0xff]
                  %1512 = vst [vmem:[%s1222 + $0x480] sm:$0xff] %v1511
                  %v1513 = vld [vmem:[%s1221 + $0x2440] sm:$0xff]
                  %1514 = vst [vmem:[%s1222 + $0x488] sm:$0xff] %v1513
                  %v1515 = vld [vmem:[%s1221 + $0x2480] sm:$0xff]
                  %1516 = vst [vmem:[%s1222 + $0x490] sm:$0xff] %v1515
                  %v1517 = vld [vmem:[%s1221 + $0x24c0] sm:$0xff]
                  %1518 = vst [vmem:[%s1222 + $0x498] sm:$0xff] %v1517
                  %v1519 = vld [vmem:[%s1221 + $0x2500] sm:$0xff]
                  %1520 = vst [vmem:[%s1222 + $0x4a0] sm:$0xff] %v1519
                  %v1521 = vld [vmem:[%s1221 + $0x2540] sm:$0xff]
                  %1522 = vst [vmem:[%s1222 + $0x4a8] sm:$0xff] %v1521
                  %v1523 = vld [vmem:[%s1221 + $0x2580] sm:$0xff]
                  %1524 = vst [vmem:[%s1222 + $0x4b0] sm:$0xff] %v1523
                  %v1525 = vld [vmem:[%s1221 + $0x25c0] sm:$0xff]
                  %1526 = vst [vmem:[%s1222 + $0x4b8] sm:$0xff] %v1525
                  %v1527 = vld [vmem:[%s1221 + $0x2600] sm:$0xff]
                  %1528 = vst [vmem:[%s1222 + $0x4c0] sm:$0xff] %v1527
                  %v1529 = vld [vmem:[%s1221 + $0x2640] sm:$0xff]
                  %1530 = vst [vmem:[%s1222 + $0x4c8] sm:$0xff] %v1529
                  %v1531 = vld [vmem:[%s1221 + $0x2680] sm:$0xff]
                  %1532 = vst [vmem:[%s1222 + $0x4d0] sm:$0xff] %v1531
                  %v1533 = vld [vmem:[%s1221 + $0x26c0] sm:$0xff]
                  %1534 = vst [vmem:[%s1222 + $0x4d8] sm:$0xff] %v1533
                  %v1535 = vld [vmem:[%s1221 + $0x2700] sm:$0xff]
                  %1536 = vst [vmem:[%s1222 + $0x4e0] sm:$0xff] %v1535
                  %v1537 = vld [vmem:[%s1221 + $0x2740] sm:$0xff]
                  %1538 = vst [vmem:[%s1222 + $0x4e8] sm:$0xff] %v1537
                  %v1539 = vld [vmem:[%s1221 + $0x2780] sm:$0xff]
                  %1540 = vst [vmem:[%s1222 + $0x4f0] sm:$0xff] %v1539
                  %v1541 = vld [vmem:[%s1221 + $0x27c0] sm:$0xff]
                  %1542 = vst [vmem:[%s1222 + $0x4f8] sm:$0xff] %v1541
                  %v1543 = vld [vmem:[%s1221 + $0x2800] sm:$0xff]
                  %1544 = vst [vmem:[%s1222 + $0x500] sm:$0xff] %v1543
                  %v1545 = vld [vmem:[%s1221 + $0x2840] sm:$0xff]
                  %1546 = vst [vmem:[%s1222 + $0x508] sm:$0xff] %v1545
                  %v1547 = vld [vmem:[%s1221 + $0x2880] sm:$0xff]
                  %1548 = vst [vmem:[%s1222 + $0x510] sm:$0xff] %v1547
                  %v1549 = vld [vmem:[%s1221 + $0x28c0] sm:$0xff]
                  %1550 = vst [vmem:[%s1222 + $0x518] sm:$0xff] %v1549
                  %v1551 = vld [vmem:[%s1221 + $0x2900] sm:$0xff]
                  %1552 = vst [vmem:[%s1222 + $0x520] sm:$0xff] %v1551
                  %v1553 = vld [vmem:[%s1221 + $0x2940] sm:$0xff]
                  %1554 = vst [vmem:[%s1222 + $0x528] sm:$0xff] %v1553
                  %v1555 = vld [vmem:[%s1221 + $0x2980] sm:$0xff]
                  %1556 = vst [vmem:[%s1222 + $0x530] sm:$0xff] %v1555
                  %v1557 = vld [vmem:[%s1221 + $0x29c0] sm:$0xff]
                  %1558 = vst [vmem:[%s1222 + $0x538] sm:$0xff] %v1557
                  %v1559 = vld [vmem:[%s1221 + $0x2a00] sm:$0xff]
                  %1560 = vst [vmem:[%s1222 + $0x540] sm:$0xff] %v1559
                  %v1561 = vld [vmem:[%s1221 + $0x2a40] sm:$0xff]
                  %1562 = vst [vmem:[%s1222 + $0x548] sm:$0xff] %v1561
                  %v1563 = vld [vmem:[%s1221 + $0x2a80] sm:$0xff]
                  %1564 = vst [vmem:[%s1222 + $0x550] sm:$0xff] %v1563
                  %v1565 = vld [vmem:[%s1221 + $0x2ac0] sm:$0xff]
                  %1566 = vst [vmem:[%s1222 + $0x558] sm:$0xff] %v1565
                  %v1567 = vld [vmem:[%s1221 + $0x2b00] sm:$0xff]
                  %1568 = vst [vmem:[%s1222 + $0x560] sm:$0xff] %v1567
                  %v1569 = vld [vmem:[%s1221 + $0x2b40] sm:$0xff]
                  %1570 = vst [vmem:[%s1222 + $0x568] sm:$0xff] %v1569
                  %v1571 = vld [vmem:[%s1221 + $0x2b80] sm:$0xff]
                  %1572 = vst [vmem:[%s1222 + $0x570] sm:$0xff] %v1571
                  %v1573 = vld [vmem:[%s1221 + $0x2bc0] sm:$0xff]
                  %1574 = vst [vmem:[%s1222 + $0x578] sm:$0xff] %v1573
                  %v1575 = vld [vmem:[%s1221 + $0x2c00] sm:$0xff]
                  %1576 = vst [vmem:[%s1222 + $0x580] sm:$0xff] %v1575
                  %v1577 = vld [vmem:[%s1221 + $0x2c40] sm:$0xff]
                  %1578 = vst [vmem:[%s1222 + $0x588] sm:$0xff] %v1577
                  %v1579 = vld [vmem:[%s1221 + $0x2c80] sm:$0xff]
                  %1580 = vst [vmem:[%s1222 + $0x590] sm:$0xff] %v1579
                  %v1581 = vld [vmem:[%s1221 + $0x2cc0] sm:$0xff]
                  %1582 = vst [vmem:[%s1222 + $0x598] sm:$0xff] %v1581
                  %v1583 = vld [vmem:[%s1221 + $0x2d00] sm:$0xff]
                  %1584 = vst [vmem:[%s1222 + $0x5a0] sm:$0xff] %v1583
                  %v1585 = vld [vmem:[%s1221 + $0x2d40] sm:$0xff]
                  %1586 = vst [vmem:[%s1222 + $0x5a8] sm:$0xff] %v1585
                  %v1587 = vld [vmem:[%s1221 + $0x2d80] sm:$0xff]
                  %1588 = vst [vmem:[%s1222 + $0x5b0] sm:$0xff] %v1587
                  %v1589 = vld [vmem:[%s1221 + $0x2dc0] sm:$0xff]
                  %1590 = vst [vmem:[%s1222 + $0x5b8] sm:$0xff] %v1589
                  %v1591 = vld [vmem:[%s1221 + $0x2e00] sm:$0xff]
                  %1592 = vst [vmem:[%s1222 + $0x5c0] sm:$0xff] %v1591
                  %v1593 = vld [vmem:[%s1221 + $0x2e40] sm:$0xff]
                  %1594 = vst [vmem:[%s1222 + $0x5c8] sm:$0xff] %v1593
                  %v1595 = vld [vmem:[%s1221 + $0x2e80] sm:$0xff]
                  %1596 = vst [vmem:[%s1222 + $0x5d0] sm:$0xff] %v1595
                  %v1597 = vld [vmem:[%s1221 + $0x2ec0] sm:$0xff]
                  %1598 = vst [vmem:[%s1222 + $0x5d8] sm:$0xff] %v1597
                  %v1599 = vld [vmem:[%s1221 + $0x2f00] sm:$0xff]
                  %1600 = vst [vmem:[%s1222 + $0x5e0] sm:$0xff] %v1599
                  %v1601 = vld [vmem:[%s1221 + $0x2f40] sm:$0xff]
                  %1602 = vst [vmem:[%s1222 + $0x5e8] sm:$0xff] %v1601
                  %v1603 = vld [vmem:[%s1221 + $0x2f80] sm:$0xff]
                  %1604 = vst [vmem:[%s1222 + $0x5f0] sm:$0xff] %v1603
                  %v1605 = vld [vmem:[%s1221 + $0x2fc0] sm:$0xff]
                  %1606 = vst [vmem:[%s1222 + $0x5f8] sm:$0xff] %v1605
                  %v1607 = vld [vmem:[%s1221 + $0x3000] sm:$0xff]
                  %1608 = vst [vmem:[%s1222 + $0x600] sm:$0xff] %v1607
                  %v1609 = vld [vmem:[%s1221 + $0x3040] sm:$0xff]
                  %1610 = vst [vmem:[%s1222 + $0x608] sm:$0xff] %v1609
                  %v1611 = vld [vmem:[%s1221 + $0x3080] sm:$0xff]
                  %1612 = vst [vmem:[%s1222 + $0x610] sm:$0xff] %v1611
                  %v1613 = vld [vmem:[%s1221 + $0x30c0] sm:$0xff]
                  %1614 = vst [vmem:[%s1222 + $0x618] sm:$0xff] %v1613
                  %v1615 = vld [vmem:[%s1221 + $0x3100] sm:$0xff]
                  %1616 = vst [vmem:[%s1222 + $0x620] sm:$0xff] %v1615
                  %v1617 = vld [vmem:[%s1221 + $0x3140] sm:$0xff]
                  %1618 = vst [vmem:[%s1222 + $0x628] sm:$0xff] %v1617
                  %v1619 = vld [vmem:[%s1221 + $0x3180] sm:$0xff]
                  %1620 = vst [vmem:[%s1222 + $0x630] sm:$0xff] %v1619
                  %v1621 = vld [vmem:[%s1221 + $0x31c0] sm:$0xff]
                  %1622 = vst [vmem:[%s1222 + $0x638] sm:$0xff] %v1621
                  %v1623 = vld [vmem:[%s1221 + $0x3200] sm:$0xff]
                  %1624 = vst [vmem:[%s1222 + $0x640] sm:$0xff] %v1623
                  %v1625 = vld [vmem:[%s1221 + $0x3240] sm:$0xff]
                  %1626 = vst [vmem:[%s1222 + $0x648] sm:$0xff] %v1625
                  %v1627 = vld [vmem:[%s1221 + $0x3280] sm:$0xff]
                  %1628 = vst [vmem:[%s1222 + $0x650] sm:$0xff] %v1627
                  %v1629 = vld [vmem:[%s1221 + $0x32c0] sm:$0xff]
                  %1630 = vst [vmem:[%s1222 + $0x658] sm:$0xff] %v1629
                  %v1631 = vld [vmem:[%s1221 + $0x3300] sm:$0xff]
                  %1632 = vst [vmem:[%s1222 + $0x660] sm:$0xff] %v1631
                  %v1633 = vld [vmem:[%s1221 + $0x3340] sm:$0xff]
                  %1634 = vst [vmem:[%s1222 + $0x668] sm:$0xff] %v1633
                  %v1635 = vld [vmem:[%s1221 + $0x3380] sm:$0xff]
                  %1636 = vst [vmem:[%s1222 + $0x670] sm:$0xff] %v1635
                  %v1637 = vld [vmem:[%s1221 + $0x33c0] sm:$0xff]
                  %1638 = vst [vmem:[%s1222 + $0x678] sm:$0xff] %v1637
                  %v1639 = vld [vmem:[%s1221 + $0x3400] sm:$0xff]
                  %1640 = vst [vmem:[%s1222 + $0x680] sm:$0xff] %v1639
                  %v1641 = vld [vmem:[%s1221 + $0x3440] sm:$0xff]
                  %1642 = vst [vmem:[%s1222 + $0x688] sm:$0xff] %v1641
                  %v1643 = vld [vmem:[%s1221 + $0x3480] sm:$0xff]
                  %1644 = vst [vmem:[%s1222 + $0x690] sm:$0xff] %v1643
                  %v1645 = vld [vmem:[%s1221 + $0x34c0] sm:$0xff]
                  %1646 = vst [vmem:[%s1222 + $0x698] sm:$0xff] %v1645
                  %v1647 = vld [vmem:[%s1221 + $0x3500] sm:$0xff]
                  %1648 = vst [vmem:[%s1222 + $0x6a0] sm:$0xff] %v1647
                  %v1649 = vld [vmem:[%s1221 + $0x3540] sm:$0xff]
                  %1650 = vst [vmem:[%s1222 + $0x6a8] sm:$0xff] %v1649
                  %v1651 = vld [vmem:[%s1221 + $0x3580] sm:$0xff]
                  %1652 = vst [vmem:[%s1222 + $0x6b0] sm:$0xff] %v1651
                  %v1653 = vld [vmem:[%s1221 + $0x35c0] sm:$0xff]
                  %1654 = vst [vmem:[%s1222 + $0x6b8] sm:$0xff] %v1653
                  %v1655 = vld [vmem:[%s1221 + $0x3600] sm:$0xff]
                  %1656 = vst [vmem:[%s1222 + $0x6c0] sm:$0xff] %v1655
                  %v1657 = vld [vmem:[%s1221 + $0x3640] sm:$0xff]
                  %1658 = vst [vmem:[%s1222 + $0x6c8] sm:$0xff] %v1657
                  %v1659 = vld [vmem:[%s1221 + $0x3680] sm:$0xff]
                  %1660 = vst [vmem:[%s1222 + $0x6d0] sm:$0xff] %v1659
                  %v1661 = vld [vmem:[%s1221 + $0x36c0] sm:$0xff]
                  %1662 = vst [vmem:[%s1222 + $0x6d8] sm:$0xff] %v1661
                  %v1663 = vld [vmem:[%s1221 + $0x3700] sm:$0xff]
                  %1664 = vst [vmem:[%s1222 + $0x6e0] sm:$0xff] %v1663
                  %v1665 = vld [vmem:[%s1221 + $0x3740] sm:$0xff]
                  %1666 = vst [vmem:[%s1222 + $0x6e8] sm:$0xff] %v1665
                  %v1667 = vld [vmem:[%s1221 + $0x3780] sm:$0xff]
                  %1668 = vst [vmem:[%s1222 + $0x6f0] sm:$0xff] %v1667
                  %v1669 = vld [vmem:[%s1221 + $0x37c0] sm:$0xff]
                  %1670 = vst [vmem:[%s1222 + $0x6f8] sm:$0xff] %v1669
                  %v1671 = vld [vmem:[%s1221 + $0x3800] sm:$0xff]
                  %1672 = vst [vmem:[%s1222 + $0x700] sm:$0xff] %v1671
                  %v1673 = vld [vmem:[%s1221 + $0x3840] sm:$0xff]
                  %1674 = vst [vmem:[%s1222 + $0x708] sm:$0xff] %v1673
                  %v1675 = vld [vmem:[%s1221 + $0x3880] sm:$0xff]
                  %1676 = vst [vmem:[%s1222 + $0x710] sm:$0xff] %v1675
                  %v1677 = vld [vmem:[%s1221 + $0x38c0] sm:$0xff]
                  %1678 = vst [vmem:[%s1222 + $0x718] sm:$0xff] %v1677
                  %v1679 = vld [vmem:[%s1221 + $0x3900] sm:$0xff]
                  %1680 = vst [vmem:[%s1222 + $0x720] sm:$0xff] %v1679
                  %v1681 = vld [vmem:[%s1221 + $0x3940] sm:$0xff]
                  %1682 = vst [vmem:[%s1222 + $0x728] sm:$0xff] %v1681
                  %v1683 = vld [vmem:[%s1221 + $0x3980] sm:$0xff]
                  %1684 = vst [vmem:[%s1222 + $0x730] sm:$0xff] %v1683
                  %v1685 = vld [vmem:[%s1221 + $0x39c0] sm:$0xff]
                  %1686 = vst [vmem:[%s1222 + $0x738] sm:$0xff] %v1685
                  %v1687 = vld [vmem:[%s1221 + $0x3a00] sm:$0xff]
                  %1688 = vst [vmem:[%s1222 + $0x740] sm:$0xff] %v1687
                  %v1689 = vld [vmem:[%s1221 + $0x3a40] sm:$0xff]
                  %1690 = vst [vmem:[%s1222 + $0x748] sm:$0xff] %v1689
                  %v1691 = vld [vmem:[%s1221 + $0x3a80] sm:$0xff]
                  %1692 = vst [vmem:[%s1222 + $0x750] sm:$0xff] %v1691
                  %v1693 = vld [vmem:[%s1221 + $0x3ac0] sm:$0xff]
                  %1694 = vst [vmem:[%s1222 + $0x758] sm:$0xff] %v1693
                  %v1695 = vld [vmem:[%s1221 + $0x3b00] sm:$0xff]
                  %1696 = vst [vmem:[%s1222 + $0x760] sm:$0xff] %v1695
                  %v1697 = vld [vmem:[%s1221 + $0x3b40] sm:$0xff]
                  %1698 = vst [vmem:[%s1222 + $0x768] sm:$0xff] %v1697
                  %v1699 = vld [vmem:[%s1221 + $0x3b80] sm:$0xff]
                  %1700 = vst [vmem:[%s1222 + $0x770] sm:$0xff] %v1699
                  %v1701 = vld [vmem:[%s1221 + $0x3bc0] sm:$0xff]
                  %1702 = vst [vmem:[%s1222 + $0x778] sm:$0xff] %v1701
                  %v1703 = vld [vmem:[%s1221 + $0x3c00] sm:$0xff]
                  %1704 = vst [vmem:[%s1222 + $0x780] sm:$0xff] %v1703
                  %v1705 = vld [vmem:[%s1221 + $0x3c40] sm:$0xff]
                  %1706 = vst [vmem:[%s1222 + $0x788] sm:$0xff] %v1705
                  %v1707 = vld [vmem:[%s1221 + $0x3c80] sm:$0xff]
                  %1708 = vst [vmem:[%s1222 + $0x790] sm:$0xff] %v1707
                  %v1709 = vld [vmem:[%s1221 + $0x3cc0] sm:$0xff]
                  %1710 = vst [vmem:[%s1222 + $0x798] sm:$0xff] %v1709
                  %v1711 = vld [vmem:[%s1221 + $0x3d00] sm:$0xff]
                  %1712 = vst [vmem:[%s1222 + $0x7a0] sm:$0xff] %v1711
                  %v1713 = vld [vmem:[%s1221 + $0x3d40] sm:$0xff]
                  %1714 = vst [vmem:[%s1222 + $0x7a8] sm:$0xff] %v1713
                  %v1715 = vld [vmem:[%s1221 + $0x3d80] sm:$0xff]
                  %1716 = vst [vmem:[%s1222 + $0x7b0] sm:$0xff] %v1715
                  %v1717 = vld [vmem:[%s1221 + $0x3dc0] sm:$0xff]
                  %1718 = vst [vmem:[%s1222 + $0x7b8] sm:$0xff] %v1717
                  %v1719 = vld [vmem:[%s1221 + $0x3e00] sm:$0xff]
                  %1720 = vst [vmem:[%s1222 + $0x7c0] sm:$0xff] %v1719
                  %v1721 = vld [vmem:[%s1221 + $0x3e40] sm:$0xff]
                  %1722 = vst [vmem:[%s1222 + $0x7c8] sm:$0xff] %v1721
                  %v1723 = vld [vmem:[%s1221 + $0x3e80] sm:$0xff]
                  %1724 = vst [vmem:[%s1222 + $0x7d0] sm:$0xff] %v1723
                  %v1725 = vld [vmem:[%s1221 + $0x3ec0] sm:$0xff]
                  %1726 = vst [vmem:[%s1222 + $0x7d8] sm:$0xff] %v1725
                  %v1727 = vld [vmem:[%s1221 + $0x3f00] sm:$0xff]
                  %1728 = vst [vmem:[%s1222 + $0x7e0] sm:$0xff] %v1727
                  %v1729 = vld [vmem:[%s1221 + $0x3f40] sm:$0xff]
                  %1730 = vst [vmem:[%s1222 + $0x7e8] sm:$0xff] %v1729
                  %v1731 = vld [vmem:[%s1221 + $0x3f80] sm:$0xff]
                  %1732 = vst [vmem:[%s1222 + $0x7f0] sm:$0xff] %v1731
                  %v1733 = vld [vmem:[%s1221 + $0x3fc0] sm:$0xff]
                  %1734 = vst [vmem:[%s1222 + $0x7f8] sm:$0xff] %v1733
                  %v1735 = vld [vmem:[%s1221 + $0x4000] sm:$0xff]
                  %1736 = vst [vmem:[%s1222 + $0x800] sm:$0xff] %v1735
                  %v1737 = vld [vmem:[%s1221 + $0x4040] sm:$0xff]
                  %1738 = vst [vmem:[%s1222 + $0x808] sm:$0xff] %v1737
                  %v1739 = vld [vmem:[%s1221 + $0x4080] sm:$0xff]
                  %1740 = vst [vmem:[%s1222 + $0x810] sm:$0xff] %v1739
                  %v1741 = vld [vmem:[%s1221 + $0x40c0] sm:$0xff]
                  %1742 = vst [vmem:[%s1222 + $0x818] sm:$0xff] %v1741
                  %v1743 = vld [vmem:[%s1221 + $0x4100] sm:$0xff]
                  %1744 = vst [vmem:[%s1222 + $0x820] sm:$0xff] %v1743
                  %v1745 = vld [vmem:[%s1221 + $0x4140] sm:$0xff]
                  %1746 = vst [vmem:[%s1222 + $0x828] sm:$0xff] %v1745
                  %v1747 = vld [vmem:[%s1221 + $0x4180] sm:$0xff]
                  %1748 = vst [vmem:[%s1222 + $0x830] sm:$0xff] %v1747
                  %v1749 = vld [vmem:[%s1221 + $0x41c0] sm:$0xff]
                  %1750 = vst [vmem:[%s1222 + $0x838] sm:$0xff] %v1749
                  %v1751 = vld [vmem:[%s1221 + $0x4200] sm:$0xff]
                  %1752 = vst [vmem:[%s1222 + $0x840] sm:$0xff] %v1751
                  %v1753 = vld [vmem:[%s1221 + $0x4240] sm:$0xff]
                  %1754 = vst [vmem:[%s1222 + $0x848] sm:$0xff] %v1753
                  %v1755 = vld [vmem:[%s1221 + $0x4280] sm:$0xff]
                  %1756 = vst [vmem:[%s1222 + $0x850] sm:$0xff] %v1755
                  %v1757 = vld [vmem:[%s1221 + $0x42c0] sm:$0xff]
                  %1758 = vst [vmem:[%s1222 + $0x858] sm:$0xff] %v1757
                  %v1759 = vld [vmem:[%s1221 + $0x4300] sm:$0xff]
                  %1760 = vst [vmem:[%s1222 + $0x860] sm:$0xff] %v1759
                  %v1761 = vld [vmem:[%s1221 + $0x4340] sm:$0xff]
                  %1762 = vst [vmem:[%s1222 + $0x868] sm:$0xff] %v1761
                  %v1763 = vld [vmem:[%s1221 + $0x4380] sm:$0xff]
                  %1764 = vst [vmem:[%s1222 + $0x870] sm:$0xff] %v1763
                  %v1765 = vld [vmem:[%s1221 + $0x43c0] sm:$0xff]
                  %1766 = vst [vmem:[%s1222 + $0x878] sm:$0xff] %v1765
                  %v1767 = vld [vmem:[%s1221 + $0x4400] sm:$0xff]
                  %1768 = vst [vmem:[%s1222 + $0x880] sm:$0xff] %v1767
                  %v1769 = vld [vmem:[%s1221 + $0x4440] sm:$0xff]
                  %1770 = vst [vmem:[%s1222 + $0x888] sm:$0xff] %v1769
                  %v1771 = vld [vmem:[%s1221 + $0x4480] sm:$0xff]
                  %1772 = vst [vmem:[%s1222 + $0x890] sm:$0xff] %v1771
                  %v1773 = vld [vmem:[%s1221 + $0x44c0] sm:$0xff]
                  %1774 = vst [vmem:[%s1222 + $0x898] sm:$0xff] %v1773
                  %v1775 = vld [vmem:[%s1221 + $0x4500] sm:$0xff]
                  %1776 = vst [vmem:[%s1222 + $0x8a0] sm:$0xff] %v1775
                  %v1777 = vld [vmem:[%s1221 + $0x4540] sm:$0xff]
                  %1778 = vst [vmem:[%s1222 + $0x8a8] sm:$0xff] %v1777
                  %v1779 = vld [vmem:[%s1221 + $0x4580] sm:$0xff]
                  %1780 = vst [vmem:[%s1222 + $0x8b0] sm:$0xff] %v1779
                  %v1781 = vld [vmem:[%s1221 + $0x45c0] sm:$0xff]
                  %1782 = vst [vmem:[%s1222 + $0x8b8] sm:$0xff] %v1781
                  %v1783 = vld [vmem:[%s1221 + $0x4600] sm:$0xff]
                  %1784 = vst [vmem:[%s1222 + $0x8c0] sm:$0xff] %v1783
                  %v1785 = vld [vmem:[%s1221 + $0x4640] sm:$0xff]
                  %1786 = vst [vmem:[%s1222 + $0x8c8] sm:$0xff] %v1785
                  %v1787 = vld [vmem:[%s1221 + $0x4680] sm:$0xff]
                  %1788 = vst [vmem:[%s1222 + $0x8d0] sm:$0xff] %v1787
                  %v1789 = vld [vmem:[%s1221 + $0x46c0] sm:$0xff]
                  %1790 = vst [vmem:[%s1222 + $0x8d8] sm:$0xff] %v1789
                  %v1791 = vld [vmem:[%s1221 + $0x4700] sm:$0xff]
                  %1792 = vst [vmem:[%s1222 + $0x8e0] sm:$0xff] %v1791
                  %v1793 = vld [vmem:[%s1221 + $0x4740] sm:$0xff]
                  %1794 = vst [vmem:[%s1222 + $0x8e8] sm:$0xff] %v1793
                  %v1795 = vld [vmem:[%s1221 + $0x4780] sm:$0xff]
                  %1796 = vst [vmem:[%s1222 + $0x8f0] sm:$0xff] %v1795
                  %v1797 = vld [vmem:[%s1221 + $0x47c0] sm:$0xff]
                  %1798 = vst [vmem:[%s1222 + $0x8f8] sm:$0xff] %v1797
                  %v1799 = vld [vmem:[%s1221 + $0x4800] sm:$0xff]
                  %1800 = vst [vmem:[%s1222 + $0x900] sm:$0xff] %v1799
                  %v1801 = vld [vmem:[%s1221 + $0x4840] sm:$0xff]
                  %1802 = vst [vmem:[%s1222 + $0x908] sm:$0xff] %v1801
                  %v1803 = vld [vmem:[%s1221 + $0x4880] sm:$0xff]
                  %1804 = vst [vmem:[%s1222 + $0x910] sm:$0xff] %v1803
                  %v1805 = vld [vmem:[%s1221 + $0x48c0] sm:$0xff]
                  %1806 = vst [vmem:[%s1222 + $0x918] sm:$0xff] %v1805
                  %v1807 = vld [vmem:[%s1221 + $0x4900] sm:$0xff]
                  %1808 = vst [vmem:[%s1222 + $0x920] sm:$0xff] %v1807
                  %v1809 = vld [vmem:[%s1221 + $0x4940] sm:$0xff]
                  %1810 = vst [vmem:[%s1222 + $0x928] sm:$0xff] %v1809
                  %v1811 = vld [vmem:[%s1221 + $0x4980] sm:$0xff]
                  %1812 = vst [vmem:[%s1222 + $0x930] sm:$0xff] %v1811
                  %v1813 = vld [vmem:[%s1221 + $0x49c0] sm:$0xff]
                  %1814 = vst [vmem:[%s1222 + $0x938] sm:$0xff] %v1813
                  %v1815 = vld [vmem:[%s1221 + $0x4a00] sm:$0xff]
                  %1816 = vst [vmem:[%s1222 + $0x940] sm:$0xff] %v1815
                  %v1817 = vld [vmem:[%s1221 + $0x4a40] sm:$0xff]
                  %1818 = vst [vmem:[%s1222 + $0x948] sm:$0xff] %v1817
                  %v1819 = vld [vmem:[%s1221 + $0x4a80] sm:$0xff]
                  %1820 = vst [vmem:[%s1222 + $0x950] sm:$0xff] %v1819
                  %v1821 = vld [vmem:[%s1221 + $0x4ac0] sm:$0xff]
                  %1822 = vst [vmem:[%s1222 + $0x958] sm:$0xff] %v1821
                  %v1823 = vld [vmem:[%s1221 + $0x4b00] sm:$0xff]
                  %1824 = vst [vmem:[%s1222 + $0x960] sm:$0xff] %v1823
                  %v1825 = vld [vmem:[%s1221 + $0x4b40] sm:$0xff]
                  %1826 = vst [vmem:[%s1222 + $0x968] sm:$0xff] %v1825
                  %v1827 = vld [vmem:[%s1221 + $0x4b80] sm:$0xff]
                  %1828 = vst [vmem:[%s1222 + $0x970] sm:$0xff] %v1827
                  %v1829 = vld [vmem:[%s1221 + $0x4bc0] sm:$0xff]
                  %1830 = vst [vmem:[%s1222 + $0x978] sm:$0xff] %v1829
                  %v1831 = vld [vmem:[%s1221 + $0x4c00] sm:$0xff]
                  %1832 = vst [vmem:[%s1222 + $0x980] sm:$0xff] %v1831
                  %v1833 = vld [vmem:[%s1221 + $0x4c40] sm:$0xff]
                  %1834 = vst [vmem:[%s1222 + $0x988] sm:$0xff] %v1833
                  %v1835 = vld [vmem:[%s1221 + $0x4c80] sm:$0xff]
                  %1836 = vst [vmem:[%s1222 + $0x990] sm:$0xff] %v1835
                  %v1837 = vld [vmem:[%s1221 + $0x4cc0] sm:$0xff]
                  %1838 = vst [vmem:[%s1222 + $0x998] sm:$0xff] %v1837
                  %v1839 = vld [vmem:[%s1221 + $0x4d00] sm:$0xff]
                  %1840 = vst [vmem:[%s1222 + $0x9a0] sm:$0xff] %v1839
                  %v1841 = vld [vmem:[%s1221 + $0x4d40] sm:$0xff]
                  %1842 = vst [vmem:[%s1222 + $0x9a8] sm:$0xff] %v1841
                  %v1843 = vld [vmem:[%s1221 + $0x4d80] sm:$0xff]
                  %1844 = vst [vmem:[%s1222 + $0x9b0] sm:$0xff] %v1843
                  %v1845 = vld [vmem:[%s1221 + $0x4dc0] sm:$0xff]
                  %1846 = vst [vmem:[%s1222 + $0x9b8] sm:$0xff] %v1845
                  %v1847 = vld [vmem:[%s1221 + $0x4e00] sm:$0xff]
                  %1848 = vst [vmem:[%s1222 + $0x9c0] sm:$0xff] %v1847
                  %v1849 = vld [vmem:[%s1221 + $0x4e40] sm:$0xff]
                  %1850 = vst [vmem:[%s1222 + $0x9c8] sm:$0xff] %v1849
                  %v1851 = vld [vmem:[%s1221 + $0x4e80] sm:$0xff]
                  %1852 = vst [vmem:[%s1222 + $0x9d0] sm:$0xff] %v1851
                  %v1853 = vld [vmem:[%s1221 + $0x4ec0] sm:$0xff]
                  %1854 = vst [vmem:[%s1222 + $0x9d8] sm:$0xff] %v1853
                  %v1855 = vld [vmem:[%s1221 + $0x4f00] sm:$0xff]
                  %1856 = vst [vmem:[%s1222 + $0x9e0] sm:$0xff] %v1855
                  %v1857 = vld [vmem:[%s1221 + $0x4f40] sm:$0xff]
                  %1858 = vst [vmem:[%s1222 + $0x9e8] sm:$0xff] %v1857
                  %v1859 = vld [vmem:[%s1221 + $0x4f80] sm:$0xff]
                  %1860 = vst [vmem:[%s1222 + $0x9f0] sm:$0xff] %v1859
                  %v1861 = vld [vmem:[%s1221 + $0x4fc0] sm:$0xff]
                  %1862 = vst [vmem:[%s1222 + $0x9f8] sm:$0xff] %v1861
                  %v1863 = vld [vmem:[%s1221 + $0x5000] sm:$0xff]
                  %1864 = vst [vmem:[%s1222 + $0xa00] sm:$0xff] %v1863
                  %v1865 = vld [vmem:[%s1221 + $0x5040] sm:$0xff]
                  %1866 = vst [vmem:[%s1222 + $0xa08] sm:$0xff] %v1865
                  %v1867 = vld [vmem:[%s1221 + $0x5080] sm:$0xff]
                  %1868 = vst [vmem:[%s1222 + $0xa10] sm:$0xff] %v1867
                  %v1869 = vld [vmem:[%s1221 + $0x50c0] sm:$0xff]
                  %1870 = vst [vmem:[%s1222 + $0xa18] sm:$0xff] %v1869
                  %v1871 = vld [vmem:[%s1221 + $0x5100] sm:$0xff]
                  %1872 = vst [vmem:[%s1222 + $0xa20] sm:$0xff] %v1871
                  %v1873 = vld [vmem:[%s1221 + $0x5140] sm:$0xff]
                  %1874 = vst [vmem:[%s1222 + $0xa28] sm:$0xff] %v1873
                  %v1875 = vld [vmem:[%s1221 + $0x5180] sm:$0xff]
                  %1876 = vst [vmem:[%s1222 + $0xa30] sm:$0xff] %v1875
                  %v1877 = vld [vmem:[%s1221 + $0x51c0] sm:$0xff]
                  %1878 = vst [vmem:[%s1222 + $0xa38] sm:$0xff] %v1877
                  %v1879 = vld [vmem:[%s1221 + $0x5200] sm:$0xff]
                  %1880 = vst [vmem:[%s1222 + $0xa40] sm:$0xff] %v1879
                  %v1881 = vld [vmem:[%s1221 + $0x5240] sm:$0xff]
                  %1882 = vst [vmem:[%s1222 + $0xa48] sm:$0xff] %v1881
                  %v1883 = vld [vmem:[%s1221 + $0x5280] sm:$0xff]
                  %1884 = vst [vmem:[%s1222 + $0xa50] sm:$0xff] %v1883
                  %v1885 = vld [vmem:[%s1221 + $0x52c0] sm:$0xff]
                  %1886 = vst [vmem:[%s1222 + $0xa58] sm:$0xff] %v1885
                  %v1887 = vld [vmem:[%s1221 + $0x5300] sm:$0xff]
                  %1888 = vst [vmem:[%s1222 + $0xa60] sm:$0xff] %v1887
                  %v1889 = vld [vmem:[%s1221 + $0x5340] sm:$0xff]
                  %1890 = vst [vmem:[%s1222 + $0xa68] sm:$0xff] %v1889
                  %v1891 = vld [vmem:[%s1221 + $0x5380] sm:$0xff]
                  %1892 = vst [vmem:[%s1222 + $0xa70] sm:$0xff] %v1891
                  %v1893 = vld [vmem:[%s1221 + $0x53c0] sm:$0xff]
                  %1894 = vst [vmem:[%s1222 + $0xa78] sm:$0xff] %v1893
                  %v1895 = vld [vmem:[%s1221 + $0x5400] sm:$0xff]
                  %1896 = vst [vmem:[%s1222 + $0xa80] sm:$0xff] %v1895
                  %v1897 = vld [vmem:[%s1221 + $0x5440] sm:$0xff]
                  %1898 = vst [vmem:[%s1222 + $0xa88] sm:$0xff] %v1897
                  %v1899 = vld [vmem:[%s1221 + $0x5480] sm:$0xff]
                  %1900 = vst [vmem:[%s1222 + $0xa90] sm:$0xff] %v1899
                  %v1901 = vld [vmem:[%s1221 + $0x54c0] sm:$0xff]
                  %1902 = vst [vmem:[%s1222 + $0xa98] sm:$0xff] %v1901
                  %v1903 = vld [vmem:[%s1221 + $0x5500] sm:$0xff]
                  %1904 = vst [vmem:[%s1222 + $0xaa0] sm:$0xff] %v1903
                  %v1905 = vld [vmem:[%s1221 + $0x5540] sm:$0xff]
                  %1906 = vst [vmem:[%s1222 + $0xaa8] sm:$0xff] %v1905
                  %v1907 = vld [vmem:[%s1221 + $0x5580] sm:$0xff]
                  %1908 = vst [vmem:[%s1222 + $0xab0] sm:$0xff] %v1907
                  %v1909 = vld [vmem:[%s1221 + $0x55c0] sm:$0xff]
                  %1910 = vst [vmem:[%s1222 + $0xab8] sm:$0xff] %v1909
                  %v1911 = vld [vmem:[%s1221 + $0x5600] sm:$0xff]
                  %1912 = vst [vmem:[%s1222 + $0xac0] sm:$0xff] %v1911
                  %v1913 = vld [vmem:[%s1221 + $0x5640] sm:$0xff]
                  %1914 = vst [vmem:[%s1222 + $0xac8] sm:$0xff] %v1913
                  %v1915 = vld [vmem:[%s1221 + $0x5680] sm:$0xff]
                  %1916 = vst [vmem:[%s1222 + $0xad0] sm:$0xff] %v1915
                  %v1917 = vld [vmem:[%s1221 + $0x56c0] sm:$0xff]
                  %1918 = vst [vmem:[%s1222 + $0xad8] sm:$0xff] %v1917
                  %v1919 = vld [vmem:[%s1221 + $0x5700] sm:$0xff]
                  %1920 = vst [vmem:[%s1222 + $0xae0] sm:$0xff] %v1919
                  %v1921 = vld [vmem:[%s1221 + $0x5740] sm:$0xff]
                  %1922 = vst [vmem:[%s1222 + $0xae8] sm:$0xff] %v1921
                  %v1923 = vld [vmem:[%s1221 + $0x5780] sm:$0xff]
                  %1924 = vst [vmem:[%s1222 + $0xaf0] sm:$0xff] %v1923
                  %v1925 = vld [vmem:[%s1221 + $0x57c0] sm:$0xff]
                  %1926 = vst [vmem:[%s1222 + $0xaf8] sm:$0xff] %v1925
                  %v1927 = vld [vmem:[%s1221 + $0x5800] sm:$0xff]
                  %1928 = vst [vmem:[%s1222 + $0xb00] sm:$0xff] %v1927
                  %v1929 = vld [vmem:[%s1221 + $0x5840] sm:$0xff]
                  %1930 = vst [vmem:[%s1222 + $0xb08] sm:$0xff] %v1929
                  %v1931 = vld [vmem:[%s1221 + $0x5880] sm:$0xff]
                  %1932 = vst [vmem:[%s1222 + $0xb10] sm:$0xff] %v1931
                  %v1933 = vld [vmem:[%s1221 + $0x58c0] sm:$0xff]
                  %1934 = vst [vmem:[%s1222 + $0xb18] sm:$0xff] %v1933
                  %v1935 = vld [vmem:[%s1221 + $0x5900] sm:$0xff]
                  %1936 = vst [vmem:[%s1222 + $0xb20] sm:$0xff] %v1935
                  %v1937 = vld [vmem:[%s1221 + $0x5940] sm:$0xff]
                  %1938 = vst [vmem:[%s1222 + $0xb28] sm:$0xff] %v1937
                  %v1939 = vld [vmem:[%s1221 + $0x5980] sm:$0xff]
                  %1940 = vst [vmem:[%s1222 + $0xb30] sm:$0xff] %v1939
                  %v1941 = vld [vmem:[%s1221 + $0x59c0] sm:$0xff]
                  %1942 = vst [vmem:[%s1222 + $0xb38] sm:$0xff] %v1941
                  %v1943 = vld [vmem:[%s1221 + $0x5a00] sm:$0xff]
                  %1944 = vst [vmem:[%s1222 + $0xb40] sm:$0xff] %v1943
                  %v1945 = vld [vmem:[%s1221 + $0x5a40] sm:$0xff]
                  %1946 = vst [vmem:[%s1222 + $0xb48] sm:$0xff] %v1945
                  %v1947 = vld [vmem:[%s1221 + $0x5a80] sm:$0xff]
                  %1948 = vst [vmem:[%s1222 + $0xb50] sm:$0xff] %v1947
                  %v1949 = vld [vmem:[%s1221 + $0x5ac0] sm:$0xff]
                  %1950 = vst [vmem:[%s1222 + $0xb58] sm:$0xff] %v1949
                  %v1951 = vld [vmem:[%s1221 + $0x5b00] sm:$0xff]
                  %1952 = vst [vmem:[%s1222 + $0xb60] sm:$0xff] %v1951
                  %v1953 = vld [vmem:[%s1221 + $0x5b40] sm:$0xff]
                  %1954 = vst [vmem:[%s1222 + $0xb68] sm:$0xff] %v1953
                  %v1955 = vld [vmem:[%s1221 + $0x5b80] sm:$0xff]
                  %1956 = vst [vmem:[%s1222 + $0xb70] sm:$0xff] %v1955
                  %v1957 = vld [vmem:[%s1221 + $0x5bc0] sm:$0xff]
                  %1958 = vst [vmem:[%s1222 + $0xb78] sm:$0xff] %v1957
                  %v1959 = vld [vmem:[%s1221 + $0x5c00] sm:$0xff]
                  %1960 = vst [vmem:[%s1222 + $0xb80] sm:$0xff] %v1959
                  %v1961 = vld [vmem:[%s1221 + $0x5c40] sm:$0xff]
                  %1962 = vst [vmem:[%s1222 + $0xb88] sm:$0xff] %v1961
                  %v1963 = vld [vmem:[%s1221 + $0x5c80] sm:$0xff]
                  %1964 = vst [vmem:[%s1222 + $0xb90] sm:$0xff] %v1963
                  %v1965 = vld [vmem:[%s1221 + $0x5cc0] sm:$0xff]
                  %1966 = vst [vmem:[%s1222 + $0xb98] sm:$0xff] %v1965
                  %v1967 = vld [vmem:[%s1221 + $0x5d00] sm:$0xff]
                  %1968 = vst [vmem:[%s1222 + $0xba0] sm:$0xff] %v1967
                  %v1969 = vld [vmem:[%s1221 + $0x5d40] sm:$0xff]
                  %1970 = vst [vmem:[%s1222 + $0xba8] sm:$0xff] %v1969
                  %v1971 = vld [vmem:[%s1221 + $0x5d80] sm:$0xff]
                  %1972 = vst [vmem:[%s1222 + $0xbb0] sm:$0xff] %v1971
                  %v1973 = vld [vmem:[%s1221 + $0x5dc0] sm:$0xff]
                  %1974 = vst [vmem:[%s1222 + $0xbb8] sm:$0xff] %v1973
                  %v1975 = vld [vmem:[%s1221 + $0x5e00] sm:$0xff]
                  %1976 = vst [vmem:[%s1222 + $0xbc0] sm:$0xff] %v1975
                  %v1977 = vld [vmem:[%s1221 + $0x5e40] sm:$0xff]
                  %1978 = vst [vmem:[%s1222 + $0xbc8] sm:$0xff] %v1977
                  %v1979 = vld [vmem:[%s1221 + $0x5e80] sm:$0xff]
                  %1980 = vst [vmem:[%s1222 + $0xbd0] sm:$0xff] %v1979
                  %v1981 = vld [vmem:[%s1221 + $0x5ec0] sm:$0xff]
                  %1982 = vst [vmem:[%s1222 + $0xbd8] sm:$0xff] %v1981
                  %v1983 = vld [vmem:[%s1221 + $0x5f00] sm:$0xff]
                  %1984 = vst [vmem:[%s1222 + $0xbe0] sm:$0xff] %v1983
                  %v1985 = vld [vmem:[%s1221 + $0x5f40] sm:$0xff]
                  %1986 = vst [vmem:[%s1222 + $0xbe8] sm:$0xff] %v1985
                  %v1987 = vld [vmem:[%s1221 + $0x5f80] sm:$0xff]
                  %1988 = vst [vmem:[%s1222 + $0xbf0] sm:$0xff] %v1987
                  %v1989 = vld [vmem:[%s1221 + $0x5fc0] sm:$0xff]
                  %1990 = vst [vmem:[%s1222 + $0xbf8] sm:$0xff] %v1989
                  %v1991 = vld [vmem:[%s1221 + $0x6000] sm:$0xff]
                  %1992 = vst [vmem:[%s1222 + $0xc00] sm:$0xff] %v1991
                  %v1993 = vld [vmem:[%s1221 + $0x6040] sm:$0xff]
                  %1994 = vst [vmem:[%s1222 + $0xc08] sm:$0xff] %v1993
                  %v1995 = vld [vmem:[%s1221 + $0x6080] sm:$0xff]
                  %1996 = vst [vmem:[%s1222 + $0xc10] sm:$0xff] %v1995
                  %v1997 = vld [vmem:[%s1221 + $0x60c0] sm:$0xff]
                  %1998 = vst [vmem:[%s1222 + $0xc18] sm:$0xff] %v1997
                  %v1999 = vld [vmem:[%s1221 + $0x6100] sm:$0xff]
                  %2000 = vst [vmem:[%s1222 + $0xc20] sm:$0xff] %v1999
                  %v2001 = vld [vmem:[%s1221 + $0x6140] sm:$0xff]
                  %2002 = vst [vmem:[%s1222 + $0xc28] sm:$0xff] %v2001
                  %v2003 = vld [vmem:[%s1221 + $0x6180] sm:$0xff]
                  %2004 = vst [vmem:[%s1222 + $0xc30] sm:$0xff] %v2003
                  %v2005 = vld [vmem:[%s1221 + $0x61c0] sm:$0xff]
                  %2006 = vst [vmem:[%s1222 + $0xc38] sm:$0xff] %v2005
                  %v2007 = vld [vmem:[%s1221 + $0x6200] sm:$0xff]
                  %2008 = vst [vmem:[%s1222 + $0xc40] sm:$0xff] %v2007
                  %v2009 = vld [vmem:[%s1221 + $0x6240] sm:$0xff]
                  %2010 = vst [vmem:[%s1222 + $0xc48] sm:$0xff] %v2009
                  %v2011 = vld [vmem:[%s1221 + $0x6280] sm:$0xff]
                  %2012 = vst [vmem:[%s1222 + $0xc50] sm:$0xff] %v2011
                  %v2013 = vld [vmem:[%s1221 + $0x62c0] sm:$0xff]
                  %2014 = vst [vmem:[%s1222 + $0xc58] sm:$0xff] %v2013
                  %v2015 = vld [vmem:[%s1221 + $0x6300] sm:$0xff]
                  %2016 = vst [vmem:[%s1222 + $0xc60] sm:$0xff] %v2015
                  %v2017 = vld [vmem:[%s1221 + $0x6340] sm:$0xff]
                  %2018 = vst [vmem:[%s1222 + $0xc68] sm:$0xff] %v2017
                  %v2019 = vld [vmem:[%s1221 + $0x6380] sm:$0xff]
                  %2020 = vst [vmem:[%s1222 + $0xc70] sm:$0xff] %v2019
                  %v2021 = vld [vmem:[%s1221 + $0x63c0] sm:$0xff]
                  %2022 = vst [vmem:[%s1222 + $0xc78] sm:$0xff] %v2021
                  %v2023 = vld [vmem:[%s1221 + $0x6400] sm:$0xff]
                  %2024 = vst [vmem:[%s1222 + $0xc80] sm:$0xff] %v2023
                  %v2025 = vld [vmem:[%s1221 + $0x6440] sm:$0xff]
                  %2026 = vst [vmem:[%s1222 + $0xc88] sm:$0xff] %v2025
                  %v2027 = vld [vmem:[%s1221 + $0x6480] sm:$0xff]
                  %2028 = vst [vmem:[%s1222 + $0xc90] sm:$0xff] %v2027
                  %v2029 = vld [vmem:[%s1221 + $0x64c0] sm:$0xff]
                  %2030 = vst [vmem:[%s1222 + $0xc98] sm:$0xff] %v2029
                  %v2031 = vld [vmem:[%s1221 + $0x6500] sm:$0xff]
                  %2032 = vst [vmem:[%s1222 + $0xca0] sm:$0xff] %v2031
                  %v2033 = vld [vmem:[%s1221 + $0x6540] sm:$0xff]
                  %2034 = vst [vmem:[%s1222 + $0xca8] sm:$0xff] %v2033
                  %v2035 = vld [vmem:[%s1221 + $0x6580] sm:$0xff]
                  %2036 = vst [vmem:[%s1222 + $0xcb0] sm:$0xff] %v2035
                  %v2037 = vld [vmem:[%s1221 + $0x65c0] sm:$0xff]
                  %2038 = vst [vmem:[%s1222 + $0xcb8] sm:$0xff] %v2037
                  %v2039 = vld [vmem:[%s1221 + $0x6600] sm:$0xff]
                  %2040 = vst [vmem:[%s1222 + $0xcc0] sm:$0xff] %v2039
                  %v2041 = vld [vmem:[%s1221 + $0x6640] sm:$0xff]
                  %2042 = vst [vmem:[%s1222 + $0xcc8] sm:$0xff] %v2041
                  %v2043 = vld [vmem:[%s1221 + $0x6680] sm:$0xff]
                  %2044 = vst [vmem:[%s1222 + $0xcd0] sm:$0xff] %v2043
                  %v2045 = vld [vmem:[%s1221 + $0x66c0] sm:$0xff]
                  %2046 = vst [vmem:[%s1222 + $0xcd8] sm:$0xff] %v2045
                  %v2047 = vld [vmem:[%s1221 + $0x6700] sm:$0xff]
                  %2048 = vst [vmem:[%s1222 + $0xce0] sm:$0xff] %v2047
                  %v2049 = vld [vmem:[%s1221 + $0x6740] sm:$0xff]
                  %2050 = vst [vmem:[%s1222 + $0xce8] sm:$0xff] %v2049
                  %v2051 = vld [vmem:[%s1221 + $0x6780] sm:$0xff]
                  %2052 = vst [vmem:[%s1222 + $0xcf0] sm:$0xff] %v2051
                  %v2053 = vld [vmem:[%s1221 + $0x67c0] sm:$0xff]
                  %2054 = vst [vmem:[%s1222 + $0xcf8] sm:$0xff] %v2053
                  %v2055 = vld [vmem:[%s1221 + $0x6800] sm:$0xff]
                  %2056 = vst [vmem:[%s1222 + $0xd00] sm:$0xff] %v2055
                  %v2057 = vld [vmem:[%s1221 + $0x6840] sm:$0xff]
                  %2058 = vst [vmem:[%s1222 + $0xd08] sm:$0xff] %v2057
                  %v2059 = vld [vmem:[%s1221 + $0x6880] sm:$0xff]
                  %2060 = vst [vmem:[%s1222 + $0xd10] sm:$0xff] %v2059
                  %v2061 = vld [vmem:[%s1221 + $0x68c0] sm:$0xff]
                  %2062 = vst [vmem:[%s1222 + $0xd18] sm:$0xff] %v2061
                  %v2063 = vld [vmem:[%s1221 + $0x6900] sm:$0xff]
                  %2064 = vst [vmem:[%s1222 + $0xd20] sm:$0xff] %v2063
                  %v2065 = vld [vmem:[%s1221 + $0x6940] sm:$0xff]
                  %2066 = vst [vmem:[%s1222 + $0xd28] sm:$0xff] %v2065
                  %v2067 = vld [vmem:[%s1221 + $0x6980] sm:$0xff]
                  %2068 = vst [vmem:[%s1222 + $0xd30] sm:$0xff] %v2067
                  %v2069 = vld [vmem:[%s1221 + $0x69c0] sm:$0xff]
                  %2070 = vst [vmem:[%s1222 + $0xd38] sm:$0xff] %v2069
                  %v2071 = vld [vmem:[%s1221 + $0x6a00] sm:$0xff]
                  %2072 = vst [vmem:[%s1222 + $0xd40] sm:$0xff] %v2071
                  %v2073 = vld [vmem:[%s1221 + $0x6a40] sm:$0xff]
                  %2074 = vst [vmem:[%s1222 + $0xd48] sm:$0xff] %v2073
                  %v2075 = vld [vmem:[%s1221 + $0x6a80] sm:$0xff]
                  %2076 = vst [vmem:[%s1222 + $0xd50] sm:$0xff] %v2075
                  %v2077 = vld [vmem:[%s1221 + $0x6ac0] sm:$0xff]
                  %2078 = vst [vmem:[%s1222 + $0xd58] sm:$0xff] %v2077
                  %v2079 = vld [vmem:[%s1221 + $0x6b00] sm:$0xff]
                  %2080 = vst [vmem:[%s1222 + $0xd60] sm:$0xff] %v2079
                  %v2081 = vld [vmem:[%s1221 + $0x6b40] sm:$0xff]
                  %2082 = vst [vmem:[%s1222 + $0xd68] sm:$0xff] %v2081
                  %v2083 = vld [vmem:[%s1221 + $0x6b80] sm:$0xff]
                  %2084 = vst [vmem:[%s1222 + $0xd70] sm:$0xff] %v2083
                  %v2085 = vld [vmem:[%s1221 + $0x6bc0] sm:$0xff]
                  %2086 = vst [vmem:[%s1222 + $0xd78] sm:$0xff] %v2085
                  %v2087 = vld [vmem:[%s1221 + $0x6c00] sm:$0xff]
                  %2088 = vst [vmem:[%s1222 + $0xd80] sm:$0xff] %v2087
                  %v2089 = vld [vmem:[%s1221 + $0x6c40] sm:$0xff]
                  %2090 = vst [vmem:[%s1222 + $0xd88] sm:$0xff] %v2089
                  %v2091 = vld [vmem:[%s1221 + $0x6c80] sm:$0xff]
                  %2092 = vst [vmem:[%s1222 + $0xd90] sm:$0xff] %v2091
                  %v2093 = vld [vmem:[%s1221 + $0x6cc0] sm:$0xff]
                  %2094 = vst [vmem:[%s1222 + $0xd98] sm:$0xff] %v2093
                  %v2095 = vld [vmem:[%s1221 + $0x6d00] sm:$0xff]
                  %2096 = vst [vmem:[%s1222 + $0xda0] sm:$0xff] %v2095
                  %v2097 = vld [vmem:[%s1221 + $0x6d40] sm:$0xff]
                  %2098 = vst [vmem:[%s1222 + $0xda8] sm:$0xff] %v2097
                  %v2099 = vld [vmem:[%s1221 + $0x6d80] sm:$0xff]
                  %2100 = vst [vmem:[%s1222 + $0xdb0] sm:$0xff] %v2099
                  %v2101 = vld [vmem:[%s1221 + $0x6dc0] sm:$0xff]
                  %2102 = vst [vmem:[%s1222 + $0xdb8] sm:$0xff] %v2101
                  %v2103 = vld [vmem:[%s1221 + $0x6e00] sm:$0xff]
                  %2104 = vst [vmem:[%s1222 + $0xdc0] sm:$0xff] %v2103
                  %v2105 = vld [vmem:[%s1221 + $0x6e40] sm:$0xff]
                  %2106 = vst [vmem:[%s1222 + $0xdc8] sm:$0xff] %v2105
                  %v2107 = vld [vmem:[%s1221 + $0x6e80] sm:$0xff]
                  %2108 = vst [vmem:[%s1222 + $0xdd0] sm:$0xff] %v2107
                  %v2109 = vld [vmem:[%s1221 + $0x6ec0] sm:$0xff]
                  %2110 = vst [vmem:[%s1222 + $0xdd8] sm:$0xff] %v2109
                  %v2111 = vld [vmem:[%s1221 + $0x6f00] sm:$0xff]
                  %2112 = vst [vmem:[%s1222 + $0xde0] sm:$0xff] %v2111
                  %v2113 = vld [vmem:[%s1221 + $0x6f40] sm:$0xff]
                  %2114 = vst [vmem:[%s1222 + $0xde8] sm:$0xff] %v2113
                  %v2115 = vld [vmem:[%s1221 + $0x6f80] sm:$0xff]
                  %2116 = vst [vmem:[%s1222 + $0xdf0] sm:$0xff] %v2115
                  %v2117 = vld [vmem:[%s1221 + $0x6fc0] sm:$0xff]
                  %2118 = vst [vmem:[%s1222 + $0xdf8] sm:$0xff] %v2117
                  %v2119 = vld [vmem:[%s1221 + $0x7000] sm:$0xff]
                  %2120 = vst [vmem:[%s1222 + $0xe00] sm:$0xff] %v2119
                  %v2121 = vld [vmem:[%s1221 + $0x7040] sm:$0xff]
                  %2122 = vst [vmem:[%s1222 + $0xe08] sm:$0xff] %v2121
                  %v2123 = vld [vmem:[%s1221 + $0x7080] sm:$0xff]
                  %2124 = vst [vmem:[%s1222 + $0xe10] sm:$0xff] %v2123
                  %v2125 = vld [vmem:[%s1221 + $0x70c0] sm:$0xff]
                  %2126 = vst [vmem:[%s1222 + $0xe18] sm:$0xff] %v2125
                  %v2127 = vld [vmem:[%s1221 + $0x7100] sm:$0xff]
                  %2128 = vst [vmem:[%s1222 + $0xe20] sm:$0xff] %v2127
                  %v2129 = vld [vmem:[%s1221 + $0x7140] sm:$0xff]
                  %2130 = vst [vmem:[%s1222 + $0xe28] sm:$0xff] %v2129
                  %v2131 = vld [vmem:[%s1221 + $0x7180] sm:$0xff]
                  %2132 = vst [vmem:[%s1222 + $0xe30] sm:$0xff] %v2131
                  %v2133 = vld [vmem:[%s1221 + $0x71c0] sm:$0xff]
                  %2134 = vst [vmem:[%s1222 + $0xe38] sm:$0xff] %v2133
                  %v2135 = vld [vmem:[%s1221 + $0x7200] sm:$0xff]
                  %2136 = vst [vmem:[%s1222 + $0xe40] sm:$0xff] %v2135
                  %v2137 = vld [vmem:[%s1221 + $0x7240] sm:$0xff]
                  %2138 = vst [vmem:[%s1222 + $0xe48] sm:$0xff] %v2137
                  %v2139 = vld [vmem:[%s1221 + $0x7280] sm:$0xff]
                  %2140 = vst [vmem:[%s1222 + $0xe50] sm:$0xff] %v2139
                  %v2141 = vld [vmem:[%s1221 + $0x72c0] sm:$0xff]
                  %2142 = vst [vmem:[%s1222 + $0xe58] sm:$0xff] %v2141
                  %v2143 = vld [vmem:[%s1221 + $0x7300] sm:$0xff]
                  %2144 = vst [vmem:[%s1222 + $0xe60] sm:$0xff] %v2143
                  %v2145 = vld [vmem:[%s1221 + $0x7340] sm:$0xff]
                  %2146 = vst [vmem:[%s1222 + $0xe68] sm:$0xff] %v2145
                  %v2147 = vld [vmem:[%s1221 + $0x7380] sm:$0xff]
                  %2148 = vst [vmem:[%s1222 + $0xe70] sm:$0xff] %v2147
                  %v2149 = vld [vmem:[%s1221 + $0x73c0] sm:$0xff]
                  %2150 = vst [vmem:[%s1222 + $0xe78] sm:$0xff] %v2149
                  %v2151 = vld [vmem:[%s1221 + $0x7400] sm:$0xff]
                  %2152 = vst [vmem:[%s1222 + $0xe80] sm:$0xff] %v2151
                  %v2153 = vld [vmem:[%s1221 + $0x7440] sm:$0xff]
                  %2154 = vst [vmem:[%s1222 + $0xe88] sm:$0xff] %v2153
                  %v2155 = vld [vmem:[%s1221 + $0x7480] sm:$0xff]
                  %2156 = vst [vmem:[%s1222 + $0xe90] sm:$0xff] %v2155
                  %v2157 = vld [vmem:[%s1221 + $0x74c0] sm:$0xff]
                  %2158 = vst [vmem:[%s1222 + $0xe98] sm:$0xff] %v2157
                  %v2159 = vld [vmem:[%s1221 + $0x7500] sm:$0xff]
                  %2160 = vst [vmem:[%s1222 + $0xea0] sm:$0xff] %v2159
                  %v2161 = vld [vmem:[%s1221 + $0x7540] sm:$0xff]
                  %2162 = vst [vmem:[%s1222 + $0xea8] sm:$0xff] %v2161
                  %v2163 = vld [vmem:[%s1221 + $0x7580] sm:$0xff]
                  %2164 = vst [vmem:[%s1222 + $0xeb0] sm:$0xff] %v2163
                  %v2165 = vld [vmem:[%s1221 + $0x75c0] sm:$0xff]
                  %2166 = vst [vmem:[%s1222 + $0xeb8] sm:$0xff] %v2165
                  %v2167 = vld [vmem:[%s1221 + $0x7600] sm:$0xff]
                  %2168 = vst [vmem:[%s1222 + $0xec0] sm:$0xff] %v2167
                  %v2169 = vld [vmem:[%s1221 + $0x7640] sm:$0xff]
                  %2170 = vst [vmem:[%s1222 + $0xec8] sm:$0xff] %v2169
                  %v2171 = vld [vmem:[%s1221 + $0x7680] sm:$0xff]
                  %2172 = vst [vmem:[%s1222 + $0xed0] sm:$0xff] %v2171
                  %v2173 = vld [vmem:[%s1221 + $0x76c0] sm:$0xff]
                  %2174 = vst [vmem:[%s1222 + $0xed8] sm:$0xff] %v2173
                  %v2175 = vld [vmem:[%s1221 + $0x7700] sm:$0xff]
                  %2176 = vst [vmem:[%s1222 + $0xee0] sm:$0xff] %v2175
                  %v2177 = vld [vmem:[%s1221 + $0x7740] sm:$0xff]
                  %2178 = vst [vmem:[%s1222 + $0xee8] sm:$0xff] %v2177
                  %v2179 = vld [vmem:[%s1221 + $0x7780] sm:$0xff]
                  %2180 = vst [vmem:[%s1222 + $0xef0] sm:$0xff] %v2179
                  %v2181 = vld [vmem:[%s1221 + $0x77c0] sm:$0xff]
                  %2182 = vst [vmem:[%s1222 + $0xef8] sm:$0xff] %v2181
                  %v2183 = vld [vmem:[%s1221 + $0x7800] sm:$0xff]
                  %2184 = vst [vmem:[%s1222 + $0xf00] sm:$0xff] %v2183
                  %v2185 = vld [vmem:[%s1221 + $0x7840] sm:$0xff]
                  %2186 = vst [vmem:[%s1222 + $0xf08] sm:$0xff] %v2185
                  %v2187 = vld [vmem:[%s1221 + $0x7880] sm:$0xff]
                  %2188 = vst [vmem:[%s1222 + $0xf10] sm:$0xff] %v2187
                  %v2189 = vld [vmem:[%s1221 + $0x78c0] sm:$0xff]
                  %2190 = vst [vmem:[%s1222 + $0xf18] sm:$0xff] %v2189
                  %v2191 = vld [vmem:[%s1221 + $0x7900] sm:$0xff]
                  %2192 = vst [vmem:[%s1222 + $0xf20] sm:$0xff] %v2191
                  %v2193 = vld [vmem:[%s1221 + $0x7940] sm:$0xff]
                  %2194 = vst [vmem:[%s1222 + $0xf28] sm:$0xff] %v2193
                  %v2195 = vld [vmem:[%s1221 + $0x7980] sm:$0xff]
                  %2196 = vst [vmem:[%s1222 + $0xf30] sm:$0xff] %v2195
                  %v2197 = vld [vmem:[%s1221 + $0x79c0] sm:$0xff]
                  %2198 = vst [vmem:[%s1222 + $0xf38] sm:$0xff] %v2197
                  %v2199 = vld [vmem:[%s1221 + $0x7a00] sm:$0xff]
                  %2200 = vst [vmem:[%s1222 + $0xf40] sm:$0xff] %v2199
                  %v2201 = vld [vmem:[%s1221 + $0x7a40] sm:$0xff]
                  %2202 = vst [vmem:[%s1222 + $0xf48] sm:$0xff] %v2201
                  %v2203 = vld [vmem:[%s1221 + $0x7a80] sm:$0xff]
                  %2204 = vst [vmem:[%s1222 + $0xf50] sm:$0xff] %v2203
                  %v2205 = vld [vmem:[%s1221 + $0x7ac0] sm:$0xff]
                  %2206 = vst [vmem:[%s1222 + $0xf58] sm:$0xff] %v2205
                  %v2207 = vld [vmem:[%s1221 + $0x7b00] sm:$0xff]
                  %2208 = vst [vmem:[%s1222 + $0xf60] sm:$0xff] %v2207
                  %v2209 = vld [vmem:[%s1221 + $0x7b40] sm:$0xff]
                  %2210 = vst [vmem:[%s1222 + $0xf68] sm:$0xff] %v2209
                  %v2211 = vld [vmem:[%s1221 + $0x7b80] sm:$0xff]
                  %2212 = vst [vmem:[%s1222 + $0xf70] sm:$0xff] %v2211
                  %v2213 = vld [vmem:[%s1221 + $0x7bc0] sm:$0xff]
                  %2214 = vst [vmem:[%s1222 + $0xf78] sm:$0xff] %v2213
                  %v2215 = vld [vmem:[%s1221 + $0x7c00] sm:$0xff]
                  %2216 = vst [vmem:[%s1222 + $0xf80] sm:$0xff] %v2215
                  %v2217 = vld [vmem:[%s1221 + $0x7c40] sm:$0xff]
                  %2218 = vst [vmem:[%s1222 + $0xf88] sm:$0xff] %v2217
                  %v2219 = vld [vmem:[%s1221 + $0x7c80] sm:$0xff]
                  %2220 = vst [vmem:[%s1222 + $0xf90] sm:$0xff] %v2219
                  %v2221 = vld [vmem:[%s1221 + $0x7cc0] sm:$0xff]
                  %2222 = vst [vmem:[%s1222 + $0xf98] sm:$0xff] %v2221
                  %v2223 = vld [vmem:[%s1221 + $0x7d00] sm:$0xff]
                  %2224 = vst [vmem:[%s1222 + $0xfa0] sm:$0xff] %v2223
                  %v2225 = vld [vmem:[%s1221 + $0x7d40] sm:$0xff]
                  %2226 = vst [vmem:[%s1222 + $0xfa8] sm:$0xff] %v2225
                  %v2227 = vld [vmem:[%s1221 + $0x7d80] sm:$0xff]
                  %2228 = vst [vmem:[%s1222 + $0xfb0] sm:$0xff] %v2227
                  %v2229 = vld [vmem:[%s1221 + $0x7dc0] sm:$0xff]
                  %2230 = vst [vmem:[%s1222 + $0xfb8] sm:$0xff] %v2229
                  %v2231 = vld [vmem:[%s1221 + $0x7e00] sm:$0xff]
                  %2232 = vst [vmem:[%s1222 + $0xfc0] sm:$0xff] %v2231
                  %v2233 = vld [vmem:[%s1221 + $0x7e40] sm:$0xff]
                  %2234 = vst [vmem:[%s1222 + $0xfc8] sm:$0xff] %v2233
                  %v2235 = vld [vmem:[%s1221 + $0x7e80] sm:$0xff]
                  %2236 = vst [vmem:[%s1222 + $0xfd0] sm:$0xff] %v2235
                  %v2237 = vld [vmem:[%s1221 + $0x7ec0] sm:$0xff]
                  %2238 = vst [vmem:[%s1222 + $0xfd8] sm:$0xff] %v2237
                  %v2239 = vld [vmem:[%s1221 + $0x7f00] sm:$0xff]
                  %2240 = vst [vmem:[%s1222 + $0xfe0] sm:$0xff] %v2239
                  %v2241 = vld [vmem:[%s1221 + $0x7f40] sm:$0xff]
                  %2242 = vst [vmem:[%s1222 + $0xfe8] sm:$0xff] %v2241
                  %v2243 = vld [vmem:[%s1221 + $0x7f80] sm:$0xff]
                  %2244 = vst [vmem:[%s1222 + $0xff0] sm:$0xff] %v2243
                  %v2245 = vld [vmem:[%s1221 + $0x7fc0] sm:$0xff]
                  %2246 = vst [vmem:[%s1222 + $0xff8] sm:$0xff] %v2245
                  %v2247 = vld [vmem:[%s1221 + $0x8000] sm:$0xff]
                  %2248 = vst [vmem:[%s1222 + $0x1000] sm:$0xff] %v2247
                  %v2249 = vld [vmem:[%s1221 + $0x8040] sm:$0xff]
                  %2250 = vst [vmem:[%s1222 + $0x1008] sm:$0xff] %v2249
                  %v2251 = vld [vmem:[%s1221 + $0x8080] sm:$0xff]
                  %2252 = vst [vmem:[%s1222 + $0x1010] sm:$0xff] %v2251
                  %v2253 = vld [vmem:[%s1221 + $0x80c0] sm:$0xff]
                  %2254 = vst [vmem:[%s1222 + $0x1018] sm:$0xff] %v2253
                  %v2255 = vld [vmem:[%s1221 + $0x8100] sm:$0xff]
                  %2256 = vst [vmem:[%s1222 + $0x1020] sm:$0xff] %v2255
                  %v2257 = vld [vmem:[%s1221 + $0x8140] sm:$0xff]
                  %2258 = vst [vmem:[%s1222 + $0x1028] sm:$0xff] %v2257
                  %v2259 = vld [vmem:[%s1221 + $0x8180] sm:$0xff]
                  %2260 = vst [vmem:[%s1222 + $0x1030] sm:$0xff] %v2259
                  %v2261 = vld [vmem:[%s1221 + $0x81c0] sm:$0xff]
                  %2262 = vst [vmem:[%s1222 + $0x1038] sm:$0xff] %v2261
                  %v2263 = vld [vmem:[%s1221 + $0x8200] sm:$0xff]
                  %2264 = vst [vmem:[%s1222 + $0x1040] sm:$0xff] %v2263
                  %v2265 = vld [vmem:[%s1221 + $0x8240] sm:$0xff]
                  %2266 = vst [vmem:[%s1222 + $0x1048] sm:$0xff] %v2265
                  %v2267 = vld [vmem:[%s1221 + $0x8280] sm:$0xff]
                  %2268 = vst [vmem:[%s1222 + $0x1050] sm:$0xff] %v2267
                  %v2269 = vld [vmem:[%s1221 + $0x82c0] sm:$0xff]
                  %2270 = vst [vmem:[%s1222 + $0x1058] sm:$0xff] %v2269
                  %v2271 = vld [vmem:[%s1221 + $0x8300] sm:$0xff]
                  %2272 = vst [vmem:[%s1222 + $0x1060] sm:$0xff] %v2271
                  %v2273 = vld [vmem:[%s1221 + $0x8340] sm:$0xff]
                  %2274 = vst [vmem:[%s1222 + $0x1068] sm:$0xff] %v2273
                  %v2275 = vld [vmem:[%s1221 + $0x8380] sm:$0xff]
                  %2276 = vst [vmem:[%s1222 + $0x1070] sm:$0xff] %v2275
                  %v2277 = vld [vmem:[%s1221 + $0x83c0] sm:$0xff]
                  %2278 = vst [vmem:[%s1222 + $0x1078] sm:$0xff] %v2277
                  %s2279 = sadd.s32 1, %s1220
                  %p2280 = scmp.ge.s32.totalorder %s2279, 1
                  %s2281 = scalar_select %p2280, 0, %s2279
                  %s2282 = smul.u32 %s2281, 8
                  %s2283 = smul.u32 %s2281, 8
                  %s2284 = scalar_lea.vmem %s138, %s2282
                  %s2285 = scalar_lea.vmem %s135, %s2283 [#allocation2]
                $region52: #{partial_inception_network.1} parent=46 // loop_footer
                  %s1219 = sadd.s32 1, %s1215
                $region53: #{partial_inception_network.1} parent=46 // loop_footer_branch
                  %1214 = sbr.rel target = $region49
                $region54: #{partial_inception_network.1} parent=46 // loop_exit
                  _
              $region47: #{partial_inception_network.1} parent=31 // pred_fallthru
                _
              // Predicated region
              $region55: #{partial_inception_network.1} parent=31 // pred_check
                _
              $region56: #{partial_inception_network.1} parent=31 // pred_check_branch
                %2287 = sbr.rel target = $region58
              $region57: #{partial_inception_network.1} parent=31 // pred_region
                %s2288 = scalar_lea.vmem %s138, 8
                %s2289 = scalar_lea.vmem %s135, 8 [#allocation2]
                loop: start=0, step=1, limit=1
                $region59: #{partial_inception_network.1} parent=57 // loop_pre_header
                  _
                $region60: #{partial_inception_network.1} parent=57 // loop_header
                  %s2293 = sphi 0, %s2297
                  %p2294 = scmp.ge.s32.totalorder %s2293, 1
                  %s2298 = sphi 0, %s3359
                  %s2299 = sphi %s138, %s3362
                  %s2300 = sphi %s135, %s3363
                $region61: #{partial_inception_network.1} parent=57 // loop_header_branch
                  %2296 = sbr.rel (%p2294) target = $region65
                $region62: #{partial_inception_network.1} parent=57 // loop_body
                  %v2301 = vld [vmem:[%s2299] sm:$0xff]
                  %2302 = vst [vmem:[%s2300] sm:$0xff] %v2301
                  %v2303 = vld [vmem:[%s2299 + $0x40] sm:$0xff]
                  %2304 = vst [vmem:[%s2300 + $0x8] sm:$0xff] %v2303
                  %v2305 = vld [vmem:[%s2299 + $0x80] sm:$0xff]
                  %2306 = vst [vmem:[%s2300 + $0x10] sm:$0xff] %v2305
                  %v2307 = vld [vmem:[%s2299 + $0xc0] sm:$0xff]
                  %2308 = vst [vmem:[%s2300 + $0x18] sm:$0xff] %v2307
                  %v2309 = vld [vmem:[%s2299 + $0x100] sm:$0xff]
                  %2310 = vst [vmem:[%s2300 + $0x20] sm:$0xff] %v2309
                  %v2311 = vld [vmem:[%s2299 + $0x140] sm:$0xff]
                  %2312 = vst [vmem:[%s2300 + $0x28] sm:$0xff] %v2311
                  %v2313 = vld [vmem:[%s2299 + $0x180] sm:$0xff]
                  %2314 = vst [vmem:[%s2300 + $0x30] sm:$0xff] %v2313
                  %v2315 = vld [vmem:[%s2299 + $0x1c0] sm:$0xff]
                  %2316 = vst [vmem:[%s2300 + $0x38] sm:$0xff] %v2315
                  %v2317 = vld [vmem:[%s2299 + $0x200] sm:$0xff]
                  %2318 = vst [vmem:[%s2300 + $0x40] sm:$0xff] %v2317
                  %v2319 = vld [vmem:[%s2299 + $0x240] sm:$0xff]
                  %2320 = vst [vmem:[%s2300 + $0x48] sm:$0xff] %v2319
                  %v2321 = vld [vmem:[%s2299 + $0x280] sm:$0xff]
                  %2322 = vst [vmem:[%s2300 + $0x50] sm:$0xff] %v2321
                  %v2323 = vld [vmem:[%s2299 + $0x2c0] sm:$0xff]
                  %2324 = vst [vmem:[%s2300 + $0x58] sm:$0xff] %v2323
                  %v2325 = vld [vmem:[%s2299 + $0x300] sm:$0xff]
                  %2326 = vst [vmem:[%s2300 + $0x60] sm:$0xff] %v2325
                  %v2327 = vld [vmem:[%s2299 + $0x340] sm:$0xff]
                  %2328 = vst [vmem:[%s2300 + $0x68] sm:$0xff] %v2327
                  %v2329 = vld [vmem:[%s2299 + $0x380] sm:$0xff]
                  %2330 = vst [vmem:[%s2300 + $0x70] sm:$0xff] %v2329
                  %v2331 = vld [vmem:[%s2299 + $0x3c0] sm:$0xff]
                  %2332 = vst [vmem:[%s2300 + $0x78] sm:$0xff] %v2331
                  %v2333 = vld [vmem:[%s2299 + $0x400] sm:$0xff]
                  %2334 = vst [vmem:[%s2300 + $0x80] sm:$0xff] %v2333
                  %v2335 = vld [vmem:[%s2299 + $0x440] sm:$0xff]
                  %2336 = vst [vmem:[%s2300 + $0x88] sm:$0xff] %v2335
                  %v2337 = vld [vmem:[%s2299 + $0x480] sm:$0xff]
                  %2338 = vst [vmem:[%s2300 + $0x90] sm:$0xff] %v2337
                  %v2339 = vld [vmem:[%s2299 + $0x4c0] sm:$0xff]
                  %2340 = vst [vmem:[%s2300 + $0x98] sm:$0xff] %v2339
                  %v2341 = vld [vmem:[%s2299 + $0x500] sm:$0xff]
                  %2342 = vst [vmem:[%s2300 + $0xa0] sm:$0xff] %v2341
                  %v2343 = vld [vmem:[%s2299 + $0x540] sm:$0xff]
                  %2344 = vst [vmem:[%s2300 + $0xa8] sm:$0xff] %v2343
                  %v2345 = vld [vmem:[%s2299 + $0x580] sm:$0xff]
                  %2346 = vst [vmem:[%s2300 + $0xb0] sm:$0xff] %v2345
                  %v2347 = vld [vmem:[%s2299 + $0x5c0] sm:$0xff]
                  %2348 = vst [vmem:[%s2300 + $0xb8] sm:$0xff] %v2347
                  %v2349 = vld [vmem:[%s2299 + $0x600] sm:$0xff]
                  %2350 = vst [vmem:[%s2300 + $0xc0] sm:$0xff] %v2349
                  %v2351 = vld [vmem:[%s2299 + $0x640] sm:$0xff]
                  %2352 = vst [vmem:[%s2300 + $0xc8] sm:$0xff] %v2351
                  %v2353 = vld [vmem:[%s2299 + $0x680] sm:$0xff]
                  %2354 = vst [vmem:[%s2300 + $0xd0] sm:$0xff] %v2353
                  %v2355 = vld [vmem:[%s2299 + $0x6c0] sm:$0xff]
                  %2356 = vst [vmem:[%s2300 + $0xd8] sm:$0xff] %v2355
                  %v2357 = vld [vmem:[%s2299 + $0x700] sm:$0xff]
                  %2358 = vst [vmem:[%s2300 + $0xe0] sm:$0xff] %v2357
                  %v2359 = vld [vmem:[%s2299 + $0x740] sm:$0xff]
                  %2360 = vst [vmem:[%s2300 + $0xe8] sm:$0xff] %v2359
                  %v2361 = vld [vmem:[%s2299 + $0x780] sm:$0xff]
                  %2362 = vst [vmem:[%s2300 + $0xf0] sm:$0xff] %v2361
                  %v2363 = vld [vmem:[%s2299 + $0x7c0] sm:$0xff]
                  %2364 = vst [vmem:[%s2300 + $0xf8] sm:$0xff] %v2363
                  %v2365 = vld [vmem:[%s2299 + $0x800] sm:$0xff]
                  %2366 = vst [vmem:[%s2300 + $0x100] sm:$0xff] %v2365
                  %v2367 = vld [vmem:[%s2299 + $0x840] sm:$0xff]
                  %2368 = vst [vmem:[%s2300 + $0x108] sm:$0xff] %v2367
                  %v2369 = vld [vmem:[%s2299 + $0x880] sm:$0xff]
                  %2370 = vst [vmem:[%s2300 + $0x110] sm:$0xff] %v2369
                  %v2371 = vld [vmem:[%s2299 + $0x8c0] sm:$0xff]
                  %2372 = vst [vmem:[%s2300 + $0x118] sm:$0xff] %v2371
                  %v2373 = vld [vmem:[%s2299 + $0x900] sm:$0xff]
                  %2374 = vst [vmem:[%s2300 + $0x120] sm:$0xff] %v2373
                  %v2375 = vld [vmem:[%s2299 + $0x940] sm:$0xff]
                  %2376 = vst [vmem:[%s2300 + $0x128] sm:$0xff] %v2375
                  %v2377 = vld [vmem:[%s2299 + $0x980] sm:$0xff]
                  %2378 = vst [vmem:[%s2300 + $0x130] sm:$0xff] %v2377
                  %v2379 = vld [vmem:[%s2299 + $0x9c0] sm:$0xff]
                  %2380 = vst [vmem:[%s2300 + $0x138] sm:$0xff] %v2379
                  %v2381 = vld [vmem:[%s2299 + $0xa00] sm:$0xff]
                  %2382 = vst [vmem:[%s2300 + $0x140] sm:$0xff] %v2381
                  %v2383 = vld [vmem:[%s2299 + $0xa40] sm:$0xff]
                  %2384 = vst [vmem:[%s2300 + $0x148] sm:$0xff] %v2383
                  %v2385 = vld [vmem:[%s2299 + $0xa80] sm:$0xff]
                  %2386 = vst [vmem:[%s2300 + $0x150] sm:$0xff] %v2385
                  %v2387 = vld [vmem:[%s2299 + $0xac0] sm:$0xff]
                  %2388 = vst [vmem:[%s2300 + $0x158] sm:$0xff] %v2387
                  %v2389 = vld [vmem:[%s2299 + $0xb00] sm:$0xff]
                  %2390 = vst [vmem:[%s2300 + $0x160] sm:$0xff] %v2389
                  %v2391 = vld [vmem:[%s2299 + $0xb40] sm:$0xff]
                  %2392 = vst [vmem:[%s2300 + $0x168] sm:$0xff] %v2391
                  %v2393 = vld [vmem:[%s2299 + $0xb80] sm:$0xff]
                  %2394 = vst [vmem:[%s2300 + $0x170] sm:$0xff] %v2393
                  %v2395 = vld [vmem:[%s2299 + $0xbc0] sm:$0xff]
                  %2396 = vst [vmem:[%s2300 + $0x178] sm:$0xff] %v2395
                  %v2397 = vld [vmem:[%s2299 + $0xc00] sm:$0xff]
                  %2398 = vst [vmem:[%s2300 + $0x180] sm:$0xff] %v2397
                  %v2399 = vld [vmem:[%s2299 + $0xc40] sm:$0xff]
                  %2400 = vst [vmem:[%s2300 + $0x188] sm:$0xff] %v2399
                  %v2401 = vld [vmem:[%s2299 + $0xc80] sm:$0xff]
                  %2402 = vst [vmem:[%s2300 + $0x190] sm:$0xff] %v2401
                  %v2403 = vld [vmem:[%s2299 + $0xcc0] sm:$0xff]
                  %2404 = vst [vmem:[%s2300 + $0x198] sm:$0xff] %v2403
                  %v2405 = vld [vmem:[%s2299 + $0xd00] sm:$0xff]
                  %2406 = vst [vmem:[%s2300 + $0x1a0] sm:$0xff] %v2405
                  %v2407 = vld [vmem:[%s2299 + $0xd40] sm:$0xff]
                  %2408 = vst [vmem:[%s2300 + $0x1a8] sm:$0xff] %v2407
                  %v2409 = vld [vmem:[%s2299 + $0xd80] sm:$0xff]
                  %2410 = vst [vmem:[%s2300 + $0x1b0] sm:$0xff] %v2409
                  %v2411 = vld [vmem:[%s2299 + $0xdc0] sm:$0xff]
                  %2412 = vst [vmem:[%s2300 + $0x1b8] sm:$0xff] %v2411
                  %v2413 = vld [vmem:[%s2299 + $0xe00] sm:$0xff]
                  %2414 = vst [vmem:[%s2300 + $0x1c0] sm:$0xff] %v2413
                  %v2415 = vld [vmem:[%s2299 + $0xe40] sm:$0xff]
                  %2416 = vst [vmem:[%s2300 + $0x1c8] sm:$0xff] %v2415
                  %v2417 = vld [vmem:[%s2299 + $0xe80] sm:$0xff]
                  %2418 = vst [vmem:[%s2300 + $0x1d0] sm:$0xff] %v2417
                  %v2419 = vld [vmem:[%s2299 + $0xec0] sm:$0xff]
                  %2420 = vst [vmem:[%s2300 + $0x1d8] sm:$0xff] %v2419
                  %v2421 = vld [vmem:[%s2299 + $0xf00] sm:$0xff]
                  %2422 = vst [vmem:[%s2300 + $0x1e0] sm:$0xff] %v2421
                  %v2423 = vld [vmem:[%s2299 + $0xf40] sm:$0xff]
                  %2424 = vst [vmem:[%s2300 + $0x1e8] sm:$0xff] %v2423
                  %v2425 = vld [vmem:[%s2299 + $0xf80] sm:$0xff]
                  %2426 = vst [vmem:[%s2300 + $0x1f0] sm:$0xff] %v2425
                  %v2427 = vld [vmem:[%s2299 + $0xfc0] sm:$0xff]
                  %2428 = vst [vmem:[%s2300 + $0x1f8] sm:$0xff] %v2427
                  %v2429 = vld [vmem:[%s2299 + $0x1000] sm:$0xff]
                  %2430 = vst [vmem:[%s2300 + $0x200] sm:$0xff] %v2429
                  %v2431 = vld [vmem:[%s2299 + $0x1040] sm:$0xff]
                  %2432 = vst [vmem:[%s2300 + $0x208] sm:$0xff] %v2431
                  %v2433 = vld [vmem:[%s2299 + $0x1080] sm:$0xff]
                  %2434 = vst [vmem:[%s2300 + $0x210] sm:$0xff] %v2433
                  %v2435 = vld [vmem:[%s2299 + $0x10c0] sm:$0xff]
                  %2436 = vst [vmem:[%s2300 + $0x218] sm:$0xff] %v2435
                  %v2437 = vld [vmem:[%s2299 + $0x1100] sm:$0xff]
                  %2438 = vst [vmem:[%s2300 + $0x220] sm:$0xff] %v2437
                  %v2439 = vld [vmem:[%s2299 + $0x1140] sm:$0xff]
                  %2440 = vst [vmem:[%s2300 + $0x228] sm:$0xff] %v2439
                  %v2441 = vld [vmem:[%s2299 + $0x1180] sm:$0xff]
                  %2442 = vst [vmem:[%s2300 + $0x230] sm:$0xff] %v2441
                  %v2443 = vld [vmem:[%s2299 + $0x11c0] sm:$0xff]
                  %2444 = vst [vmem:[%s2300 + $0x238] sm:$0xff] %v2443
                  %v2445 = vld [vmem:[%s2299 + $0x1200] sm:$0xff]
                  %2446 = vst [vmem:[%s2300 + $0x240] sm:$0xff] %v2445
                  %v2447 = vld [vmem:[%s2299 + $0x1240] sm:$0xff]
                  %2448 = vst [vmem:[%s2300 + $0x248] sm:$0xff] %v2447
                  %v2449 = vld [vmem:[%s2299 + $0x1280] sm:$0xff]
                  %2450 = vst [vmem:[%s2300 + $0x250] sm:$0xff] %v2449
                  %v2451 = vld [vmem:[%s2299 + $0x12c0] sm:$0xff]
                  %2452 = vst [vmem:[%s2300 + $0x258] sm:$0xff] %v2451
                  %v2453 = vld [vmem:[%s2299 + $0x1300] sm:$0xff]
                  %2454 = vst [vmem:[%s2300 + $0x260] sm:$0xff] %v2453
                  %v2455 = vld [vmem:[%s2299 + $0x1340] sm:$0xff]
                  %2456 = vst [vmem:[%s2300 + $0x268] sm:$0xff] %v2455
                  %v2457 = vld [vmem:[%s2299 + $0x1380] sm:$0xff]
                  %2458 = vst [vmem:[%s2300 + $0x270] sm:$0xff] %v2457
                  %v2459 = vld [vmem:[%s2299 + $0x13c0] sm:$0xff]
                  %2460 = vst [vmem:[%s2300 + $0x278] sm:$0xff] %v2459
                  %v2461 = vld [vmem:[%s2299 + $0x1400] sm:$0xff]
                  %2462 = vst [vmem:[%s2300 + $0x280] sm:$0xff] %v2461
                  %v2463 = vld [vmem:[%s2299 + $0x1440] sm:$0xff]
                  %2464 = vst [vmem:[%s2300 + $0x288] sm:$0xff] %v2463
                  %v2465 = vld [vmem:[%s2299 + $0x1480] sm:$0xff]
                  %2466 = vst [vmem:[%s2300 + $0x290] sm:$0xff] %v2465
                  %v2467 = vld [vmem:[%s2299 + $0x14c0] sm:$0xff]
                  %2468 = vst [vmem:[%s2300 + $0x298] sm:$0xff] %v2467
                  %v2469 = vld [vmem:[%s2299 + $0x1500] sm:$0xff]
                  %2470 = vst [vmem:[%s2300 + $0x2a0] sm:$0xff] %v2469
                  %v2471 = vld [vmem:[%s2299 + $0x1540] sm:$0xff]
                  %2472 = vst [vmem:[%s2300 + $0x2a8] sm:$0xff] %v2471
                  %v2473 = vld [vmem:[%s2299 + $0x1580] sm:$0xff]
                  %2474 = vst [vmem:[%s2300 + $0x2b0] sm:$0xff] %v2473
                  %v2475 = vld [vmem:[%s2299 + $0x15c0] sm:$0xff]
                  %2476 = vst [vmem:[%s2300 + $0x2b8] sm:$0xff] %v2475
                  %v2477 = vld [vmem:[%s2299 + $0x1600] sm:$0xff]
                  %2478 = vst [vmem:[%s2300 + $0x2c0] sm:$0xff] %v2477
                  %v2479 = vld [vmem:[%s2299 + $0x1640] sm:$0xff]
                  %2480 = vst [vmem:[%s2300 + $0x2c8] sm:$0xff] %v2479
                  %v2481 = vld [vmem:[%s2299 + $0x1680] sm:$0xff]
                  %2482 = vst [vmem:[%s2300 + $0x2d0] sm:$0xff] %v2481
                  %v2483 = vld [vmem:[%s2299 + $0x16c0] sm:$0xff]
                  %2484 = vst [vmem:[%s2300 + $0x2d8] sm:$0xff] %v2483
                  %v2485 = vld [vmem:[%s2299 + $0x1700] sm:$0xff]
                  %2486 = vst [vmem:[%s2300 + $0x2e0] sm:$0xff] %v2485
                  %v2487 = vld [vmem:[%s2299 + $0x1740] sm:$0xff]
                  %2488 = vst [vmem:[%s2300 + $0x2e8] sm:$0xff] %v2487
                  %v2489 = vld [vmem:[%s2299 + $0x1780] sm:$0xff]
                  %2490 = vst [vmem:[%s2300 + $0x2f0] sm:$0xff] %v2489
                  %v2491 = vld [vmem:[%s2299 + $0x17c0] sm:$0xff]
                  %2492 = vst [vmem:[%s2300 + $0x2f8] sm:$0xff] %v2491
                  %v2493 = vld [vmem:[%s2299 + $0x1800] sm:$0xff]
                  %2494 = vst [vmem:[%s2300 + $0x300] sm:$0xff] %v2493
                  %v2495 = vld [vmem:[%s2299 + $0x1840] sm:$0xff]
                  %2496 = vst [vmem:[%s2300 + $0x308] sm:$0xff] %v2495
                  %v2497 = vld [vmem:[%s2299 + $0x1880] sm:$0xff]
                  %2498 = vst [vmem:[%s2300 + $0x310] sm:$0xff] %v2497
                  %v2499 = vld [vmem:[%s2299 + $0x18c0] sm:$0xff]
                  %2500 = vst [vmem:[%s2300 + $0x318] sm:$0xff] %v2499
                  %v2501 = vld [vmem:[%s2299 + $0x1900] sm:$0xff]
                  %2502 = vst [vmem:[%s2300 + $0x320] sm:$0xff] %v2501
                  %v2503 = vld [vmem:[%s2299 + $0x1940] sm:$0xff]
                  %2504 = vst [vmem:[%s2300 + $0x328] sm:$0xff] %v2503
                  %v2505 = vld [vmem:[%s2299 + $0x1980] sm:$0xff]
                  %2506 = vst [vmem:[%s2300 + $0x330] sm:$0xff] %v2505
                  %v2507 = vld [vmem:[%s2299 + $0x19c0] sm:$0xff]
                  %2508 = vst [vmem:[%s2300 + $0x338] sm:$0xff] %v2507
                  %v2509 = vld [vmem:[%s2299 + $0x1a00] sm:$0xff]
                  %2510 = vst [vmem:[%s2300 + $0x340] sm:$0xff] %v2509
                  %v2511 = vld [vmem:[%s2299 + $0x1a40] sm:$0xff]
                  %2512 = vst [vmem:[%s2300 + $0x348] sm:$0xff] %v2511
                  %v2513 = vld [vmem:[%s2299 + $0x1a80] sm:$0xff]
                  %2514 = vst [vmem:[%s2300 + $0x350] sm:$0xff] %v2513
                  %v2515 = vld [vmem:[%s2299 + $0x1ac0] sm:$0xff]
                  %2516 = vst [vmem:[%s2300 + $0x358] sm:$0xff] %v2515
                  %v2517 = vld [vmem:[%s2299 + $0x1b00] sm:$0xff]
                  %2518 = vst [vmem:[%s2300 + $0x360] sm:$0xff] %v2517
                  %v2519 = vld [vmem:[%s2299 + $0x1b40] sm:$0xff]
                  %2520 = vst [vmem:[%s2300 + $0x368] sm:$0xff] %v2519
                  %v2521 = vld [vmem:[%s2299 + $0x1b80] sm:$0xff]
                  %2522 = vst [vmem:[%s2300 + $0x370] sm:$0xff] %v2521
                  %v2523 = vld [vmem:[%s2299 + $0x1bc0] sm:$0xff]
                  %2524 = vst [vmem:[%s2300 + $0x378] sm:$0xff] %v2523
                  %v2525 = vld [vmem:[%s2299 + $0x1c00] sm:$0xff]
                  %2526 = vst [vmem:[%s2300 + $0x380] sm:$0xff] %v2525
                  %v2527 = vld [vmem:[%s2299 + $0x1c40] sm:$0xff]
                  %2528 = vst [vmem:[%s2300 + $0x388] sm:$0xff] %v2527
                  %v2529 = vld [vmem:[%s2299 + $0x1c80] sm:$0xff]
                  %2530 = vst [vmem:[%s2300 + $0x390] sm:$0xff] %v2529
                  %v2531 = vld [vmem:[%s2299 + $0x1cc0] sm:$0xff]
                  %2532 = vst [vmem:[%s2300 + $0x398] sm:$0xff] %v2531
                  %v2533 = vld [vmem:[%s2299 + $0x1d00] sm:$0xff]
                  %2534 = vst [vmem:[%s2300 + $0x3a0] sm:$0xff] %v2533
                  %v2535 = vld [vmem:[%s2299 + $0x1d40] sm:$0xff]
                  %2536 = vst [vmem:[%s2300 + $0x3a8] sm:$0xff] %v2535
                  %v2537 = vld [vmem:[%s2299 + $0x1d80] sm:$0xff]
                  %2538 = vst [vmem:[%s2300 + $0x3b0] sm:$0xff] %v2537
                  %v2539 = vld [vmem:[%s2299 + $0x1dc0] sm:$0xff]
                  %2540 = vst [vmem:[%s2300 + $0x3b8] sm:$0xff] %v2539
                  %v2541 = vld [vmem:[%s2299 + $0x1e00] sm:$0xff]
                  %2542 = vst [vmem:[%s2300 + $0x3c0] sm:$0xff] %v2541
                  %v2543 = vld [vmem:[%s2299 + $0x1e40] sm:$0xff]
                  %2544 = vst [vmem:[%s2300 + $0x3c8] sm:$0xff] %v2543
                  %v2545 = vld [vmem:[%s2299 + $0x1e80] sm:$0xff]
                  %2546 = vst [vmem:[%s2300 + $0x3d0] sm:$0xff] %v2545
                  %v2547 = vld [vmem:[%s2299 + $0x1ec0] sm:$0xff]
                  %2548 = vst [vmem:[%s2300 + $0x3d8] sm:$0xff] %v2547
                  %v2549 = vld [vmem:[%s2299 + $0x1f00] sm:$0xff]
                  %2550 = vst [vmem:[%s2300 + $0x3e0] sm:$0xff] %v2549
                  %v2551 = vld [vmem:[%s2299 + $0x1f40] sm:$0xff]
                  %2552 = vst [vmem:[%s2300 + $0x3e8] sm:$0xff] %v2551
                  %v2553 = vld [vmem:[%s2299 + $0x1f80] sm:$0xff]
                  %2554 = vst [vmem:[%s2300 + $0x3f0] sm:$0xff] %v2553
                  %v2555 = vld [vmem:[%s2299 + $0x1fc0] sm:$0xff]
                  %2556 = vst [vmem:[%s2300 + $0x3f8] sm:$0xff] %v2555
                  %v2557 = vld [vmem:[%s2299 + $0x2000] sm:$0xff]
                  %2558 = vst [vmem:[%s2300 + $0x400] sm:$0xff] %v2557
                  %v2559 = vld [vmem:[%s2299 + $0x2040] sm:$0xff]
                  %2560 = vst [vmem:[%s2300 + $0x408] sm:$0xff] %v2559
                  %v2561 = vld [vmem:[%s2299 + $0x2080] sm:$0xff]
                  %2562 = vst [vmem:[%s2300 + $0x410] sm:$0xff] %v2561
                  %v2563 = vld [vmem:[%s2299 + $0x20c0] sm:$0xff]
                  %2564 = vst [vmem:[%s2300 + $0x418] sm:$0xff] %v2563
                  %v2565 = vld [vmem:[%s2299 + $0x2100] sm:$0xff]
                  %2566 = vst [vmem:[%s2300 + $0x420] sm:$0xff] %v2565
                  %v2567 = vld [vmem:[%s2299 + $0x2140] sm:$0xff]
                  %2568 = vst [vmem:[%s2300 + $0x428] sm:$0xff] %v2567
                  %v2569 = vld [vmem:[%s2299 + $0x2180] sm:$0xff]
                  %2570 = vst [vmem:[%s2300 + $0x430] sm:$0xff] %v2569
                  %v2571 = vld [vmem:[%s2299 + $0x21c0] sm:$0xff]
                  %2572 = vst [vmem:[%s2300 + $0x438] sm:$0xff] %v2571
                  %v2573 = vld [vmem:[%s2299 + $0x2200] sm:$0xff]
                  %2574 = vst [vmem:[%s2300 + $0x440] sm:$0xff] %v2573
                  %v2575 = vld [vmem:[%s2299 + $0x2240] sm:$0xff]
                  %2576 = vst [vmem:[%s2300 + $0x448] sm:$0xff] %v2575
                  %v2577 = vld [vmem:[%s2299 + $0x2280] sm:$0xff]
                  %2578 = vst [vmem:[%s2300 + $0x450] sm:$0xff] %v2577
                  %v2579 = vld [vmem:[%s2299 + $0x22c0] sm:$0xff]
                  %2580 = vst [vmem:[%s2300 + $0x458] sm:$0xff] %v2579
                  %v2581 = vld [vmem:[%s2299 + $0x2300] sm:$0xff]
                  %2582 = vst [vmem:[%s2300 + $0x460] sm:$0xff] %v2581
                  %v2583 = vld [vmem:[%s2299 + $0x2340] sm:$0xff]
                  %2584 = vst [vmem:[%s2300 + $0x468] sm:$0xff] %v2583
                  %v2585 = vld [vmem:[%s2299 + $0x2380] sm:$0xff]
                  %2586 = vst [vmem:[%s2300 + $0x470] sm:$0xff] %v2585
                  %v2587 = vld [vmem:[%s2299 + $0x23c0] sm:$0xff]
                  %2588 = vst [vmem:[%s2300 + $0x478] sm:$0xff] %v2587
                  %v2589 = vld [vmem:[%s2299 + $0x2400] sm:$0xff]
                  %2590 = vst [vmem:[%s2300 + $0x480] sm:$0xff] %v2589
                  %v2591 = vld [vmem:[%s2299 + $0x2440] sm:$0xff]
                  %2592 = vst [vmem:[%s2300 + $0x488] sm:$0xff] %v2591
                  %v2593 = vld [vmem:[%s2299 + $0x2480] sm:$0xff]
                  %2594 = vst [vmem:[%s2300 + $0x490] sm:$0xff] %v2593
                  %v2595 = vld [vmem:[%s2299 + $0x24c0] sm:$0xff]
                  %2596 = vst [vmem:[%s2300 + $0x498] sm:$0xff] %v2595
                  %v2597 = vld [vmem:[%s2299 + $0x2500] sm:$0xff]
                  %2598 = vst [vmem:[%s2300 + $0x4a0] sm:$0xff] %v2597
                  %v2599 = vld [vmem:[%s2299 + $0x2540] sm:$0xff]
                  %2600 = vst [vmem:[%s2300 + $0x4a8] sm:$0xff] %v2599
                  %v2601 = vld [vmem:[%s2299 + $0x2580] sm:$0xff]
                  %2602 = vst [vmem:[%s2300 + $0x4b0] sm:$0xff] %v2601
                  %v2603 = vld [vmem:[%s2299 + $0x25c0] sm:$0xff]
                  %2604 = vst [vmem:[%s2300 + $0x4b8] sm:$0xff] %v2603
                  %v2605 = vld [vmem:[%s2299 + $0x2600] sm:$0xff]
                  %2606 = vst [vmem:[%s2300 + $0x4c0] sm:$0xff] %v2605
                  %v2607 = vld [vmem:[%s2299 + $0x2640] sm:$0xff]
                  %2608 = vst [vmem:[%s2300 + $0x4c8] sm:$0xff] %v2607
                  %v2609 = vld [vmem:[%s2299 + $0x2680] sm:$0xff]
                  %2610 = vst [vmem:[%s2300 + $0x4d0] sm:$0xff] %v2609
                  %v2611 = vld [vmem:[%s2299 + $0x26c0] sm:$0xff]
                  %2612 = vst [vmem:[%s2300 + $0x4d8] sm:$0xff] %v2611
                  %v2613 = vld [vmem:[%s2299 + $0x2700] sm:$0xff]
                  %2614 = vst [vmem:[%s2300 + $0x4e0] sm:$0xff] %v2613
                  %v2615 = vld [vmem:[%s2299 + $0x2740] sm:$0xff]
                  %2616 = vst [vmem:[%s2300 + $0x4e8] sm:$0xff] %v2615
                  %v2617 = vld [vmem:[%s2299 + $0x2780] sm:$0xff]
                  %2618 = vst [vmem:[%s2300 + $0x4f0] sm:$0xff] %v2617
                  %v2619 = vld [vmem:[%s2299 + $0x27c0] sm:$0xff]
                  %2620 = vst [vmem:[%s2300 + $0x4f8] sm:$0xff] %v2619
                  %v2621 = vld [vmem:[%s2299 + $0x2800] sm:$0xff]
                  %2622 = vst [vmem:[%s2300 + $0x500] sm:$0xff] %v2621
                  %v2623 = vld [vmem:[%s2299 + $0x2840] sm:$0xff]
                  %2624 = vst [vmem:[%s2300 + $0x508] sm:$0xff] %v2623
                  %v2625 = vld [vmem:[%s2299 + $0x2880] sm:$0xff]
                  %2626 = vst [vmem:[%s2300 + $0x510] sm:$0xff] %v2625
                  %v2627 = vld [vmem:[%s2299 + $0x28c0] sm:$0xff]
                  %2628 = vst [vmem:[%s2300 + $0x518] sm:$0xff] %v2627
                  %v2629 = vld [vmem:[%s2299 + $0x2900] sm:$0xff]
                  %2630 = vst [vmem:[%s2300 + $0x520] sm:$0xff] %v2629
                  %v2631 = vld [vmem:[%s2299 + $0x2940] sm:$0xff]
                  %2632 = vst [vmem:[%s2300 + $0x528] sm:$0xff] %v2631
                  %v2633 = vld [vmem:[%s2299 + $0x2980] sm:$0xff]
                  %2634 = vst [vmem:[%s2300 + $0x530] sm:$0xff] %v2633
                  %v2635 = vld [vmem:[%s2299 + $0x29c0] sm:$0xff]
                  %2636 = vst [vmem:[%s2300 + $0x538] sm:$0xff] %v2635
                  %v2637 = vld [vmem:[%s2299 + $0x2a00] sm:$0xff]
                  %2638 = vst [vmem:[%s2300 + $0x540] sm:$0xff] %v2637
                  %v2639 = vld [vmem:[%s2299 + $0x2a40] sm:$0xff]
                  %2640 = vst [vmem:[%s2300 + $0x548] sm:$0xff] %v2639
                  %v2641 = vld [vmem:[%s2299 + $0x2a80] sm:$0xff]
                  %2642 = vst [vmem:[%s2300 + $0x550] sm:$0xff] %v2641
                  %v2643 = vld [vmem:[%s2299 + $0x2ac0] sm:$0xff]
                  %2644 = vst [vmem:[%s2300 + $0x558] sm:$0xff] %v2643
                  %v2645 = vld [vmem:[%s2299 + $0x2b00] sm:$0xff]
                  %2646 = vst [vmem:[%s2300 + $0x560] sm:$0xff] %v2645
                  %v2647 = vld [vmem:[%s2299 + $0x2b40] sm:$0xff]
                  %2648 = vst [vmem:[%s2300 + $0x568] sm:$0xff] %v2647
                  %v2649 = vld [vmem:[%s2299 + $0x2b80] sm:$0xff]
                  %2650 = vst [vmem:[%s2300 + $0x570] sm:$0xff] %v2649
                  %v2651 = vld [vmem:[%s2299 + $0x2bc0] sm:$0xff]
                  %2652 = vst [vmem:[%s2300 + $0x578] sm:$0xff] %v2651
                  %v2653 = vld [vmem:[%s2299 + $0x2c00] sm:$0xff]
                  %2654 = vst [vmem:[%s2300 + $0x580] sm:$0xff] %v2653
                  %v2655 = vld [vmem:[%s2299 + $0x2c40] sm:$0xff]
                  %2656 = vst [vmem:[%s2300 + $0x588] sm:$0xff] %v2655
                  %v2657 = vld [vmem:[%s2299 + $0x2c80] sm:$0xff]
                  %2658 = vst [vmem:[%s2300 + $0x590] sm:$0xff] %v2657
                  %v2659 = vld [vmem:[%s2299 + $0x2cc0] sm:$0xff]
                  %2660 = vst [vmem:[%s2300 + $0x598] sm:$0xff] %v2659
                  %v2661 = vld [vmem:[%s2299 + $0x2d00] sm:$0xff]
                  %2662 = vst [vmem:[%s2300 + $0x5a0] sm:$0xff] %v2661
                  %v2663 = vld [vmem:[%s2299 + $0x2d40] sm:$0xff]
                  %2664 = vst [vmem:[%s2300 + $0x5a8] sm:$0xff] %v2663
                  %v2665 = vld [vmem:[%s2299 + $0x2d80] sm:$0xff]
                  %2666 = vst [vmem:[%s2300 + $0x5b0] sm:$0xff] %v2665
                  %v2667 = vld [vmem:[%s2299 + $0x2dc0] sm:$0xff]
                  %2668 = vst [vmem:[%s2300 + $0x5b8] sm:$0xff] %v2667
                  %v2669 = vld [vmem:[%s2299 + $0x2e00] sm:$0xff]
                  %2670 = vst [vmem:[%s2300 + $0x5c0] sm:$0xff] %v2669
                  %v2671 = vld [vmem:[%s2299 + $0x2e40] sm:$0xff]
                  %2672 = vst [vmem:[%s2300 + $0x5c8] sm:$0xff] %v2671
                  %v2673 = vld [vmem:[%s2299 + $0x2e80] sm:$0xff]
                  %2674 = vst [vmem:[%s2300 + $0x5d0] sm:$0xff] %v2673
                  %v2675 = vld [vmem:[%s2299 + $0x2ec0] sm:$0xff]
                  %2676 = vst [vmem:[%s2300 + $0x5d8] sm:$0xff] %v2675
                  %v2677 = vld [vmem:[%s2299 + $0x2f00] sm:$0xff]
                  %2678 = vst [vmem:[%s2300 + $0x5e0] sm:$0xff] %v2677
                  %v2679 = vld [vmem:[%s2299 + $0x2f40] sm:$0xff]
                  %2680 = vst [vmem:[%s2300 + $0x5e8] sm:$0xff] %v2679
                  %v2681 = vld [vmem:[%s2299 + $0x2f80] sm:$0xff]
                  %2682 = vst [vmem:[%s2300 + $0x5f0] sm:$0xff] %v2681
                  %v2683 = vld [vmem:[%s2299 + $0x2fc0] sm:$0xff]
                  %2684 = vst [vmem:[%s2300 + $0x5f8] sm:$0xff] %v2683
                  %v2685 = vld [vmem:[%s2299 + $0x3000] sm:$0xff]
                  %2686 = vst [vmem:[%s2300 + $0x600] sm:$0xff] %v2685
                  %v2687 = vld [vmem:[%s2299 + $0x3040] sm:$0xff]
                  %2688 = vst [vmem:[%s2300 + $0x608] sm:$0xff] %v2687
                  %v2689 = vld [vmem:[%s2299 + $0x3080] sm:$0xff]
                  %2690 = vst [vmem:[%s2300 + $0x610] sm:$0xff] %v2689
                  %v2691 = vld [vmem:[%s2299 + $0x30c0] sm:$0xff]
                  %2692 = vst [vmem:[%s2300 + $0x618] sm:$0xff] %v2691
                  %v2693 = vld [vmem:[%s2299 + $0x3100] sm:$0xff]
                  %2694 = vst [vmem:[%s2300 + $0x620] sm:$0xff] %v2693
                  %v2695 = vld [vmem:[%s2299 + $0x3140] sm:$0xff]
                  %2696 = vst [vmem:[%s2300 + $0x628] sm:$0xff] %v2695
                  %v2697 = vld [vmem:[%s2299 + $0x3180] sm:$0xff]
                  %2698 = vst [vmem:[%s2300 + $0x630] sm:$0xff] %v2697
                  %v2699 = vld [vmem:[%s2299 + $0x31c0] sm:$0xff]
                  %2700 = vst [vmem:[%s2300 + $0x638] sm:$0xff] %v2699
                  %v2701 = vld [vmem:[%s2299 + $0x3200] sm:$0xff]
                  %2702 = vst [vmem:[%s2300 + $0x640] sm:$0xff] %v2701
                  %v2703 = vld [vmem:[%s2299 + $0x3240] sm:$0xff]
                  %2704 = vst [vmem:[%s2300 + $0x648] sm:$0xff] %v2703
                  %v2705 = vld [vmem:[%s2299 + $0x3280] sm:$0xff]
                  %2706 = vst [vmem:[%s2300 + $0x650] sm:$0xff] %v2705
                  %v2707 = vld [vmem:[%s2299 + $0x32c0] sm:$0xff]
                  %2708 = vst [vmem:[%s2300 + $0x658] sm:$0xff] %v2707
                  %v2709 = vld [vmem:[%s2299 + $0x3300] sm:$0xff]
                  %2710 = vst [vmem:[%s2300 + $0x660] sm:$0xff] %v2709
                  %v2711 = vld [vmem:[%s2299 + $0x3340] sm:$0xff]
                  %2712 = vst [vmem:[%s2300 + $0x668] sm:$0xff] %v2711
                  %v2713 = vld [vmem:[%s2299 + $0x3380] sm:$0xff]
                  %2714 = vst [vmem:[%s2300 + $0x670] sm:$0xff] %v2713
                  %v2715 = vld [vmem:[%s2299 + $0x33c0] sm:$0xff]
                  %2716 = vst [vmem:[%s2300 + $0x678] sm:$0xff] %v2715
                  %v2717 = vld [vmem:[%s2299 + $0x3400] sm:$0xff]
                  %2718 = vst [vmem:[%s2300 + $0x680] sm:$0xff] %v2717
                  %v2719 = vld [vmem:[%s2299 + $0x3440] sm:$0xff]
                  %2720 = vst [vmem:[%s2300 + $0x688] sm:$0xff] %v2719
                  %v2721 = vld [vmem:[%s2299 + $0x3480] sm:$0xff]
                  %2722 = vst [vmem:[%s2300 + $0x690] sm:$0xff] %v2721
                  %v2723 = vld [vmem:[%s2299 + $0x34c0] sm:$0xff]
                  %2724 = vst [vmem:[%s2300 + $0x698] sm:$0xff] %v2723
                  %v2725 = vld [vmem:[%s2299 + $0x3500] sm:$0xff]
                  %2726 = vst [vmem:[%s2300 + $0x6a0] sm:$0xff] %v2725
                  %v2727 = vld [vmem:[%s2299 + $0x3540] sm:$0xff]
                  %2728 = vst [vmem:[%s2300 + $0x6a8] sm:$0xff] %v2727
                  %v2729 = vld [vmem:[%s2299 + $0x3580] sm:$0xff]
                  %2730 = vst [vmem:[%s2300 + $0x6b0] sm:$0xff] %v2729
                  %v2731 = vld [vmem:[%s2299 + $0x35c0] sm:$0xff]
                  %2732 = vst [vmem:[%s2300 + $0x6b8] sm:$0xff] %v2731
                  %v2733 = vld [vmem:[%s2299 + $0x3600] sm:$0xff]
                  %2734 = vst [vmem:[%s2300 + $0x6c0] sm:$0xff] %v2733
                  %v2735 = vld [vmem:[%s2299 + $0x3640] sm:$0xff]
                  %2736 = vst [vmem:[%s2300 + $0x6c8] sm:$0xff] %v2735
                  %v2737 = vld [vmem:[%s2299 + $0x3680] sm:$0xff]
                  %2738 = vst [vmem:[%s2300 + $0x6d0] sm:$0xff] %v2737
                  %v2739 = vld [vmem:[%s2299 + $0x36c0] sm:$0xff]
                  %2740 = vst [vmem:[%s2300 + $0x6d8] sm:$0xff] %v2739
                  %v2741 = vld [vmem:[%s2299 + $0x3700] sm:$0xff]
                  %2742 = vst [vmem:[%s2300 + $0x6e0] sm:$0xff] %v2741
                  %v2743 = vld [vmem:[%s2299 + $0x3740] sm:$0xff]
                  %2744 = vst [vmem:[%s2300 + $0x6e8] sm:$0xff] %v2743
                  %v2745 = vld [vmem:[%s2299 + $0x3780] sm:$0xff]
                  %2746 = vst [vmem:[%s2300 + $0x6f0] sm:$0xff] %v2745
                  %v2747 = vld [vmem:[%s2299 + $0x37c0] sm:$0xff]
                  %2748 = vst [vmem:[%s2300 + $0x6f8] sm:$0xff] %v2747
                  %v2749 = vld [vmem:[%s2299 + $0x3800] sm:$0xff]
                  %2750 = vst [vmem:[%s2300 + $0x700] sm:$0xff] %v2749
                  %v2751 = vld [vmem:[%s2299 + $0x3840] sm:$0xff]
                  %2752 = vst [vmem:[%s2300 + $0x708] sm:$0xff] %v2751
                  %v2753 = vld [vmem:[%s2299 + $0x3880] sm:$0xff]
                  %2754 = vst [vmem:[%s2300 + $0x710] sm:$0xff] %v2753
                  %v2755 = vld [vmem:[%s2299 + $0x38c0] sm:$0xff]
                  %2756 = vst [vmem:[%s2300 + $0x718] sm:$0xff] %v2755
                  %v2757 = vld [vmem:[%s2299 + $0x3900] sm:$0xff]
                  %2758 = vst [vmem:[%s2300 + $0x720] sm:$0xff] %v2757
                  %v2759 = vld [vmem:[%s2299 + $0x3940] sm:$0xff]
                  %2760 = vst [vmem:[%s2300 + $0x728] sm:$0xff] %v2759
                  %v2761 = vld [vmem:[%s2299 + $0x3980] sm:$0xff]
                  %2762 = vst [vmem:[%s2300 + $0x730] sm:$0xff] %v2761
                  %v2763 = vld [vmem:[%s2299 + $0x39c0] sm:$0xff]
                  %2764 = vst [vmem:[%s2300 + $0x738] sm:$0xff] %v2763
                  %v2765 = vld [vmem:[%s2299 + $0x3a00] sm:$0xff]
                  %2766 = vst [vmem:[%s2300 + $0x740] sm:$0xff] %v2765
                  %v2767 = vld [vmem:[%s2299 + $0x3a40] sm:$0xff]
                  %2768 = vst [vmem:[%s2300 + $0x748] sm:$0xff] %v2767
                  %v2769 = vld [vmem:[%s2299 + $0x3a80] sm:$0xff]
                  %2770 = vst [vmem:[%s2300 + $0x750] sm:$0xff] %v2769
                  %v2771 = vld [vmem:[%s2299 + $0x3ac0] sm:$0xff]
                  %2772 = vst [vmem:[%s2300 + $0x758] sm:$0xff] %v2771
                  %v2773 = vld [vmem:[%s2299 + $0x3b00] sm:$0xff]
                  %2774 = vst [vmem:[%s2300 + $0x760] sm:$0xff] %v2773
                  %v2775 = vld [vmem:[%s2299 + $0x3b40] sm:$0xff]
                  %2776 = vst [vmem:[%s2300 + $0x768] sm:$0xff] %v2775
                  %v2777 = vld [vmem:[%s2299 + $0x3b80] sm:$0xff]
                  %2778 = vst [vmem:[%s2300 + $0x770] sm:$0xff] %v2777
                  %v2779 = vld [vmem:[%s2299 + $0x3bc0] sm:$0xff]
                  %2780 = vst [vmem:[%s2300 + $0x778] sm:$0xff] %v2779
                  %v2781 = vld [vmem:[%s2299 + $0x3c00] sm:$0xff]
                  %2782 = vst [vmem:[%s2300 + $0x780] sm:$0xff] %v2781
                  %v2783 = vld [vmem:[%s2299 + $0x3c40] sm:$0xff]
                  %2784 = vst [vmem:[%s2300 + $0x788] sm:$0xff] %v2783
                  %v2785 = vld [vmem:[%s2299 + $0x3c80] sm:$0xff]
                  %2786 = vst [vmem:[%s2300 + $0x790] sm:$0xff] %v2785
                  %v2787 = vld [vmem:[%s2299 + $0x3cc0] sm:$0xff]
                  %2788 = vst [vmem:[%s2300 + $0x798] sm:$0xff] %v2787
                  %v2789 = vld [vmem:[%s2299 + $0x3d00] sm:$0xff]
                  %2790 = vst [vmem:[%s2300 + $0x7a0] sm:$0xff] %v2789
                  %v2791 = vld [vmem:[%s2299 + $0x3d40] sm:$0xff]
                  %2792 = vst [vmem:[%s2300 + $0x7a8] sm:$0xff] %v2791
                  %v2793 = vld [vmem:[%s2299 + $0x3d80] sm:$0xff]
                  %2794 = vst [vmem:[%s2300 + $0x7b0] sm:$0xff] %v2793
                  %v2795 = vld [vmem:[%s2299 + $0x3dc0] sm:$0xff]
                  %2796 = vst [vmem:[%s2300 + $0x7b8] sm:$0xff] %v2795
                  %v2797 = vld [vmem:[%s2299 + $0x3e00] sm:$0xff]
                  %2798 = vst [vmem:[%s2300 + $0x7c0] sm:$0xff] %v2797
                  %v2799 = vld [vmem:[%s2299 + $0x3e40] sm:$0xff]
                  %2800 = vst [vmem:[%s2300 + $0x7c8] sm:$0xff] %v2799
                  %v2801 = vld [vmem:[%s2299 + $0x3e80] sm:$0xff]
                  %2802 = vst [vmem:[%s2300 + $0x7d0] sm:$0xff] %v2801
                  %v2803 = vld [vmem:[%s2299 + $0x3ec0] sm:$0xff]
                  %2804 = vst [vmem:[%s2300 + $0x7d8] sm:$0xff] %v2803
                  %v2805 = vld [vmem:[%s2299 + $0x3f00] sm:$0xff]
                  %2806 = vst [vmem:[%s2300 + $0x7e0] sm:$0xff] %v2805
                  %v2807 = vld [vmem:[%s2299 + $0x3f40] sm:$0xff]
                  %2808 = vst [vmem:[%s2300 + $0x7e8] sm:$0xff] %v2807
                  %v2809 = vld [vmem:[%s2299 + $0x3f80] sm:$0xff]
                  %2810 = vst [vmem:[%s2300 + $0x7f0] sm:$0xff] %v2809
                  %v2811 = vld [vmem:[%s2299 + $0x3fc0] sm:$0xff]
                  %2812 = vst [vmem:[%s2300 + $0x7f8] sm:$0xff] %v2811
                  %v2813 = vld [vmem:[%s2299 + $0x4000] sm:$0xff]
                  %2814 = vst [vmem:[%s2300 + $0x800] sm:$0xff] %v2813
                  %v2815 = vld [vmem:[%s2299 + $0x4040] sm:$0xff]
                  %2816 = vst [vmem:[%s2300 + $0x808] sm:$0xff] %v2815
                  %v2817 = vld [vmem:[%s2299 + $0x4080] sm:$0xff]
                  %2818 = vst [vmem:[%s2300 + $0x810] sm:$0xff] %v2817
                  %v2819 = vld [vmem:[%s2299 + $0x40c0] sm:$0xff]
                  %2820 = vst [vmem:[%s2300 + $0x818] sm:$0xff] %v2819
                  %v2821 = vld [vmem:[%s2299 + $0x4100] sm:$0xff]
                  %2822 = vst [vmem:[%s2300 + $0x820] sm:$0xff] %v2821
                  %v2823 = vld [vmem:[%s2299 + $0x4140] sm:$0xff]
                  %2824 = vst [vmem:[%s2300 + $0x828] sm:$0xff] %v2823
                  %v2825 = vld [vmem:[%s2299 + $0x4180] sm:$0xff]
                  %2826 = vst [vmem:[%s2300 + $0x830] sm:$0xff] %v2825
                  %v2827 = vld [vmem:[%s2299 + $0x41c0] sm:$0xff]
                  %2828 = vst [vmem:[%s2300 + $0x838] sm:$0xff] %v2827
                  %v2829 = vld [vmem:[%s2299 + $0x4200] sm:$0xff]
                  %2830 = vst [vmem:[%s2300 + $0x840] sm:$0xff] %v2829
                  %v2831 = vld [vmem:[%s2299 + $0x4240] sm:$0xff]
                  %2832 = vst [vmem:[%s2300 + $0x848] sm:$0xff] %v2831
                  %v2833 = vld [vmem:[%s2299 + $0x4280] sm:$0xff]
                  %2834 = vst [vmem:[%s2300 + $0x850] sm:$0xff] %v2833
                  %v2835 = vld [vmem:[%s2299 + $0x42c0] sm:$0xff]
                  %2836 = vst [vmem:[%s2300 + $0x858] sm:$0xff] %v2835
                  %v2837 = vld [vmem:[%s2299 + $0x4300] sm:$0xff]
                  %2838 = vst [vmem:[%s2300 + $0x860] sm:$0xff] %v2837
                  %v2839 = vld [vmem:[%s2299 + $0x4340] sm:$0xff]
                  %2840 = vst [vmem:[%s2300 + $0x868] sm:$0xff] %v2839
                  %v2841 = vld [vmem:[%s2299 + $0x4380] sm:$0xff]
                  %2842 = vst [vmem:[%s2300 + $0x870] sm:$0xff] %v2841
                  %v2843 = vld [vmem:[%s2299 + $0x43c0] sm:$0xff]
                  %2844 = vst [vmem:[%s2300 + $0x878] sm:$0xff] %v2843
                  %v2845 = vld [vmem:[%s2299 + $0x4400] sm:$0xff]
                  %2846 = vst [vmem:[%s2300 + $0x880] sm:$0xff] %v2845
                  %v2847 = vld [vmem:[%s2299 + $0x4440] sm:$0xff]
                  %2848 = vst [vmem:[%s2300 + $0x888] sm:$0xff] %v2847
                  %v2849 = vld [vmem:[%s2299 + $0x4480] sm:$0xff]
                  %2850 = vst [vmem:[%s2300 + $0x890] sm:$0xff] %v2849
                  %v2851 = vld [vmem:[%s2299 + $0x44c0] sm:$0xff]
                  %2852 = vst [vmem:[%s2300 + $0x898] sm:$0xff] %v2851
                  %v2853 = vld [vmem:[%s2299 + $0x4500] sm:$0xff]
                  %2854 = vst [vmem:[%s2300 + $0x8a0] sm:$0xff] %v2853
                  %v2855 = vld [vmem:[%s2299 + $0x4540] sm:$0xff]
                  %2856 = vst [vmem:[%s2300 + $0x8a8] sm:$0xff] %v2855
                  %v2857 = vld [vmem:[%s2299 + $0x4580] sm:$0xff]
                  %2858 = vst [vmem:[%s2300 + $0x8b0] sm:$0xff] %v2857
                  %v2859 = vld [vmem:[%s2299 + $0x45c0] sm:$0xff]
                  %2860 = vst [vmem:[%s2300 + $0x8b8] sm:$0xff] %v2859
                  %v2861 = vld [vmem:[%s2299 + $0x4600] sm:$0xff]
                  %2862 = vst [vmem:[%s2300 + $0x8c0] sm:$0xff] %v2861
                  %v2863 = vld [vmem:[%s2299 + $0x4640] sm:$0xff]
                  %2864 = vst [vmem:[%s2300 + $0x8c8] sm:$0xff] %v2863
                  %v2865 = vld [vmem:[%s2299 + $0x4680] sm:$0xff]
                  %2866 = vst [vmem:[%s2300 + $0x8d0] sm:$0xff] %v2865
                  %v2867 = vld [vmem:[%s2299 + $0x46c0] sm:$0xff]
                  %2868 = vst [vmem:[%s2300 + $0x8d8] sm:$0xff] %v2867
                  %v2869 = vld [vmem:[%s2299 + $0x4700] sm:$0xff]
                  %2870 = vst [vmem:[%s2300 + $0x8e0] sm:$0xff] %v2869
                  %v2871 = vld [vmem:[%s2299 + $0x4740] sm:$0xff]
                  %2872 = vst [vmem:[%s2300 + $0x8e8] sm:$0xff] %v2871
                  %v2873 = vld [vmem:[%s2299 + $0x4780] sm:$0xff]
                  %2874 = vst [vmem:[%s2300 + $0x8f0] sm:$0xff] %v2873
                  %v2875 = vld [vmem:[%s2299 + $0x47c0] sm:$0xff]
                  %2876 = vst [vmem:[%s2300 + $0x8f8] sm:$0xff] %v2875
                  %v2877 = vld [vmem:[%s2299 + $0x4800] sm:$0xff]
                  %2878 = vst [vmem:[%s2300 + $0x900] sm:$0xff] %v2877
                  %v2879 = vld [vmem:[%s2299 + $0x4840] sm:$0xff]
                  %2880 = vst [vmem:[%s2300 + $0x908] sm:$0xff] %v2879
                  %v2881 = vld [vmem:[%s2299 + $0x4880] sm:$0xff]
                  %2882 = vst [vmem:[%s2300 + $0x910] sm:$0xff] %v2881
                  %v2883 = vld [vmem:[%s2299 + $0x48c0] sm:$0xff]
                  %2884 = vst [vmem:[%s2300 + $0x918] sm:$0xff] %v2883
                  %v2885 = vld [vmem:[%s2299 + $0x4900] sm:$0xff]
                  %2886 = vst [vmem:[%s2300 + $0x920] sm:$0xff] %v2885
                  %v2887 = vld [vmem:[%s2299 + $0x4940] sm:$0xff]
                  %2888 = vst [vmem:[%s2300 + $0x928] sm:$0xff] %v2887
                  %v2889 = vld [vmem:[%s2299 + $0x4980] sm:$0xff]
                  %2890 = vst [vmem:[%s2300 + $0x930] sm:$0xff] %v2889
                  %v2891 = vld [vmem:[%s2299 + $0x49c0] sm:$0xff]
                  %2892 = vst [vmem:[%s2300 + $0x938] sm:$0xff] %v2891
                  %v2893 = vld [vmem:[%s2299 + $0x4a00] sm:$0xff]
                  %2894 = vst [vmem:[%s2300 + $0x940] sm:$0xff] %v2893
                  %v2895 = vld [vmem:[%s2299 + $0x4a40] sm:$0xff]
                  %2896 = vst [vmem:[%s2300 + $0x948] sm:$0xff] %v2895
                  %v2897 = vld [vmem:[%s2299 + $0x4a80] sm:$0xff]
                  %2898 = vst [vmem:[%s2300 + $0x950] sm:$0xff] %v2897
                  %v2899 = vld [vmem:[%s2299 + $0x4ac0] sm:$0xff]
                  %2900 = vst [vmem:[%s2300 + $0x958] sm:$0xff] %v2899
                  %v2901 = vld [vmem:[%s2299 + $0x4b00] sm:$0xff]
                  %2902 = vst [vmem:[%s2300 + $0x960] sm:$0xff] %v2901
                  %v2903 = vld [vmem:[%s2299 + $0x4b40] sm:$0xff]
                  %2904 = vst [vmem:[%s2300 + $0x968] sm:$0xff] %v2903
                  %v2905 = vld [vmem:[%s2299 + $0x4b80] sm:$0xff]
                  %2906 = vst [vmem:[%s2300 + $0x970] sm:$0xff] %v2905
                  %v2907 = vld [vmem:[%s2299 + $0x4bc0] sm:$0xff]
                  %2908 = vst [vmem:[%s2300 + $0x978] sm:$0xff] %v2907
                  %v2909 = vld [vmem:[%s2299 + $0x4c00] sm:$0xff]
                  %2910 = vst [vmem:[%s2300 + $0x980] sm:$0xff] %v2909
                  %v2911 = vld [vmem:[%s2299 + $0x4c40] sm:$0xff]
                  %2912 = vst [vmem:[%s2300 + $0x988] sm:$0xff] %v2911
                  %v2913 = vld [vmem:[%s2299 + $0x4c80] sm:$0xff]
                  %2914 = vst [vmem:[%s2300 + $0x990] sm:$0xff] %v2913
                  %v2915 = vld [vmem:[%s2299 + $0x4cc0] sm:$0xff]
                  %2916 = vst [vmem:[%s2300 + $0x998] sm:$0xff] %v2915
                  %v2917 = vld [vmem:[%s2299 + $0x4d00] sm:$0xff]
                  %2918 = vst [vmem:[%s2300 + $0x9a0] sm:$0xff] %v2917
                  %v2919 = vld [vmem:[%s2299 + $0x4d40] sm:$0xff]
                  %2920 = vst [vmem:[%s2300 + $0x9a8] sm:$0xff] %v2919
                  %v2921 = vld [vmem:[%s2299 + $0x4d80] sm:$0xff]
                  %2922 = vst [vmem:[%s2300 + $0x9b0] sm:$0xff] %v2921
                  %v2923 = vld [vmem:[%s2299 + $0x4dc0] sm:$0xff]
                  %2924 = vst [vmem:[%s2300 + $0x9b8] sm:$0xff] %v2923
                  %v2925 = vld [vmem:[%s2299 + $0x4e00] sm:$0xff]
                  %2926 = vst [vmem:[%s2300 + $0x9c0] sm:$0xff] %v2925
                  %v2927 = vld [vmem:[%s2299 + $0x4e40] sm:$0xff]
                  %2928 = vst [vmem:[%s2300 + $0x9c8] sm:$0xff] %v2927
                  %v2929 = vld [vmem:[%s2299 + $0x4e80] sm:$0xff]
                  %2930 = vst [vmem:[%s2300 + $0x9d0] sm:$0xff] %v2929
                  %v2931 = vld [vmem:[%s2299 + $0x4ec0] sm:$0xff]
                  %2932 = vst [vmem:[%s2300 + $0x9d8] sm:$0xff] %v2931
                  %v2933 = vld [vmem:[%s2299 + $0x4f00] sm:$0xff]
                  %2934 = vst [vmem:[%s2300 + $0x9e0] sm:$0xff] %v2933
                  %v2935 = vld [vmem:[%s2299 + $0x4f40] sm:$0xff]
                  %2936 = vst [vmem:[%s2300 + $0x9e8] sm:$0xff] %v2935
                  %v2937 = vld [vmem:[%s2299 + $0x4f80] sm:$0xff]
                  %2938 = vst [vmem:[%s2300 + $0x9f0] sm:$0xff] %v2937
                  %v2939 = vld [vmem:[%s2299 + $0x4fc0] sm:$0xff]
                  %2940 = vst [vmem:[%s2300 + $0x9f8] sm:$0xff] %v2939
                  %v2941 = vld [vmem:[%s2299 + $0x5000] sm:$0xff]
                  %2942 = vst [vmem:[%s2300 + $0xa00] sm:$0xff] %v2941
                  %v2943 = vld [vmem:[%s2299 + $0x5040] sm:$0xff]
                  %2944 = vst [vmem:[%s2300 + $0xa08] sm:$0xff] %v2943
                  %v2945 = vld [vmem:[%s2299 + $0x5080] sm:$0xff]
                  %2946 = vst [vmem:[%s2300 + $0xa10] sm:$0xff] %v2945
                  %v2947 = vld [vmem:[%s2299 + $0x50c0] sm:$0xff]
                  %2948 = vst [vmem:[%s2300 + $0xa18] sm:$0xff] %v2947
                  %v2949 = vld [vmem:[%s2299 + $0x5100] sm:$0xff]
                  %2950 = vst [vmem:[%s2300 + $0xa20] sm:$0xff] %v2949
                  %v2951 = vld [vmem:[%s2299 + $0x5140] sm:$0xff]
                  %2952 = vst [vmem:[%s2300 + $0xa28] sm:$0xff] %v2951
                  %v2953 = vld [vmem:[%s2299 + $0x5180] sm:$0xff]
                  %2954 = vst [vmem:[%s2300 + $0xa30] sm:$0xff] %v2953
                  %v2955 = vld [vmem:[%s2299 + $0x51c0] sm:$0xff]
                  %2956 = vst [vmem:[%s2300 + $0xa38] sm:$0xff] %v2955
                  %v2957 = vld [vmem:[%s2299 + $0x5200] sm:$0xff]
                  %2958 = vst [vmem:[%s2300 + $0xa40] sm:$0xff] %v2957
                  %v2959 = vld [vmem:[%s2299 + $0x5240] sm:$0xff]
                  %2960 = vst [vmem:[%s2300 + $0xa48] sm:$0xff] %v2959
                  %v2961 = vld [vmem:[%s2299 + $0x5280] sm:$0xff]
                  %2962 = vst [vmem:[%s2300 + $0xa50] sm:$0xff] %v2961
                  %v2963 = vld [vmem:[%s2299 + $0x52c0] sm:$0xff]
                  %2964 = vst [vmem:[%s2300 + $0xa58] sm:$0xff] %v2963
                  %v2965 = vld [vmem:[%s2299 + $0x5300] sm:$0xff]
                  %2966 = vst [vmem:[%s2300 + $0xa60] sm:$0xff] %v2965
                  %v2967 = vld [vmem:[%s2299 + $0x5340] sm:$0xff]
                  %2968 = vst [vmem:[%s2300 + $0xa68] sm:$0xff] %v2967
                  %v2969 = vld [vmem:[%s2299 + $0x5380] sm:$0xff]
                  %2970 = vst [vmem:[%s2300 + $0xa70] sm:$0xff] %v2969
                  %v2971 = vld [vmem:[%s2299 + $0x53c0] sm:$0xff]
                  %2972 = vst [vmem:[%s2300 + $0xa78] sm:$0xff] %v2971
                  %v2973 = vld [vmem:[%s2299 + $0x5400] sm:$0xff]
                  %2974 = vst [vmem:[%s2300 + $0xa80] sm:$0xff] %v2973
                  %v2975 = vld [vmem:[%s2299 + $0x5440] sm:$0xff]
                  %2976 = vst [vmem:[%s2300 + $0xa88] sm:$0xff] %v2975
                  %v2977 = vld [vmem:[%s2299 + $0x5480] sm:$0xff]
                  %2978 = vst [vmem:[%s2300 + $0xa90] sm:$0xff] %v2977
                  %v2979 = vld [vmem:[%s2299 + $0x54c0] sm:$0xff]
                  %2980 = vst [vmem:[%s2300 + $0xa98] sm:$0xff] %v2979
                  %v2981 = vld [vmem:[%s2299 + $0x5500] sm:$0xff]
                  %2982 = vst [vmem:[%s2300 + $0xaa0] sm:$0xff] %v2981
                  %v2983 = vld [vmem:[%s2299 + $0x5540] sm:$0xff]
                  %2984 = vst [vmem:[%s2300 + $0xaa8] sm:$0xff] %v2983
                  %v2985 = vld [vmem:[%s2299 + $0x5580] sm:$0xff]
                  %2986 = vst [vmem:[%s2300 + $0xab0] sm:$0xff] %v2985
                  %v2987 = vld [vmem:[%s2299 + $0x55c0] sm:$0xff]
                  %2988 = vst [vmem:[%s2300 + $0xab8] sm:$0xff] %v2987
                  %v2989 = vld [vmem:[%s2299 + $0x5600] sm:$0xff]
                  %2990 = vst [vmem:[%s2300 + $0xac0] sm:$0xff] %v2989
                  %v2991 = vld [vmem:[%s2299 + $0x5640] sm:$0xff]
                  %2992 = vst [vmem:[%s2300 + $0xac8] sm:$0xff] %v2991
                  %v2993 = vld [vmem:[%s2299 + $0x5680] sm:$0xff]
                  %2994 = vst [vmem:[%s2300 + $0xad0] sm:$0xff] %v2993
                  %v2995 = vld [vmem:[%s2299 + $0x56c0] sm:$0xff]
                  %2996 = vst [vmem:[%s2300 + $0xad8] sm:$0xff] %v2995
                  %v2997 = vld [vmem:[%s2299 + $0x5700] sm:$0xff]
                  %2998 = vst [vmem:[%s2300 + $0xae0] sm:$0xff] %v2997
                  %v2999 = vld [vmem:[%s2299 + $0x5740] sm:$0xff]
                  %3000 = vst [vmem:[%s2300 + $0xae8] sm:$0xff] %v2999
                  %v3001 = vld [vmem:[%s2299 + $0x5780] sm:$0xff]
                  %3002 = vst [vmem:[%s2300 + $0xaf0] sm:$0xff] %v3001
                  %v3003 = vld [vmem:[%s2299 + $0x57c0] sm:$0xff]
                  %3004 = vst [vmem:[%s2300 + $0xaf8] sm:$0xff] %v3003
                  %v3005 = vld [vmem:[%s2299 + $0x5800] sm:$0xff]
                  %3006 = vst [vmem:[%s2300 + $0xb00] sm:$0xff] %v3005
                  %v3007 = vld [vmem:[%s2299 + $0x5840] sm:$0xff]
                  %3008 = vst [vmem:[%s2300 + $0xb08] sm:$0xff] %v3007
                  %v3009 = vld [vmem:[%s2299 + $0x5880] sm:$0xff]
                  %3010 = vst [vmem:[%s2300 + $0xb10] sm:$0xff] %v3009
                  %v3011 = vld [vmem:[%s2299 + $0x58c0] sm:$0xff]
                  %3012 = vst [vmem:[%s2300 + $0xb18] sm:$0xff] %v3011
                  %v3013 = vld [vmem:[%s2299 + $0x5900] sm:$0xff]
                  %3014 = vst [vmem:[%s2300 + $0xb20] sm:$0xff] %v3013
                  %v3015 = vld [vmem:[%s2299 + $0x5940] sm:$0xff]
                  %3016 = vst [vmem:[%s2300 + $0xb28] sm:$0xff] %v3015
                  %v3017 = vld [vmem:[%s2299 + $0x5980] sm:$0xff]
                  %3018 = vst [vmem:[%s2300 + $0xb30] sm:$0xff] %v3017
                  %v3019 = vld [vmem:[%s2299 + $0x59c0] sm:$0xff]
                  %3020 = vst [vmem:[%s2300 + $0xb38] sm:$0xff] %v3019
                  %v3021 = vld [vmem:[%s2299 + $0x5a00] sm:$0xff]
                  %3022 = vst [vmem:[%s2300 + $0xb40] sm:$0xff] %v3021
                  %v3023 = vld [vmem:[%s2299 + $0x5a40] sm:$0xff]
                  %3024 = vst [vmem:[%s2300 + $0xb48] sm:$0xff] %v3023
                  %v3025 = vld [vmem:[%s2299 + $0x5a80] sm:$0xff]
                  %3026 = vst [vmem:[%s2300 + $0xb50] sm:$0xff] %v3025
                  %v3027 = vld [vmem:[%s2299 + $0x5ac0] sm:$0xff]
                  %3028 = vst [vmem:[%s2300 + $0xb58] sm:$0xff] %v3027
                  %v3029 = vld [vmem:[%s2299 + $0x5b00] sm:$0xff]
                  %3030 = vst [vmem:[%s2300 + $0xb60] sm:$0xff] %v3029
                  %v3031 = vld [vmem:[%s2299 + $0x5b40] sm:$0xff]
                  %3032 = vst [vmem:[%s2300 + $0xb68] sm:$0xff] %v3031
                  %v3033 = vld [vmem:[%s2299 + $0x5b80] sm:$0xff]
                  %3034 = vst [vmem:[%s2300 + $0xb70] sm:$0xff] %v3033
                  %v3035 = vld [vmem:[%s2299 + $0x5bc0] sm:$0xff]
                  %3036 = vst [vmem:[%s2300 + $0xb78] sm:$0xff] %v3035
                  %v3037 = vld [vmem:[%s2299 + $0x5c00] sm:$0xff]
                  %3038 = vst [vmem:[%s2300 + $0xb80] sm:$0xff] %v3037
                  %v3039 = vld [vmem:[%s2299 + $0x5c40] sm:$0xff]
                  %3040 = vst [vmem:[%s2300 + $0xb88] sm:$0xff] %v3039
                  %v3041 = vld [vmem:[%s2299 + $0x5c80] sm:$0xff]
                  %3042 = vst [vmem:[%s2300 + $0xb90] sm:$0xff] %v3041
                  %v3043 = vld [vmem:[%s2299 + $0x5cc0] sm:$0xff]
                  %3044 = vst [vmem:[%s2300 + $0xb98] sm:$0xff] %v3043
                  %v3045 = vld [vmem:[%s2299 + $0x5d00] sm:$0xff]
                  %3046 = vst [vmem:[%s2300 + $0xba0] sm:$0xff] %v3045
                  %v3047 = vld [vmem:[%s2299 + $0x5d40] sm:$0xff]
                  %3048 = vst [vmem:[%s2300 + $0xba8] sm:$0xff] %v3047
                  %v3049 = vld [vmem:[%s2299 + $0x5d80] sm:$0xff]
                  %3050 = vst [vmem:[%s2300 + $0xbb0] sm:$0xff] %v3049
                  %v3051 = vld [vmem:[%s2299 + $0x5dc0] sm:$0xff]
                  %3052 = vst [vmem:[%s2300 + $0xbb8] sm:$0xff] %v3051
                  %v3053 = vld [vmem:[%s2299 + $0x5e00] sm:$0xff]
                  %3054 = vst [vmem:[%s2300 + $0xbc0] sm:$0xff] %v3053
                  %v3055 = vld [vmem:[%s2299 + $0x5e40] sm:$0xff]
                  %3056 = vst [vmem:[%s2300 + $0xbc8] sm:$0xff] %v3055
                  %v3057 = vld [vmem:[%s2299 + $0x5e80] sm:$0xff]
                  %3058 = vst [vmem:[%s2300 + $0xbd0] sm:$0xff] %v3057
                  %v3059 = vld [vmem:[%s2299 + $0x5ec0] sm:$0xff]
                  %3060 = vst [vmem:[%s2300 + $0xbd8] sm:$0xff] %v3059
                  %v3061 = vld [vmem:[%s2299 + $0x5f00] sm:$0xff]
                  %3062 = vst [vmem:[%s2300 + $0xbe0] sm:$0xff] %v3061
                  %v3063 = vld [vmem:[%s2299 + $0x5f40] sm:$0xff]
                  %3064 = vst [vmem:[%s2300 + $0xbe8] sm:$0xff] %v3063
                  %v3065 = vld [vmem:[%s2299 + $0x5f80] sm:$0xff]
                  %3066 = vst [vmem:[%s2300 + $0xbf0] sm:$0xff] %v3065
                  %v3067 = vld [vmem:[%s2299 + $0x5fc0] sm:$0xff]
                  %3068 = vst [vmem:[%s2300 + $0xbf8] sm:$0xff] %v3067
                  %v3069 = vld [vmem:[%s2299 + $0x6000] sm:$0xff]
                  %3070 = vst [vmem:[%s2300 + $0xc00] sm:$0xff] %v3069
                  %v3071 = vld [vmem:[%s2299 + $0x6040] sm:$0xff]
                  %3072 = vst [vmem:[%s2300 + $0xc08] sm:$0xff] %v3071
                  %v3073 = vld [vmem:[%s2299 + $0x6080] sm:$0xff]
                  %3074 = vst [vmem:[%s2300 + $0xc10] sm:$0xff] %v3073
                  %v3075 = vld [vmem:[%s2299 + $0x60c0] sm:$0xff]
                  %3076 = vst [vmem:[%s2300 + $0xc18] sm:$0xff] %v3075
                  %v3077 = vld [vmem:[%s2299 + $0x6100] sm:$0xff]
                  %3078 = vst [vmem:[%s2300 + $0xc20] sm:$0xff] %v3077
                  %v3079 = vld [vmem:[%s2299 + $0x6140] sm:$0xff]
                  %3080 = vst [vmem:[%s2300 + $0xc28] sm:$0xff] %v3079
                  %v3081 = vld [vmem:[%s2299 + $0x6180] sm:$0xff]
                  %3082 = vst [vmem:[%s2300 + $0xc30] sm:$0xff] %v3081
                  %v3083 = vld [vmem:[%s2299 + $0x61c0] sm:$0xff]
                  %3084 = vst [vmem:[%s2300 + $0xc38] sm:$0xff] %v3083
                  %v3085 = vld [vmem:[%s2299 + $0x6200] sm:$0xff]
                  %3086 = vst [vmem:[%s2300 + $0xc40] sm:$0xff] %v3085
                  %v3087 = vld [vmem:[%s2299 + $0x6240] sm:$0xff]
                  %3088 = vst [vmem:[%s2300 + $0xc48] sm:$0xff] %v3087
                  %v3089 = vld [vmem:[%s2299 + $0x6280] sm:$0xff]
                  %3090 = vst [vmem:[%s2300 + $0xc50] sm:$0xff] %v3089
                  %v3091 = vld [vmem:[%s2299 + $0x62c0] sm:$0xff]
                  %3092 = vst [vmem:[%s2300 + $0xc58] sm:$0xff] %v3091
                  %v3093 = vld [vmem:[%s2299 + $0x6300] sm:$0xff]
                  %3094 = vst [vmem:[%s2300 + $0xc60] sm:$0xff] %v3093
                  %v3095 = vld [vmem:[%s2299 + $0x6340] sm:$0xff]
                  %3096 = vst [vmem:[%s2300 + $0xc68] sm:$0xff] %v3095
                  %v3097 = vld [vmem:[%s2299 + $0x6380] sm:$0xff]
                  %3098 = vst [vmem:[%s2300 + $0xc70] sm:$0xff] %v3097
                  %v3099 = vld [vmem:[%s2299 + $0x63c0] sm:$0xff]
                  %3100 = vst [vmem:[%s2300 + $0xc78] sm:$0xff] %v3099
                  %v3101 = vld [vmem:[%s2299 + $0x6400] sm:$0xff]
                  %3102 = vst [vmem:[%s2300 + $0xc80] sm:$0xff] %v3101
                  %v3103 = vld [vmem:[%s2299 + $0x6440] sm:$0xff]
                  %3104 = vst [vmem:[%s2300 + $0xc88] sm:$0xff] %v3103
                  %v3105 = vld [vmem:[%s2299 + $0x6480] sm:$0xff]
                  %3106 = vst [vmem:[%s2300 + $0xc90] sm:$0xff] %v3105
                  %v3107 = vld [vmem:[%s2299 + $0x64c0] sm:$0xff]
                  %3108 = vst [vmem:[%s2300 + $0xc98] sm:$0xff] %v3107
                  %v3109 = vld [vmem:[%s2299 + $0x6500] sm:$0xff]
                  %3110 = vst [vmem:[%s2300 + $0xca0] sm:$0xff] %v3109
                  %v3111 = vld [vmem:[%s2299 + $0x6540] sm:$0xff]
                  %3112 = vst [vmem:[%s2300 + $0xca8] sm:$0xff] %v3111
                  %v3113 = vld [vmem:[%s2299 + $0x6580] sm:$0xff]
                  %3114 = vst [vmem:[%s2300 + $0xcb0] sm:$0xff] %v3113
                  %v3115 = vld [vmem:[%s2299 + $0x65c0] sm:$0xff]
                  %3116 = vst [vmem:[%s2300 + $0xcb8] sm:$0xff] %v3115
                  %v3117 = vld [vmem:[%s2299 + $0x6600] sm:$0xff]
                  %3118 = vst [vmem:[%s2300 + $0xcc0] sm:$0xff] %v3117
                  %v3119 = vld [vmem:[%s2299 + $0x6640] sm:$0xff]
                  %3120 = vst [vmem:[%s2300 + $0xcc8] sm:$0xff] %v3119
                  %v3121 = vld [vmem:[%s2299 + $0x6680] sm:$0xff]
                  %3122 = vst [vmem:[%s2300 + $0xcd0] sm:$0xff] %v3121
                  %v3123 = vld [vmem:[%s2299 + $0x66c0] sm:$0xff]
                  %3124 = vst [vmem:[%s2300 + $0xcd8] sm:$0xff] %v3123
                  %v3125 = vld [vmem:[%s2299 + $0x6700] sm:$0xff]
                  %3126 = vst [vmem:[%s2300 + $0xce0] sm:$0xff] %v3125
                  %v3127 = vld [vmem:[%s2299 + $0x6740] sm:$0xff]
                  %3128 = vst [vmem:[%s2300 + $0xce8] sm:$0xff] %v3127
                  %v3129 = vld [vmem:[%s2299 + $0x6780] sm:$0xff]
                  %3130 = vst [vmem:[%s2300 + $0xcf0] sm:$0xff] %v3129
                  %v3131 = vld [vmem:[%s2299 + $0x67c0] sm:$0xff]
                  %3132 = vst [vmem:[%s2300 + $0xcf8] sm:$0xff] %v3131
                  %v3133 = vld [vmem:[%s2299 + $0x6800] sm:$0xff]
                  %3134 = vst [vmem:[%s2300 + $0xd00] sm:$0xff] %v3133
                  %v3135 = vld [vmem:[%s2299 + $0x6840] sm:$0xff]
                  %3136 = vst [vmem:[%s2300 + $0xd08] sm:$0xff] %v3135
                  %v3137 = vld [vmem:[%s2299 + $0x6880] sm:$0xff]
                  %3138 = vst [vmem:[%s2300 + $0xd10] sm:$0xff] %v3137
                  %v3139 = vld [vmem:[%s2299 + $0x68c0] sm:$0xff]
                  %3140 = vst [vmem:[%s2300 + $0xd18] sm:$0xff] %v3139
                  %v3141 = vld [vmem:[%s2299 + $0x6900] sm:$0xff]
                  %3142 = vst [vmem:[%s2300 + $0xd20] sm:$0xff] %v3141
                  %v3143 = vld [vmem:[%s2299 + $0x6940] sm:$0xff]
                  %3144 = vst [vmem:[%s2300 + $0xd28] sm:$0xff] %v3143
                  %v3145 = vld [vmem:[%s2299 + $0x6980] sm:$0xff]
                  %3146 = vst [vmem:[%s2300 + $0xd30] sm:$0xff] %v3145
                  %v3147 = vld [vmem:[%s2299 + $0x69c0] sm:$0xff]
                  %3148 = vst [vmem:[%s2300 + $0xd38] sm:$0xff] %v3147
                  %v3149 = vld [vmem:[%s2299 + $0x6a00] sm:$0xff]
                  %3150 = vst [vmem:[%s2300 + $0xd40] sm:$0xff] %v3149
                  %v3151 = vld [vmem:[%s2299 + $0x6a40] sm:$0xff]
                  %3152 = vst [vmem:[%s2300 + $0xd48] sm:$0xff] %v3151
                  %v3153 = vld [vmem:[%s2299 + $0x6a80] sm:$0xff]
                  %3154 = vst [vmem:[%s2300 + $0xd50] sm:$0xff] %v3153
                  %v3155 = vld [vmem:[%s2299 + $0x6ac0] sm:$0xff]
                  %3156 = vst [vmem:[%s2300 + $0xd58] sm:$0xff] %v3155
                  %v3157 = vld [vmem:[%s2299 + $0x6b00] sm:$0xff]
                  %3158 = vst [vmem:[%s2300 + $0xd60] sm:$0xff] %v3157
                  %v3159 = vld [vmem:[%s2299 + $0x6b40] sm:$0xff]
                  %3160 = vst [vmem:[%s2300 + $0xd68] sm:$0xff] %v3159
                  %v3161 = vld [vmem:[%s2299 + $0x6b80] sm:$0xff]
                  %3162 = vst [vmem:[%s2300 + $0xd70] sm:$0xff] %v3161
                  %v3163 = vld [vmem:[%s2299 + $0x6bc0] sm:$0xff]
                  %3164 = vst [vmem:[%s2300 + $0xd78] sm:$0xff] %v3163
                  %v3165 = vld [vmem:[%s2299 + $0x6c00] sm:$0xff]
                  %3166 = vst [vmem:[%s2300 + $0xd80] sm:$0xff] %v3165
                  %v3167 = vld [vmem:[%s2299 + $0x6c40] sm:$0xff]
                  %3168 = vst [vmem:[%s2300 + $0xd88] sm:$0xff] %v3167
                  %v3169 = vld [vmem:[%s2299 + $0x6c80] sm:$0xff]
                  %3170 = vst [vmem:[%s2300 + $0xd90] sm:$0xff] %v3169
                  %v3171 = vld [vmem:[%s2299 + $0x6cc0] sm:$0xff]
                  %3172 = vst [vmem:[%s2300 + $0xd98] sm:$0xff] %v3171
                  %v3173 = vld [vmem:[%s2299 + $0x6d00] sm:$0xff]
                  %3174 = vst [vmem:[%s2300 + $0xda0] sm:$0xff] %v3173
                  %v3175 = vld [vmem:[%s2299 + $0x6d40] sm:$0xff]
                  %3176 = vst [vmem:[%s2300 + $0xda8] sm:$0xff] %v3175
                  %v3177 = vld [vmem:[%s2299 + $0x6d80] sm:$0xff]
                  %3178 = vst [vmem:[%s2300 + $0xdb0] sm:$0xff] %v3177
                  %v3179 = vld [vmem:[%s2299 + $0x6dc0] sm:$0xff]
                  %3180 = vst [vmem:[%s2300 + $0xdb8] sm:$0xff] %v3179
                  %v3181 = vld [vmem:[%s2299 + $0x6e00] sm:$0xff]
                  %3182 = vst [vmem:[%s2300 + $0xdc0] sm:$0xff] %v3181
                  %v3183 = vld [vmem:[%s2299 + $0x6e40] sm:$0xff]
                  %3184 = vst [vmem:[%s2300 + $0xdc8] sm:$0xff] %v3183
                  %v3185 = vld [vmem:[%s2299 + $0x6e80] sm:$0xff]
                  %3186 = vst [vmem:[%s2300 + $0xdd0] sm:$0xff] %v3185
                  %v3187 = vld [vmem:[%s2299 + $0x6ec0] sm:$0xff]
                  %3188 = vst [vmem:[%s2300 + $0xdd8] sm:$0xff] %v3187
                  %v3189 = vld [vmem:[%s2299 + $0x6f00] sm:$0xff]
                  %3190 = vst [vmem:[%s2300 + $0xde0] sm:$0xff] %v3189
                  %v3191 = vld [vmem:[%s2299 + $0x6f40] sm:$0xff]
                  %3192 = vst [vmem:[%s2300 + $0xde8] sm:$0xff] %v3191
                  %v3193 = vld [vmem:[%s2299 + $0x6f80] sm:$0xff]
                  %3194 = vst [vmem:[%s2300 + $0xdf0] sm:$0xff] %v3193
                  %v3195 = vld [vmem:[%s2299 + $0x6fc0] sm:$0xff]
                  %3196 = vst [vmem:[%s2300 + $0xdf8] sm:$0xff] %v3195
                  %v3197 = vld [vmem:[%s2299 + $0x7000] sm:$0xff]
                  %3198 = vst [vmem:[%s2300 + $0xe00] sm:$0xff] %v3197
                  %v3199 = vld [vmem:[%s2299 + $0x7040] sm:$0xff]
                  %3200 = vst [vmem:[%s2300 + $0xe08] sm:$0xff] %v3199
                  %v3201 = vld [vmem:[%s2299 + $0x7080] sm:$0xff]
                  %3202 = vst [vmem:[%s2300 + $0xe10] sm:$0xff] %v3201
                  %v3203 = vld [vmem:[%s2299 + $0x70c0] sm:$0xff]
                  %3204 = vst [vmem:[%s2300 + $0xe18] sm:$0xff] %v3203
                  %v3205 = vld [vmem:[%s2299 + $0x7100] sm:$0xff]
                  %3206 = vst [vmem:[%s2300 + $0xe20] sm:$0xff] %v3205
                  %v3207 = vld [vmem:[%s2299 + $0x7140] sm:$0xff]
                  %3208 = vst [vmem:[%s2300 + $0xe28] sm:$0xff] %v3207
                  %v3209 = vld [vmem:[%s2299 + $0x7180] sm:$0xff]
                  %3210 = vst [vmem:[%s2300 + $0xe30] sm:$0xff] %v3209
                  %v3211 = vld [vmem:[%s2299 + $0x71c0] sm:$0xff]
                  %3212 = vst [vmem:[%s2300 + $0xe38] sm:$0xff] %v3211
                  %v3213 = vld [vmem:[%s2299 + $0x7200] sm:$0xff]
                  %3214 = vst [vmem:[%s2300 + $0xe40] sm:$0xff] %v3213
                  %v3215 = vld [vmem:[%s2299 + $0x7240] sm:$0xff]
                  %3216 = vst [vmem:[%s2300 + $0xe48] sm:$0xff] %v3215
                  %v3217 = vld [vmem:[%s2299 + $0x7280] sm:$0xff]
                  %3218 = vst [vmem:[%s2300 + $0xe50] sm:$0xff] %v3217
                  %v3219 = vld [vmem:[%s2299 + $0x72c0] sm:$0xff]
                  %3220 = vst [vmem:[%s2300 + $0xe58] sm:$0xff] %v3219
                  %v3221 = vld [vmem:[%s2299 + $0x7300] sm:$0xff]
                  %3222 = vst [vmem:[%s2300 + $0xe60] sm:$0xff] %v3221
                  %v3223 = vld [vmem:[%s2299 + $0x7340] sm:$0xff]
                  %3224 = vst [vmem:[%s2300 + $0xe68] sm:$0xff] %v3223
                  %v3225 = vld [vmem:[%s2299 + $0x7380] sm:$0xff]
                  %3226 = vst [vmem:[%s2300 + $0xe70] sm:$0xff] %v3225
                  %v3227 = vld [vmem:[%s2299 + $0x73c0] sm:$0xff]
                  %3228 = vst [vmem:[%s2300 + $0xe78] sm:$0xff] %v3227
                  %v3229 = vld [vmem:[%s2299 + $0x7400] sm:$0xff]
                  %3230 = vst [vmem:[%s2300 + $0xe80] sm:$0xff] %v3229
                  %v3231 = vld [vmem:[%s2299 + $0x7440] sm:$0xff]
                  %3232 = vst [vmem:[%s2300 + $0xe88] sm:$0xff] %v3231
                  %v3233 = vld [vmem:[%s2299 + $0x7480] sm:$0xff]
                  %3234 = vst [vmem:[%s2300 + $0xe90] sm:$0xff] %v3233
                  %v3235 = vld [vmem:[%s2299 + $0x74c0] sm:$0xff]
                  %3236 = vst [vmem:[%s2300 + $0xe98] sm:$0xff] %v3235
                  %v3237 = vld [vmem:[%s2299 + $0x7500] sm:$0xff]
                  %3238 = vst [vmem:[%s2300 + $0xea0] sm:$0xff] %v3237
                  %v3239 = vld [vmem:[%s2299 + $0x7540] sm:$0xff]
                  %3240 = vst [vmem:[%s2300 + $0xea8] sm:$0xff] %v3239
                  %v3241 = vld [vmem:[%s2299 + $0x7580] sm:$0xff]
                  %3242 = vst [vmem:[%s2300 + $0xeb0] sm:$0xff] %v3241
                  %v3243 = vld [vmem:[%s2299 + $0x75c0] sm:$0xff]
                  %3244 = vst [vmem:[%s2300 + $0xeb8] sm:$0xff] %v3243
                  %v3245 = vld [vmem:[%s2299 + $0x7600] sm:$0xff]
                  %3246 = vst [vmem:[%s2300 + $0xec0] sm:$0xff] %v3245
                  %v3247 = vld [vmem:[%s2299 + $0x7640] sm:$0xff]
                  %3248 = vst [vmem:[%s2300 + $0xec8] sm:$0xff] %v3247
                  %v3249 = vld [vmem:[%s2299 + $0x7680] sm:$0xff]
                  %3250 = vst [vmem:[%s2300 + $0xed0] sm:$0xff] %v3249
                  %v3251 = vld [vmem:[%s2299 + $0x76c0] sm:$0xff]
                  %3252 = vst [vmem:[%s2300 + $0xed8] sm:$0xff] %v3251
                  %v3253 = vld [vmem:[%s2299 + $0x7700] sm:$0xff]
                  %3254 = vst [vmem:[%s2300 + $0xee0] sm:$0xff] %v3253
                  %v3255 = vld [vmem:[%s2299 + $0x7740] sm:$0xff]
                  %3256 = vst [vmem:[%s2300 + $0xee8] sm:$0xff] %v3255
                  %v3257 = vld [vmem:[%s2299 + $0x7780] sm:$0xff]
                  %3258 = vst [vmem:[%s2300 + $0xef0] sm:$0xff] %v3257
                  %v3259 = vld [vmem:[%s2299 + $0x77c0] sm:$0xff]
                  %3260 = vst [vmem:[%s2300 + $0xef8] sm:$0xff] %v3259
                  %v3261 = vld [vmem:[%s2299 + $0x7800] sm:$0xff]
                  %3262 = vst [vmem:[%s2300 + $0xf00] sm:$0xff] %v3261
                  %v3263 = vld [vmem:[%s2299 + $0x7840] sm:$0xff]
                  %3264 = vst [vmem:[%s2300 + $0xf08] sm:$0xff] %v3263
                  %v3265 = vld [vmem:[%s2299 + $0x7880] sm:$0xff]
                  %3266 = vst [vmem:[%s2300 + $0xf10] sm:$0xff] %v3265
                  %v3267 = vld [vmem:[%s2299 + $0x78c0] sm:$0xff]
                  %3268 = vst [vmem:[%s2300 + $0xf18] sm:$0xff] %v3267
                  %v3269 = vld [vmem:[%s2299 + $0x7900] sm:$0xff]
                  %3270 = vst [vmem:[%s2300 + $0xf20] sm:$0xff] %v3269
                  %v3271 = vld [vmem:[%s2299 + $0x7940] sm:$0xff]
                  %3272 = vst [vmem:[%s2300 + $0xf28] sm:$0xff] %v3271
                  %v3273 = vld [vmem:[%s2299 + $0x7980] sm:$0xff]
                  %3274 = vst [vmem:[%s2300 + $0xf30] sm:$0xff] %v3273
                  %v3275 = vld [vmem:[%s2299 + $0x79c0] sm:$0xff]
                  %3276 = vst [vmem:[%s2300 + $0xf38] sm:$0xff] %v3275
                  %v3277 = vld [vmem:[%s2299 + $0x7a00] sm:$0xff]
                  %3278 = vst [vmem:[%s2300 + $0xf40] sm:$0xff] %v3277
                  %v3279 = vld [vmem:[%s2299 + $0x7a40] sm:$0xff]
                  %3280 = vst [vmem:[%s2300 + $0xf48] sm:$0xff] %v3279
                  %v3281 = vld [vmem:[%s2299 + $0x7a80] sm:$0xff]
                  %3282 = vst [vmem:[%s2300 + $0xf50] sm:$0xff] %v3281
                  %v3283 = vld [vmem:[%s2299 + $0x7ac0] sm:$0xff]
                  %3284 = vst [vmem:[%s2300 + $0xf58] sm:$0xff] %v3283
                  %v3285 = vld [vmem:[%s2299 + $0x7b00] sm:$0xff]
                  %3286 = vst [vmem:[%s2300 + $0xf60] sm:$0xff] %v3285
                  %v3287 = vld [vmem:[%s2299 + $0x7b40] sm:$0xff]
                  %3288 = vst [vmem:[%s2300 + $0xf68] sm:$0xff] %v3287
                  %v3289 = vld [vmem:[%s2299 + $0x7b80] sm:$0xff]
                  %3290 = vst [vmem:[%s2300 + $0xf70] sm:$0xff] %v3289
                  %v3291 = vld [vmem:[%s2299 + $0x7bc0] sm:$0xff]
                  %3292 = vst [vmem:[%s2300 + $0xf78] sm:$0xff] %v3291
                  %v3293 = vld [vmem:[%s2299 + $0x7c00] sm:$0xff]
                  %3294 = vst [vmem:[%s2300 + $0xf80] sm:$0xff] %v3293
                  %v3295 = vld [vmem:[%s2299 + $0x7c40] sm:$0xff]
                  %3296 = vst [vmem:[%s2300 + $0xf88] sm:$0xff] %v3295
                  %v3297 = vld [vmem:[%s2299 + $0x7c80] sm:$0xff]
                  %3298 = vst [vmem:[%s2300 + $0xf90] sm:$0xff] %v3297
                  %v3299 = vld [vmem:[%s2299 + $0x7cc0] sm:$0xff]
                  %3300 = vst [vmem:[%s2300 + $0xf98] sm:$0xff] %v3299
                  %v3301 = vld [vmem:[%s2299 + $0x7d00] sm:$0xff]
                  %3302 = vst [vmem:[%s2300 + $0xfa0] sm:$0xff] %v3301
                  %v3303 = vld [vmem:[%s2299 + $0x7d40] sm:$0xff]
                  %3304 = vst [vmem:[%s2300 + $0xfa8] sm:$0xff] %v3303
                  %v3305 = vld [vmem:[%s2299 + $0x7d80] sm:$0xff]
                  %3306 = vst [vmem:[%s2300 + $0xfb0] sm:$0xff] %v3305
                  %v3307 = vld [vmem:[%s2299 + $0x7dc0] sm:$0xff]
                  %3308 = vst [vmem:[%s2300 + $0xfb8] sm:$0xff] %v3307
                  %v3309 = vld [vmem:[%s2299 + $0x7e00] sm:$0xff]
                  %3310 = vst [vmem:[%s2300 + $0xfc0] sm:$0xff] %v3309
                  %v3311 = vld [vmem:[%s2299 + $0x7e40] sm:$0xff]
                  %3312 = vst [vmem:[%s2300 + $0xfc8] sm:$0xff] %v3311
                  %v3313 = vld [vmem:[%s2299 + $0x7e80] sm:$0xff]
                  %3314 = vst [vmem:[%s2300 + $0xfd0] sm:$0xff] %v3313
                  %v3315 = vld [vmem:[%s2299 + $0x7ec0] sm:$0xff]
                  %3316 = vst [vmem:[%s2300 + $0xfd8] sm:$0xff] %v3315
                  %v3317 = vld [vmem:[%s2299 + $0x7f00] sm:$0xff]
                  %3318 = vst [vmem:[%s2300 + $0xfe0] sm:$0xff] %v3317
                  %v3319 = vld [vmem:[%s2299 + $0x7f40] sm:$0xff]
                  %3320 = vst [vmem:[%s2300 + $0xfe8] sm:$0xff] %v3319
                  %v3321 = vld [vmem:[%s2299 + $0x7f80] sm:$0xff]
                  %3322 = vst [vmem:[%s2300 + $0xff0] sm:$0xff] %v3321
                  %v3323 = vld [vmem:[%s2299 + $0x7fc0] sm:$0xff]
                  %3324 = vst [vmem:[%s2300 + $0xff8] sm:$0xff] %v3323
                  %v3325 = vld [vmem:[%s2299 + $0x8000] sm:$0xff]
                  %3326 = vst [vmem:[%s2300 + $0x1000] sm:$0xff] %v3325
                  %v3327 = vld [vmem:[%s2299 + $0x8040] sm:$0xff]
                  %3328 = vst [vmem:[%s2300 + $0x1008] sm:$0xff] %v3327
                  %v3329 = vld [vmem:[%s2299 + $0x8080] sm:$0xff]
                  %3330 = vst [vmem:[%s2300 + $0x1010] sm:$0xff] %v3329
                  %v3331 = vld [vmem:[%s2299 + $0x80c0] sm:$0xff]
                  %3332 = vst [vmem:[%s2300 + $0x1018] sm:$0xff] %v3331
                  %v3333 = vld [vmem:[%s2299 + $0x8100] sm:$0xff]
                  %3334 = vst [vmem:[%s2300 + $0x1020] sm:$0xff] %v3333
                  %v3335 = vld [vmem:[%s2299 + $0x8140] sm:$0xff]
                  %3336 = vst [vmem:[%s2300 + $0x1028] sm:$0xff] %v3335
                  %v3337 = vld [vmem:[%s2299 + $0x8180] sm:$0xff]
                  %3338 = vst [vmem:[%s2300 + $0x1030] sm:$0xff] %v3337
                  %v3339 = vld [vmem:[%s2299 + $0x81c0] sm:$0xff]
                  %3340 = vst [vmem:[%s2300 + $0x1038] sm:$0xff] %v3339
                  %v3341 = vld [vmem:[%s2299 + $0x8200] sm:$0xff]
                  %3342 = vst [vmem:[%s2300 + $0x1040] sm:$0xff] %v3341
                  %v3343 = vld [vmem:[%s2299 + $0x8240] sm:$0xff]
                  %3344 = vst [vmem:[%s2300 + $0x1048] sm:$0xff] %v3343
                  %v3345 = vld [vmem:[%s2299 + $0x8280] sm:$0xff]
                  %3346 = vst [vmem:[%s2300 + $0x1050] sm:$0xff] %v3345
                  %v3347 = vld [vmem:[%s2299 + $0x82c0] sm:$0xff]
                  %3348 = vst [vmem:[%s2300 + $0x1058] sm:$0xff] %v3347
                  %v3349 = vld [vmem:[%s2299 + $0x8300] sm:$0xff]
                  %3350 = vst [vmem:[%s2300 + $0x1060] sm:$0xff] %v3349
                  %v3351 = vld [vmem:[%s2299 + $0x8340] sm:$0xff]
                  %3352 = vst [vmem:[%s2300 + $0x1068] sm:$0xff] %v3351
                  %v3353 = vld [vmem:[%s2299 + $0x8380] sm:$0xff]
                  %3354 = vst [vmem:[%s2300 + $0x1070] sm:$0xff] %v3353
                  %v3355 = vld [vmem:[%s2299 + $0x83c0] sm:$0xff]
                  %3356 = vst [vmem:[%s2300 + $0x1078] sm:$0xff] %v3355
                  %s3357 = sadd.s32 1, %s2298
                  %p3358 = scmp.ge.s32.totalorder %s3357, 1
                  %s3359 = scalar_select %p3358, 0, %s3357
                  %s3360 = smul.u32 %s3359, 8
                  %s3361 = smul.u32 %s3359, 8
                  %s3362 = scalar_lea.vmem %s138, %s3360
                  %s3363 = scalar_lea.vmem %s135, %s3361 [#allocation2]
                $region63: #{partial_inception_network.1} parent=57 // loop_footer
                  %s2297 = sadd.s32 1, %s2293
                $region64: #{partial_inception_network.1} parent=57 // loop_footer_branch
                  %2292 = sbr.rel target = $region60
                $region65: #{partial_inception_network.1} parent=57 // loop_exit
                  _
                loop: start=0, step=1, limit=1
                $region66: #{partial_inception_network.1} parent=57 // loop_pre_header
                  _
                $region67: #{partial_inception_network.1} parent=57 // loop_header
                  %s3366 = sphi 0, %s3370
                  %p3367 = scmp.ge.s32.totalorder %s3366, 1
                  %s3371 = sphi %s2288, %s2288
                  %s3372 = sphi %s2289, %s2289
                $region68: #{partial_inception_network.1} parent=57 // loop_header_branch
                  %3369 = sbr.rel (%p3367) target = $region72
                $region69: #{partial_inception_network.1} parent=57 // loop_body
                  %v3373 = vld [vmem:[%s3371] sm:$0x0]
                  %3374 = vst [vmem:[%s3372] sm:$0x0] %v3373
                  %v3375 = vld [vmem:[%s3371 + $0x40] sm:$0x0]
                  %3376 = vst [vmem:[%s3372 + $0x8] sm:$0x0] %v3375
                  %v3377 = vld [vmem:[%s3371 + $0x80] sm:$0x0]
                  %3378 = vst [vmem:[%s3372 + $0x10] sm:$0x0] %v3377
                  %v3379 = vld [vmem:[%s3371 + $0xc0] sm:$0x0]
                  %3380 = vst [vmem:[%s3372 + $0x18] sm:$0x0] %v3379
                  %v3381 = vld [vmem:[%s3371 + $0x100] sm:$0x0]
                  %3382 = vst [vmem:[%s3372 + $0x20] sm:$0x0] %v3381
                  %v3383 = vld [vmem:[%s3371 + $0x140] sm:$0x0]
                  %3384 = vst [vmem:[%s3372 + $0x28] sm:$0x0] %v3383
                  %v3385 = vld [vmem:[%s3371 + $0x180] sm:$0x0]
                  %3386 = vst [vmem:[%s3372 + $0x30] sm:$0x0] %v3385
                  %v3387 = vld [vmem:[%s3371 + $0x1c0] sm:$0x0]
                  %3388 = vst [vmem:[%s3372 + $0x38] sm:$0x0] %v3387
                  %v3389 = vld [vmem:[%s3371 + $0x200] sm:$0x0]
                  %3390 = vst [vmem:[%s3372 + $0x40] sm:$0x0] %v3389
                  %v3391 = vld [vmem:[%s3371 + $0x240] sm:$0x0]
                  %3392 = vst [vmem:[%s3372 + $0x48] sm:$0x0] %v3391
                  %v3393 = vld [vmem:[%s3371 + $0x280] sm:$0x0]
                  %3394 = vst [vmem:[%s3372 + $0x50] sm:$0x0] %v3393
                  %v3395 = vld [vmem:[%s3371 + $0x2c0] sm:$0x0]
                  %3396 = vst [vmem:[%s3372 + $0x58] sm:$0x0] %v3395
                  %v3397 = vld [vmem:[%s3371 + $0x300] sm:$0x0]
                  %3398 = vst [vmem:[%s3372 + $0x60] sm:$0x0] %v3397
                  %v3399 = vld [vmem:[%s3371 + $0x340] sm:$0x0]
                  %3400 = vst [vmem:[%s3372 + $0x68] sm:$0x0] %v3399
                  %v3401 = vld [vmem:[%s3371 + $0x380] sm:$0x0]
                  %3402 = vst [vmem:[%s3372 + $0x70] sm:$0x0] %v3401
                  %v3403 = vld [vmem:[%s3371 + $0x3c0] sm:$0x0]
                  %3404 = vst [vmem:[%s3372 + $0x78] sm:$0x0] %v3403
                  %v3405 = vld [vmem:[%s3371 + $0x400] sm:$0x0]
                  %3406 = vst [vmem:[%s3372 + $0x80] sm:$0x0] %v3405
                  %v3407 = vld [vmem:[%s3371 + $0x440] sm:$0x0]
                  %3408 = vst [vmem:[%s3372 + $0x88] sm:$0x0] %v3407
                  %v3409 = vld [vmem:[%s3371 + $0x480] sm:$0x0]
                  %3410 = vst [vmem:[%s3372 + $0x90] sm:$0x0] %v3409
                  %v3411 = vld [vmem:[%s3371 + $0x4c0] sm:$0x0]
                  %3412 = vst [vmem:[%s3372 + $0x98] sm:$0x0] %v3411
                  %v3413 = vld [vmem:[%s3371 + $0x500] sm:$0x0]
                  %3414 = vst [vmem:[%s3372 + $0xa0] sm:$0x0] %v3413
                  %v3415 = vld [vmem:[%s3371 + $0x540] sm:$0x0]
                  %3416 = vst [vmem:[%s3372 + $0xa8] sm:$0x0] %v3415
                  %v3417 = vld [vmem:[%s3371 + $0x580] sm:$0x0]
                  %3418 = vst [vmem:[%s3372 + $0xb0] sm:$0x0] %v3417
                  %v3419 = vld [vmem:[%s3371 + $0x5c0] sm:$0x0]
                  %3420 = vst [vmem:[%s3372 + $0xb8] sm:$0x0] %v3419
                  %v3421 = vld [vmem:[%s3371 + $0x600] sm:$0x0]
                  %3422 = vst [vmem:[%s3372 + $0xc0] sm:$0x0] %v3421
                  %v3423 = vld [vmem:[%s3371 + $0x640] sm:$0x0]
                  %3424 = vst [vmem:[%s3372 + $0xc8] sm:$0x0] %v3423
                  %v3425 = vld [vmem:[%s3371 + $0x680] sm:$0x0]
                  %3426 = vst [vmem:[%s3372 + $0xd0] sm:$0x0] %v3425
                  %v3427 = vld [vmem:[%s3371 + $0x6c0] sm:$0x0]
                  %3428 = vst [vmem:[%s3372 + $0xd8] sm:$0x0] %v3427
                  %v3429 = vld [vmem:[%s3371 + $0x700] sm:$0x0]
                  %3430 = vst [vmem:[%s3372 + $0xe0] sm:$0x0] %v3429
                  %v3431 = vld [vmem:[%s3371 + $0x740] sm:$0x0]
                  %3432 = vst [vmem:[%s3372 + $0xe8] sm:$0x0] %v3431
                  %v3433 = vld [vmem:[%s3371 + $0x780] sm:$0x0]
                  %3434 = vst [vmem:[%s3372 + $0xf0] sm:$0x0] %v3433
                  %v3435 = vld [vmem:[%s3371 + $0x7c0] sm:$0x0]
                  %3436 = vst [vmem:[%s3372 + $0xf8] sm:$0x0] %v3435
                  %v3437 = vld [vmem:[%s3371 + $0x800] sm:$0x0]
                  %3438 = vst [vmem:[%s3372 + $0x100] sm:$0x0] %v3437
                  %v3439 = vld [vmem:[%s3371 + $0x840] sm:$0x0]
                  %3440 = vst [vmem:[%s3372 + $0x108] sm:$0x0] %v3439
                  %v3441 = vld [vmem:[%s3371 + $0x880] sm:$0x0]
                  %3442 = vst [vmem:[%s3372 + $0x110] sm:$0x0] %v3441
                  %v3443 = vld [vmem:[%s3371 + $0x8c0] sm:$0x0]
                  %3444 = vst [vmem:[%s3372 + $0x118] sm:$0x0] %v3443
                  %v3445 = vld [vmem:[%s3371 + $0x900] sm:$0x0]
                  %3446 = vst [vmem:[%s3372 + $0x120] sm:$0x0] %v3445
                  %v3447 = vld [vmem:[%s3371 + $0x940] sm:$0x0]
                  %3448 = vst [vmem:[%s3372 + $0x128] sm:$0x0] %v3447
                  %v3449 = vld [vmem:[%s3371 + $0x980] sm:$0x0]
                  %3450 = vst [vmem:[%s3372 + $0x130] sm:$0x0] %v3449
                  %v3451 = vld [vmem:[%s3371 + $0x9c0] sm:$0x0]
                  %3452 = vst [vmem:[%s3372 + $0x138] sm:$0x0] %v3451
                  %v3453 = vld [vmem:[%s3371 + $0xa00] sm:$0x0]
                  %3454 = vst [vmem:[%s3372 + $0x140] sm:$0x0] %v3453
                  %v3455 = vld [vmem:[%s3371 + $0xa40] sm:$0x0]
                  %3456 = vst [vmem:[%s3372 + $0x148] sm:$0x0] %v3455
                  %v3457 = vld [vmem:[%s3371 + $0xa80] sm:$0x0]
                  %3458 = vst [vmem:[%s3372 + $0x150] sm:$0x0] %v3457
                  %v3459 = vld [vmem:[%s3371 + $0xac0] sm:$0x0]
                  %3460 = vst [vmem:[%s3372 + $0x158] sm:$0x0] %v3459
                  %v3461 = vld [vmem:[%s3371 + $0xb00] sm:$0x0]
                  %3462 = vst [vmem:[%s3372 + $0x160] sm:$0x0] %v3461
                  %v3463 = vld [vmem:[%s3371 + $0xb40] sm:$0x0]
                  %3464 = vst [vmem:[%s3372 + $0x168] sm:$0x0] %v3463
                  %v3465 = vld [vmem:[%s3371 + $0xb80] sm:$0x0]
                  %3466 = vst [vmem:[%s3372 + $0x170] sm:$0x0] %v3465
                  %v3467 = vld [vmem:[%s3371 + $0xbc0] sm:$0x0]
                  %3468 = vst [vmem:[%s3372 + $0x178] sm:$0x0] %v3467
                  %v3469 = vld [vmem:[%s3371 + $0xc00] sm:$0x0]
                  %3470 = vst [vmem:[%s3372 + $0x180] sm:$0x0] %v3469
                  %v3471 = vld [vmem:[%s3371 + $0xc40] sm:$0x0]
                  %3472 = vst [vmem:[%s3372 + $0x188] sm:$0x0] %v3471
                  %v3473 = vld [vmem:[%s3371 + $0xc80] sm:$0x0]
                  %3474 = vst [vmem:[%s3372 + $0x190] sm:$0x0] %v3473
                  %v3475 = vld [vmem:[%s3371 + $0xcc0] sm:$0x0]
                  %3476 = vst [vmem:[%s3372 + $0x198] sm:$0x0] %v3475
                  %v3477 = vld [vmem:[%s3371 + $0xd00] sm:$0x0]
                  %3478 = vst [vmem:[%s3372 + $0x1a0] sm:$0x0] %v3477
                  %v3479 = vld [vmem:[%s3371 + $0xd40] sm:$0x0]
                  %3480 = vst [vmem:[%s3372 + $0x1a8] sm:$0x0] %v3479
                  %v3481 = vld [vmem:[%s3371 + $0xd80] sm:$0x0]
                  %3482 = vst [vmem:[%s3372 + $0x1b0] sm:$0x0] %v3481
                  %v3483 = vld [vmem:[%s3371 + $0xdc0] sm:$0x0]
                  %3484 = vst [vmem:[%s3372 + $0x1b8] sm:$0x0] %v3483
                  %v3485 = vld [vmem:[%s3371 + $0xe00] sm:$0x0]
                  %3486 = vst [vmem:[%s3372 + $0x1c0] sm:$0x0] %v3485
                  %v3487 = vld [vmem:[%s3371 + $0xe40] sm:$0x0]
                  %3488 = vst [vmem:[%s3372 + $0x1c8] sm:$0x0] %v3487
                  %v3489 = vld [vmem:[%s3371 + $0xe80] sm:$0x0]
                  %3490 = vst [vmem:[%s3372 + $0x1d0] sm:$0x0] %v3489
                  %v3491 = vld [vmem:[%s3371 + $0xec0] sm:$0x0]
                  %3492 = vst [vmem:[%s3372 + $0x1d8] sm:$0x0] %v3491
                  %v3493 = vld [vmem:[%s3371 + $0xf00] sm:$0x0]
                  %3494 = vst [vmem:[%s3372 + $0x1e0] sm:$0x0] %v3493
                  %v3495 = vld [vmem:[%s3371 + $0xf40] sm:$0x0]
                  %3496 = vst [vmem:[%s3372 + $0x1e8] sm:$0x0] %v3495
                  %v3497 = vld [vmem:[%s3371 + $0xf80] sm:$0x0]
                  %3498 = vst [vmem:[%s3372 + $0x1f0] sm:$0x0] %v3497
                  %v3499 = vld [vmem:[%s3371 + $0xfc0] sm:$0x0]
                  %3500 = vst [vmem:[%s3372 + $0x1f8] sm:$0x0] %v3499
                  %v3501 = vld [vmem:[%s3371 + $0x1000] sm:$0x0]
                  %3502 = vst [vmem:[%s3372 + $0x200] sm:$0x0] %v3501
                  %v3503 = vld [vmem:[%s3371 + $0x1040] sm:$0x0]
                  %3504 = vst [vmem:[%s3372 + $0x208] sm:$0x0] %v3503
                  %v3505 = vld [vmem:[%s3371 + $0x1080] sm:$0x0]
                  %3506 = vst [vmem:[%s3372 + $0x210] sm:$0x0] %v3505
                  %v3507 = vld [vmem:[%s3371 + $0x10c0] sm:$0x0]
                  %3508 = vst [vmem:[%s3372 + $0x218] sm:$0x0] %v3507
                  %v3509 = vld [vmem:[%s3371 + $0x1100] sm:$0x0]
                  %3510 = vst [vmem:[%s3372 + $0x220] sm:$0x0] %v3509
                  %v3511 = vld [vmem:[%s3371 + $0x1140] sm:$0x0]
                  %3512 = vst [vmem:[%s3372 + $0x228] sm:$0x0] %v3511
                  %v3513 = vld [vmem:[%s3371 + $0x1180] sm:$0x0]
                  %3514 = vst [vmem:[%s3372 + $0x230] sm:$0x0] %v3513
                  %v3515 = vld [vmem:[%s3371 + $0x11c0] sm:$0x0]
                  %3516 = vst [vmem:[%s3372 + $0x238] sm:$0x0] %v3515
                  %v3517 = vld [vmem:[%s3371 + $0x1200] sm:$0x0]
                  %3518 = vst [vmem:[%s3372 + $0x240] sm:$0x0] %v3517
                  %v3519 = vld [vmem:[%s3371 + $0x1240] sm:$0x0]
                  %3520 = vst [vmem:[%s3372 + $0x248] sm:$0x0] %v3519
                  %v3521 = vld [vmem:[%s3371 + $0x1280] sm:$0x0]
                  %3522 = vst [vmem:[%s3372 + $0x250] sm:$0x0] %v3521
                  %v3523 = vld [vmem:[%s3371 + $0x12c0] sm:$0x0]
                  %3524 = vst [vmem:[%s3372 + $0x258] sm:$0x0] %v3523
                  %v3525 = vld [vmem:[%s3371 + $0x1300] sm:$0x0]
                  %3526 = vst [vmem:[%s3372 + $0x260] sm:$0x0] %v3525
                  %v3527 = vld [vmem:[%s3371 + $0x1340] sm:$0x0]
                  %3528 = vst [vmem:[%s3372 + $0x268] sm:$0x0] %v3527
                  %v3529 = vld [vmem:[%s3371 + $0x1380] sm:$0x0]
                  %3530 = vst [vmem:[%s3372 + $0x270] sm:$0x0] %v3529
                  %v3531 = vld [vmem:[%s3371 + $0x13c0] sm:$0x0]
                  %3532 = vst [vmem:[%s3372 + $0x278] sm:$0x0] %v3531
                  %v3533 = vld [vmem:[%s3371 + $0x1400] sm:$0x0]
                  %3534 = vst [vmem:[%s3372 + $0x280] sm:$0x0] %v3533
                  %v3535 = vld [vmem:[%s3371 + $0x1440] sm:$0x0]
                  %3536 = vst [vmem:[%s3372 + $0x288] sm:$0x0] %v3535
                  %v3537 = vld [vmem:[%s3371 + $0x1480] sm:$0x0]
                  %3538 = vst [vmem:[%s3372 + $0x290] sm:$0x0] %v3537
                  %v3539 = vld [vmem:[%s3371 + $0x14c0] sm:$0x0]
                  %3540 = vst [vmem:[%s3372 + $0x298] sm:$0x0] %v3539
                  %v3541 = vld [vmem:[%s3371 + $0x1500] sm:$0x0]
                  %3542 = vst [vmem:[%s3372 + $0x2a0] sm:$0x0] %v3541
                  %v3543 = vld [vmem:[%s3371 + $0x1540] sm:$0x0]
                  %3544 = vst [vmem:[%s3372 + $0x2a8] sm:$0x0] %v3543
                  %v3545 = vld [vmem:[%s3371 + $0x1580] sm:$0x0]
                  %3546 = vst [vmem:[%s3372 + $0x2b0] sm:$0x0] %v3545
                  %v3547 = vld [vmem:[%s3371 + $0x15c0] sm:$0x0]
                  %3548 = vst [vmem:[%s3372 + $0x2b8] sm:$0x0] %v3547
                  %v3549 = vld [vmem:[%s3371 + $0x1600] sm:$0x0]
                  %3550 = vst [vmem:[%s3372 + $0x2c0] sm:$0x0] %v3549
                  %v3551 = vld [vmem:[%s3371 + $0x1640] sm:$0x0]
                  %3552 = vst [vmem:[%s3372 + $0x2c8] sm:$0x0] %v3551
                  %v3553 = vld [vmem:[%s3371 + $0x1680] sm:$0x0]
                  %3554 = vst [vmem:[%s3372 + $0x2d0] sm:$0x0] %v3553
                  %v3555 = vld [vmem:[%s3371 + $0x16c0] sm:$0x0]
                  %3556 = vst [vmem:[%s3372 + $0x2d8] sm:$0x0] %v3555
                  %v3557 = vld [vmem:[%s3371 + $0x1700] sm:$0x0]
                  %3558 = vst [vmem:[%s3372 + $0x2e0] sm:$0x0] %v3557
                  %v3559 = vld [vmem:[%s3371 + $0x1740] sm:$0x0]
                  %3560 = vst [vmem:[%s3372 + $0x2e8] sm:$0x0] %v3559
                  %v3561 = vld [vmem:[%s3371 + $0x1780] sm:$0x0]
                  %3562 = vst [vmem:[%s3372 + $0x2f0] sm:$0x0] %v3561
                  %v3563 = vld [vmem:[%s3371 + $0x17c0] sm:$0x0]
                  %3564 = vst [vmem:[%s3372 + $0x2f8] sm:$0x0] %v3563
                  %v3565 = vld [vmem:[%s3371 + $0x1800] sm:$0x0]
                  %3566 = vst [vmem:[%s3372 + $0x300] sm:$0x0] %v3565
                  %v3567 = vld [vmem:[%s3371 + $0x1840] sm:$0x0]
                  %3568 = vst [vmem:[%s3372 + $0x308] sm:$0x0] %v3567
                  %v3569 = vld [vmem:[%s3371 + $0x1880] sm:$0x0]
                  %3570 = vst [vmem:[%s3372 + $0x310] sm:$0x0] %v3569
                  %v3571 = vld [vmem:[%s3371 + $0x18c0] sm:$0x0]
                  %3572 = vst [vmem:[%s3372 + $0x318] sm:$0x0] %v3571
                  %v3573 = vld [vmem:[%s3371 + $0x1900] sm:$0x0]
                  %3574 = vst [vmem:[%s3372 + $0x320] sm:$0x0] %v3573
                  %v3575 = vld [vmem:[%s3371 + $0x1940] sm:$0x0]
                  %3576 = vst [vmem:[%s3372 + $0x328] sm:$0x0] %v3575
                  %v3577 = vld [vmem:[%s3371 + $0x1980] sm:$0x0]
                  %3578 = vst [vmem:[%s3372 + $0x330] sm:$0x0] %v3577
                  %v3579 = vld [vmem:[%s3371 + $0x19c0] sm:$0x0]
                  %3580 = vst [vmem:[%s3372 + $0x338] sm:$0x0] %v3579
                  %v3581 = vld [vmem:[%s3371 + $0x1a00] sm:$0x0]
                  %3582 = vst [vmem:[%s3372 + $0x340] sm:$0x0] %v3581
                  %v3583 = vld [vmem:[%s3371 + $0x1a40] sm:$0x0]
                  %3584 = vst [vmem:[%s3372 + $0x348] sm:$0x0] %v3583
                  %v3585 = vld [vmem:[%s3371 + $0x1a80] sm:$0x0]
                  %3586 = vst [vmem:[%s3372 + $0x350] sm:$0x0] %v3585
                  %v3587 = vld [vmem:[%s3371 + $0x1ac0] sm:$0x0]
                  %3588 = vst [vmem:[%s3372 + $0x358] sm:$0x0] %v3587
                  %v3589 = vld [vmem:[%s3371 + $0x1b00] sm:$0x0]
                  %3590 = vst [vmem:[%s3372 + $0x360] sm:$0x0] %v3589
                  %v3591 = vld [vmem:[%s3371 + $0x1b40] sm:$0x0]
                  %3592 = vst [vmem:[%s3372 + $0x368] sm:$0x0] %v3591
                  %v3593 = vld [vmem:[%s3371 + $0x1b80] sm:$0x0]
                  %3594 = vst [vmem:[%s3372 + $0x370] sm:$0x0] %v3593
                  %v3595 = vld [vmem:[%s3371 + $0x1bc0] sm:$0x0]
                  %3596 = vst [vmem:[%s3372 + $0x378] sm:$0x0] %v3595
                  %v3597 = vld [vmem:[%s3371 + $0x1c00] sm:$0x0]
                  %3598 = vst [vmem:[%s3372 + $0x380] sm:$0x0] %v3597
                  %v3599 = vld [vmem:[%s3371 + $0x1c40] sm:$0x0]
                  %3600 = vst [vmem:[%s3372 + $0x388] sm:$0x0] %v3599
                  %v3601 = vld [vmem:[%s3371 + $0x1c80] sm:$0x0]
                  %3602 = vst [vmem:[%s3372 + $0x390] sm:$0x0] %v3601
                  %v3603 = vld [vmem:[%s3371 + $0x1cc0] sm:$0x0]
                  %3604 = vst [vmem:[%s3372 + $0x398] sm:$0x0] %v3603
                  %v3605 = vld [vmem:[%s3371 + $0x1d00] sm:$0x0]
                  %3606 = vst [vmem:[%s3372 + $0x3a0] sm:$0x0] %v3605
                  %v3607 = vld [vmem:[%s3371 + $0x1d40] sm:$0x0]
                  %3608 = vst [vmem:[%s3372 + $0x3a8] sm:$0x0] %v3607
                  %v3609 = vld [vmem:[%s3371 + $0x1d80] sm:$0x0]
                  %3610 = vst [vmem:[%s3372 + $0x3b0] sm:$0x0] %v3609
                  %v3611 = vld [vmem:[%s3371 + $0x1dc0] sm:$0x0]
                  %3612 = vst [vmem:[%s3372 + $0x3b8] sm:$0x0] %v3611
                  %v3613 = vld [vmem:[%s3371 + $0x1e00] sm:$0x0]
                  %3614 = vst [vmem:[%s3372 + $0x3c0] sm:$0x0] %v3613
                  %v3615 = vld [vmem:[%s3371 + $0x1e40] sm:$0x0]
                  %3616 = vst [vmem:[%s3372 + $0x3c8] sm:$0x0] %v3615
                  %v3617 = vld [vmem:[%s3371 + $0x1e80] sm:$0x0]
                  %3618 = vst [vmem:[%s3372 + $0x3d0] sm:$0x0] %v3617
                  %v3619 = vld [vmem:[%s3371 + $0x1ec0] sm:$0x0]
                  %3620 = vst [vmem:[%s3372 + $0x3d8] sm:$0x0] %v3619
                  %v3621 = vld [vmem:[%s3371 + $0x1f00] sm:$0x0]
                  %3622 = vst [vmem:[%s3372 + $0x3e0] sm:$0x0] %v3621
                  %v3623 = vld [vmem:[%s3371 + $0x1f40] sm:$0x0]
                  %3624 = vst [vmem:[%s3372 + $0x3e8] sm:$0x0] %v3623
                  %v3625 = vld [vmem:[%s3371 + $0x1f80] sm:$0x0]
                  %3626 = vst [vmem:[%s3372 + $0x3f0] sm:$0x0] %v3625
                  %v3627 = vld [vmem:[%s3371 + $0x1fc0] sm:$0x0]
                  %3628 = vst [vmem:[%s3372 + $0x3f8] sm:$0x0] %v3627
                  %v3629 = vld [vmem:[%s3371 + $0x2000] sm:$0x0]
                  %3630 = vst [vmem:[%s3372 + $0x400] sm:$0x0] %v3629
                  %v3631 = vld [vmem:[%s3371 + $0x2040] sm:$0x0]
                  %3632 = vst [vmem:[%s3372 + $0x408] sm:$0x0] %v3631
                  %v3633 = vld [vmem:[%s3371 + $0x2080] sm:$0x0]
                  %3634 = vst [vmem:[%s3372 + $0x410] sm:$0x0] %v3633
                  %v3635 = vld [vmem:[%s3371 + $0x20c0] sm:$0x0]
                  %3636 = vst [vmem:[%s3372 + $0x418] sm:$0x0] %v3635
                  %v3637 = vld [vmem:[%s3371 + $0x2100] sm:$0x0]
                  %3638 = vst [vmem:[%s3372 + $0x420] sm:$0x0] %v3637
                  %v3639 = vld [vmem:[%s3371 + $0x2140] sm:$0x0]
                  %3640 = vst [vmem:[%s3372 + $0x428] sm:$0x0] %v3639
                  %v3641 = vld [vmem:[%s3371 + $0x2180] sm:$0x0]
                  %3642 = vst [vmem:[%s3372 + $0x430] sm:$0x0] %v3641
                  %v3643 = vld [vmem:[%s3371 + $0x21c0] sm:$0x0]
                  %3644 = vst [vmem:[%s3372 + $0x438] sm:$0x0] %v3643
                  %v3645 = vld [vmem:[%s3371 + $0x2200] sm:$0x0]
                  %3646 = vst [vmem:[%s3372 + $0x440] sm:$0x0] %v3645
                  %v3647 = vld [vmem:[%s3371 + $0x2240] sm:$0x0]
                  %3648 = vst [vmem:[%s3372 + $0x448] sm:$0x0] %v3647
                  %v3649 = vld [vmem:[%s3371 + $0x2280] sm:$0x0]
                  %3650 = vst [vmem:[%s3372 + $0x450] sm:$0x0] %v3649
                  %v3651 = vld [vmem:[%s3371 + $0x22c0] sm:$0x0]
                  %3652 = vst [vmem:[%s3372 + $0x458] sm:$0x0] %v3651
                  %v3653 = vld [vmem:[%s3371 + $0x2300] sm:$0x0]
                  %3654 = vst [vmem:[%s3372 + $0x460] sm:$0x0] %v3653
                  %v3655 = vld [vmem:[%s3371 + $0x2340] sm:$0x0]
                  %3656 = vst [vmem:[%s3372 + $0x468] sm:$0x0] %v3655
                  %v3657 = vld [vmem:[%s3371 + $0x2380] sm:$0x0]
                  %3658 = vst [vmem:[%s3372 + $0x470] sm:$0x0] %v3657
                  %v3659 = vld [vmem:[%s3371 + $0x23c0] sm:$0x0]
                  %3660 = vst [vmem:[%s3372 + $0x478] sm:$0x0] %v3659
                  %v3661 = vld [vmem:[%s3371 + $0x2400] sm:$0x0]
                  %3662 = vst [vmem:[%s3372 + $0x480] sm:$0x0] %v3661
                  %v3663 = vld [vmem:[%s3371 + $0x2440] sm:$0x0]
                  %3664 = vst [vmem:[%s3372 + $0x488] sm:$0x0] %v3663
                  %v3665 = vld [vmem:[%s3371 + $0x2480] sm:$0x0]
                  %3666 = vst [vmem:[%s3372 + $0x490] sm:$0x0] %v3665
                  %v3667 = vld [vmem:[%s3371 + $0x24c0] sm:$0x0]
                  %3668 = vst [vmem:[%s3372 + $0x498] sm:$0x0] %v3667
                  %v3669 = vld [vmem:[%s3371 + $0x2500] sm:$0x0]
                  %3670 = vst [vmem:[%s3372 + $0x4a0] sm:$0x0] %v3669
                  %v3671 = vld [vmem:[%s3371 + $0x2540] sm:$0x0]
                  %3672 = vst [vmem:[%s3372 + $0x4a8] sm:$0x0] %v3671
                  %v3673 = vld [vmem:[%s3371 + $0x2580] sm:$0x0]
                  %3674 = vst [vmem:[%s3372 + $0x4b0] sm:$0x0] %v3673
                  %v3675 = vld [vmem:[%s3371 + $0x25c0] sm:$0x0]
                  %3676 = vst [vmem:[%s3372 + $0x4b8] sm:$0x0] %v3675
                  %v3677 = vld [vmem:[%s3371 + $0x2600] sm:$0x0]
                  %3678 = vst [vmem:[%s3372 + $0x4c0] sm:$0x0] %v3677
                  %v3679 = vld [vmem:[%s3371 + $0x2640] sm:$0x0]
                  %3680 = vst [vmem:[%s3372 + $0x4c8] sm:$0x0] %v3679
                  %v3681 = vld [vmem:[%s3371 + $0x2680] sm:$0x0]
                  %3682 = vst [vmem:[%s3372 + $0x4d0] sm:$0x0] %v3681
                  %v3683 = vld [vmem:[%s3371 + $0x26c0] sm:$0x0]
                  %3684 = vst [vmem:[%s3372 + $0x4d8] sm:$0x0] %v3683
                  %v3685 = vld [vmem:[%s3371 + $0x2700] sm:$0x0]
                  %3686 = vst [vmem:[%s3372 + $0x4e0] sm:$0x0] %v3685
                  %v3687 = vld [vmem:[%s3371 + $0x2740] sm:$0x0]
                  %3688 = vst [vmem:[%s3372 + $0x4e8] sm:$0x0] %v3687
                  %v3689 = vld [vmem:[%s3371 + $0x2780] sm:$0x0]
                  %3690 = vst [vmem:[%s3372 + $0x4f0] sm:$0x0] %v3689
                  %v3691 = vld [vmem:[%s3371 + $0x27c0] sm:$0x0]
                  %3692 = vst [vmem:[%s3372 + $0x4f8] sm:$0x0] %v3691
                  %v3693 = vld [vmem:[%s3371 + $0x2800] sm:$0x0]
                  %3694 = vst [vmem:[%s3372 + $0x500] sm:$0x0] %v3693
                  %v3695 = vld [vmem:[%s3371 + $0x2840] sm:$0x0]
                  %3696 = vst [vmem:[%s3372 + $0x508] sm:$0x0] %v3695
                  %v3697 = vld [vmem:[%s3371 + $0x2880] sm:$0x0]
                  %3698 = vst [vmem:[%s3372 + $0x510] sm:$0x0] %v3697
                  %v3699 = vld [vmem:[%s3371 + $0x28c0] sm:$0x0]
                  %3700 = vst [vmem:[%s3372 + $0x518] sm:$0x0] %v3699
                  %v3701 = vld [vmem:[%s3371 + $0x2900] sm:$0x0]
                  %3702 = vst [vmem:[%s3372 + $0x520] sm:$0x0] %v3701
                  %v3703 = vld [vmem:[%s3371 + $0x2940] sm:$0x0]
                  %3704 = vst [vmem:[%s3372 + $0x528] sm:$0x0] %v3703
                  %v3705 = vld [vmem:[%s3371 + $0x2980] sm:$0x0]
                  %3706 = vst [vmem:[%s3372 + $0x530] sm:$0x0] %v3705
                  %v3707 = vld [vmem:[%s3371 + $0x29c0] sm:$0x0]
                  %3708 = vst [vmem:[%s3372 + $0x538] sm:$0x0] %v3707
                  %v3709 = vld [vmem:[%s3371 + $0x2a00] sm:$0x0]
                  %3710 = vst [vmem:[%s3372 + $0x540] sm:$0x0] %v3709
                  %v3711 = vld [vmem:[%s3371 + $0x2a40] sm:$0x0]
                  %3712 = vst [vmem:[%s3372 + $0x548] sm:$0x0] %v3711
                  %v3713 = vld [vmem:[%s3371 + $0x2a80] sm:$0x0]
                  %3714 = vst [vmem:[%s3372 + $0x550] sm:$0x0] %v3713
                  %v3715 = vld [vmem:[%s3371 + $0x2ac0] sm:$0x0]
                  %3716 = vst [vmem:[%s3372 + $0x558] sm:$0x0] %v3715
                  %v3717 = vld [vmem:[%s3371 + $0x2b00] sm:$0x0]
                  %3718 = vst [vmem:[%s3372 + $0x560] sm:$0x0] %v3717
                  %v3719 = vld [vmem:[%s3371 + $0x2b40] sm:$0x0]
                  %3720 = vst [vmem:[%s3372 + $0x568] sm:$0x0] %v3719
                  %v3721 = vld [vmem:[%s3371 + $0x2b80] sm:$0x0]
                  %3722 = vst [vmem:[%s3372 + $0x570] sm:$0x0] %v3721
                  %v3723 = vld [vmem:[%s3371 + $0x2bc0] sm:$0x0]
                  %3724 = vst [vmem:[%s3372 + $0x578] sm:$0x0] %v3723
                  %v3725 = vld [vmem:[%s3371 + $0x2c00] sm:$0x0]
                  %3726 = vst [vmem:[%s3372 + $0x580] sm:$0x0] %v3725
                  %v3727 = vld [vmem:[%s3371 + $0x2c40] sm:$0x0]
                  %3728 = vst [vmem:[%s3372 + $0x588] sm:$0x0] %v3727
                  %v3729 = vld [vmem:[%s3371 + $0x2c80] sm:$0x0]
                  %3730 = vst [vmem:[%s3372 + $0x590] sm:$0x0] %v3729
                  %v3731 = vld [vmem:[%s3371 + $0x2cc0] sm:$0x0]
                  %3732 = vst [vmem:[%s3372 + $0x598] sm:$0x0] %v3731
                  %v3733 = vld [vmem:[%s3371 + $0x2d00] sm:$0x0]
                  %3734 = vst [vmem:[%s3372 + $0x5a0] sm:$0x0] %v3733
                  %v3735 = vld [vmem:[%s3371 + $0x2d40] sm:$0x0]
                  %3736 = vst [vmem:[%s3372 + $0x5a8] sm:$0x0] %v3735
                  %v3737 = vld [vmem:[%s3371 + $0x2d80] sm:$0x0]
                  %3738 = vst [vmem:[%s3372 + $0x5b0] sm:$0x0] %v3737
                  %v3739 = vld [vmem:[%s3371 + $0x2dc0] sm:$0x0]
                  %3740 = vst [vmem:[%s3372 + $0x5b8] sm:$0x0] %v3739
                  %v3741 = vld [vmem:[%s3371 + $0x2e00] sm:$0x0]
                  %3742 = vst [vmem:[%s3372 + $0x5c0] sm:$0x0] %v3741
                  %v3743 = vld [vmem:[%s3371 + $0x2e40] sm:$0x0]
                  %3744 = vst [vmem:[%s3372 + $0x5c8] sm:$0x0] %v3743
                  %v3745 = vld [vmem:[%s3371 + $0x2e80] sm:$0x0]
                  %3746 = vst [vmem:[%s3372 + $0x5d0] sm:$0x0] %v3745
                  %v3747 = vld [vmem:[%s3371 + $0x2ec0] sm:$0x0]
                  %3748 = vst [vmem:[%s3372 + $0x5d8] sm:$0x0] %v3747
                  %v3749 = vld [vmem:[%s3371 + $0x2f00] sm:$0x0]
                  %3750 = vst [vmem:[%s3372 + $0x5e0] sm:$0x0] %v3749
                  %v3751 = vld [vmem:[%s3371 + $0x2f40] sm:$0x0]
                  %3752 = vst [vmem:[%s3372 + $0x5e8] sm:$0x0] %v3751
                  %v3753 = vld [vmem:[%s3371 + $0x2f80] sm:$0x0]
                  %3754 = vst [vmem:[%s3372 + $0x5f0] sm:$0x0] %v3753
                  %v3755 = vld [vmem:[%s3371 + $0x2fc0] sm:$0x0]
                  %3756 = vst [vmem:[%s3372 + $0x5f8] sm:$0x0] %v3755
                  %v3757 = vld [vmem:[%s3371 + $0x3000] sm:$0x0]
                  %3758 = vst [vmem:[%s3372 + $0x600] sm:$0x0] %v3757
                  %v3759 = vld [vmem:[%s3371 + $0x3040] sm:$0x0]
                  %3760 = vst [vmem:[%s3372 + $0x608] sm:$0x0] %v3759
                  %v3761 = vld [vmem:[%s3371 + $0x3080] sm:$0x0]
                  %3762 = vst [vmem:[%s3372 + $0x610] sm:$0x0] %v3761
                  %v3763 = vld [vmem:[%s3371 + $0x30c0] sm:$0x0]
                  %3764 = vst [vmem:[%s3372 + $0x618] sm:$0x0] %v3763
                  %v3765 = vld [vmem:[%s3371 + $0x3100] sm:$0x0]
                  %3766 = vst [vmem:[%s3372 + $0x620] sm:$0x0] %v3765
                  %v3767 = vld [vmem:[%s3371 + $0x3140] sm:$0x0]
                  %3768 = vst [vmem:[%s3372 + $0x628] sm:$0x0] %v3767
                  %v3769 = vld [vmem:[%s3371 + $0x3180] sm:$0x0]
                  %3770 = vst [vmem:[%s3372 + $0x630] sm:$0x0] %v3769
                  %v3771 = vld [vmem:[%s3371 + $0x31c0] sm:$0x0]
                  %3772 = vst [vmem:[%s3372 + $0x638] sm:$0x0] %v3771
                  %v3773 = vld [vmem:[%s3371 + $0x3200] sm:$0x0]
                  %3774 = vst [vmem:[%s3372 + $0x640] sm:$0x0] %v3773
                  %v3775 = vld [vmem:[%s3371 + $0x3240] sm:$0x0]
                  %3776 = vst [vmem:[%s3372 + $0x648] sm:$0x0] %v3775
                  %v3777 = vld [vmem:[%s3371 + $0x3280] sm:$0x0]
                  %3778 = vst [vmem:[%s3372 + $0x650] sm:$0x0] %v3777
                  %v3779 = vld [vmem:[%s3371 + $0x32c0] sm:$0x0]
                  %3780 = vst [vmem:[%s3372 + $0x658] sm:$0x0] %v3779
                  %v3781 = vld [vmem:[%s3371 + $0x3300] sm:$0x0]
                  %3782 = vst [vmem:[%s3372 + $0x660] sm:$0x0] %v3781
                  %v3783 = vld [vmem:[%s3371 + $0x3340] sm:$0x0]
                  %3784 = vst [vmem:[%s3372 + $0x668] sm:$0x0] %v3783
                  %v3785 = vld [vmem:[%s3371 + $0x3380] sm:$0x0]
                  %3786 = vst [vmem:[%s3372 + $0x670] sm:$0x0] %v3785
                  %v3787 = vld [vmem:[%s3371 + $0x33c0] sm:$0x0]
                  %3788 = vst [vmem:[%s3372 + $0x678] sm:$0x0] %v3787
                  %v3789 = vld [vmem:[%s3371 + $0x3400] sm:$0x0]
                  %3790 = vst [vmem:[%s3372 + $0x680] sm:$0x0] %v3789
                  %v3791 = vld [vmem:[%s3371 + $0x3440] sm:$0x0]
                  %3792 = vst [vmem:[%s3372 + $0x688] sm:$0x0] %v3791
                  %v3793 = vld [vmem:[%s3371 + $0x3480] sm:$0x0]
                  %3794 = vst [vmem:[%s3372 + $0x690] sm:$0x0] %v3793
                  %v3795 = vld [vmem:[%s3371 + $0x34c0] sm:$0x0]
                  %3796 = vst [vmem:[%s3372 + $0x698] sm:$0x0] %v3795
                  %v3797 = vld [vmem:[%s3371 + $0x3500] sm:$0x0]
                  %3798 = vst [vmem:[%s3372 + $0x6a0] sm:$0x0] %v3797
                  %v3799 = vld [vmem:[%s3371 + $0x3540] sm:$0x0]
                  %3800 = vst [vmem:[%s3372 + $0x6a8] sm:$0x0] %v3799
                  %v3801 = vld [vmem:[%s3371 + $0x3580] sm:$0x0]
                  %3802 = vst [vmem:[%s3372 + $0x6b0] sm:$0x0] %v3801
                  %v3803 = vld [vmem:[%s3371 + $0x35c0] sm:$0x0]
                  %3804 = vst [vmem:[%s3372 + $0x6b8] sm:$0x0] %v3803
                  %v3805 = vld [vmem:[%s3371 + $0x3600] sm:$0x0]
                  %3806 = vst [vmem:[%s3372 + $0x6c0] sm:$0x0] %v3805
                  %v3807 = vld [vmem:[%s3371 + $0x3640] sm:$0x0]
                  %3808 = vst [vmem:[%s3372 + $0x6c8] sm:$0x0] %v3807
                  %v3809 = vld [vmem:[%s3371 + $0x3680] sm:$0x0]
                  %3810 = vst [vmem:[%s3372 + $0x6d0] sm:$0x0] %v3809
                  %v3811 = vld [vmem:[%s3371 + $0x36c0] sm:$0x0]
                  %3812 = vst [vmem:[%s3372 + $0x6d8] sm:$0x0] %v3811
                  %v3813 = vld [vmem:[%s3371 + $0x3700] sm:$0x0]
                  %3814 = vst [vmem:[%s3372 + $0x6e0] sm:$0x0] %v3813
                  %v3815 = vld [vmem:[%s3371 + $0x3740] sm:$0x0]
                  %3816 = vst [vmem:[%s3372 + $0x6e8] sm:$0x0] %v3815
                  %v3817 = vld [vmem:[%s3371 + $0x3780] sm:$0x0]
                  %3818 = vst [vmem:[%s3372 + $0x6f0] sm:$0x0] %v3817
                  %v3819 = vld [vmem:[%s3371 + $0x37c0] sm:$0x0]
                  %3820 = vst [vmem:[%s3372 + $0x6f8] sm:$0x0] %v3819
                  %v3821 = vld [vmem:[%s3371 + $0x3800] sm:$0x0]
                  %3822 = vst [vmem:[%s3372 + $0x700] sm:$0x0] %v3821
                  %v3823 = vld [vmem:[%s3371 + $0x3840] sm:$0x0]
                  %3824 = vst [vmem:[%s3372 + $0x708] sm:$0x0] %v3823
                  %v3825 = vld [vmem:[%s3371 + $0x3880] sm:$0x0]
                  %3826 = vst [vmem:[%s3372 + $0x710] sm:$0x0] %v3825
                  %v3827 = vld [vmem:[%s3371 + $0x38c0] sm:$0x0]
                  %3828 = vst [vmem:[%s3372 + $0x718] sm:$0x0] %v3827
                  %v3829 = vld [vmem:[%s3371 + $0x3900] sm:$0x0]
                  %3830 = vst [vmem:[%s3372 + $0x720] sm:$0x0] %v3829
                  %v3831 = vld [vmem:[%s3371 + $0x3940] sm:$0x0]
                  %3832 = vst [vmem:[%s3372 + $0x728] sm:$0x0] %v3831
                  %v3833 = vld [vmem:[%s3371 + $0x3980] sm:$0x0]
                  %3834 = vst [vmem:[%s3372 + $0x730] sm:$0x0] %v3833
                  %v3835 = vld [vmem:[%s3371 + $0x39c0] sm:$0x0]
                  %3836 = vst [vmem:[%s3372 + $0x738] sm:$0x0] %v3835
                  %v3837 = vld [vmem:[%s3371 + $0x3a00] sm:$0x0]
                  %3838 = vst [vmem:[%s3372 + $0x740] sm:$0x0] %v3837
                  %v3839 = vld [vmem:[%s3371 + $0x3a40] sm:$0x0]
                  %3840 = vst [vmem:[%s3372 + $0x748] sm:$0x0] %v3839
                  %v3841 = vld [vmem:[%s3371 + $0x3a80] sm:$0x0]
                  %3842 = vst [vmem:[%s3372 + $0x750] sm:$0x0] %v3841
                  %v3843 = vld [vmem:[%s3371 + $0x3ac0] sm:$0x0]
                  %3844 = vst [vmem:[%s3372 + $0x758] sm:$0x0] %v3843
                  %v3845 = vld [vmem:[%s3371 + $0x3b00] sm:$0x0]
                  %3846 = vst [vmem:[%s3372 + $0x760] sm:$0x0] %v3845
                  %v3847 = vld [vmem:[%s3371 + $0x3b40] sm:$0x0]
                  %3848 = vst [vmem:[%s3372 + $0x768] sm:$0x0] %v3847
                  %v3849 = vld [vmem:[%s3371 + $0x3b80] sm:$0x0]
                  %3850 = vst [vmem:[%s3372 + $0x770] sm:$0x0] %v3849
                  %v3851 = vld [vmem:[%s3371 + $0x3bc0] sm:$0x0]
                  %3852 = vst [vmem:[%s3372 + $0x778] sm:$0x0] %v3851
                  %v3853 = vld [vmem:[%s3371 + $0x3c00] sm:$0x0]
                  %3854 = vst [vmem:[%s3372 + $0x780] sm:$0x0] %v3853
                  %v3855 = vld [vmem:[%s3371 + $0x3c40] sm:$0x0]
                  %3856 = vst [vmem:[%s3372 + $0x788] sm:$0x0] %v3855
                  %v3857 = vld [vmem:[%s3371 + $0x3c80] sm:$0x0]
                  %3858 = vst [vmem:[%s3372 + $0x790] sm:$0x0] %v3857
                  %v3859 = vld [vmem:[%s3371 + $0x3cc0] sm:$0x0]
                  %3860 = vst [vmem:[%s3372 + $0x798] sm:$0x0] %v3859
                  %v3861 = vld [vmem:[%s3371 + $0x3d00] sm:$0x0]
                  %3862 = vst [vmem:[%s3372 + $0x7a0] sm:$0x0] %v3861
                  %v3863 = vld [vmem:[%s3371 + $0x3d40] sm:$0x0]
                  %3864 = vst [vmem:[%s3372 + $0x7a8] sm:$0x0] %v3863
                  %v3865 = vld [vmem:[%s3371 + $0x3d80] sm:$0x0]
                  %3866 = vst [vmem:[%s3372 + $0x7b0] sm:$0x0] %v3865
                  %v3867 = vld [vmem:[%s3371 + $0x3dc0] sm:$0x0]
                  %3868 = vst [vmem:[%s3372 + $0x7b8] sm:$0x0] %v3867
                  %v3869 = vld [vmem:[%s3371 + $0x3e00] sm:$0x0]
                  %3870 = vst [vmem:[%s3372 + $0x7c0] sm:$0x0] %v3869
                  %v3871 = vld [vmem:[%s3371 + $0x3e40] sm:$0x0]
                  %3872 = vst [vmem:[%s3372 + $0x7c8] sm:$0x0] %v3871
                  %v3873 = vld [vmem:[%s3371 + $0x3e80] sm:$0x0]
                  %3874 = vst [vmem:[%s3372 + $0x7d0] sm:$0x0] %v3873
                  %v3875 = vld [vmem:[%s3371 + $0x3ec0] sm:$0x0]
                  %3876 = vst [vmem:[%s3372 + $0x7d8] sm:$0x0] %v3875
                  %v3877 = vld [vmem:[%s3371 + $0x3f00] sm:$0x0]
                  %3878 = vst [vmem:[%s3372 + $0x7e0] sm:$0x0] %v3877
                  %v3879 = vld [vmem:[%s3371 + $0x3f40] sm:$0x0]
                  %3880 = vst [vmem:[%s3372 + $0x7e8] sm:$0x0] %v3879
                  %v3881 = vld [vmem:[%s3371 + $0x3f80] sm:$0x0]
                  %3882 = vst [vmem:[%s3372 + $0x7f0] sm:$0x0] %v3881
                  %v3883 = vld [vmem:[%s3371 + $0x3fc0] sm:$0x0]
                  %3884 = vst [vmem:[%s3372 + $0x7f8] sm:$0x0] %v3883
                  %v3885 = vld [vmem:[%s3371 + $0x4000] sm:$0x0]
                  %3886 = vst [vmem:[%s3372 + $0x800] sm:$0x0] %v3885
                  %v3887 = vld [vmem:[%s3371 + $0x4040] sm:$0x0]
                  %3888 = vst [vmem:[%s3372 + $0x808] sm:$0x0] %v3887
                  %v3889 = vld [vmem:[%s3371 + $0x4080] sm:$0x0]
                  %3890 = vst [vmem:[%s3372 + $0x810] sm:$0x0] %v3889
                  %v3891 = vld [vmem:[%s3371 + $0x40c0] sm:$0x0]
                  %3892 = vst [vmem:[%s3372 + $0x818] sm:$0x0] %v3891
                  %v3893 = vld [vmem:[%s3371 + $0x4100] sm:$0x0]
                  %3894 = vst [vmem:[%s3372 + $0x820] sm:$0x0] %v3893
                  %v3895 = vld [vmem:[%s3371 + $0x4140] sm:$0x0]
                  %3896 = vst [vmem:[%s3372 + $0x828] sm:$0x0] %v3895
                  %v3897 = vld [vmem:[%s3371 + $0x4180] sm:$0x0]
                  %3898 = vst [vmem:[%s3372 + $0x830] sm:$0x0] %v3897
                  %v3899 = vld [vmem:[%s3371 + $0x41c0] sm:$0x0]
                  %3900 = vst [vmem:[%s3372 + $0x838] sm:$0x0] %v3899
                  %v3901 = vld [vmem:[%s3371 + $0x4200] sm:$0x0]
                  %3902 = vst [vmem:[%s3372 + $0x840] sm:$0x0] %v3901
                  %v3903 = vld [vmem:[%s3371 + $0x4240] sm:$0x0]
                  %3904 = vst [vmem:[%s3372 + $0x848] sm:$0x0] %v3903
                  %v3905 = vld [vmem:[%s3371 + $0x4280] sm:$0x0]
                  %3906 = vst [vmem:[%s3372 + $0x850] sm:$0x0] %v3905
                  %v3907 = vld [vmem:[%s3371 + $0x42c0] sm:$0x0]
                  %3908 = vst [vmem:[%s3372 + $0x858] sm:$0x0] %v3907
                  %v3909 = vld [vmem:[%s3371 + $0x4300] sm:$0x0]
                  %3910 = vst [vmem:[%s3372 + $0x860] sm:$0x0] %v3909
                  %v3911 = vld [vmem:[%s3371 + $0x4340] sm:$0x0]
                  %3912 = vst [vmem:[%s3372 + $0x868] sm:$0x0] %v3911
                  %v3913 = vld [vmem:[%s3371 + $0x4380] sm:$0x0]
                  %3914 = vst [vmem:[%s3372 + $0x870] sm:$0x0] %v3913
                  %v3915 = vld [vmem:[%s3371 + $0x43c0] sm:$0x0]
                  %3916 = vst [vmem:[%s3372 + $0x878] sm:$0x0] %v3915
                  %v3917 = vld [vmem:[%s3371 + $0x4400] sm:$0x0]
                  %3918 = vst [vmem:[%s3372 + $0x880] sm:$0x0] %v3917
                  %v3919 = vld [vmem:[%s3371 + $0x4440] sm:$0x0]
                  %3920 = vst [vmem:[%s3372 + $0x888] sm:$0x0] %v3919
                  %v3921 = vld [vmem:[%s3371 + $0x4480] sm:$0x0]
                  %3922 = vst [vmem:[%s3372 + $0x890] sm:$0x0] %v3921
                  %v3923 = vld [vmem:[%s3371 + $0x44c0] sm:$0x0]
                  %3924 = vst [vmem:[%s3372 + $0x898] sm:$0x0] %v3923
                  %v3925 = vld [vmem:[%s3371 + $0x4500] sm:$0x0]
                  %3926 = vst [vmem:[%s3372 + $0x8a0] sm:$0x0] %v3925
                  %v3927 = vld [vmem:[%s3371 + $0x4540] sm:$0x0]
                  %3928 = vst [vmem:[%s3372 + $0x8a8] sm:$0x0] %v3927
                  %v3929 = vld [vmem:[%s3371 + $0x4580] sm:$0x0]
                  %3930 = vst [vmem:[%s3372 + $0x8b0] sm:$0x0] %v3929
                  %v3931 = vld [vmem:[%s3371 + $0x45c0] sm:$0x0]
                  %3932 = vst [vmem:[%s3372 + $0x8b8] sm:$0x0] %v3931
                  %v3933 = vld [vmem:[%s3371 + $0x4600] sm:$0x0]
                  %3934 = vst [vmem:[%s3372 + $0x8c0] sm:$0x0] %v3933
                  %v3935 = vld [vmem:[%s3371 + $0x4640] sm:$0x0]
                  %3936 = vst [vmem:[%s3372 + $0x8c8] sm:$0x0] %v3935
                  %v3937 = vld [vmem:[%s3371 + $0x4680] sm:$0x0]
                  %3938 = vst [vmem:[%s3372 + $0x8d0] sm:$0x0] %v3937
                  %v3939 = vld [vmem:[%s3371 + $0x46c0] sm:$0x0]
                  %3940 = vst [vmem:[%s3372 + $0x8d8] sm:$0x0] %v3939
                  %v3941 = vld [vmem:[%s3371 + $0x4700] sm:$0x0]
                  %3942 = vst [vmem:[%s3372 + $0x8e0] sm:$0x0] %v3941
                  %v3943 = vld [vmem:[%s3371 + $0x4740] sm:$0x0]
                  %3944 = vst [vmem:[%s3372 + $0x8e8] sm:$0x0] %v3943
                  %v3945 = vld [vmem:[%s3371 + $0x4780] sm:$0x0]
                  %3946 = vst [vmem:[%s3372 + $0x8f0] sm:$0x0] %v3945
                  %v3947 = vld [vmem:[%s3371 + $0x47c0] sm:$0x0]
                  %3948 = vst [vmem:[%s3372 + $0x8f8] sm:$0x0] %v3947
                  %v3949 = vld [vmem:[%s3371 + $0x4800] sm:$0x0]
                  %3950 = vst [vmem:[%s3372 + $0x900] sm:$0x0] %v3949
                  %v3951 = vld [vmem:[%s3371 + $0x4840] sm:$0x0]
                  %3952 = vst [vmem:[%s3372 + $0x908] sm:$0x0] %v3951
                  %v3953 = vld [vmem:[%s3371 + $0x4880] sm:$0x0]
                  %3954 = vst [vmem:[%s3372 + $0x910] sm:$0x0] %v3953
                  %v3955 = vld [vmem:[%s3371 + $0x48c0] sm:$0x0]
                  %3956 = vst [vmem:[%s3372 + $0x918] sm:$0x0] %v3955
                  %v3957 = vld [vmem:[%s3371 + $0x4900] sm:$0x0]
                  %3958 = vst [vmem:[%s3372 + $0x920] sm:$0x0] %v3957
                  %v3959 = vld [vmem:[%s3371 + $0x4940] sm:$0x0]
                  %3960 = vst [vmem:[%s3372 + $0x928] sm:$0x0] %v3959
                  %v3961 = vld [vmem:[%s3371 + $0x4980] sm:$0x0]
                  %3962 = vst [vmem:[%s3372 + $0x930] sm:$0x0] %v3961
                  %v3963 = vld [vmem:[%s3371 + $0x49c0] sm:$0x0]
                  %3964 = vst [vmem:[%s3372 + $0x938] sm:$0x0] %v3963
                  %v3965 = vld [vmem:[%s3371 + $0x4a00] sm:$0x0]
                  %3966 = vst [vmem:[%s3372 + $0x940] sm:$0x0] %v3965
                  %v3967 = vld [vmem:[%s3371 + $0x4a40] sm:$0x0]
                  %3968 = vst [vmem:[%s3372 + $0x948] sm:$0x0] %v3967
                  %v3969 = vld [vmem:[%s3371 + $0x4a80] sm:$0x0]
                  %3970 = vst [vmem:[%s3372 + $0x950] sm:$0x0] %v3969
                  %v3971 = vld [vmem:[%s3371 + $0x4ac0] sm:$0x0]
                  %3972 = vst [vmem:[%s3372 + $0x958] sm:$0x0] %v3971
                  %v3973 = vld [vmem:[%s3371 + $0x4b00] sm:$0x0]
                  %3974 = vst [vmem:[%s3372 + $0x960] sm:$0x0] %v3973
                  %v3975 = vld [vmem:[%s3371 + $0x4b40] sm:$0x0]
                  %3976 = vst [vmem:[%s3372 + $0x968] sm:$0x0] %v3975
                  %v3977 = vld [vmem:[%s3371 + $0x4b80] sm:$0x0]
                  %3978 = vst [vmem:[%s3372 + $0x970] sm:$0x0] %v3977
                  %v3979 = vld [vmem:[%s3371 + $0x4bc0] sm:$0x0]
                  %3980 = vst [vmem:[%s3372 + $0x978] sm:$0x0] %v3979
                  %v3981 = vld [vmem:[%s3371 + $0x4c00] sm:$0x0]
                  %3982 = vst [vmem:[%s3372 + $0x980] sm:$0x0] %v3981
                  %v3983 = vld [vmem:[%s3371 + $0x4c40] sm:$0x0]
                  %3984 = vst [vmem:[%s3372 + $0x988] sm:$0x0] %v3983
                  %v3985 = vld [vmem:[%s3371 + $0x4c80] sm:$0x0]
                  %3986 = vst [vmem:[%s3372 + $0x990] sm:$0x0] %v3985
                  %v3987 = vld [vmem:[%s3371 + $0x4cc0] sm:$0x0]
                  %3988 = vst [vmem:[%s3372 + $0x998] sm:$0x0] %v3987
                  %v3989 = vld [vmem:[%s3371 + $0x4d00] sm:$0x0]
                  %3990 = vst [vmem:[%s3372 + $0x9a0] sm:$0x0] %v3989
                  %v3991 = vld [vmem:[%s3371 + $0x4d40] sm:$0x0]
                  %3992 = vst [vmem:[%s3372 + $0x9a8] sm:$0x0] %v3991
                  %v3993 = vld [vmem:[%s3371 + $0x4d80] sm:$0x0]
                  %3994 = vst [vmem:[%s3372 + $0x9b0] sm:$0x0] %v3993
                  %v3995 = vld [vmem:[%s3371 + $0x4dc0] sm:$0x0]
                  %3996 = vst [vmem:[%s3372 + $0x9b8] sm:$0x0] %v3995
                  %v3997 = vld [vmem:[%s3371 + $0x4e00] sm:$0x0]
                  %3998 = vst [vmem:[%s3372 + $0x9c0] sm:$0x0] %v3997
                  %v3999 = vld [vmem:[%s3371 + $0x4e40] sm:$0x0]
                  %4000 = vst [vmem:[%s3372 + $0x9c8] sm:$0x0] %v3999
                  %v4001 = vld [vmem:[%s3371 + $0x4e80] sm:$0x0]
                  %4002 = vst [vmem:[%s3372 + $0x9d0] sm:$0x0] %v4001
                  %v4003 = vld [vmem:[%s3371 + $0x4ec0] sm:$0x0]
                  %4004 = vst [vmem:[%s3372 + $0x9d8] sm:$0x0] %v4003
                  %v4005 = vld [vmem:[%s3371 + $0x4f00] sm:$0x0]
                  %4006 = vst [vmem:[%s3372 + $0x9e0] sm:$0x0] %v4005
                  %v4007 = vld [vmem:[%s3371 + $0x4f40] sm:$0x0]
                  %4008 = vst [vmem:[%s3372 + $0x9e8] sm:$0x0] %v4007
                  %v4009 = vld [vmem:[%s3371 + $0x4f80] sm:$0x0]
                  %4010 = vst [vmem:[%s3372 + $0x9f0] sm:$0x0] %v4009
                  %v4011 = vld [vmem:[%s3371 + $0x4fc0] sm:$0x0]
                  %4012 = vst [vmem:[%s3372 + $0x9f8] sm:$0x0] %v4011
                  %v4013 = vld [vmem:[%s3371 + $0x5000] sm:$0x0]
                  %4014 = vst [vmem:[%s3372 + $0xa00] sm:$0x0] %v4013
                  %v4015 = vld [vmem:[%s3371 + $0x5040] sm:$0x0]
                  %4016 = vst [vmem:[%s3372 + $0xa08] sm:$0x0] %v4015
                  %v4017 = vld [vmem:[%s3371 + $0x5080] sm:$0x0]
                  %4018 = vst [vmem:[%s3372 + $0xa10] sm:$0x0] %v4017
                  %v4019 = vld [vmem:[%s3371 + $0x50c0] sm:$0x0]
                  %4020 = vst [vmem:[%s3372 + $0xa18] sm:$0x0] %v4019
                  %v4021 = vld [vmem:[%s3371 + $0x5100] sm:$0x0]
                  %4022 = vst [vmem:[%s3372 + $0xa20] sm:$0x0] %v4021
                  %v4023 = vld [vmem:[%s3371 + $0x5140] sm:$0x0]
                  %4024 = vst [vmem:[%s3372 + $0xa28] sm:$0x0] %v4023
                  %v4025 = vld [vmem:[%s3371 + $0x5180] sm:$0x0]
                  %4026 = vst [vmem:[%s3372 + $0xa30] sm:$0x0] %v4025
                  %v4027 = vld [vmem:[%s3371 + $0x51c0] sm:$0x0]
                  %4028 = vst [vmem:[%s3372 + $0xa38] sm:$0x0] %v4027
                  %v4029 = vld [vmem:[%s3371 + $0x5200] sm:$0x0]
                  %4030 = vst [vmem:[%s3372 + $0xa40] sm:$0x0] %v4029
                  %v4031 = vld [vmem:[%s3371 + $0x5240] sm:$0x0]
                  %4032 = vst [vmem:[%s3372 + $0xa48] sm:$0x0] %v4031
                  %v4033 = vld [vmem:[%s3371 + $0x5280] sm:$0x0]
                  %4034 = vst [vmem:[%s3372 + $0xa50] sm:$0x0] %v4033
                  %v4035 = vld [vmem:[%s3371 + $0x52c0] sm:$0x0]
                  %4036 = vst [vmem:[%s3372 + $0xa58] sm:$0x0] %v4035
                  %v4037 = vld [vmem:[%s3371 + $0x5300] sm:$0x0]
                  %4038 = vst [vmem:[%s3372 + $0xa60] sm:$0x0] %v4037
                  %v4039 = vld [vmem:[%s3371 + $0x5340] sm:$0x0]
                  %4040 = vst [vmem:[%s3372 + $0xa68] sm:$0x0] %v4039
                  %v4041 = vld [vmem:[%s3371 + $0x5380] sm:$0x0]
                  %4042 = vst [vmem:[%s3372 + $0xa70] sm:$0x0] %v4041
                  %v4043 = vld [vmem:[%s3371 + $0x53c0] sm:$0x0]
                  %4044 = vst [vmem:[%s3372 + $0xa78] sm:$0x0] %v4043
                  %v4045 = vld [vmem:[%s3371 + $0x5400] sm:$0x0]
                  %4046 = vst [vmem:[%s3372 + $0xa80] sm:$0x0] %v4045
                  %v4047 = vld [vmem:[%s3371 + $0x5440] sm:$0x0]
                  %4048 = vst [vmem:[%s3372 + $0xa88] sm:$0x0] %v4047
                  %v4049 = vld [vmem:[%s3371 + $0x5480] sm:$0x0]
                  %4050 = vst [vmem:[%s3372 + $0xa90] sm:$0x0] %v4049
                  %v4051 = vld [vmem:[%s3371 + $0x54c0] sm:$0x0]
                  %4052 = vst [vmem:[%s3372 + $0xa98] sm:$0x0] %v4051
                  %v4053 = vld [vmem:[%s3371 + $0x5500] sm:$0x0]
                  %4054 = vst [vmem:[%s3372 + $0xaa0] sm:$0x0] %v4053
                  %v4055 = vld [vmem:[%s3371 + $0x5540] sm:$0x0]
                  %4056 = vst [vmem:[%s3372 + $0xaa8] sm:$0x0] %v4055
                  %v4057 = vld [vmem:[%s3371 + $0x5580] sm:$0x0]
                  %4058 = vst [vmem:[%s3372 + $0xab0] sm:$0x0] %v4057
                  %v4059 = vld [vmem:[%s3371 + $0x55c0] sm:$0x0]
                  %4060 = vst [vmem:[%s3372 + $0xab8] sm:$0x0] %v4059
                  %v4061 = vld [vmem:[%s3371 + $0x5600] sm:$0x0]
                  %4062 = vst [vmem:[%s3372 + $0xac0] sm:$0x0] %v4061
                  %v4063 = vld [vmem:[%s3371 + $0x5640] sm:$0x0]
                  %4064 = vst [vmem:[%s3372 + $0xac8] sm:$0x0] %v4063
                  %v4065 = vld [vmem:[%s3371 + $0x5680] sm:$0x0]
                  %4066 = vst [vmem:[%s3372 + $0xad0] sm:$0x0] %v4065
                  %v4067 = vld [vmem:[%s3371 + $0x56c0] sm:$0x0]
                  %4068 = vst [vmem:[%s3372 + $0xad8] sm:$0x0] %v4067
                  %v4069 = vld [vmem:[%s3371 + $0x5700] sm:$0x0]
                  %4070 = vst [vmem:[%s3372 + $0xae0] sm:$0x0] %v4069
                  %v4071 = vld [vmem:[%s3371 + $0x5740] sm:$0x0]
                  %4072 = vst [vmem:[%s3372 + $0xae8] sm:$0x0] %v4071
                  %v4073 = vld [vmem:[%s3371 + $0x5780] sm:$0x0]
                  %4074 = vst [vmem:[%s3372 + $0xaf0] sm:$0x0] %v4073
                  %v4075 = vld [vmem:[%s3371 + $0x57c0] sm:$0x0]
                  %4076 = vst [vmem:[%s3372 + $0xaf8] sm:$0x0] %v4075
                  %v4077 = vld [vmem:[%s3371 + $0x5800] sm:$0x0]
                  %4078 = vst [vmem:[%s3372 + $0xb00] sm:$0x0] %v4077
                  %v4079 = vld [vmem:[%s3371 + $0x5840] sm:$0x0]
                  %4080 = vst [vmem:[%s3372 + $0xb08] sm:$0x0] %v4079
                  %v4081 = vld [vmem:[%s3371 + $0x5880] sm:$0x0]
                  %4082 = vst [vmem:[%s3372 + $0xb10] sm:$0x0] %v4081
                  %v4083 = vld [vmem:[%s3371 + $0x58c0] sm:$0x0]
                  %4084 = vst [vmem:[%s3372 + $0xb18] sm:$0x0] %v4083
                  %v4085 = vld [vmem:[%s3371 + $0x5900] sm:$0x0]
                  %4086 = vst [vmem:[%s3372 + $0xb20] sm:$0x0] %v4085
                  %v4087 = vld [vmem:[%s3371 + $0x5940] sm:$0x0]
                  %4088 = vst [vmem:[%s3372 + $0xb28] sm:$0x0] %v4087
                  %v4089 = vld [vmem:[%s3371 + $0x5980] sm:$0x0]
                  %4090 = vst [vmem:[%s3372 + $0xb30] sm:$0x0] %v4089
                  %v4091 = vld [vmem:[%s3371 + $0x59c0] sm:$0x0]
                  %4092 = vst [vmem:[%s3372 + $0xb38] sm:$0x0] %v4091
                  %v4093 = vld [vmem:[%s3371 + $0x5a00] sm:$0x0]
                  %4094 = vst [vmem:[%s3372 + $0xb40] sm:$0x0] %v4093
                  %v4095 = vld [vmem:[%s3371 + $0x5a40] sm:$0x0]
                  %4096 = vst [vmem:[%s3372 + $0xb48] sm:$0x0] %v4095
                  %v4097 = vld [vmem:[%s3371 + $0x5a80] sm:$0x0]
                  %4098 = vst [vmem:[%s3372 + $0xb50] sm:$0x0] %v4097
                  %v4099 = vld [vmem:[%s3371 + $0x5ac0] sm:$0x0]
                  %4100 = vst [vmem:[%s3372 + $0xb58] sm:$0x0] %v4099
                  %v4101 = vld [vmem:[%s3371 + $0x5b00] sm:$0x0]
                  %4102 = vst [vmem:[%s3372 + $0xb60] sm:$0x0] %v4101
                  %v4103 = vld [vmem:[%s3371 + $0x5b40] sm:$0x0]
                  %4104 = vst [vmem:[%s3372 + $0xb68] sm:$0x0] %v4103
                  %v4105 = vld [vmem:[%s3371 + $0x5b80] sm:$0x0]
                  %4106 = vst [vmem:[%s3372 + $0xb70] sm:$0x0] %v4105
                  %v4107 = vld [vmem:[%s3371 + $0x5bc0] sm:$0x0]
                  %4108 = vst [vmem:[%s3372 + $0xb78] sm:$0x0] %v4107
                  %v4109 = vld [vmem:[%s3371 + $0x5c00] sm:$0x0]
                  %4110 = vst [vmem:[%s3372 + $0xb80] sm:$0x0] %v4109
                  %v4111 = vld [vmem:[%s3371 + $0x5c40] sm:$0x0]
                  %4112 = vst [vmem:[%s3372 + $0xb88] sm:$0x0] %v4111
                  %v4113 = vld [vmem:[%s3371 + $0x5c80] sm:$0x0]
                  %4114 = vst [vmem:[%s3372 + $0xb90] sm:$0x0] %v4113
                  %v4115 = vld [vmem:[%s3371 + $0x5cc0] sm:$0x0]
                  %4116 = vst [vmem:[%s3372 + $0xb98] sm:$0x0] %v4115
                  %v4117 = vld [vmem:[%s3371 + $0x5d00] sm:$0x0]
                  %4118 = vst [vmem:[%s3372 + $0xba0] sm:$0x0] %v4117
                  %v4119 = vld [vmem:[%s3371 + $0x5d40] sm:$0x0]
                  %4120 = vst [vmem:[%s3372 + $0xba8] sm:$0x0] %v4119
                  %v4121 = vld [vmem:[%s3371 + $0x5d80] sm:$0x0]
                  %4122 = vst [vmem:[%s3372 + $0xbb0] sm:$0x0] %v4121
                  %v4123 = vld [vmem:[%s3371 + $0x5dc0] sm:$0x0]
                  %4124 = vst [vmem:[%s3372 + $0xbb8] sm:$0x0] %v4123
                  %v4125 = vld [vmem:[%s3371 + $0x5e00] sm:$0x0]
                  %4126 = vst [vmem:[%s3372 + $0xbc0] sm:$0x0] %v4125
                  %v4127 = vld [vmem:[%s3371 + $0x5e40] sm:$0x0]
                  %4128 = vst [vmem:[%s3372 + $0xbc8] sm:$0x0] %v4127
                  %v4129 = vld [vmem:[%s3371 + $0x5e80] sm:$0x0]
                  %4130 = vst [vmem:[%s3372 + $0xbd0] sm:$0x0] %v4129
                  %v4131 = vld [vmem:[%s3371 + $0x5ec0] sm:$0x0]
                  %4132 = vst [vmem:[%s3372 + $0xbd8] sm:$0x0] %v4131
                  %v4133 = vld [vmem:[%s3371 + $0x5f00] sm:$0x0]
                  %4134 = vst [vmem:[%s3372 + $0xbe0] sm:$0x0] %v4133
                  %v4135 = vld [vmem:[%s3371 + $0x5f40] sm:$0x0]
                  %4136 = vst [vmem:[%s3372 + $0xbe8] sm:$0x0] %v4135
                  %v4137 = vld [vmem:[%s3371 + $0x5f80] sm:$0x0]
                  %4138 = vst [vmem:[%s3372 + $0xbf0] sm:$0x0] %v4137
                  %v4139 = vld [vmem:[%s3371 + $0x5fc0] sm:$0x0]
                  %4140 = vst [vmem:[%s3372 + $0xbf8] sm:$0x0] %v4139
                  %v4141 = vld [vmem:[%s3371 + $0x6000] sm:$0x0]
                  %4142 = vst [vmem:[%s3372 + $0xc00] sm:$0x0] %v4141
                  %v4143 = vld [vmem:[%s3371 + $0x6040] sm:$0x0]
                  %4144 = vst [vmem:[%s3372 + $0xc08] sm:$0x0] %v4143
                  %v4145 = vld [vmem:[%s3371 + $0x6080] sm:$0x0]
                  %4146 = vst [vmem:[%s3372 + $0xc10] sm:$0x0] %v4145
                  %v4147 = vld [vmem:[%s3371 + $0x60c0] sm:$0x0]
                  %4148 = vst [vmem:[%s3372 + $0xc18] sm:$0x0] %v4147
                  %v4149 = vld [vmem:[%s3371 + $0x6100] sm:$0x0]
                  %4150 = vst [vmem:[%s3372 + $0xc20] sm:$0x0] %v4149
                  %v4151 = vld [vmem:[%s3371 + $0x6140] sm:$0x0]
                  %4152 = vst [vmem:[%s3372 + $0xc28] sm:$0x0] %v4151
                  %v4153 = vld [vmem:[%s3371 + $0x6180] sm:$0x0]
                  %4154 = vst [vmem:[%s3372 + $0xc30] sm:$0x0] %v4153
                  %v4155 = vld [vmem:[%s3371 + $0x61c0] sm:$0x0]
                  %4156 = vst [vmem:[%s3372 + $0xc38] sm:$0x0] %v4155
                  %v4157 = vld [vmem:[%s3371 + $0x6200] sm:$0x0]
                  %4158 = vst [vmem:[%s3372 + $0xc40] sm:$0x0] %v4157
                  %v4159 = vld [vmem:[%s3371 + $0x6240] sm:$0x0]
                  %4160 = vst [vmem:[%s3372 + $0xc48] sm:$0x0] %v4159
                  %v4161 = vld [vmem:[%s3371 + $0x6280] sm:$0x0]
                  %4162 = vst [vmem:[%s3372 + $0xc50] sm:$0x0] %v4161
                  %v4163 = vld [vmem:[%s3371 + $0x62c0] sm:$0x0]
                  %4164 = vst [vmem:[%s3372 + $0xc58] sm:$0x0] %v4163
                  %v4165 = vld [vmem:[%s3371 + $0x6300] sm:$0x0]
                  %4166 = vst [vmem:[%s3372 + $0xc60] sm:$0x0] %v4165
                  %v4167 = vld [vmem:[%s3371 + $0x6340] sm:$0x0]
                  %4168 = vst [vmem:[%s3372 + $0xc68] sm:$0x0] %v4167
                  %v4169 = vld [vmem:[%s3371 + $0x6380] sm:$0x0]
                  %4170 = vst [vmem:[%s3372 + $0xc70] sm:$0x0] %v4169
                  %v4171 = vld [vmem:[%s3371 + $0x63c0] sm:$0x0]
                  %4172 = vst [vmem:[%s3372 + $0xc78] sm:$0x0] %v4171
                  %v4173 = vld [vmem:[%s3371 + $0x6400] sm:$0x0]
                  %4174 = vst [vmem:[%s3372 + $0xc80] sm:$0x0] %v4173
                  %v4175 = vld [vmem:[%s3371 + $0x6440] sm:$0x0]
                  %4176 = vst [vmem:[%s3372 + $0xc88] sm:$0x0] %v4175
                  %v4177 = vld [vmem:[%s3371 + $0x6480] sm:$0x0]
                  %4178 = vst [vmem:[%s3372 + $0xc90] sm:$0x0] %v4177
                  %v4179 = vld [vmem:[%s3371 + $0x64c0] sm:$0x0]
                  %4180 = vst [vmem:[%s3372 + $0xc98] sm:$0x0] %v4179
                  %v4181 = vld [vmem:[%s3371 + $0x6500] sm:$0x0]
                  %4182 = vst [vmem:[%s3372 + $0xca0] sm:$0x0] %v4181
                  %v4183 = vld [vmem:[%s3371 + $0x6540] sm:$0x0]
                  %4184 = vst [vmem:[%s3372 + $0xca8] sm:$0x0] %v4183
                  %v4185 = vld [vmem:[%s3371 + $0x6580] sm:$0x0]
                  %4186 = vst [vmem:[%s3372 + $0xcb0] sm:$0x0] %v4185
                  %v4187 = vld [vmem:[%s3371 + $0x65c0] sm:$0x0]
                  %4188 = vst [vmem:[%s3372 + $0xcb8] sm:$0x0] %v4187
                  %v4189 = vld [vmem:[%s3371 + $0x6600] sm:$0x0]
                  %4190 = vst [vmem:[%s3372 + $0xcc0] sm:$0x0] %v4189
                  %v4191 = vld [vmem:[%s3371 + $0x6640] sm:$0x0]
                  %4192 = vst [vmem:[%s3372 + $0xcc8] sm:$0x0] %v4191
                  %v4193 = vld [vmem:[%s3371 + $0x6680] sm:$0x0]
                  %4194 = vst [vmem:[%s3372 + $0xcd0] sm:$0x0] %v4193
                  %v4195 = vld [vmem:[%s3371 + $0x66c0] sm:$0x0]
                  %4196 = vst [vmem:[%s3372 + $0xcd8] sm:$0x0] %v4195
                  %v4197 = vld [vmem:[%s3371 + $0x6700] sm:$0x0]
                  %4198 = vst [vmem:[%s3372 + $0xce0] sm:$0x0] %v4197
                  %v4199 = vld [vmem:[%s3371 + $0x6740] sm:$0x0]
                  %4200 = vst [vmem:[%s3372 + $0xce8] sm:$0x0] %v4199
                  %v4201 = vld [vmem:[%s3371 + $0x6780] sm:$0x0]
                  %4202 = vst [vmem:[%s3372 + $0xcf0] sm:$0x0] %v4201
                  %v4203 = vld [vmem:[%s3371 + $0x67c0] sm:$0x0]
                  %4204 = vst [vmem:[%s3372 + $0xcf8] sm:$0x0] %v4203
                  %v4205 = vld [vmem:[%s3371 + $0x6800] sm:$0x0]
                  %4206 = vst [vmem:[%s3372 + $0xd00] sm:$0x0] %v4205
                  %v4207 = vld [vmem:[%s3371 + $0x6840] sm:$0x0]
                  %4208 = vst [vmem:[%s3372 + $0xd08] sm:$0x0] %v4207
                  %v4209 = vld [vmem:[%s3371 + $0x6880] sm:$0x0]
                  %4210 = vst [vmem:[%s3372 + $0xd10] sm:$0x0] %v4209
                  %v4211 = vld [vmem:[%s3371 + $0x68c0] sm:$0x0]
                  %4212 = vst [vmem:[%s3372 + $0xd18] sm:$0x0] %v4211
                  %v4213 = vld [vmem:[%s3371 + $0x6900] sm:$0x0]
                  %4214 = vst [vmem:[%s3372 + $0xd20] sm:$0x0] %v4213
                  %v4215 = vld [vmem:[%s3371 + $0x6940] sm:$0x0]
                  %4216 = vst [vmem:[%s3372 + $0xd28] sm:$0x0] %v4215
                  %v4217 = vld [vmem:[%s3371 + $0x6980] sm:$0x0]
                  %4218 = vst [vmem:[%s3372 + $0xd30] sm:$0x0] %v4217
                  %v4219 = vld [vmem:[%s3371 + $0x69c0] sm:$0x0]
                  %4220 = vst [vmem:[%s3372 + $0xd38] sm:$0x0] %v4219
                  %v4221 = vld [vmem:[%s3371 + $0x6a00] sm:$0x0]
                  %4222 = vst [vmem:[%s3372 + $0xd40] sm:$0x0] %v4221
                  %v4223 = vld [vmem:[%s3371 + $0x6a40] sm:$0x0]
                  %4224 = vst [vmem:[%s3372 + $0xd48] sm:$0x0] %v4223
                  %v4225 = vld [vmem:[%s3371 + $0x6a80] sm:$0x0]
                  %4226 = vst [vmem:[%s3372 + $0xd50] sm:$0x0] %v4225
                  %v4227 = vld [vmem:[%s3371 + $0x6ac0] sm:$0x0]
                  %4228 = vst [vmem:[%s3372 + $0xd58] sm:$0x0] %v4227
                  %v4229 = vld [vmem:[%s3371 + $0x6b00] sm:$0x0]
                  %4230 = vst [vmem:[%s3372 + $0xd60] sm:$0x0] %v4229
                  %v4231 = vld [vmem:[%s3371 + $0x6b40] sm:$0x0]
                  %4232 = vst [vmem:[%s3372 + $0xd68] sm:$0x0] %v4231
                  %v4233 = vld [vmem:[%s3371 + $0x6b80] sm:$0x0]
                  %4234 = vst [vmem:[%s3372 + $0xd70] sm:$0x0] %v4233
                  %v4235 = vld [vmem:[%s3371 + $0x6bc0] sm:$0x0]
                  %4236 = vst [vmem:[%s3372 + $0xd78] sm:$0x0] %v4235
                  %v4237 = vld [vmem:[%s3371 + $0x6c00] sm:$0x0]
                  %4238 = vst [vmem:[%s3372 + $0xd80] sm:$0x0] %v4237
                  %v4239 = vld [vmem:[%s3371 + $0x6c40] sm:$0x0]
                  %4240 = vst [vmem:[%s3372 + $0xd88] sm:$0x0] %v4239
                  %v4241 = vld [vmem:[%s3371 + $0x6c80] sm:$0x0]
                  %4242 = vst [vmem:[%s3372 + $0xd90] sm:$0x0] %v4241
                  %v4243 = vld [vmem:[%s3371 + $0x6cc0] sm:$0x0]
                  %4244 = vst [vmem:[%s3372 + $0xd98] sm:$0x0] %v4243
                  %v4245 = vld [vmem:[%s3371 + $0x6d00] sm:$0x0]
                  %4246 = vst [vmem:[%s3372 + $0xda0] sm:$0x0] %v4245
                  %v4247 = vld [vmem:[%s3371 + $0x6d40] sm:$0x0]
                  %4248 = vst [vmem:[%s3372 + $0xda8] sm:$0x0] %v4247
                  %v4249 = vld [vmem:[%s3371 + $0x6d80] sm:$0x0]
                  %4250 = vst [vmem:[%s3372 + $0xdb0] sm:$0x0] %v4249
                  %v4251 = vld [vmem:[%s3371 + $0x6dc0] sm:$0x0]
                  %4252 = vst [vmem:[%s3372 + $0xdb8] sm:$0x0] %v4251
                  %v4253 = vld [vmem:[%s3371 + $0x6e00] sm:$0x0]
                  %4254 = vst [vmem:[%s3372 + $0xdc0] sm:$0x0] %v4253
                  %v4255 = vld [vmem:[%s3371 + $0x6e40] sm:$0x0]
                  %4256 = vst [vmem:[%s3372 + $0xdc8] sm:$0x0] %v4255
                  %v4257 = vld [vmem:[%s3371 + $0x6e80] sm:$0x0]
                  %4258 = vst [vmem:[%s3372 + $0xdd0] sm:$0x0] %v4257
                  %v4259 = vld [vmem:[%s3371 + $0x6ec0] sm:$0x0]
                  %4260 = vst [vmem:[%s3372 + $0xdd8] sm:$0x0] %v4259
                  %v4261 = vld [vmem:[%s3371 + $0x6f00] sm:$0x0]
                  %4262 = vst [vmem:[%s3372 + $0xde0] sm:$0x0] %v4261
                  %v4263 = vld [vmem:[%s3371 + $0x6f40] sm:$0x0]
                  %4264 = vst [vmem:[%s3372 + $0xde8] sm:$0x0] %v4263
                  %v4265 = vld [vmem:[%s3371 + $0x6f80] sm:$0x0]
                  %4266 = vst [vmem:[%s3372 + $0xdf0] sm:$0x0] %v4265
                  %v4267 = vld [vmem:[%s3371 + $0x6fc0] sm:$0x0]
                  %4268 = vst [vmem:[%s3372 + $0xdf8] sm:$0x0] %v4267
                  %v4269 = vld [vmem:[%s3371 + $0x7000] sm:$0x0]
                  %4270 = vst [vmem:[%s3372 + $0xe00] sm:$0x0] %v4269
                  %v4271 = vld [vmem:[%s3371 + $0x7040] sm:$0x0]
                  %4272 = vst [vmem:[%s3372 + $0xe08] sm:$0x0] %v4271
                  %v4273 = vld [vmem:[%s3371 + $0x7080] sm:$0x0]
                  %4274 = vst [vmem:[%s3372 + $0xe10] sm:$0x0] %v4273
                  %v4275 = vld [vmem:[%s3371 + $0x70c0] sm:$0x0]
                  %4276 = vst [vmem:[%s3372 + $0xe18] sm:$0x0] %v4275
                  %v4277 = vld [vmem:[%s3371 + $0x7100] sm:$0x0]
                  %4278 = vst [vmem:[%s3372 + $0xe20] sm:$0x0] %v4277
                  %v4279 = vld [vmem:[%s3371 + $0x7140] sm:$0x0]
                  %4280 = vst [vmem:[%s3372 + $0xe28] sm:$0x0] %v4279
                  %v4281 = vld [vmem:[%s3371 + $0x7180] sm:$0x0]
                  %4282 = vst [vmem:[%s3372 + $0xe30] sm:$0x0] %v4281
                  %v4283 = vld [vmem:[%s3371 + $0x71c0] sm:$0x0]
                  %4284 = vst [vmem:[%s3372 + $0xe38] sm:$0x0] %v4283
                  %v4285 = vld [vmem:[%s3371 + $0x7200] sm:$0x0]
                  %4286 = vst [vmem:[%s3372 + $0xe40] sm:$0x0] %v4285
                  %v4287 = vld [vmem:[%s3371 + $0x7240] sm:$0x0]
                  %4288 = vst [vmem:[%s3372 + $0xe48] sm:$0x0] %v4287
                  %v4289 = vld [vmem:[%s3371 + $0x7280] sm:$0x0]
                  %4290 = vst [vmem:[%s3372 + $0xe50] sm:$0x0] %v4289
                  %v4291 = vld [vmem:[%s3371 + $0x72c0] sm:$0x0]
                  %4292 = vst [vmem:[%s3372 + $0xe58] sm:$0x0] %v4291
                  %v4293 = vld [vmem:[%s3371 + $0x7300] sm:$0x0]
                  %4294 = vst [vmem:[%s3372 + $0xe60] sm:$0x0] %v4293
                  %v4295 = vld [vmem:[%s3371 + $0x7340] sm:$0x0]
                  %4296 = vst [vmem:[%s3372 + $0xe68] sm:$0x0] %v4295
                  %v4297 = vld [vmem:[%s3371 + $0x7380] sm:$0x0]
                  %4298 = vst [vmem:[%s3372 + $0xe70] sm:$0x0] %v4297
                  %v4299 = vld [vmem:[%s3371 + $0x73c0] sm:$0x0]
                  %4300 = vst [vmem:[%s3372 + $0xe78] sm:$0x0] %v4299
                  %v4301 = vld [vmem:[%s3371 + $0x7400] sm:$0x0]
                  %4302 = vst [vmem:[%s3372 + $0xe80] sm:$0x0] %v4301
                  %v4303 = vld [vmem:[%s3371 + $0x7440] sm:$0x0]
                  %4304 = vst [vmem:[%s3372 + $0xe88] sm:$0x0] %v4303
                  %v4305 = vld [vmem:[%s3371 + $0x7480] sm:$0x0]
                  %4306 = vst [vmem:[%s3372 + $0xe90] sm:$0x0] %v4305
                  %v4307 = vld [vmem:[%s3371 + $0x74c0] sm:$0x0]
                  %4308 = vst [vmem:[%s3372 + $0xe98] sm:$0x0] %v4307
                  %v4309 = vld [vmem:[%s3371 + $0x7500] sm:$0x0]
                  %4310 = vst [vmem:[%s3372 + $0xea0] sm:$0x0] %v4309
                  %v4311 = vld [vmem:[%s3371 + $0x7540] sm:$0x0]
                  %4312 = vst [vmem:[%s3372 + $0xea8] sm:$0x0] %v4311
                  %v4313 = vld [vmem:[%s3371 + $0x7580] sm:$0x0]
                  %4314 = vst [vmem:[%s3372 + $0xeb0] sm:$0x0] %v4313
                  %v4315 = vld [vmem:[%s3371 + $0x75c0] sm:$0x0]
                  %4316 = vst [vmem:[%s3372 + $0xeb8] sm:$0x0] %v4315
                  %v4317 = vld [vmem:[%s3371 + $0x7600] sm:$0x0]
                  %4318 = vst [vmem:[%s3372 + $0xec0] sm:$0x0] %v4317
                  %v4319 = vld [vmem:[%s3371 + $0x7640] sm:$0x0]
                  %4320 = vst [vmem:[%s3372 + $0xec8] sm:$0x0] %v4319
                  %v4321 = vld [vmem:[%s3371 + $0x7680] sm:$0x0]
                  %4322 = vst [vmem:[%s3372 + $0xed0] sm:$0x0] %v4321
                  %v4323 = vld [vmem:[%s3371 + $0x76c0] sm:$0x0]
                  %4324 = vst [vmem:[%s3372 + $0xed8] sm:$0x0] %v4323
                  %v4325 = vld [vmem:[%s3371 + $0x7700] sm:$0x0]
                  %4326 = vst [vmem:[%s3372 + $0xee0] sm:$0x0] %v4325
                  %v4327 = vld [vmem:[%s3371 + $0x7740] sm:$0x0]
                  %4328 = vst [vmem:[%s3372 + $0xee8] sm:$0x0] %v4327
                  %v4329 = vld [vmem:[%s3371 + $0x7780] sm:$0x0]
                  %4330 = vst [vmem:[%s3372 + $0xef0] sm:$0x0] %v4329
                  %v4331 = vld [vmem:[%s3371 + $0x77c0] sm:$0x0]
                  %4332 = vst [vmem:[%s3372 + $0xef8] sm:$0x0] %v4331
                  %v4333 = vld [vmem:[%s3371 + $0x7800] sm:$0x0]
                  %4334 = vst [vmem:[%s3372 + $0xf00] sm:$0x0] %v4333
                  %v4335 = vld [vmem:[%s3371 + $0x7840] sm:$0x0]
                  %4336 = vst [vmem:[%s3372 + $0xf08] sm:$0x0] %v4335
                  %v4337 = vld [vmem:[%s3371 + $0x7880] sm:$0x0]
                  %4338 = vst [vmem:[%s3372 + $0xf10] sm:$0x0] %v4337
                  %v4339 = vld [vmem:[%s3371 + $0x78c0] sm:$0x0]
                  %4340 = vst [vmem:[%s3372 + $0xf18] sm:$0x0] %v4339
                  %v4341 = vld [vmem:[%s3371 + $0x7900] sm:$0x0]
                  %4342 = vst [vmem:[%s3372 + $0xf20] sm:$0x0] %v4341
                  %v4343 = vld [vmem:[%s3371 + $0x7940] sm:$0x0]
                  %4344 = vst [vmem:[%s3372 + $0xf28] sm:$0x0] %v4343
                  %v4345 = vld [vmem:[%s3371 + $0x7980] sm:$0x0]
                  %4346 = vst [vmem:[%s3372 + $0xf30] sm:$0x0] %v4345
                  %v4347 = vld [vmem:[%s3371 + $0x79c0] sm:$0x0]
                  %4348 = vst [vmem:[%s3372 + $0xf38] sm:$0x0] %v4347
                  %v4349 = vld [vmem:[%s3371 + $0x7a00] sm:$0x0]
                  %4350 = vst [vmem:[%s3372 + $0xf40] sm:$0x0] %v4349
                  %v4351 = vld [vmem:[%s3371 + $0x7a40] sm:$0x0]
                  %4352 = vst [vmem:[%s3372 + $0xf48] sm:$0x0] %v4351
                  %v4353 = vld [vmem:[%s3371 + $0x7a80] sm:$0x0]
                  %4354 = vst [vmem:[%s3372 + $0xf50] sm:$0x0] %v4353
                  %v4355 = vld [vmem:[%s3371 + $0x7ac0] sm:$0x0]
                  %4356 = vst [vmem:[%s3372 + $0xf58] sm:$0x0] %v4355
                  %v4357 = vld [vmem:[%s3371 + $0x7b00] sm:$0x0]
                  %4358 = vst [vmem:[%s3372 + $0xf60] sm:$0x0] %v4357
                  %v4359 = vld [vmem:[%s3371 + $0x7b40] sm:$0x0]
                  %4360 = vst [vmem:[%s3372 + $0xf68] sm:$0x0] %v4359
                  %v4361 = vld [vmem:[%s3371 + $0x7b80] sm:$0x0]
                  %4362 = vst [vmem:[%s3372 + $0xf70] sm:$0x0] %v4361
                  %v4363 = vld [vmem:[%s3371 + $0x7bc0] sm:$0x0]
                  %4364 = vst [vmem:[%s3372 + $0xf78] sm:$0x0] %v4363
                  %v4365 = vld [vmem:[%s3371 + $0x7c00] sm:$0x0]
                  %4366 = vst [vmem:[%s3372 + $0xf80] sm:$0x0] %v4365
                  %v4367 = vld [vmem:[%s3371 + $0x7c40] sm:$0x0]
                  %4368 = vst [vmem:[%s3372 + $0xf88] sm:$0x0] %v4367
                  %v4369 = vld [vmem:[%s3371 + $0x7c80] sm:$0x0]
                  %4370 = vst [vmem:[%s3372 + $0xf90] sm:$0x0] %v4369
                  %v4371 = vld [vmem:[%s3371 + $0x7cc0] sm:$0x0]
                  %4372 = vst [vmem:[%s3372 + $0xf98] sm:$0x0] %v4371
                  %v4373 = vld [vmem:[%s3371 + $0x7d00] sm:$0x0]
                  %4374 = vst [vmem:[%s3372 + $0xfa0] sm:$0x0] %v4373
                  %v4375 = vld [vmem:[%s3371 + $0x7d40] sm:$0x0]
                  %4376 = vst [vmem:[%s3372 + $0xfa8] sm:$0x0] %v4375
                  %v4377 = vld [vmem:[%s3371 + $0x7d80] sm:$0x0]
                  %4378 = vst [vmem:[%s3372 + $0xfb0] sm:$0x0] %v4377
                  %v4379 = vld [vmem:[%s3371 + $0x7dc0] sm:$0x0]
                  %4380 = vst [vmem:[%s3372 + $0xfb8] sm:$0x0] %v4379
                  %v4381 = vld [vmem:[%s3371 + $0x7e00] sm:$0x0]
                  %4382 = vst [vmem:[%s3372 + $0xfc0] sm:$0x0] %v4381
                  %v4383 = vld [vmem:[%s3371 + $0x7e40] sm:$0x0]
                  %4384 = vst [vmem:[%s3372 + $0xfc8] sm:$0x0] %v4383
                  %v4385 = vld [vmem:[%s3371 + $0x7e80] sm:$0x0]
                  %4386 = vst [vmem:[%s3372 + $0xfd0] sm:$0x0] %v4385
                  %v4387 = vld [vmem:[%s3371 + $0x7ec0] sm:$0x0]
                  %4388 = vst [vmem:[%s3372 + $0xfd8] sm:$0x0] %v4387
                  %v4389 = vld [vmem:[%s3371 + $0x7f00] sm:$0x0]
                  %4390 = vst [vmem:[%s3372 + $0xfe0] sm:$0x0] %v4389
                  %v4391 = vld [vmem:[%s3371 + $0x7f40] sm:$0x0]
                  %4392 = vst [vmem:[%s3372 + $0xfe8] sm:$0x0] %v4391
                  %v4393 = vld [vmem:[%s3371 + $0x7f80] sm:$0x0]
                  %4394 = vst [vmem:[%s3372 + $0xff0] sm:$0x0] %v4393
                  %v4395 = vld [vmem:[%s3371 + $0x7fc0] sm:$0x0]
                  %4396 = vst [vmem:[%s3372 + $0xff8] sm:$0x0] %v4395
                  %v4397 = vld [vmem:[%s3371 + $0x8000] sm:$0x0]
                  %4398 = vst [vmem:[%s3372 + $0x1000] sm:$0x0] %v4397
                  %v4399 = vld [vmem:[%s3371 + $0x8040] sm:$0x0]
                  %4400 = vst [vmem:[%s3372 + $0x1008] sm:$0x0] %v4399
                  %v4401 = vld [vmem:[%s3371 + $0x8080] sm:$0x0]
                  %4402 = vst [vmem:[%s3372 + $0x1010] sm:$0x0] %v4401
                  %v4403 = vld [vmem:[%s3371 + $0x80c0] sm:$0x0]
                  %4404 = vst [vmem:[%s3372 + $0x1018] sm:$0x0] %v4403
                  %v4405 = vld [vmem:[%s3371 + $0x8100] sm:$0x0]
                  %4406 = vst [vmem:[%s3372 + $0x1020] sm:$0x0] %v4405
                  %v4407 = vld [vmem:[%s3371 + $0x8140] sm:$0x0]
                  %4408 = vst [vmem:[%s3372 + $0x1028] sm:$0x0] %v4407
                  %v4409 = vld [vmem:[%s3371 + $0x8180] sm:$0x0]
                  %4410 = vst [vmem:[%s3372 + $0x1030] sm:$0x0] %v4409
                  %v4411 = vld [vmem:[%s3371 + $0x81c0] sm:$0x0]
                  %4412 = vst [vmem:[%s3372 + $0x1038] sm:$0x0] %v4411
                  %v4413 = vld [vmem:[%s3371 + $0x8200] sm:$0x0]
                  %4414 = vst [vmem:[%s3372 + $0x1040] sm:$0x0] %v4413
                  %v4415 = vld [vmem:[%s3371 + $0x8240] sm:$0x0]
                  %4416 = vst [vmem:[%s3372 + $0x1048] sm:$0x0] %v4415
                  %v4417 = vld [vmem:[%s3371 + $0x8280] sm:$0x0]
                  %4418 = vst [vmem:[%s3372 + $0x1050] sm:$0x0] %v4417
                  %v4419 = vld [vmem:[%s3371 + $0x82c0] sm:$0x0]
                  %4420 = vst [vmem:[%s3372 + $0x1058] sm:$0x0] %v4419
                  %v4421 = vld [vmem:[%s3371 + $0x8300] sm:$0x0]
                  %4422 = vst [vmem:[%s3372 + $0x1060] sm:$0x0] %v4421
                  %v4423 = vld [vmem:[%s3371 + $0x8340] sm:$0x0]
                  %4424 = vst [vmem:[%s3372 + $0x1068] sm:$0x0] %v4423
                  %v4425 = vld [vmem:[%s3371 + $0x8380] sm:$0x0]
                  %4426 = vst [vmem:[%s3372 + $0x1070] sm:$0x0] %v4425
                  %v4427 = vld [vmem:[%s3371 + $0x83c0] sm:$0x0]
                  %4428 = vst [vmem:[%s3372 + $0x1078] sm:$0x0] %v4427
                $region70: #{partial_inception_network.1} parent=57 // loop_footer
                  %s3370 = sadd.s32 1, %s3366
                $region71: #{partial_inception_network.1} parent=57 // loop_footer_branch
                  %3365 = sbr.rel target = $region67
                $region72: #{partial_inception_network.1} parent=57 // loop_exit
                  _
              $region58: #{partial_inception_network.1} parent=31 // pred_fallthru
                _
            $region32: #{partial_inception_network.1} parent=27 // pred_fallthru
              _
            // Predicated region
            $region33: #{partial_inception_network.1} parent=27 // pred_check
              _
            $region34: #{partial_inception_network.1} parent=27 // pred_check_branch
              %144 = sbr.rel target = $region36
            $region35: #{partial_inception_network.1} parent=27 // pred_region
              loop: start=0, step=1, limit=1
              $region37: #{partial_inception_network.1} parent=35 // loop_pre_header
                _
              $region38: #{partial_inception_network.1} parent=35 // loop_header
                %s147 = sphi 0, %s151
                %p148 = scmp.ge.s32.totalorder %s147, 1
                %s152 = sphi %s138, %s138
                %s153 = sphi %s135, %s135
              $region39: #{partial_inception_network.1} parent=35 // loop_header_branch
                %150 = sbr.rel (%p148) target = $region43
              $region40: #{partial_inception_network.1} parent=35 // loop_body
                %v154 = vld [vmem:[%s152] sm:$0xff]
                %155 = vst [vmem:[%s153] sm:$0xff] %v154
                %v156 = vld [vmem:[%s152 + $0x40] sm:$0xff]
                %157 = vst [vmem:[%s153 + $0x8] sm:$0xff] %v156
                %v158 = vld [vmem:[%s152 + $0x80] sm:$0xff]
                %159 = vst [vmem:[%s153 + $0x10] sm:$0xff] %v158
                %v160 = vld [vmem:[%s152 + $0xc0] sm:$0xff]
                %161 = vst [vmem:[%s153 + $0x18] sm:$0xff] %v160
                %v162 = vld [vmem:[%s152 + $0x100] sm:$0xff]
                %163 = vst [vmem:[%s153 + $0x20] sm:$0xff] %v162
                %v164 = vld [vmem:[%s152 + $0x140] sm:$0xff]
                %165 = vst [vmem:[%s153 + $0x28] sm:$0xff] %v164
                %v166 = vld [vmem:[%s152 + $0x180] sm:$0xff]
                %167 = vst [vmem:[%s153 + $0x30] sm:$0xff] %v166
                %v168 = vld [vmem:[%s152 + $0x1c0] sm:$0xff]
                %169 = vst [vmem:[%s153 + $0x38] sm:$0xff] %v168
                %v170 = vld [vmem:[%s152 + $0x200] sm:$0xff]
                %171 = vst [vmem:[%s153 + $0x40] sm:$0xff] %v170
                %v172 = vld [vmem:[%s152 + $0x240] sm:$0xff]
                %173 = vst [vmem:[%s153 + $0x48] sm:$0xff] %v172
                %v174 = vld [vmem:[%s152 + $0x280] sm:$0xff]
                %175 = vst [vmem:[%s153 + $0x50] sm:$0xff] %v174
                %v176 = vld [vmem:[%s152 + $0x2c0] sm:$0xff]
                %177 = vst [vmem:[%s153 + $0x58] sm:$0xff] %v176
                %v178 = vld [vmem:[%s152 + $0x300] sm:$0xff]
                %179 = vst [vmem:[%s153 + $0x60] sm:$0xff] %v178
                %v180 = vld [vmem:[%s152 + $0x340] sm:$0xff]
                %181 = vst [vmem:[%s153 + $0x68] sm:$0xff] %v180
                %v182 = vld [vmem:[%s152 + $0x380] sm:$0xff]
                %183 = vst [vmem:[%s153 + $0x70] sm:$0xff] %v182
                %v184 = vld [vmem:[%s152 + $0x3c0] sm:$0xff]
                %185 = vst [vmem:[%s153 + $0x78] sm:$0xff] %v184
                %v186 = vld [vmem:[%s152 + $0x400] sm:$0xff]
                %187 = vst [vmem:[%s153 + $0x80] sm:$0xff] %v186
                %v188 = vld [vmem:[%s152 + $0x440] sm:$0xff]
                %189 = vst [vmem:[%s153 + $0x88] sm:$0xff] %v188
                %v190 = vld [vmem:[%s152 + $0x480] sm:$0xff]
                %191 = vst [vmem:[%s153 + $0x90] sm:$0xff] %v190
                %v192 = vld [vmem:[%s152 + $0x4c0] sm:$0xff]
                %193 = vst [vmem:[%s153 + $0x98] sm:$0xff] %v192
                %v194 = vld [vmem:[%s152 + $0x500] sm:$0xff]
                %195 = vst [vmem:[%s153 + $0xa0] sm:$0xff] %v194
                %v196 = vld [vmem:[%s152 + $0x540] sm:$0xff]
                %197 = vst [vmem:[%s153 + $0xa8] sm:$0xff] %v196
                %v198 = vld [vmem:[%s152 + $0x580] sm:$0xff]
                %199 = vst [vmem:[%s153 + $0xb0] sm:$0xff] %v198
                %v200 = vld [vmem:[%s152 + $0x5c0] sm:$0xff]
                %201 = vst [vmem:[%s153 + $0xb8] sm:$0xff] %v200
                %v202 = vld [vmem:[%s152 + $0x600] sm:$0xff]
                %203 = vst [vmem:[%s153 + $0xc0] sm:$0xff] %v202
                %v204 = vld [vmem:[%s152 + $0x640] sm:$0xff]
                %205 = vst [vmem:[%s153 + $0xc8] sm:$0xff] %v204
                %v206 = vld [vmem:[%s152 + $0x680] sm:$0xff]
                %207 = vst [vmem:[%s153 + $0xd0] sm:$0xff] %v206
                %v208 = vld [vmem:[%s152 + $0x6c0] sm:$0xff]
                %209 = vst [vmem:[%s153 + $0xd8] sm:$0xff] %v208
                %v210 = vld [vmem:[%s152 + $0x700] sm:$0xff]
                %211 = vst [vmem:[%s153 + $0xe0] sm:$0xff] %v210
                %v212 = vld [vmem:[%s152 + $0x740] sm:$0xff]
                %213 = vst [vmem:[%s153 + $0xe8] sm:$0xff] %v212
                %v214 = vld [vmem:[%s152 + $0x780] sm:$0xff]
                %215 = vst [vmem:[%s153 + $0xf0] sm:$0xff] %v214
                %v216 = vld [vmem:[%s152 + $0x7c0] sm:$0xff]
                %217 = vst [vmem:[%s153 + $0xf8] sm:$0xff] %v216
                %v218 = vld [vmem:[%s152 + $0x800] sm:$0xff]
                %219 = vst [vmem:[%s153 + $0x100] sm:$0xff] %v218
                %v220 = vld [vmem:[%s152 + $0x840] sm:$0xff]
                %221 = vst [vmem:[%s153 + $0x108] sm:$0xff] %v220
                %v222 = vld [vmem:[%s152 + $0x880] sm:$0xff]
                %223 = vst [vmem:[%s153 + $0x110] sm:$0xff] %v222
                %v224 = vld [vmem:[%s152 + $0x8c0] sm:$0xff]
                %225 = vst [vmem:[%s153 + $0x118] sm:$0xff] %v224
                %v226 = vld [vmem:[%s152 + $0x900] sm:$0xff]
                %227 = vst [vmem:[%s153 + $0x120] sm:$0xff] %v226
                %v228 = vld [vmem:[%s152 + $0x940] sm:$0xff]
                %229 = vst [vmem:[%s153 + $0x128] sm:$0xff] %v228
                %v230 = vld [vmem:[%s152 + $0x980] sm:$0xff]
                %231 = vst [vmem:[%s153 + $0x130] sm:$0xff] %v230
                %v232 = vld [vmem:[%s152 + $0x9c0] sm:$0xff]
                %233 = vst [vmem:[%s153 + $0x138] sm:$0xff] %v232
                %v234 = vld [vmem:[%s152 + $0xa00] sm:$0xff]
                %235 = vst [vmem:[%s153 + $0x140] sm:$0xff] %v234
                %v236 = vld [vmem:[%s152 + $0xa40] sm:$0xff]
                %237 = vst [vmem:[%s153 + $0x148] sm:$0xff] %v236
                %v238 = vld [vmem:[%s152 + $0xa80] sm:$0xff]
                %239 = vst [vmem:[%s153 + $0x150] sm:$0xff] %v238
                %v240 = vld [vmem:[%s152 + $0xac0] sm:$0xff]
                %241 = vst [vmem:[%s153 + $0x158] sm:$0xff] %v240
                %v242 = vld [vmem:[%s152 + $0xb00] sm:$0xff]
                %243 = vst [vmem:[%s153 + $0x160] sm:$0xff] %v242
                %v244 = vld [vmem:[%s152 + $0xb40] sm:$0xff]
                %245 = vst [vmem:[%s153 + $0x168] sm:$0xff] %v244
                %v246 = vld [vmem:[%s152 + $0xb80] sm:$0xff]
                %247 = vst [vmem:[%s153 + $0x170] sm:$0xff] %v246
                %v248 = vld [vmem:[%s152 + $0xbc0] sm:$0xff]
                %249 = vst [vmem:[%s153 + $0x178] sm:$0xff] %v248
                %v250 = vld [vmem:[%s152 + $0xc00] sm:$0xff]
                %251 = vst [vmem:[%s153 + $0x180] sm:$0xff] %v250
                %v252 = vld [vmem:[%s152 + $0xc40] sm:$0xff]
                %253 = vst [vmem:[%s153 + $0x188] sm:$0xff] %v252
                %v254 = vld [vmem:[%s152 + $0xc80] sm:$0xff]
                %255 = vst [vmem:[%s153 + $0x190] sm:$0xff] %v254
                %v256 = vld [vmem:[%s152 + $0xcc0] sm:$0xff]
                %257 = vst [vmem:[%s153 + $0x198] sm:$0xff] %v256
                %v258 = vld [vmem:[%s152 + $0xd00] sm:$0xff]
                %259 = vst [vmem:[%s153 + $0x1a0] sm:$0xff] %v258
                %v260 = vld [vmem:[%s152 + $0xd40] sm:$0xff]
                %261 = vst [vmem:[%s153 + $0x1a8] sm:$0xff] %v260
                %v262 = vld [vmem:[%s152 + $0xd80] sm:$0xff]
                %263 = vst [vmem:[%s153 + $0x1b0] sm:$0xff] %v262
                %v264 = vld [vmem:[%s152 + $0xdc0] sm:$0xff]
                %265 = vst [vmem:[%s153 + $0x1b8] sm:$0xff] %v264
                %v266 = vld [vmem:[%s152 + $0xe00] sm:$0xff]
                %267 = vst [vmem:[%s153 + $0x1c0] sm:$0xff] %v266
                %v268 = vld [vmem:[%s152 + $0xe40] sm:$0xff]
                %269 = vst [vmem:[%s153 + $0x1c8] sm:$0xff] %v268
                %v270 = vld [vmem:[%s152 + $0xe80] sm:$0xff]
                %271 = vst [vmem:[%s153 + $0x1d0] sm:$0xff] %v270
                %v272 = vld [vmem:[%s152 + $0xec0] sm:$0xff]
                %273 = vst [vmem:[%s153 + $0x1d8] sm:$0xff] %v272
                %v274 = vld [vmem:[%s152 + $0xf00] sm:$0xff]
                %275 = vst [vmem:[%s153 + $0x1e0] sm:$0xff] %v274
                %v276 = vld [vmem:[%s152 + $0xf40] sm:$0xff]
                %277 = vst [vmem:[%s153 + $0x1e8] sm:$0xff] %v276
                %v278 = vld [vmem:[%s152 + $0xf80] sm:$0xff]
                %279 = vst [vmem:[%s153 + $0x1f0] sm:$0xff] %v278
                %v280 = vld [vmem:[%s152 + $0xfc0] sm:$0xff]
                %281 = vst [vmem:[%s153 + $0x1f8] sm:$0xff] %v280
                %v282 = vld [vmem:[%s152 + $0x1000] sm:$0xff]
                %283 = vst [vmem:[%s153 + $0x200] sm:$0xff] %v282
                %v284 = vld [vmem:[%s152 + $0x1040] sm:$0xff]
                %285 = vst [vmem:[%s153 + $0x208] sm:$0xff] %v284
                %v286 = vld [vmem:[%s152 + $0x1080] sm:$0xff]
                %287 = vst [vmem:[%s153 + $0x210] sm:$0xff] %v286
                %v288 = vld [vmem:[%s152 + $0x10c0] sm:$0xff]
                %289 = vst [vmem:[%s153 + $0x218] sm:$0xff] %v288
                %v290 = vld [vmem:[%s152 + $0x1100] sm:$0xff]
                %291 = vst [vmem:[%s153 + $0x220] sm:$0xff] %v290
                %v292 = vld [vmem:[%s152 + $0x1140] sm:$0xff]
                %293 = vst [vmem:[%s153 + $0x228] sm:$0xff] %v292
                %v294 = vld [vmem:[%s152 + $0x1180] sm:$0xff]
                %295 = vst [vmem:[%s153 + $0x230] sm:$0xff] %v294
                %v296 = vld [vmem:[%s152 + $0x11c0] sm:$0xff]
                %297 = vst [vmem:[%s153 + $0x238] sm:$0xff] %v296
                %v298 = vld [vmem:[%s152 + $0x1200] sm:$0xff]
                %299 = vst [vmem:[%s153 + $0x240] sm:$0xff] %v298
                %v300 = vld [vmem:[%s152 + $0x1240] sm:$0xff]
                %301 = vst [vmem:[%s153 + $0x248] sm:$0xff] %v300
                %v302 = vld [vmem:[%s152 + $0x1280] sm:$0xff]
                %303 = vst [vmem:[%s153 + $0x250] sm:$0xff] %v302
                %v304 = vld [vmem:[%s152 + $0x12c0] sm:$0xff]
                %305 = vst [vmem:[%s153 + $0x258] sm:$0xff] %v304
                %v306 = vld [vmem:[%s152 + $0x1300] sm:$0xff]
                %307 = vst [vmem:[%s153 + $0x260] sm:$0xff] %v306
                %v308 = vld [vmem:[%s152 + $0x1340] sm:$0xff]
                %309 = vst [vmem:[%s153 + $0x268] sm:$0xff] %v308
                %v310 = vld [vmem:[%s152 + $0x1380] sm:$0xff]
                %311 = vst [vmem:[%s153 + $0x270] sm:$0xff] %v310
                %v312 = vld [vmem:[%s152 + $0x13c0] sm:$0xff]
                %313 = vst [vmem:[%s153 + $0x278] sm:$0xff] %v312
                %v314 = vld [vmem:[%s152 + $0x1400] sm:$0xff]
                %315 = vst [vmem:[%s153 + $0x280] sm:$0xff] %v314
                %v316 = vld [vmem:[%s152 + $0x1440] sm:$0xff]
                %317 = vst [vmem:[%s153 + $0x288] sm:$0xff] %v316
                %v318 = vld [vmem:[%s152 + $0x1480] sm:$0xff]
                %319 = vst [vmem:[%s153 + $0x290] sm:$0xff] %v318
                %v320 = vld [vmem:[%s152 + $0x14c0] sm:$0xff]
                %321 = vst [vmem:[%s153 + $0x298] sm:$0xff] %v320
                %v322 = vld [vmem:[%s152 + $0x1500] sm:$0xff]
                %323 = vst [vmem:[%s153 + $0x2a0] sm:$0xff] %v322
                %v324 = vld [vmem:[%s152 + $0x1540] sm:$0xff]
                %325 = vst [vmem:[%s153 + $0x2a8] sm:$0xff] %v324
                %v326 = vld [vmem:[%s152 + $0x1580] sm:$0xff]
                %327 = vst [vmem:[%s153 + $0x2b0] sm:$0xff] %v326
                %v328 = vld [vmem:[%s152 + $0x15c0] sm:$0xff]
                %329 = vst [vmem:[%s153 + $0x2b8] sm:$0xff] %v328
                %v330 = vld [vmem:[%s152 + $0x1600] sm:$0xff]
                %331 = vst [vmem:[%s153 + $0x2c0] sm:$0xff] %v330
                %v332 = vld [vmem:[%s152 + $0x1640] sm:$0xff]
                %333 = vst [vmem:[%s153 + $0x2c8] sm:$0xff] %v332
                %v334 = vld [vmem:[%s152 + $0x1680] sm:$0xff]
                %335 = vst [vmem:[%s153 + $0x2d0] sm:$0xff] %v334
                %v336 = vld [vmem:[%s152 + $0x16c0] sm:$0xff]
                %337 = vst [vmem:[%s153 + $0x2d8] sm:$0xff] %v336
                %v338 = vld [vmem:[%s152 + $0x1700] sm:$0xff]
                %339 = vst [vmem:[%s153 + $0x2e0] sm:$0xff] %v338
                %v340 = vld [vmem:[%s152 + $0x1740] sm:$0xff]
                %341 = vst [vmem:[%s153 + $0x2e8] sm:$0xff] %v340
                %v342 = vld [vmem:[%s152 + $0x1780] sm:$0xff]
                %343 = vst [vmem:[%s153 + $0x2f0] sm:$0xff] %v342
                %v344 = vld [vmem:[%s152 + $0x17c0] sm:$0xff]
                %345 = vst [vmem:[%s153 + $0x2f8] sm:$0xff] %v344
                %v346 = vld [vmem:[%s152 + $0x1800] sm:$0xff]
                %347 = vst [vmem:[%s153 + $0x300] sm:$0xff] %v346
                %v348 = vld [vmem:[%s152 + $0x1840] sm:$0xff]
                %349 = vst [vmem:[%s153 + $0x308] sm:$0xff] %v348
                %v350 = vld [vmem:[%s152 + $0x1880] sm:$0xff]
                %351 = vst [vmem:[%s153 + $0x310] sm:$0xff] %v350
                %v352 = vld [vmem:[%s152 + $0x18c0] sm:$0xff]
                %353 = vst [vmem:[%s153 + $0x318] sm:$0xff] %v352
                %v354 = vld [vmem:[%s152 + $0x1900] sm:$0xff]
                %355 = vst [vmem:[%s153 + $0x320] sm:$0xff] %v354
                %v356 = vld [vmem:[%s152 + $0x1940] sm:$0xff]
                %357 = vst [vmem:[%s153 + $0x328] sm:$0xff] %v356
                %v358 = vld [vmem:[%s152 + $0x1980] sm:$0xff]
                %359 = vst [vmem:[%s153 + $0x330] sm:$0xff] %v358
                %v360 = vld [vmem:[%s152 + $0x19c0] sm:$0xff]
                %361 = vst [vmem:[%s153 + $0x338] sm:$0xff] %v360
                %v362 = vld [vmem:[%s152 + $0x1a00] sm:$0xff]
                %363 = vst [vmem:[%s153 + $0x340] sm:$0xff] %v362
                %v364 = vld [vmem:[%s152 + $0x1a40] sm:$0xff]
                %365 = vst [vmem:[%s153 + $0x348] sm:$0xff] %v364
                %v366 = vld [vmem:[%s152 + $0x1a80] sm:$0xff]
                %367 = vst [vmem:[%s153 + $0x350] sm:$0xff] %v366
                %v368 = vld [vmem:[%s152 + $0x1ac0] sm:$0xff]
                %369 = vst [vmem:[%s153 + $0x358] sm:$0xff] %v368
                %v370 = vld [vmem:[%s152 + $0x1b00] sm:$0xff]
                %371 = vst [vmem:[%s153 + $0x360] sm:$0xff] %v370
                %v372 = vld [vmem:[%s152 + $0x1b40] sm:$0xff]
                %373 = vst [vmem:[%s153 + $0x368] sm:$0xff] %v372
                %v374 = vld [vmem:[%s152 + $0x1b80] sm:$0xff]
                %375 = vst [vmem:[%s153 + $0x370] sm:$0xff] %v374
                %v376 = vld [vmem:[%s152 + $0x1bc0] sm:$0xff]
                %377 = vst [vmem:[%s153 + $0x378] sm:$0xff] %v376
                %v378 = vld [vmem:[%s152 + $0x1c00] sm:$0xff]
                %379 = vst [vmem:[%s153 + $0x380] sm:$0xff] %v378
                %v380 = vld [vmem:[%s152 + $0x1c40] sm:$0xff]
                %381 = vst [vmem:[%s153 + $0x388] sm:$0xff] %v380
                %v382 = vld [vmem:[%s152 + $0x1c80] sm:$0xff]
                %383 = vst [vmem:[%s153 + $0x390] sm:$0xff] %v382
                %v384 = vld [vmem:[%s152 + $0x1cc0] sm:$0xff]
                %385 = vst [vmem:[%s153 + $0x398] sm:$0xff] %v384
                %v386 = vld [vmem:[%s152 + $0x1d00] sm:$0xff]
                %387 = vst [vmem:[%s153 + $0x3a0] sm:$0xff] %v386
                %v388 = vld [vmem:[%s152 + $0x1d40] sm:$0xff]
                %389 = vst [vmem:[%s153 + $0x3a8] sm:$0xff] %v388
                %v390 = vld [vmem:[%s152 + $0x1d80] sm:$0xff]
                %391 = vst [vmem:[%s153 + $0x3b0] sm:$0xff] %v390
                %v392 = vld [vmem:[%s152 + $0x1dc0] sm:$0xff]
                %393 = vst [vmem:[%s153 + $0x3b8] sm:$0xff] %v392
                %v394 = vld [vmem:[%s152 + $0x1e00] sm:$0xff]
                %395 = vst [vmem:[%s153 + $0x3c0] sm:$0xff] %v394
                %v396 = vld [vmem:[%s152 + $0x1e40] sm:$0xff]
                %397 = vst [vmem:[%s153 + $0x3c8] sm:$0xff] %v396
                %v398 = vld [vmem:[%s152 + $0x1e80] sm:$0xff]
                %399 = vst [vmem:[%s153 + $0x3d0] sm:$0xff] %v398
                %v400 = vld [vmem:[%s152 + $0x1ec0] sm:$0xff]
                %401 = vst [vmem:[%s153 + $0x3d8] sm:$0xff] %v400
                %v402 = vld [vmem:[%s152 + $0x1f00] sm:$0xff]
                %403 = vst [vmem:[%s153 + $0x3e0] sm:$0xff] %v402
                %v404 = vld [vmem:[%s152 + $0x1f40] sm:$0xff]
                %405 = vst [vmem:[%s153 + $0x3e8] sm:$0xff] %v404
                %v406 = vld [vmem:[%s152 + $0x1f80] sm:$0xff]
                %407 = vst [vmem:[%s153 + $0x3f0] sm:$0xff] %v406
                %v408 = vld [vmem:[%s152 + $0x1fc0] sm:$0xff]
                %409 = vst [vmem:[%s153 + $0x3f8] sm:$0xff] %v408
                %v410 = vld [vmem:[%s152 + $0x2000] sm:$0xff]
                %411 = vst [vmem:[%s153 + $0x400] sm:$0xff] %v410
                %v412 = vld [vmem:[%s152 + $0x2040] sm:$0xff]
                %413 = vst [vmem:[%s153 + $0x408] sm:$0xff] %v412
                %v414 = vld [vmem:[%s152 + $0x2080] sm:$0xff]
                %415 = vst [vmem:[%s153 + $0x410] sm:$0xff] %v414
                %v416 = vld [vmem:[%s152 + $0x20c0] sm:$0xff]
                %417 = vst [vmem:[%s153 + $0x418] sm:$0xff] %v416
                %v418 = vld [vmem:[%s152 + $0x2100] sm:$0xff]
                %419 = vst [vmem:[%s153 + $0x420] sm:$0xff] %v418
                %v420 = vld [vmem:[%s152 + $0x2140] sm:$0xff]
                %421 = vst [vmem:[%s153 + $0x428] sm:$0xff] %v420
                %v422 = vld [vmem:[%s152 + $0x2180] sm:$0xff]
                %423 = vst [vmem:[%s153 + $0x430] sm:$0xff] %v422
                %v424 = vld [vmem:[%s152 + $0x21c0] sm:$0xff]
                %425 = vst [vmem:[%s153 + $0x438] sm:$0xff] %v424
                %v426 = vld [vmem:[%s152 + $0x2200] sm:$0xff]
                %427 = vst [vmem:[%s153 + $0x440] sm:$0xff] %v426
                %v428 = vld [vmem:[%s152 + $0x2240] sm:$0xff]
                %429 = vst [vmem:[%s153 + $0x448] sm:$0xff] %v428
                %v430 = vld [vmem:[%s152 + $0x2280] sm:$0xff]
                %431 = vst [vmem:[%s153 + $0x450] sm:$0xff] %v430
                %v432 = vld [vmem:[%s152 + $0x22c0] sm:$0xff]
                %433 = vst [vmem:[%s153 + $0x458] sm:$0xff] %v432
                %v434 = vld [vmem:[%s152 + $0x2300] sm:$0xff]
                %435 = vst [vmem:[%s153 + $0x460] sm:$0xff] %v434
                %v436 = vld [vmem:[%s152 + $0x2340] sm:$0xff]
                %437 = vst [vmem:[%s153 + $0x468] sm:$0xff] %v436
                %v438 = vld [vmem:[%s152 + $0x2380] sm:$0xff]
                %439 = vst [vmem:[%s153 + $0x470] sm:$0xff] %v438
                %v440 = vld [vmem:[%s152 + $0x23c0] sm:$0xff]
                %441 = vst [vmem:[%s153 + $0x478] sm:$0xff] %v440
                %v442 = vld [vmem:[%s152 + $0x2400] sm:$0xff]
                %443 = vst [vmem:[%s153 + $0x480] sm:$0xff] %v442
                %v444 = vld [vmem:[%s152 + $0x2440] sm:$0xff]
                %445 = vst [vmem:[%s153 + $0x488] sm:$0xff] %v444
                %v446 = vld [vmem:[%s152 + $0x2480] sm:$0xff]
                %447 = vst [vmem:[%s153 + $0x490] sm:$0xff] %v446
                %v448 = vld [vmem:[%s152 + $0x24c0] sm:$0xff]
                %449 = vst [vmem:[%s153 + $0x498] sm:$0xff] %v448
                %v450 = vld [vmem:[%s152 + $0x2500] sm:$0xff]
                %451 = vst [vmem:[%s153 + $0x4a0] sm:$0xff] %v450
                %v452 = vld [vmem:[%s152 + $0x2540] sm:$0xff]
                %453 = vst [vmem:[%s153 + $0x4a8] sm:$0xff] %v452
                %v454 = vld [vmem:[%s152 + $0x2580] sm:$0xff]
                %455 = vst [vmem:[%s153 + $0x4b0] sm:$0xff] %v454
                %v456 = vld [vmem:[%s152 + $0x25c0] sm:$0xff]
                %457 = vst [vmem:[%s153 + $0x4b8] sm:$0xff] %v456
                %v458 = vld [vmem:[%s152 + $0x2600] sm:$0xff]
                %459 = vst [vmem:[%s153 + $0x4c0] sm:$0xff] %v458
                %v460 = vld [vmem:[%s152 + $0x2640] sm:$0xff]
                %461 = vst [vmem:[%s153 + $0x4c8] sm:$0xff] %v460
                %v462 = vld [vmem:[%s152 + $0x2680] sm:$0xff]
                %463 = vst [vmem:[%s153 + $0x4d0] sm:$0xff] %v462
                %v464 = vld [vmem:[%s152 + $0x26c0] sm:$0xff]
                %465 = vst [vmem:[%s153 + $0x4d8] sm:$0xff] %v464
                %v466 = vld [vmem:[%s152 + $0x2700] sm:$0xff]
                %467 = vst [vmem:[%s153 + $0x4e0] sm:$0xff] %v466
                %v468 = vld [vmem:[%s152 + $0x2740] sm:$0xff]
                %469 = vst [vmem:[%s153 + $0x4e8] sm:$0xff] %v468
                %v470 = vld [vmem:[%s152 + $0x2780] sm:$0xff]
                %471 = vst [vmem:[%s153 + $0x4f0] sm:$0xff] %v470
                %v472 = vld [vmem:[%s152 + $0x27c0] sm:$0xff]
                %473 = vst [vmem:[%s153 + $0x4f8] sm:$0xff] %v472
                %v474 = vld [vmem:[%s152 + $0x2800] sm:$0xff]
                %475 = vst [vmem:[%s153 + $0x500] sm:$0xff] %v474
                %v476 = vld [vmem:[%s152 + $0x2840] sm:$0xff]
                %477 = vst [vmem:[%s153 + $0x508] sm:$0xff] %v476
                %v478 = vld [vmem:[%s152 + $0x2880] sm:$0xff]
                %479 = vst [vmem:[%s153 + $0x510] sm:$0xff] %v478
                %v480 = vld [vmem:[%s152 + $0x28c0] sm:$0xff]
                %481 = vst [vmem:[%s153 + $0x518] sm:$0xff] %v480
                %v482 = vld [vmem:[%s152 + $0x2900] sm:$0xff]
                %483 = vst [vmem:[%s153 + $0x520] sm:$0xff] %v482
                %v484 = vld [vmem:[%s152 + $0x2940] sm:$0xff]
                %485 = vst [vmem:[%s153 + $0x528] sm:$0xff] %v484
                %v486 = vld [vmem:[%s152 + $0x2980] sm:$0xff]
                %487 = vst [vmem:[%s153 + $0x530] sm:$0xff] %v486
                %v488 = vld [vmem:[%s152 + $0x29c0] sm:$0xff]
                %489 = vst [vmem:[%s153 + $0x538] sm:$0xff] %v488
                %v490 = vld [vmem:[%s152 + $0x2a00] sm:$0xff]
                %491 = vst [vmem:[%s153 + $0x540] sm:$0xff] %v490
                %v492 = vld [vmem:[%s152 + $0x2a40] sm:$0xff]
                %493 = vst [vmem:[%s153 + $0x548] sm:$0xff] %v492
                %v494 = vld [vmem:[%s152 + $0x2a80] sm:$0xff]
                %495 = vst [vmem:[%s153 + $0x550] sm:$0xff] %v494
                %v496 = vld [vmem:[%s152 + $0x2ac0] sm:$0xff]
                %497 = vst [vmem:[%s153 + $0x558] sm:$0xff] %v496
                %v498 = vld [vmem:[%s152 + $0x2b00] sm:$0xff]
                %499 = vst [vmem:[%s153 + $0x560] sm:$0xff] %v498
                %v500 = vld [vmem:[%s152 + $0x2b40] sm:$0xff]
                %501 = vst [vmem:[%s153 + $0x568] sm:$0xff] %v500
                %v502 = vld [vmem:[%s152 + $0x2b80] sm:$0xff]
                %503 = vst [vmem:[%s153 + $0x570] sm:$0xff] %v502
                %v504 = vld [vmem:[%s152 + $0x2bc0] sm:$0xff]
                %505 = vst [vmem:[%s153 + $0x578] sm:$0xff] %v504
                %v506 = vld [vmem:[%s152 + $0x2c00] sm:$0xff]
                %507 = vst [vmem:[%s153 + $0x580] sm:$0xff] %v506
                %v508 = vld [vmem:[%s152 + $0x2c40] sm:$0xff]
                %509 = vst [vmem:[%s153 + $0x588] sm:$0xff] %v508
                %v510 = vld [vmem:[%s152 + $0x2c80] sm:$0xff]
                %511 = vst [vmem:[%s153 + $0x590] sm:$0xff] %v510
                %v512 = vld [vmem:[%s152 + $0x2cc0] sm:$0xff]
                %513 = vst [vmem:[%s153 + $0x598] sm:$0xff] %v512
                %v514 = vld [vmem:[%s152 + $0x2d00] sm:$0xff]
                %515 = vst [vmem:[%s153 + $0x5a0] sm:$0xff] %v514
                %v516 = vld [vmem:[%s152 + $0x2d40] sm:$0xff]
                %517 = vst [vmem:[%s153 + $0x5a8] sm:$0xff] %v516
                %v518 = vld [vmem:[%s152 + $0x2d80] sm:$0xff]
                %519 = vst [vmem:[%s153 + $0x5b0] sm:$0xff] %v518
                %v520 = vld [vmem:[%s152 + $0x2dc0] sm:$0xff]
                %521 = vst [vmem:[%s153 + $0x5b8] sm:$0xff] %v520
                %v522 = vld [vmem:[%s152 + $0x2e00] sm:$0xff]
                %523 = vst [vmem:[%s153 + $0x5c0] sm:$0xff] %v522
                %v524 = vld [vmem:[%s152 + $0x2e40] sm:$0xff]
                %525 = vst [vmem:[%s153 + $0x5c8] sm:$0xff] %v524
                %v526 = vld [vmem:[%s152 + $0x2e80] sm:$0xff]
                %527 = vst [vmem:[%s153 + $0x5d0] sm:$0xff] %v526
                %v528 = vld [vmem:[%s152 + $0x2ec0] sm:$0xff]
                %529 = vst [vmem:[%s153 + $0x5d8] sm:$0xff] %v528
                %v530 = vld [vmem:[%s152 + $0x2f00] sm:$0xff]
                %531 = vst [vmem:[%s153 + $0x5e0] sm:$0xff] %v530
                %v532 = vld [vmem:[%s152 + $0x2f40] sm:$0xff]
                %533 = vst [vmem:[%s153 + $0x5e8] sm:$0xff] %v532
                %v534 = vld [vmem:[%s152 + $0x2f80] sm:$0xff]
                %535 = vst [vmem:[%s153 + $0x5f0] sm:$0xff] %v534
                %v536 = vld [vmem:[%s152 + $0x2fc0] sm:$0xff]
                %537 = vst [vmem:[%s153 + $0x5f8] sm:$0xff] %v536
                %v538 = vld [vmem:[%s152 + $0x3000] sm:$0xff]
                %539 = vst [vmem:[%s153 + $0x600] sm:$0xff] %v538
                %v540 = vld [vmem:[%s152 + $0x3040] sm:$0xff]
                %541 = vst [vmem:[%s153 + $0x608] sm:$0xff] %v540
                %v542 = vld [vmem:[%s152 + $0x3080] sm:$0xff]
                %543 = vst [vmem:[%s153 + $0x610] sm:$0xff] %v542
                %v544 = vld [vmem:[%s152 + $0x30c0] sm:$0xff]
                %545 = vst [vmem:[%s153 + $0x618] sm:$0xff] %v544
                %v546 = vld [vmem:[%s152 + $0x3100] sm:$0xff]
                %547 = vst [vmem:[%s153 + $0x620] sm:$0xff] %v546
                %v548 = vld [vmem:[%s152 + $0x3140] sm:$0xff]
                %549 = vst [vmem:[%s153 + $0x628] sm:$0xff] %v548
                %v550 = vld [vmem:[%s152 + $0x3180] sm:$0xff]
                %551 = vst [vmem:[%s153 + $0x630] sm:$0xff] %v550
                %v552 = vld [vmem:[%s152 + $0x31c0] sm:$0xff]
                %553 = vst [vmem:[%s153 + $0x638] sm:$0xff] %v552
                %v554 = vld [vmem:[%s152 + $0x3200] sm:$0xff]
                %555 = vst [vmem:[%s153 + $0x640] sm:$0xff] %v554
                %v556 = vld [vmem:[%s152 + $0x3240] sm:$0xff]
                %557 = vst [vmem:[%s153 + $0x648] sm:$0xff] %v556
                %v558 = vld [vmem:[%s152 + $0x3280] sm:$0xff]
                %559 = vst [vmem:[%s153 + $0x650] sm:$0xff] %v558
                %v560 = vld [vmem:[%s152 + $0x32c0] sm:$0xff]
                %561 = vst [vmem:[%s153 + $0x658] sm:$0xff] %v560
                %v562 = vld [vmem:[%s152 + $0x3300] sm:$0xff]
                %563 = vst [vmem:[%s153 + $0x660] sm:$0xff] %v562
                %v564 = vld [vmem:[%s152 + $0x3340] sm:$0xff]
                %565 = vst [vmem:[%s153 + $0x668] sm:$0xff] %v564
                %v566 = vld [vmem:[%s152 + $0x3380] sm:$0xff]
                %567 = vst [vmem:[%s153 + $0x670] sm:$0xff] %v566
                %v568 = vld [vmem:[%s152 + $0x33c0] sm:$0xff]
                %569 = vst [vmem:[%s153 + $0x678] sm:$0xff] %v568
                %v570 = vld [vmem:[%s152 + $0x3400] sm:$0xff]
                %571 = vst [vmem:[%s153 + $0x680] sm:$0xff] %v570
                %v572 = vld [vmem:[%s152 + $0x3440] sm:$0xff]
                %573 = vst [vmem:[%s153 + $0x688] sm:$0xff] %v572
                %v574 = vld [vmem:[%s152 + $0x3480] sm:$0xff]
                %575 = vst [vmem:[%s153 + $0x690] sm:$0xff] %v574
                %v576 = vld [vmem:[%s152 + $0x34c0] sm:$0xff]
                %577 = vst [vmem:[%s153 + $0x698] sm:$0xff] %v576
                %v578 = vld [vmem:[%s152 + $0x3500] sm:$0xff]
                %579 = vst [vmem:[%s153 + $0x6a0] sm:$0xff] %v578
                %v580 = vld [vmem:[%s152 + $0x3540] sm:$0xff]
                %581 = vst [vmem:[%s153 + $0x6a8] sm:$0xff] %v580
                %v582 = vld [vmem:[%s152 + $0x3580] sm:$0xff]
                %583 = vst [vmem:[%s153 + $0x6b0] sm:$0xff] %v582
                %v584 = vld [vmem:[%s152 + $0x35c0] sm:$0xff]
                %585 = vst [vmem:[%s153 + $0x6b8] sm:$0xff] %v584
                %v586 = vld [vmem:[%s152 + $0x3600] sm:$0xff]
                %587 = vst [vmem:[%s153 + $0x6c0] sm:$0xff] %v586
                %v588 = vld [vmem:[%s152 + $0x3640] sm:$0xff]
                %589 = vst [vmem:[%s153 + $0x6c8] sm:$0xff] %v588
                %v590 = vld [vmem:[%s152 + $0x3680] sm:$0xff]
                %591 = vst [vmem:[%s153 + $0x6d0] sm:$0xff] %v590
                %v592 = vld [vmem:[%s152 + $0x36c0] sm:$0xff]
                %593 = vst [vmem:[%s153 + $0x6d8] sm:$0xff] %v592
                %v594 = vld [vmem:[%s152 + $0x3700] sm:$0xff]
                %595 = vst [vmem:[%s153 + $0x6e0] sm:$0xff] %v594
                %v596 = vld [vmem:[%s152 + $0x3740] sm:$0xff]
                %597 = vst [vmem:[%s153 + $0x6e8] sm:$0xff] %v596
                %v598 = vld [vmem:[%s152 + $0x3780] sm:$0xff]
                %599 = vst [vmem:[%s153 + $0x6f0] sm:$0xff] %v598
                %v600 = vld [vmem:[%s152 + $0x37c0] sm:$0xff]
                %601 = vst [vmem:[%s153 + $0x6f8] sm:$0xff] %v600
                %v602 = vld [vmem:[%s152 + $0x3800] sm:$0xff]
                %603 = vst [vmem:[%s153 + $0x700] sm:$0xff] %v602
                %v604 = vld [vmem:[%s152 + $0x3840] sm:$0xff]
                %605 = vst [vmem:[%s153 + $0x708] sm:$0xff] %v604
                %v606 = vld [vmem:[%s152 + $0x3880] sm:$0xff]
                %607 = vst [vmem:[%s153 + $0x710] sm:$0xff] %v606
                %v608 = vld [vmem:[%s152 + $0x38c0] sm:$0xff]
                %609 = vst [vmem:[%s153 + $0x718] sm:$0xff] %v608
                %v610 = vld [vmem:[%s152 + $0x3900] sm:$0xff]
                %611 = vst [vmem:[%s153 + $0x720] sm:$0xff] %v610
                %v612 = vld [vmem:[%s152 + $0x3940] sm:$0xff]
                %613 = vst [vmem:[%s153 + $0x728] sm:$0xff] %v612
                %v614 = vld [vmem:[%s152 + $0x3980] sm:$0xff]
                %615 = vst [vmem:[%s153 + $0x730] sm:$0xff] %v614
                %v616 = vld [vmem:[%s152 + $0x39c0] sm:$0xff]
                %617 = vst [vmem:[%s153 + $0x738] sm:$0xff] %v616
                %v618 = vld [vmem:[%s152 + $0x3a00] sm:$0xff]
                %619 = vst [vmem:[%s153 + $0x740] sm:$0xff] %v618
                %v620 = vld [vmem:[%s152 + $0x3a40] sm:$0xff]
                %621 = vst [vmem:[%s153 + $0x748] sm:$0xff] %v620
                %v622 = vld [vmem:[%s152 + $0x3a80] sm:$0xff]
                %623 = vst [vmem:[%s153 + $0x750] sm:$0xff] %v622
                %v624 = vld [vmem:[%s152 + $0x3ac0] sm:$0xff]
                %625 = vst [vmem:[%s153 + $0x758] sm:$0xff] %v624
                %v626 = vld [vmem:[%s152 + $0x3b00] sm:$0xff]
                %627 = vst [vmem:[%s153 + $0x760] sm:$0xff] %v626
                %v628 = vld [vmem:[%s152 + $0x3b40] sm:$0xff]
                %629 = vst [vmem:[%s153 + $0x768] sm:$0xff] %v628
                %v630 = vld [vmem:[%s152 + $0x3b80] sm:$0xff]
                %631 = vst [vmem:[%s153 + $0x770] sm:$0xff] %v630
                %v632 = vld [vmem:[%s152 + $0x3bc0] sm:$0xff]
                %633 = vst [vmem:[%s153 + $0x778] sm:$0xff] %v632
                %v634 = vld [vmem:[%s152 + $0x3c00] sm:$0xff]
                %635 = vst [vmem:[%s153 + $0x780] sm:$0xff] %v634
                %v636 = vld [vmem:[%s152 + $0x3c40] sm:$0xff]
                %637 = vst [vmem:[%s153 + $0x788] sm:$0xff] %v636
                %v638 = vld [vmem:[%s152 + $0x3c80] sm:$0xff]
                %639 = vst [vmem:[%s153 + $0x790] sm:$0xff] %v638
                %v640 = vld [vmem:[%s152 + $0x3cc0] sm:$0xff]
                %641 = vst [vmem:[%s153 + $0x798] sm:$0xff] %v640
                %v642 = vld [vmem:[%s152 + $0x3d00] sm:$0xff]
                %643 = vst [vmem:[%s153 + $0x7a0] sm:$0xff] %v642
                %v644 = vld [vmem:[%s152 + $0x3d40] sm:$0xff]
                %645 = vst [vmem:[%s153 + $0x7a8] sm:$0xff] %v644
                %v646 = vld [vmem:[%s152 + $0x3d80] sm:$0xff]
                %647 = vst [vmem:[%s153 + $0x7b0] sm:$0xff] %v646
                %v648 = vld [vmem:[%s152 + $0x3dc0] sm:$0xff]
                %649 = vst [vmem:[%s153 + $0x7b8] sm:$0xff] %v648
                %v650 = vld [vmem:[%s152 + $0x3e00] sm:$0xff]
                %651 = vst [vmem:[%s153 + $0x7c0] sm:$0xff] %v650
                %v652 = vld [vmem:[%s152 + $0x3e40] sm:$0xff]
                %653 = vst [vmem:[%s153 + $0x7c8] sm:$0xff] %v652
                %v654 = vld [vmem:[%s152 + $0x3e80] sm:$0xff]
                %655 = vst [vmem:[%s153 + $0x7d0] sm:$0xff] %v654
                %v656 = vld [vmem:[%s152 + $0x3ec0] sm:$0xff]
                %657 = vst [vmem:[%s153 + $0x7d8] sm:$0xff] %v656
                %v658 = vld [vmem:[%s152 + $0x3f00] sm:$0xff]
                %659 = vst [vmem:[%s153 + $0x7e0] sm:$0xff] %v658
                %v660 = vld [vmem:[%s152 + $0x3f40] sm:$0xff]
                %661 = vst [vmem:[%s153 + $0x7e8] sm:$0xff] %v660
                %v662 = vld [vmem:[%s152 + $0x3f80] sm:$0xff]
                %663 = vst [vmem:[%s153 + $0x7f0] sm:$0xff] %v662
                %v664 = vld [vmem:[%s152 + $0x3fc0] sm:$0xff]
                %665 = vst [vmem:[%s153 + $0x7f8] sm:$0xff] %v664
                %v666 = vld [vmem:[%s152 + $0x4000] sm:$0xff]
                %667 = vst [vmem:[%s153 + $0x800] sm:$0xff] %v666
                %v668 = vld [vmem:[%s152 + $0x4040] sm:$0xff]
                %669 = vst [vmem:[%s153 + $0x808] sm:$0xff] %v668
                %v670 = vld [vmem:[%s152 + $0x4080] sm:$0xff]
                %671 = vst [vmem:[%s153 + $0x810] sm:$0xff] %v670
                %v672 = vld [vmem:[%s152 + $0x40c0] sm:$0xff]
                %673 = vst [vmem:[%s153 + $0x818] sm:$0xff] %v672
                %v674 = vld [vmem:[%s152 + $0x4100] sm:$0xff]
                %675 = vst [vmem:[%s153 + $0x820] sm:$0xff] %v674
                %v676 = vld [vmem:[%s152 + $0x4140] sm:$0xff]
                %677 = vst [vmem:[%s153 + $0x828] sm:$0xff] %v676
                %v678 = vld [vmem:[%s152 + $0x4180] sm:$0xff]
                %679 = vst [vmem:[%s153 + $0x830] sm:$0xff] %v678
                %v680 = vld [vmem:[%s152 + $0x41c0] sm:$0xff]
                %681 = vst [vmem:[%s153 + $0x838] sm:$0xff] %v680
                %v682 = vld [vmem:[%s152 + $0x4200] sm:$0xff]
                %683 = vst [vmem:[%s153 + $0x840] sm:$0xff] %v682
                %v684 = vld [vmem:[%s152 + $0x4240] sm:$0xff]
                %685 = vst [vmem:[%s153 + $0x848] sm:$0xff] %v684
                %v686 = vld [vmem:[%s152 + $0x4280] sm:$0xff]
                %687 = vst [vmem:[%s153 + $0x850] sm:$0xff] %v686
                %v688 = vld [vmem:[%s152 + $0x42c0] sm:$0xff]
                %689 = vst [vmem:[%s153 + $0x858] sm:$0xff] %v688
                %v690 = vld [vmem:[%s152 + $0x4300] sm:$0xff]
                %691 = vst [vmem:[%s153 + $0x860] sm:$0xff] %v690
                %v692 = vld [vmem:[%s152 + $0x4340] sm:$0xff]
                %693 = vst [vmem:[%s153 + $0x868] sm:$0xff] %v692
                %v694 = vld [vmem:[%s152 + $0x4380] sm:$0xff]
                %695 = vst [vmem:[%s153 + $0x870] sm:$0xff] %v694
                %v696 = vld [vmem:[%s152 + $0x43c0] sm:$0xff]
                %697 = vst [vmem:[%s153 + $0x878] sm:$0xff] %v696
                %v698 = vld [vmem:[%s152 + $0x4400] sm:$0xff]
                %699 = vst [vmem:[%s153 + $0x880] sm:$0xff] %v698
                %v700 = vld [vmem:[%s152 + $0x4440] sm:$0xff]
                %701 = vst [vmem:[%s153 + $0x888] sm:$0xff] %v700
                %v702 = vld [vmem:[%s152 + $0x4480] sm:$0xff]
                %703 = vst [vmem:[%s153 + $0x890] sm:$0xff] %v702
                %v704 = vld [vmem:[%s152 + $0x44c0] sm:$0xff]
                %705 = vst [vmem:[%s153 + $0x898] sm:$0xff] %v704
                %v706 = vld [vmem:[%s152 + $0x4500] sm:$0xff]
                %707 = vst [vmem:[%s153 + $0x8a0] sm:$0xff] %v706
                %v708 = vld [vmem:[%s152 + $0x4540] sm:$0xff]
                %709 = vst [vmem:[%s153 + $0x8a8] sm:$0xff] %v708
                %v710 = vld [vmem:[%s152 + $0x4580] sm:$0xff]
                %711 = vst [vmem:[%s153 + $0x8b0] sm:$0xff] %v710
                %v712 = vld [vmem:[%s152 + $0x45c0] sm:$0xff]
                %713 = vst [vmem:[%s153 + $0x8b8] sm:$0xff] %v712
                %v714 = vld [vmem:[%s152 + $0x4600] sm:$0xff]
                %715 = vst [vmem:[%s153 + $0x8c0] sm:$0xff] %v714
                %v716 = vld [vmem:[%s152 + $0x4640] sm:$0xff]
                %717 = vst [vmem:[%s153 + $0x8c8] sm:$0xff] %v716
                %v718 = vld [vmem:[%s152 + $0x4680] sm:$0xff]
                %719 = vst [vmem:[%s153 + $0x8d0] sm:$0xff] %v718
                %v720 = vld [vmem:[%s152 + $0x46c0] sm:$0xff]
                %721 = vst [vmem:[%s153 + $0x8d8] sm:$0xff] %v720
                %v722 = vld [vmem:[%s152 + $0x4700] sm:$0xff]
                %723 = vst [vmem:[%s153 + $0x8e0] sm:$0xff] %v722
                %v724 = vld [vmem:[%s152 + $0x4740] sm:$0xff]
                %725 = vst [vmem:[%s153 + $0x8e8] sm:$0xff] %v724
                %v726 = vld [vmem:[%s152 + $0x4780] sm:$0xff]
                %727 = vst [vmem:[%s153 + $0x8f0] sm:$0xff] %v726
                %v728 = vld [vmem:[%s152 + $0x47c0] sm:$0xff]
                %729 = vst [vmem:[%s153 + $0x8f8] sm:$0xff] %v728
                %v730 = vld [vmem:[%s152 + $0x4800] sm:$0xff]
                %731 = vst [vmem:[%s153 + $0x900] sm:$0xff] %v730
                %v732 = vld [vmem:[%s152 + $0x4840] sm:$0xff]
                %733 = vst [vmem:[%s153 + $0x908] sm:$0xff] %v732
                %v734 = vld [vmem:[%s152 + $0x4880] sm:$0xff]
                %735 = vst [vmem:[%s153 + $0x910] sm:$0xff] %v734
                %v736 = vld [vmem:[%s152 + $0x48c0] sm:$0xff]
                %737 = vst [vmem:[%s153 + $0x918] sm:$0xff] %v736
                %v738 = vld [vmem:[%s152 + $0x4900] sm:$0xff]
                %739 = vst [vmem:[%s153 + $0x920] sm:$0xff] %v738
                %v740 = vld [vmem:[%s152 + $0x4940] sm:$0xff]
                %741 = vst [vmem:[%s153 + $0x928] sm:$0xff] %v740
                %v742 = vld [vmem:[%s152 + $0x4980] sm:$0xff]
                %743 = vst [vmem:[%s153 + $0x930] sm:$0xff] %v742
                %v744 = vld [vmem:[%s152 + $0x49c0] sm:$0xff]
                %745 = vst [vmem:[%s153 + $0x938] sm:$0xff] %v744
                %v746 = vld [vmem:[%s152 + $0x4a00] sm:$0xff]
                %747 = vst [vmem:[%s153 + $0x940] sm:$0xff] %v746
                %v748 = vld [vmem:[%s152 + $0x4a40] sm:$0xff]
                %749 = vst [vmem:[%s153 + $0x948] sm:$0xff] %v748
                %v750 = vld [vmem:[%s152 + $0x4a80] sm:$0xff]
                %751 = vst [vmem:[%s153 + $0x950] sm:$0xff] %v750
                %v752 = vld [vmem:[%s152 + $0x4ac0] sm:$0xff]
                %753 = vst [vmem:[%s153 + $0x958] sm:$0xff] %v752
                %v754 = vld [vmem:[%s152 + $0x4b00] sm:$0xff]
                %755 = vst [vmem:[%s153 + $0x960] sm:$0xff] %v754
                %v756 = vld [vmem:[%s152 + $0x4b40] sm:$0xff]
                %757 = vst [vmem:[%s153 + $0x968] sm:$0xff] %v756
                %v758 = vld [vmem:[%s152 + $0x4b80] sm:$0xff]
                %759 = vst [vmem:[%s153 + $0x970] sm:$0xff] %v758
                %v760 = vld [vmem:[%s152 + $0x4bc0] sm:$0xff]
                %761 = vst [vmem:[%s153 + $0x978] sm:$0xff] %v760
                %v762 = vld [vmem:[%s152 + $0x4c00] sm:$0xff]
                %763 = vst [vmem:[%s153 + $0x980] sm:$0xff] %v762
                %v764 = vld [vmem:[%s152 + $0x4c40] sm:$0xff]
                %765 = vst [vmem:[%s153 + $0x988] sm:$0xff] %v764
                %v766 = vld [vmem:[%s152 + $0x4c80] sm:$0xff]
                %767 = vst [vmem:[%s153 + $0x990] sm:$0xff] %v766
                %v768 = vld [vmem:[%s152 + $0x4cc0] sm:$0xff]
                %769 = vst [vmem:[%s153 + $0x998] sm:$0xff] %v768
                %v770 = vld [vmem:[%s152 + $0x4d00] sm:$0xff]
                %771 = vst [vmem:[%s153 + $0x9a0] sm:$0xff] %v770
                %v772 = vld [vmem:[%s152 + $0x4d40] sm:$0xff]
                %773 = vst [vmem:[%s153 + $0x9a8] sm:$0xff] %v772
                %v774 = vld [vmem:[%s152 + $0x4d80] sm:$0xff]
                %775 = vst [vmem:[%s153 + $0x9b0] sm:$0xff] %v774
                %v776 = vld [vmem:[%s152 + $0x4dc0] sm:$0xff]
                %777 = vst [vmem:[%s153 + $0x9b8] sm:$0xff] %v776
                %v778 = vld [vmem:[%s152 + $0x4e00] sm:$0xff]
                %779 = vst [vmem:[%s153 + $0x9c0] sm:$0xff] %v778
                %v780 = vld [vmem:[%s152 + $0x4e40] sm:$0xff]
                %781 = vst [vmem:[%s153 + $0x9c8] sm:$0xff] %v780
                %v782 = vld [vmem:[%s152 + $0x4e80] sm:$0xff]
                %783 = vst [vmem:[%s153 + $0x9d0] sm:$0xff] %v782
                %v784 = vld [vmem:[%s152 + $0x4ec0] sm:$0xff]
                %785 = vst [vmem:[%s153 + $0x9d8] sm:$0xff] %v784
                %v786 = vld [vmem:[%s152 + $0x4f00] sm:$0xff]
                %787 = vst [vmem:[%s153 + $0x9e0] sm:$0xff] %v786
                %v788 = vld [vmem:[%s152 + $0x4f40] sm:$0xff]
                %789 = vst [vmem:[%s153 + $0x9e8] sm:$0xff] %v788
                %v790 = vld [vmem:[%s152 + $0x4f80] sm:$0xff]
                %791 = vst [vmem:[%s153 + $0x9f0] sm:$0xff] %v790
                %v792 = vld [vmem:[%s152 + $0x4fc0] sm:$0xff]
                %793 = vst [vmem:[%s153 + $0x9f8] sm:$0xff] %v792
                %v794 = vld [vmem:[%s152 + $0x5000] sm:$0xff]
                %795 = vst [vmem:[%s153 + $0xa00] sm:$0xff] %v794
                %v796 = vld [vmem:[%s152 + $0x5040] sm:$0xff]
                %797 = vst [vmem:[%s153 + $0xa08] sm:$0xff] %v796
                %v798 = vld [vmem:[%s152 + $0x5080] sm:$0xff]
                %799 = vst [vmem:[%s153 + $0xa10] sm:$0xff] %v798
                %v800 = vld [vmem:[%s152 + $0x50c0] sm:$0xff]
                %801 = vst [vmem:[%s153 + $0xa18] sm:$0xff] %v800
                %v802 = vld [vmem:[%s152 + $0x5100] sm:$0xff]
                %803 = vst [vmem:[%s153 + $0xa20] sm:$0xff] %v802
                %v804 = vld [vmem:[%s152 + $0x5140] sm:$0xff]
                %805 = vst [vmem:[%s153 + $0xa28] sm:$0xff] %v804
                %v806 = vld [vmem:[%s152 + $0x5180] sm:$0xff]
                %807 = vst [vmem:[%s153 + $0xa30] sm:$0xff] %v806
                %v808 = vld [vmem:[%s152 + $0x51c0] sm:$0xff]
                %809 = vst [vmem:[%s153 + $0xa38] sm:$0xff] %v808
                %v810 = vld [vmem:[%s152 + $0x5200] sm:$0xff]
                %811 = vst [vmem:[%s153 + $0xa40] sm:$0xff] %v810
                %v812 = vld [vmem:[%s152 + $0x5240] sm:$0xff]
                %813 = vst [vmem:[%s153 + $0xa48] sm:$0xff] %v812
                %v814 = vld [vmem:[%s152 + $0x5280] sm:$0xff]
                %815 = vst [vmem:[%s153 + $0xa50] sm:$0xff] %v814
                %v816 = vld [vmem:[%s152 + $0x52c0] sm:$0xff]
                %817 = vst [vmem:[%s153 + $0xa58] sm:$0xff] %v816
                %v818 = vld [vmem:[%s152 + $0x5300] sm:$0xff]
                %819 = vst [vmem:[%s153 + $0xa60] sm:$0xff] %v818
                %v820 = vld [vmem:[%s152 + $0x5340] sm:$0xff]
                %821 = vst [vmem:[%s153 + $0xa68] sm:$0xff] %v820
                %v822 = vld [vmem:[%s152 + $0x5380] sm:$0xff]
                %823 = vst [vmem:[%s153 + $0xa70] sm:$0xff] %v822
                %v824 = vld [vmem:[%s152 + $0x53c0] sm:$0xff]
                %825 = vst [vmem:[%s153 + $0xa78] sm:$0xff] %v824
                %v826 = vld [vmem:[%s152 + $0x5400] sm:$0xff]
                %827 = vst [vmem:[%s153 + $0xa80] sm:$0xff] %v826
                %v828 = vld [vmem:[%s152 + $0x5440] sm:$0xff]
                %829 = vst [vmem:[%s153 + $0xa88] sm:$0xff] %v828
                %v830 = vld [vmem:[%s152 + $0x5480] sm:$0xff]
                %831 = vst [vmem:[%s153 + $0xa90] sm:$0xff] %v830
                %v832 = vld [vmem:[%s152 + $0x54c0] sm:$0xff]
                %833 = vst [vmem:[%s153 + $0xa98] sm:$0xff] %v832
                %v834 = vld [vmem:[%s152 + $0x5500] sm:$0xff]
                %835 = vst [vmem:[%s153 + $0xaa0] sm:$0xff] %v834
                %v836 = vld [vmem:[%s152 + $0x5540] sm:$0xff]
                %837 = vst [vmem:[%s153 + $0xaa8] sm:$0xff] %v836
                %v838 = vld [vmem:[%s152 + $0x5580] sm:$0xff]
                %839 = vst [vmem:[%s153 + $0xab0] sm:$0xff] %v838
                %v840 = vld [vmem:[%s152 + $0x55c0] sm:$0xff]
                %841 = vst [vmem:[%s153 + $0xab8] sm:$0xff] %v840
                %v842 = vld [vmem:[%s152 + $0x5600] sm:$0xff]
                %843 = vst [vmem:[%s153 + $0xac0] sm:$0xff] %v842
                %v844 = vld [vmem:[%s152 + $0x5640] sm:$0xff]
                %845 = vst [vmem:[%s153 + $0xac8] sm:$0xff] %v844
                %v846 = vld [vmem:[%s152 + $0x5680] sm:$0xff]
                %847 = vst [vmem:[%s153 + $0xad0] sm:$0xff] %v846
                %v848 = vld [vmem:[%s152 + $0x56c0] sm:$0xff]
                %849 = vst [vmem:[%s153 + $0xad8] sm:$0xff] %v848
                %v850 = vld [vmem:[%s152 + $0x5700] sm:$0xff]
                %851 = vst [vmem:[%s153 + $0xae0] sm:$0xff] %v850
                %v852 = vld [vmem:[%s152 + $0x5740] sm:$0xff]
                %853 = vst [vmem:[%s153 + $0xae8] sm:$0xff] %v852
                %v854 = vld [vmem:[%s152 + $0x5780] sm:$0xff]
                %855 = vst [vmem:[%s153 + $0xaf0] sm:$0xff] %v854
                %v856 = vld [vmem:[%s152 + $0x57c0] sm:$0xff]
                %857 = vst [vmem:[%s153 + $0xaf8] sm:$0xff] %v856
                %v858 = vld [vmem:[%s152 + $0x5800] sm:$0xff]
                %859 = vst [vmem:[%s153 + $0xb00] sm:$0xff] %v858
                %v860 = vld [vmem:[%s152 + $0x5840] sm:$0xff]
                %861 = vst [vmem:[%s153 + $0xb08] sm:$0xff] %v860
                %v862 = vld [vmem:[%s152 + $0x5880] sm:$0xff]
                %863 = vst [vmem:[%s153 + $0xb10] sm:$0xff] %v862
                %v864 = vld [vmem:[%s152 + $0x58c0] sm:$0xff]
                %865 = vst [vmem:[%s153 + $0xb18] sm:$0xff] %v864
                %v866 = vld [vmem:[%s152 + $0x5900] sm:$0xff]
                %867 = vst [vmem:[%s153 + $0xb20] sm:$0xff] %v866
                %v868 = vld [vmem:[%s152 + $0x5940] sm:$0xff]
                %869 = vst [vmem:[%s153 + $0xb28] sm:$0xff] %v868
                %v870 = vld [vmem:[%s152 + $0x5980] sm:$0xff]
                %871 = vst [vmem:[%s153 + $0xb30] sm:$0xff] %v870
                %v872 = vld [vmem:[%s152 + $0x59c0] sm:$0xff]
                %873 = vst [vmem:[%s153 + $0xb38] sm:$0xff] %v872
                %v874 = vld [vmem:[%s152 + $0x5a00] sm:$0xff]
                %875 = vst [vmem:[%s153 + $0xb40] sm:$0xff] %v874
                %v876 = vld [vmem:[%s152 + $0x5a40] sm:$0xff]
                %877 = vst [vmem:[%s153 + $0xb48] sm:$0xff] %v876
                %v878 = vld [vmem:[%s152 + $0x5a80] sm:$0xff]
                %879 = vst [vmem:[%s153 + $0xb50] sm:$0xff] %v878
                %v880 = vld [vmem:[%s152 + $0x5ac0] sm:$0xff]
                %881 = vst [vmem:[%s153 + $0xb58] sm:$0xff] %v880
                %v882 = vld [vmem:[%s152 + $0x5b00] sm:$0xff]
                %883 = vst [vmem:[%s153 + $0xb60] sm:$0xff] %v882
                %v884 = vld [vmem:[%s152 + $0x5b40] sm:$0xff]
                %885 = vst [vmem:[%s153 + $0xb68] sm:$0xff] %v884
                %v886 = vld [vmem:[%s152 + $0x5b80] sm:$0xff]
                %887 = vst [vmem:[%s153 + $0xb70] sm:$0xff] %v886
                %v888 = vld [vmem:[%s152 + $0x5bc0] sm:$0xff]
                %889 = vst [vmem:[%s153 + $0xb78] sm:$0xff] %v888
                %v890 = vld [vmem:[%s152 + $0x5c00] sm:$0xff]
                %891 = vst [vmem:[%s153 + $0xb80] sm:$0xff] %v890
                %v892 = vld [vmem:[%s152 + $0x5c40] sm:$0xff]
                %893 = vst [vmem:[%s153 + $0xb88] sm:$0xff] %v892
                %v894 = vld [vmem:[%s152 + $0x5c80] sm:$0xff]
                %895 = vst [vmem:[%s153 + $0xb90] sm:$0xff] %v894
                %v896 = vld [vmem:[%s152 + $0x5cc0] sm:$0xff]
                %897 = vst [vmem:[%s153 + $0xb98] sm:$0xff] %v896
                %v898 = vld [vmem:[%s152 + $0x5d00] sm:$0xff]
                %899 = vst [vmem:[%s153 + $0xba0] sm:$0xff] %v898
                %v900 = vld [vmem:[%s152 + $0x5d40] sm:$0xff]
                %901 = vst [vmem:[%s153 + $0xba8] sm:$0xff] %v900
                %v902 = vld [vmem:[%s152 + $0x5d80] sm:$0xff]
                %903 = vst [vmem:[%s153 + $0xbb0] sm:$0xff] %v902
                %v904 = vld [vmem:[%s152 + $0x5dc0] sm:$0xff]
                %905 = vst [vmem:[%s153 + $0xbb8] sm:$0xff] %v904
                %v906 = vld [vmem:[%s152 + $0x5e00] sm:$0xff]
                %907 = vst [vmem:[%s153 + $0xbc0] sm:$0xff] %v906
                %v908 = vld [vmem:[%s152 + $0x5e40] sm:$0xff]
                %909 = vst [vmem:[%s153 + $0xbc8] sm:$0xff] %v908
                %v910 = vld [vmem:[%s152 + $0x5e80] sm:$0xff]
                %911 = vst [vmem:[%s153 + $0xbd0] sm:$0xff] %v910
                %v912 = vld [vmem:[%s152 + $0x5ec0] sm:$0xff]
                %913 = vst [vmem:[%s153 + $0xbd8] sm:$0xff] %v912
                %v914 = vld [vmem:[%s152 + $0x5f00] sm:$0xff]
                %915 = vst [vmem:[%s153 + $0xbe0] sm:$0xff] %v914
                %v916 = vld [vmem:[%s152 + $0x5f40] sm:$0xff]
                %917 = vst [vmem:[%s153 + $0xbe8] sm:$0xff] %v916
                %v918 = vld [vmem:[%s152 + $0x5f80] sm:$0xff]
                %919 = vst [vmem:[%s153 + $0xbf0] sm:$0xff] %v918
                %v920 = vld [vmem:[%s152 + $0x5fc0] sm:$0xff]
                %921 = vst [vmem:[%s153 + $0xbf8] sm:$0xff] %v920
                %v922 = vld [vmem:[%s152 + $0x6000] sm:$0xff]
                %923 = vst [vmem:[%s153 + $0xc00] sm:$0xff] %v922
                %v924 = vld [vmem:[%s152 + $0x6040] sm:$0xff]
                %925 = vst [vmem:[%s153 + $0xc08] sm:$0xff] %v924
                %v926 = vld [vmem:[%s152 + $0x6080] sm:$0xff]
                %927 = vst [vmem:[%s153 + $0xc10] sm:$0xff] %v926
                %v928 = vld [vmem:[%s152 + $0x60c0] sm:$0xff]
                %929 = vst [vmem:[%s153 + $0xc18] sm:$0xff] %v928
                %v930 = vld [vmem:[%s152 + $0x6100] sm:$0xff]
                %931 = vst [vmem:[%s153 + $0xc20] sm:$0xff] %v930
                %v932 = vld [vmem:[%s152 + $0x6140] sm:$0xff]
                %933 = vst [vmem:[%s153 + $0xc28] sm:$0xff] %v932
                %v934 = vld [vmem:[%s152 + $0x6180] sm:$0xff]
                %935 = vst [vmem:[%s153 + $0xc30] sm:$0xff] %v934
                %v936 = vld [vmem:[%s152 + $0x61c0] sm:$0xff]
                %937 = vst [vmem:[%s153 + $0xc38] sm:$0xff] %v936
                %v938 = vld [vmem:[%s152 + $0x6200] sm:$0xff]
                %939 = vst [vmem:[%s153 + $0xc40] sm:$0xff] %v938
                %v940 = vld [vmem:[%s152 + $0x6240] sm:$0xff]
                %941 = vst [vmem:[%s153 + $0xc48] sm:$0xff] %v940
                %v942 = vld [vmem:[%s152 + $0x6280] sm:$0xff]
                %943 = vst [vmem:[%s153 + $0xc50] sm:$0xff] %v942
                %v944 = vld [vmem:[%s152 + $0x62c0] sm:$0xff]
                %945 = vst [vmem:[%s153 + $0xc58] sm:$0xff] %v944
                %v946 = vld [vmem:[%s152 + $0x6300] sm:$0xff]
                %947 = vst [vmem:[%s153 + $0xc60] sm:$0xff] %v946
                %v948 = vld [vmem:[%s152 + $0x6340] sm:$0xff]
                %949 = vst [vmem:[%s153 + $0xc68] sm:$0xff] %v948
                %v950 = vld [vmem:[%s152 + $0x6380] sm:$0xff]
                %951 = vst [vmem:[%s153 + $0xc70] sm:$0xff] %v950
                %v952 = vld [vmem:[%s152 + $0x63c0] sm:$0xff]
                %953 = vst [vmem:[%s153 + $0xc78] sm:$0xff] %v952
                %v954 = vld [vmem:[%s152 + $0x6400] sm:$0xff]
                %955 = vst [vmem:[%s153 + $0xc80] sm:$0xff] %v954
                %v956 = vld [vmem:[%s152 + $0x6440] sm:$0xff]
                %957 = vst [vmem:[%s153 + $0xc88] sm:$0xff] %v956
                %v958 = vld [vmem:[%s152 + $0x6480] sm:$0xff]
                %959 = vst [vmem:[%s153 + $0xc90] sm:$0xff] %v958
                %v960 = vld [vmem:[%s152 + $0x64c0] sm:$0xff]
                %961 = vst [vmem:[%s153 + $0xc98] sm:$0xff] %v960
                %v962 = vld [vmem:[%s152 + $0x6500] sm:$0xff]
                %963 = vst [vmem:[%s153 + $0xca0] sm:$0xff] %v962
                %v964 = vld [vmem:[%s152 + $0x6540] sm:$0xff]
                %965 = vst [vmem:[%s153 + $0xca8] sm:$0xff] %v964
                %v966 = vld [vmem:[%s152 + $0x6580] sm:$0xff]
                %967 = vst [vmem:[%s153 + $0xcb0] sm:$0xff] %v966
                %v968 = vld [vmem:[%s152 + $0x65c0] sm:$0xff]
                %969 = vst [vmem:[%s153 + $0xcb8] sm:$0xff] %v968
                %v970 = vld [vmem:[%s152 + $0x6600] sm:$0xff]
                %971 = vst [vmem:[%s153 + $0xcc0] sm:$0xff] %v970
                %v972 = vld [vmem:[%s152 + $0x6640] sm:$0xff]
                %973 = vst [vmem:[%s153 + $0xcc8] sm:$0xff] %v972
                %v974 = vld [vmem:[%s152 + $0x6680] sm:$0xff]
                %975 = vst [vmem:[%s153 + $0xcd0] sm:$0xff] %v974
                %v976 = vld [vmem:[%s152 + $0x66c0] sm:$0xff]
                %977 = vst [vmem:[%s153 + $0xcd8] sm:$0xff] %v976
                %v978 = vld [vmem:[%s152 + $0x6700] sm:$0xff]
                %979 = vst [vmem:[%s153 + $0xce0] sm:$0xff] %v978
                %v980 = vld [vmem:[%s152 + $0x6740] sm:$0xff]
                %981 = vst [vmem:[%s153 + $0xce8] sm:$0xff] %v980
                %v982 = vld [vmem:[%s152 + $0x6780] sm:$0xff]
                %983 = vst [vmem:[%s153 + $0xcf0] sm:$0xff] %v982
                %v984 = vld [vmem:[%s152 + $0x67c0] sm:$0xff]
                %985 = vst [vmem:[%s153 + $0xcf8] sm:$0xff] %v984
                %v986 = vld [vmem:[%s152 + $0x6800] sm:$0xff]
                %987 = vst [vmem:[%s153 + $0xd00] sm:$0xff] %v986
                %v988 = vld [vmem:[%s152 + $0x6840] sm:$0xff]
                %989 = vst [vmem:[%s153 + $0xd08] sm:$0xff] %v988
                %v990 = vld [vmem:[%s152 + $0x6880] sm:$0xff]
                %991 = vst [vmem:[%s153 + $0xd10] sm:$0xff] %v990
                %v992 = vld [vmem:[%s152 + $0x68c0] sm:$0xff]
                %993 = vst [vmem:[%s153 + $0xd18] sm:$0xff] %v992
                %v994 = vld [vmem:[%s152 + $0x6900] sm:$0xff]
                %995 = vst [vmem:[%s153 + $0xd20] sm:$0xff] %v994
                %v996 = vld [vmem:[%s152 + $0x6940] sm:$0xff]
                %997 = vst [vmem:[%s153 + $0xd28] sm:$0xff] %v996
                %v998 = vld [vmem:[%s152 + $0x6980] sm:$0xff]
                %999 = vst [vmem:[%s153 + $0xd30] sm:$0xff] %v998
                %v1000 = vld [vmem:[%s152 + $0x69c0] sm:$0xff]
                %1001 = vst [vmem:[%s153 + $0xd38] sm:$0xff] %v1000
                %v1002 = vld [vmem:[%s152 + $0x6a00] sm:$0xff]
                %1003 = vst [vmem:[%s153 + $0xd40] sm:$0xff] %v1002
                %v1004 = vld [vmem:[%s152 + $0x6a40] sm:$0xff]
                %1005 = vst [vmem:[%s153 + $0xd48] sm:$0xff] %v1004
                %v1006 = vld [vmem:[%s152 + $0x6a80] sm:$0xff]
                %1007 = vst [vmem:[%s153 + $0xd50] sm:$0xff] %v1006
                %v1008 = vld [vmem:[%s152 + $0x6ac0] sm:$0xff]
                %1009 = vst [vmem:[%s153 + $0xd58] sm:$0xff] %v1008
                %v1010 = vld [vmem:[%s152 + $0x6b00] sm:$0xff]
                %1011 = vst [vmem:[%s153 + $0xd60] sm:$0xff] %v1010
                %v1012 = vld [vmem:[%s152 + $0x6b40] sm:$0xff]
                %1013 = vst [vmem:[%s153 + $0xd68] sm:$0xff] %v1012
                %v1014 = vld [vmem:[%s152 + $0x6b80] sm:$0xff]
                %1015 = vst [vmem:[%s153 + $0xd70] sm:$0xff] %v1014
                %v1016 = vld [vmem:[%s152 + $0x6bc0] sm:$0xff]
                %1017 = vst [vmem:[%s153 + $0xd78] sm:$0xff] %v1016
                %v1018 = vld [vmem:[%s152 + $0x6c00] sm:$0xff]
                %1019 = vst [vmem:[%s153 + $0xd80] sm:$0xff] %v1018
                %v1020 = vld [vmem:[%s152 + $0x6c40] sm:$0xff]
                %1021 = vst [vmem:[%s153 + $0xd88] sm:$0xff] %v1020
                %v1022 = vld [vmem:[%s152 + $0x6c80] sm:$0xff]
                %1023 = vst [vmem:[%s153 + $0xd90] sm:$0xff] %v1022
                %v1024 = vld [vmem:[%s152 + $0x6cc0] sm:$0xff]
                %1025 = vst [vmem:[%s153 + $0xd98] sm:$0xff] %v1024
                %v1026 = vld [vmem:[%s152 + $0x6d00] sm:$0xff]
                %1027 = vst [vmem:[%s153 + $0xda0] sm:$0xff] %v1026
                %v1028 = vld [vmem:[%s152 + $0x6d40] sm:$0xff]
                %1029 = vst [vmem:[%s153 + $0xda8] sm:$0xff] %v1028
                %v1030 = vld [vmem:[%s152 + $0x6d80] sm:$0xff]
                %1031 = vst [vmem:[%s153 + $0xdb0] sm:$0xff] %v1030
                %v1032 = vld [vmem:[%s152 + $0x6dc0] sm:$0xff]
                %1033 = vst [vmem:[%s153 + $0xdb8] sm:$0xff] %v1032
                %v1034 = vld [vmem:[%s152 + $0x6e00] sm:$0xff]
                %1035 = vst [vmem:[%s153 + $0xdc0] sm:$0xff] %v1034
                %v1036 = vld [vmem:[%s152 + $0x6e40] sm:$0xff]
                %1037 = vst [vmem:[%s153 + $0xdc8] sm:$0xff] %v1036
                %v1038 = vld [vmem:[%s152 + $0x6e80] sm:$0xff]
                %1039 = vst [vmem:[%s153 + $0xdd0] sm:$0xff] %v1038
                %v1040 = vld [vmem:[%s152 + $0x6ec0] sm:$0xff]
                %1041 = vst [vmem:[%s153 + $0xdd8] sm:$0xff] %v1040
                %v1042 = vld [vmem:[%s152 + $0x6f00] sm:$0xff]
                %1043 = vst [vmem:[%s153 + $0xde0] sm:$0xff] %v1042
                %v1044 = vld [vmem:[%s152 + $0x6f40] sm:$0xff]
                %1045 = vst [vmem:[%s153 + $0xde8] sm:$0xff] %v1044
                %v1046 = vld [vmem:[%s152 + $0x6f80] sm:$0xff]
                %1047 = vst [vmem:[%s153 + $0xdf0] sm:$0xff] %v1046
                %v1048 = vld [vmem:[%s152 + $0x6fc0] sm:$0xff]
                %1049 = vst [vmem:[%s153 + $0xdf8] sm:$0xff] %v1048
                %v1050 = vld [vmem:[%s152 + $0x7000] sm:$0xff]
                %1051 = vst [vmem:[%s153 + $0xe00] sm:$0xff] %v1050
                %v1052 = vld [vmem:[%s152 + $0x7040] sm:$0xff]
                %1053 = vst [vmem:[%s153 + $0xe08] sm:$0xff] %v1052
                %v1054 = vld [vmem:[%s152 + $0x7080] sm:$0xff]
                %1055 = vst [vmem:[%s153 + $0xe10] sm:$0xff] %v1054
                %v1056 = vld [vmem:[%s152 + $0x70c0] sm:$0xff]
                %1057 = vst [vmem:[%s153 + $0xe18] sm:$0xff] %v1056
                %v1058 = vld [vmem:[%s152 + $0x7100] sm:$0xff]
                %1059 = vst [vmem:[%s153 + $0xe20] sm:$0xff] %v1058
                %v1060 = vld [vmem:[%s152 + $0x7140] sm:$0xff]
                %1061 = vst [vmem:[%s153 + $0xe28] sm:$0xff] %v1060
                %v1062 = vld [vmem:[%s152 + $0x7180] sm:$0xff]
                %1063 = vst [vmem:[%s153 + $0xe30] sm:$0xff] %v1062
                %v1064 = vld [vmem:[%s152 + $0x71c0] sm:$0xff]
                %1065 = vst [vmem:[%s153 + $0xe38] sm:$0xff] %v1064
                %v1066 = vld [vmem:[%s152 + $0x7200] sm:$0xff]
                %1067 = vst [vmem:[%s153 + $0xe40] sm:$0xff] %v1066
                %v1068 = vld [vmem:[%s152 + $0x7240] sm:$0xff]
                %1069 = vst [vmem:[%s153 + $0xe48] sm:$0xff] %v1068
                %v1070 = vld [vmem:[%s152 + $0x7280] sm:$0xff]
                %1071 = vst [vmem:[%s153 + $0xe50] sm:$0xff] %v1070
                %v1072 = vld [vmem:[%s152 + $0x72c0] sm:$0xff]
                %1073 = vst [vmem:[%s153 + $0xe58] sm:$0xff] %v1072
                %v1074 = vld [vmem:[%s152 + $0x7300] sm:$0xff]
                %1075 = vst [vmem:[%s153 + $0xe60] sm:$0xff] %v1074
                %v1076 = vld [vmem:[%s152 + $0x7340] sm:$0xff]
                %1077 = vst [vmem:[%s153 + $0xe68] sm:$0xff] %v1076
                %v1078 = vld [vmem:[%s152 + $0x7380] sm:$0xff]
                %1079 = vst [vmem:[%s153 + $0xe70] sm:$0xff] %v1078
                %v1080 = vld [vmem:[%s152 + $0x73c0] sm:$0xff]
                %1081 = vst [vmem:[%s153 + $0xe78] sm:$0xff] %v1080
                %v1082 = vld [vmem:[%s152 + $0x7400] sm:$0xff]
                %1083 = vst [vmem:[%s153 + $0xe80] sm:$0xff] %v1082
                %v1084 = vld [vmem:[%s152 + $0x7440] sm:$0xff]
                %1085 = vst [vmem:[%s153 + $0xe88] sm:$0xff] %v1084
                %v1086 = vld [vmem:[%s152 + $0x7480] sm:$0xff]
                %1087 = vst [vmem:[%s153 + $0xe90] sm:$0xff] %v1086
                %v1088 = vld [vmem:[%s152 + $0x74c0] sm:$0xff]
                %1089 = vst [vmem:[%s153 + $0xe98] sm:$0xff] %v1088
                %v1090 = vld [vmem:[%s152 + $0x7500] sm:$0xff]
                %1091 = vst [vmem:[%s153 + $0xea0] sm:$0xff] %v1090
                %v1092 = vld [vmem:[%s152 + $0x7540] sm:$0xff]
                %1093 = vst [vmem:[%s153 + $0xea8] sm:$0xff] %v1092
                %v1094 = vld [vmem:[%s152 + $0x7580] sm:$0xff]
                %1095 = vst [vmem:[%s153 + $0xeb0] sm:$0xff] %v1094
                %v1096 = vld [vmem:[%s152 + $0x75c0] sm:$0xff]
                %1097 = vst [vmem:[%s153 + $0xeb8] sm:$0xff] %v1096
                %v1098 = vld [vmem:[%s152 + $0x7600] sm:$0xff]
                %1099 = vst [vmem:[%s153 + $0xec0] sm:$0xff] %v1098
                %v1100 = vld [vmem:[%s152 + $0x7640] sm:$0xff]
                %1101 = vst [vmem:[%s153 + $0xec8] sm:$0xff] %v1100
                %v1102 = vld [vmem:[%s152 + $0x7680] sm:$0xff]
                %1103 = vst [vmem:[%s153 + $0xed0] sm:$0xff] %v1102
                %v1104 = vld [vmem:[%s152 + $0x76c0] sm:$0xff]
                %1105 = vst [vmem:[%s153 + $0xed8] sm:$0xff] %v1104
                %v1106 = vld [vmem:[%s152 + $0x7700] sm:$0xff]
                %1107 = vst [vmem:[%s153 + $0xee0] sm:$0xff] %v1106
                %v1108 = vld [vmem:[%s152 + $0x7740] sm:$0xff]
                %1109 = vst [vmem:[%s153 + $0xee8] sm:$0xff] %v1108
                %v1110 = vld [vmem:[%s152 + $0x7780] sm:$0xff]
                %1111 = vst [vmem:[%s153 + $0xef0] sm:$0xff] %v1110
                %v1112 = vld [vmem:[%s152 + $0x77c0] sm:$0xff]
                %1113 = vst [vmem:[%s153 + $0xef8] sm:$0xff] %v1112
                %v1114 = vld [vmem:[%s152 + $0x7800] sm:$0xff]
                %1115 = vst [vmem:[%s153 + $0xf00] sm:$0xff] %v1114
                %v1116 = vld [vmem:[%s152 + $0x7840] sm:$0xff]
                %1117 = vst [vmem:[%s153 + $0xf08] sm:$0xff] %v1116
                %v1118 = vld [vmem:[%s152 + $0x7880] sm:$0xff]
                %1119 = vst [vmem:[%s153 + $0xf10] sm:$0xff] %v1118
                %v1120 = vld [vmem:[%s152 + $0x78c0] sm:$0xff]
                %1121 = vst [vmem:[%s153 + $0xf18] sm:$0xff] %v1120
                %v1122 = vld [vmem:[%s152 + $0x7900] sm:$0xff]
                %1123 = vst [vmem:[%s153 + $0xf20] sm:$0xff] %v1122
                %v1124 = vld [vmem:[%s152 + $0x7940] sm:$0xff]
                %1125 = vst [vmem:[%s153 + $0xf28] sm:$0xff] %v1124
                %v1126 = vld [vmem:[%s152 + $0x7980] sm:$0xff]
                %1127 = vst [vmem:[%s153 + $0xf30] sm:$0xff] %v1126
                %v1128 = vld [vmem:[%s152 + $0x79c0] sm:$0xff]
                %1129 = vst [vmem:[%s153 + $0xf38] sm:$0xff] %v1128
                %v1130 = vld [vmem:[%s152 + $0x7a00] sm:$0xff]
                %1131 = vst [vmem:[%s153 + $0xf40] sm:$0xff] %v1130
                %v1132 = vld [vmem:[%s152 + $0x7a40] sm:$0xff]
                %1133 = vst [vmem:[%s153 + $0xf48] sm:$0xff] %v1132
                %v1134 = vld [vmem:[%s152 + $0x7a80] sm:$0xff]
                %1135 = vst [vmem:[%s153 + $0xf50] sm:$0xff] %v1134
                %v1136 = vld [vmem:[%s152 + $0x7ac0] sm:$0xff]
                %1137 = vst [vmem:[%s153 + $0xf58] sm:$0xff] %v1136
                %v1138 = vld [vmem:[%s152 + $0x7b00] sm:$0xff]
                %1139 = vst [vmem:[%s153 + $0xf60] sm:$0xff] %v1138
                %v1140 = vld [vmem:[%s152 + $0x7b40] sm:$0xff]
                %1141 = vst [vmem:[%s153 + $0xf68] sm:$0xff] %v1140
                %v1142 = vld [vmem:[%s152 + $0x7b80] sm:$0xff]
                %1143 = vst [vmem:[%s153 + $0xf70] sm:$0xff] %v1142
                %v1144 = vld [vmem:[%s152 + $0x7bc0] sm:$0xff]
                %1145 = vst [vmem:[%s153 + $0xf78] sm:$0xff] %v1144
                %v1146 = vld [vmem:[%s152 + $0x7c00] sm:$0xff]
                %1147 = vst [vmem:[%s153 + $0xf80] sm:$0xff] %v1146
                %v1148 = vld [vmem:[%s152 + $0x7c40] sm:$0xff]
                %1149 = vst [vmem:[%s153 + $0xf88] sm:$0xff] %v1148
                %v1150 = vld [vmem:[%s152 + $0x7c80] sm:$0xff]
                %1151 = vst [vmem:[%s153 + $0xf90] sm:$0xff] %v1150
                %v1152 = vld [vmem:[%s152 + $0x7cc0] sm:$0xff]
                %1153 = vst [vmem:[%s153 + $0xf98] sm:$0xff] %v1152
                %v1154 = vld [vmem:[%s152 + $0x7d00] sm:$0xff]
                %1155 = vst [vmem:[%s153 + $0xfa0] sm:$0xff] %v1154
                %v1156 = vld [vmem:[%s152 + $0x7d40] sm:$0xff]
                %1157 = vst [vmem:[%s153 + $0xfa8] sm:$0xff] %v1156
                %v1158 = vld [vmem:[%s152 + $0x7d80] sm:$0xff]
                %1159 = vst [vmem:[%s153 + $0xfb0] sm:$0xff] %v1158
                %v1160 = vld [vmem:[%s152 + $0x7dc0] sm:$0xff]
                %1161 = vst [vmem:[%s153 + $0xfb8] sm:$0xff] %v1160
                %v1162 = vld [vmem:[%s152 + $0x7e00] sm:$0xff]
                %1163 = vst [vmem:[%s153 + $0xfc0] sm:$0xff] %v1162
                %v1164 = vld [vmem:[%s152 + $0x7e40] sm:$0xff]
                %1165 = vst [vmem:[%s153 + $0xfc8] sm:$0xff] %v1164
                %v1166 = vld [vmem:[%s152 + $0x7e80] sm:$0xff]
                %1167 = vst [vmem:[%s153 + $0xfd0] sm:$0xff] %v1166
                %v1168 = vld [vmem:[%s152 + $0x7ec0] sm:$0xff]
                %1169 = vst [vmem:[%s153 + $0xfd8] sm:$0xff] %v1168
                %v1170 = vld [vmem:[%s152 + $0x7f00] sm:$0xff]
                %1171 = vst [vmem:[%s153 + $0xfe0] sm:$0xff] %v1170
                %v1172 = vld [vmem:[%s152 + $0x7f40] sm:$0xff]
                %1173 = vst [vmem:[%s153 + $0xfe8] sm:$0xff] %v1172
                %v1174 = vld [vmem:[%s152 + $0x7f80] sm:$0xff]
                %1175 = vst [vmem:[%s153 + $0xff0] sm:$0xff] %v1174
                %v1176 = vld [vmem:[%s152 + $0x7fc0] sm:$0xff]
                %1177 = vst [vmem:[%s153 + $0xff8] sm:$0xff] %v1176
                %v1178 = vld [vmem:[%s152 + $0x8000] sm:$0xff]
                %1179 = vst [vmem:[%s153 + $0x1000] sm:$0xff] %v1178
                %v1180 = vld [vmem:[%s152 + $0x8040] sm:$0xff]
                %1181 = vst [vmem:[%s153 + $0x1008] sm:$0xff] %v1180
                %v1182 = vld [vmem:[%s152 + $0x8080] sm:$0xff]
                %1183 = vst [vmem:[%s153 + $0x1010] sm:$0xff] %v1182
                %v1184 = vld [vmem:[%s152 + $0x80c0] sm:$0xff]
                %1185 = vst [vmem:[%s153 + $0x1018] sm:$0xff] %v1184
                %v1186 = vld [vmem:[%s152 + $0x8100] sm:$0xff]
                %1187 = vst [vmem:[%s153 + $0x1020] sm:$0xff] %v1186
                %v1188 = vld [vmem:[%s152 + $0x8140] sm:$0xff]
                %1189 = vst [vmem:[%s153 + $0x1028] sm:$0xff] %v1188
                %v1190 = vld [vmem:[%s152 + $0x8180] sm:$0xff]
                %1191 = vst [vmem:[%s153 + $0x1030] sm:$0xff] %v1190
                %v1192 = vld [vmem:[%s152 + $0x81c0] sm:$0xff]
                %1193 = vst [vmem:[%s153 + $0x1038] sm:$0xff] %v1192
                %v1194 = vld [vmem:[%s152 + $0x8200] sm:$0xff]
                %1195 = vst [vmem:[%s153 + $0x1040] sm:$0xff] %v1194
                %v1196 = vld [vmem:[%s152 + $0x8240] sm:$0xff]
                %1197 = vst [vmem:[%s153 + $0x1048] sm:$0xff] %v1196
                %v1198 = vld [vmem:[%s152 + $0x8280] sm:$0xff]
                %1199 = vst [vmem:[%s153 + $0x1050] sm:$0xff] %v1198
                %v1200 = vld [vmem:[%s152 + $0x82c0] sm:$0xff]
                %1201 = vst [vmem:[%s153 + $0x1058] sm:$0xff] %v1200
                %v1202 = vld [vmem:[%s152 + $0x8300] sm:$0xff]
                %1203 = vst [vmem:[%s153 + $0x1060] sm:$0xff] %v1202
                %v1204 = vld [vmem:[%s152 + $0x8340] sm:$0xff]
                %1205 = vst [vmem:[%s153 + $0x1068] sm:$0xff] %v1204
                %v1206 = vld [vmem:[%s152 + $0x8380] sm:$0xff]
                %1207 = vst [vmem:[%s153 + $0x1070] sm:$0xff] %v1206
                %v1208 = vld [vmem:[%s152 + $0x83c0] sm:$0xff]
                %1209 = vst [vmem:[%s153 + $0x1078] sm:$0xff] %v1208
              $region41: #{partial_inception_network.1} parent=35 // loop_footer
                %s151 = sadd.s32 1, %s147
              $region42: #{partial_inception_network.1} parent=35 // loop_footer_branch
                %146 = sbr.rel target = $region38
              $region43: #{partial_inception_network.1} parent=35 // loop_exit
                _
            $region36: #{partial_inception_network.1} parent=27 // pred_fallthru
              _
          $region28: #{partial_inception_network.1} parent=23 // pred_fallthru
            _
          %4429 = vnop
        $region24: #{partial_inception_network.1} parent=15 // pred_fallthru
          _
      $region16: #{partial_inception_network.1} parent=5 // pred_fallthru
        _
      %p4430 = scmp.le.s32.totalorder 1, %s8
      %p4431 = scmp.lt.s32.totalorder %s8, 17
      %p4432 = pnand %p4430, %p4431
      %p4433 = pneg %p4432
      // Predicated region
      $region73: #{partial_inception_network.1} parent=5 // pred_check
        _
      $region74: #{partial_inception_network.1} parent=5 // pred_check_branch
        %4435 = sbr.rel (%p4432) target = $region76
      $region75: #{partial_inception_network.1} parent=5 // pred_region
        %s4436 = ssub.s32 %s8, 1
        %s4437 = sand.u32 %s59, 1
        %s4438 = sand.u32 %s59, 1
        %s4439 = smul.addr %s4438, 4224
        %s4440 = scalar_lea.vmem [#allocation2], %s4439
        // Predicated region
        $region77: #{partial_inception_network.1} parent=75 // pred_check
          %p4441 = pneg %p72
        $region78: #{partial_inception_network.1} parent=75 // pred_check_branch
          %4443 = sbr.rel (%p4441) target = $region80
        $region79: #{partial_inception_network.1} parent=75 // pred_region
          _
        $region80: #{partial_inception_network.1} parent=75 // pred_fallthru
          _
        %s4444 = smul.u32 8, %s18
        %p4445 = scmp.lt.s32.totalorder %s4444, 15
        %s4446 = scalar_select %p4445, %s4444, 15
        %s4447 = smul.addr %s4446, 33
        %s4448 = smul.addr %s4447, 4
        %s4449 = scalar_lea.vmem %s0, %s4448
        %p4450 = pneg %p46
        %p4451 = pneg %p43
        %s4452 = sand.u32 %s59, 1
        %s4453 = sand.u32 %s59, 1
        %s4454 = smul.addr %s4453, 4224
        %s4455 = scalar_lea.vmem [#allocation2], %s4454
        %p4456 = pneg %p72
        %p4457 = pneg %p69
        %p4458 = pneg %p100
        %p4459 = pneg %p97
        %s4460 = smul.u32 2, %s17
        %p4461 = scmp.lt.s32.totalorder %s18, 1
        %s4462 = scalar_select %p4461, %s18, 1
        %p4463 = scmp.lt.s32.totalorder %s4460, 15
        %s4464 = scalar_select %p4463, %s4460, 15
        %s4465 = smul.addr %s4462, 16
        %s4466 = sadd.s32 %s4464, %s4465
        %s4467 = scalar_lea.vmem %s2, %s4466
        %s4468 = smul.u32 8, %s18
        %p4469 = scmp.lt.s32.totalorder %s4468, 15
        %s4470 = scalar_select %p4469, %s4468, 15
        %s4471 = smul.addr %s4470, 33
        %s4472 = smul.addr %s4471, 4
        %s4473 = scalar_lea.vmem %s0, %s4472
        %s4474 = smul.u32 8, %s18
        %s4475 = smul.u32 2, %s17
        %s4476 = smul.u32 2, %s17
        %p4477 = scmp.lt.s32.totalorder %s18, 1
        %s4478 = scalar_select %p4477, %s18, 1
        %p4479 = scmp.lt.s32.totalorder %s4476, 15
        %s4480 = scalar_select %p4479, %s4476, 15
        %s4481 = smul.addr %s4478, 16
        %s4482 = sadd.s32 %s4480, %s4481
        %s4483 = scalar_lea.vmem %s2, %s4482
        %s4484 = smul.u32 2, %s17
        %v4486 = vld [vmem:[%s4473] sm:$0xff]
        %v4487 = vld [vmem:[%s4473 + $0x8] sm:$0xff]
        %v4488 = vld [vmem:[%s4473 + $0x10] sm:$0xff]
        %v4489 = vld [vmem:[%s4473 + $0x18] sm:$0xff]
        %v4490 = vld [vmem:[%s4473 + $0x20] sm:$0xff]
        %v4491 = vld [vmem:[%s4473 + $0x28] sm:$0xff]
        %v4492 = vld [vmem:[%s4473 + $0x30] sm:$0xff]
        %v4493 = vld [vmem:[%s4473 + $0x38] sm:$0xff]
        %v4494 = vld [vmem:[%s4473 + $0x40] sm:$0xff]
        %v4495 = vld [vmem:[%s4473 + $0x48] sm:$0xff]
        %v4496 = vld [vmem:[%s4473 + $0x50] sm:$0xff]
        %v4497 = vld [vmem:[%s4473 + $0x58] sm:$0xff]
        %v4498 = vld [vmem:[%s4473 + $0x60] sm:$0xff]
        %v4499 = vld [vmem:[%s4473 + $0x68] sm:$0xff]
        %v4500 = vld [vmem:[%s4473 + $0x70] sm:$0xff]
        %v4501 = vld [vmem:[%s4473 + $0x78] sm:$0xff]
        %v4502 = vld [vmem:[%s4473 + $0x80] sm:$0xf]
        %v4503 = vld [vmem:[%s4473 + $0x84] sm:$0xff]
        %v4504 = vld [vmem:[%s4473 + $0x8c] sm:$0xff]
        %v4505 = vld [vmem:[%s4473 + $0x94] sm:$0xff]
        %v4506 = vld [vmem:[%s4473 + $0x9c] sm:$0xff]
        %v4507 = vld [vmem:[%s4473 + $0xa4] sm:$0xff]
        %v4508 = vld [vmem:[%s4473 + $0xac] sm:$0xff]
        %v4509 = vld [vmem:[%s4473 + $0xb4] sm:$0xff]
        %v4510 = vld [vmem:[%s4473 + $0xbc] sm:$0xff]
        %v4511 = vld [vmem:[%s4473 + $0xc4] sm:$0xff]
        %v4512 = vld [vmem:[%s4473 + $0xcc] sm:$0xff]
        %v4513 = vld [vmem:[%s4473 + $0xd4] sm:$0xff]
        %v4514 = vld [vmem:[%s4473 + $0xdc] sm:$0xff]
        %v4515 = vld [vmem:[%s4473 + $0xe4] sm:$0xff]
        %v4516 = vld [vmem:[%s4473 + $0xec] sm:$0xff]
        %v4517 = vld [vmem:[%s4473 + $0xf4] sm:$0xff]
        %v4518 = vld [vmem:[%s4473 + $0xfc] sm:$0xff]
        %v4519 = vld [vmem:[%s4473 + $0x104] sm:$0xf]
        %v4520 = vld [vmem:[%s4473 + $0x108] sm:$0xff]
        %v4521 = vld [vmem:[%s4473 + $0x110] sm:$0xff]
        %v4522 = vld [vmem:[%s4473 + $0x118] sm:$0xff]
        %v4523 = vld [vmem:[%s4473 + $0x120] sm:$0xff]
        %v4524 = vld [vmem:[%s4473 + $0x128] sm:$0xff]
        %v4525 = vld [vmem:[%s4473 + $0x130] sm:$0xff]
        %v4526 = vld [vmem:[%s4473 + $0x138] sm:$0xff]
        %v4527 = vld [vmem:[%s4473 + $0x140] sm:$0xff]
        %v4528 = vld [vmem:[%s4473 + $0x148] sm:$0xff]
        %v4529 = vld [vmem:[%s4473 + $0x150] sm:$0xff]
        %v4530 = vld [vmem:[%s4473 + $0x158] sm:$0xff]
        %v4531 = vld [vmem:[%s4473 + $0x160] sm:$0xff]
        %v4532 = vld [vmem:[%s4473 + $0x168] sm:$0xff]
        %v4533 = vld [vmem:[%s4473 + $0x170] sm:$0xff]
        %v4534 = vld [vmem:[%s4473 + $0x178] sm:$0xff]
        %v4535 = vld [vmem:[%s4473 + $0x180] sm:$0xff]
        %v4536 = vld [vmem:[%s4473 + $0x188] sm:$0xf]
        %v4537 = vld [vmem:[%s4473 + $0x18c] sm:$0xff]
        %v4538 = vld [vmem:[%s4473 + $0x194] sm:$0xff]
        %v4539 = vld [vmem:[%s4473 + $0x19c] sm:$0xff]
        %v4540 = vld [vmem:[%s4473 + $0x1a4] sm:$0xff]
        %v4541 = vld [vmem:[%s4473 + $0x1ac] sm:$0xff]
        %v4542 = vld [vmem:[%s4473 + $0x1b4] sm:$0xff]
        %v4543 = vld [vmem:[%s4473 + $0x1bc] sm:$0xff]
        %v4544 = vld [vmem:[%s4473 + $0x1c4] sm:$0xff]
        %v4545 = vld [vmem:[%s4473 + $0x1cc] sm:$0xff]
        %v4546 = vld [vmem:[%s4473 + $0x1d4] sm:$0xff]
        %v4547 = vld [vmem:[%s4473 + $0x1dc] sm:$0xff]
        %v4548 = vld [vmem:[%s4473 + $0x1e4] sm:$0xff]
        %v4549 = vld [vmem:[%s4473 + $0x1ec] sm:$0xff]
        %v4550 = vld [vmem:[%s4473 + $0x1f4] sm:$0xff]
        %v4551 = vld [vmem:[%s4473 + $0x1fc] sm:$0xff]
        %v4552 = vld [vmem:[%s4473 + $0x204] sm:$0xff]
        %v4553 = vld [vmem:[%s4473 + $0x20c] sm:$0xf]
        %v4554 = vld [vmem:[%s4473 + $0x210] sm:$0xff]
        %v4555 = vld [vmem:[%s4473 + $0x218] sm:$0xff]
        %v4556 = vld [vmem:[%s4473 + $0x220] sm:$0xff]
        %v4557 = vld [vmem:[%s4473 + $0x228] sm:$0xff]
        %v4558 = vld [vmem:[%s4473 + $0x230] sm:$0xff]
        %v4559 = vld [vmem:[%s4473 + $0x238] sm:$0xff]
        %v4560 = vld [vmem:[%s4473 + $0x240] sm:$0xff]
        %v4561 = vld [vmem:[%s4473 + $0x248] sm:$0xff]
        %v4562 = vld [vmem:[%s4473 + $0x250] sm:$0xff]
        %v4563 = vld [vmem:[%s4473 + $0x258] sm:$0xff]
        %v4564 = vld [vmem:[%s4473 + $0x260] sm:$0xff]
        %v4565 = vld [vmem:[%s4473 + $0x268] sm:$0xff]
        %v4566 = vld [vmem:[%s4473 + $0x270] sm:$0xff]
        %v4567 = vld [vmem:[%s4473 + $0x278] sm:$0xff]
        %v4568 = vld [vmem:[%s4473 + $0x280] sm:$0xff]
        %v4569 = vld [vmem:[%s4473 + $0x288] sm:$0xff]
        %v4570 = vld [vmem:[%s4473 + $0x290] sm:$0xf]
        %v4571 = vld [vmem:[%s4473 + $0x294] sm:$0xff]
        %v4572 = vld [vmem:[%s4473 + $0x29c] sm:$0xff]
        %v4573 = vld [vmem:[%s4473 + $0x2a4] sm:$0xff]
        %v4574 = vld [vmem:[%s4473 + $0x2ac] sm:$0xff]
        %v4575 = vld [vmem:[%s4473 + $0x2b4] sm:$0xff]
        %v4576 = vld [vmem:[%s4473 + $0x2bc] sm:$0xff]
        %v4577 = vld [vmem:[%s4473 + $0x2c4] sm:$0xff]
        %v4578 = vld [vmem:[%s4473 + $0x2cc] sm:$0xff]
        %v4579 = vld [vmem:[%s4473 + $0x2d4] sm:$0xff]
        %v4580 = vld [vmem:[%s4473 + $0x2dc] sm:$0xff]
        %v4581 = vld [vmem:[%s4473 + $0x2e4] sm:$0xff]
        %v4582 = vld [vmem:[%s4473 + $0x2ec] sm:$0xff]
        %v4583 = vld [vmem:[%s4473 + $0x2f4] sm:$0xff]
        %v4584 = vld [vmem:[%s4473 + $0x2fc] sm:$0xff]
        %v4585 = vld [vmem:[%s4473 + $0x304] sm:$0xff]
        %v4586 = vld [vmem:[%s4473 + $0x30c] sm:$0xff]
        %v4587 = vld [vmem:[%s4473 + $0x314] sm:$0xf]
        %v4588 = vld [vmem:[%s4473 + $0x318] sm:$0xff]
        %v4589 = vld [vmem:[%s4473 + $0x320] sm:$0xff]
        %v4590 = vld [vmem:[%s4473 + $0x328] sm:$0xff]
        %v4591 = vld [vmem:[%s4473 + $0x330] sm:$0xff]
        %v4592 = vld [vmem:[%s4473 + $0x338] sm:$0xff]
        %v4593 = vld [vmem:[%s4473 + $0x340] sm:$0xff]
        %v4594 = vld [vmem:[%s4473 + $0x348] sm:$0xff]
        %v4595 = vld [vmem:[%s4473 + $0x350] sm:$0xff]
        %v4596 = vld [vmem:[%s4473 + $0x358] sm:$0xff]
        %v4597 = vld [vmem:[%s4473 + $0x360] sm:$0xff]
        %v4598 = vld [vmem:[%s4473 + $0x368] sm:$0xff]
        %v4599 = vld [vmem:[%s4473 + $0x370] sm:$0xff]
        %v4600 = vld [vmem:[%s4473 + $0x378] sm:$0xff]
        %v4601 = vld [vmem:[%s4473 + $0x380] sm:$0xff]
        %v4602 = vld [vmem:[%s4473 + $0x388] sm:$0xff]
        %v4603 = vld [vmem:[%s4473 + $0x390] sm:$0xff]
        %v4604 = vld [vmem:[%s4473 + $0x398] sm:$0xf]
        %v4605 = vld [vmem:[%s4473 + $0x39c] sm:$0xff]
        %v4606 = vld [vmem:[%s4473 + $0x3a4] sm:$0xff]
        %v4607 = vld [vmem:[%s4473 + $0x3ac] sm:$0xff]
        %v4608 = vld [vmem:[%s4473 + $0x3b4] sm:$0xff]
        %v4609 = vld [vmem:[%s4473 + $0x3bc] sm:$0xff]
        %v4610 = vld [vmem:[%s4473 + $0x3c4] sm:$0xff]
        %v4611 = vld [vmem:[%s4473 + $0x3cc] sm:$0xff]
        %v4612 = vld [vmem:[%s4473 + $0x3d4] sm:$0xff]
        %v4613 = vld [vmem:[%s4473 + $0x3dc] sm:$0xff]
        %v4614 = vld [vmem:[%s4473 + $0x3e4] sm:$0xff]
        %v4615 = vld [vmem:[%s4473 + $0x3ec] sm:$0xff]
        %v4616 = vld [vmem:[%s4473 + $0x3f4] sm:$0xff]
        %v4617 = vld [vmem:[%s4473 + $0x3fc] sm:$0xff]
        %v4618 = vld [vmem:[%s4473 + $0x404] sm:$0xff]
        %v4619 = vld [vmem:[%s4473 + $0x40c] sm:$0xff]
        %v4620 = vld [vmem:[%s4473 + $0x414] sm:$0xff]
        %v4621 = vld [vmem:[%s4473 + $0x41c] sm:$0xf]
        %v4622 = vld [vmem:[%s4440] sm:$0xff]
        %v4623 = vld [vmem:[%s4440 + $0x8] sm:$0xff]
        %v4624 = vld [vmem:[%s4440 + $0x10] sm:$0xff]
        %v4625 = vld [vmem:[%s4440 + $0x18] sm:$0xff]
        %v4626 = vld [vmem:[%s4440 + $0x20] sm:$0xff]
        %v4627 = vld [vmem:[%s4440 + $0x28] sm:$0xff]
        %v4628 = vld [vmem:[%s4440 + $0x30] sm:$0xff]
        %v4629 = vld [vmem:[%s4440 + $0x38] sm:$0xff]
        %v4630 = vld [vmem:[%s4440 + $0x40] sm:$0xff]
        %v4631 = vld [vmem:[%s4440 + $0x48] sm:$0xff]
        %v4632 = vld [vmem:[%s4440 + $0x50] sm:$0xff]
        %v4633 = vld [vmem:[%s4440 + $0x58] sm:$0xff]
        %v4634 = vld [vmem:[%s4440 + $0x60] sm:$0xff]
        %v4635 = vld [vmem:[%s4440 + $0x68] sm:$0xff]
        %v4636 = vld [vmem:[%s4440 + $0x70] sm:$0xff]
        %v4637 = vld [vmem:[%s4440 + $0x78] sm:$0xff]
        %v4638 = vld [vmem:[%s4440 + $0x80] sm:$0xff]
        %v4639 = vld [vmem:[%s4440 + $0x88] sm:$0xff]
        %v4640 = vld [vmem:[%s4440 + $0x90] sm:$0xff]
        %v4641 = vld [vmem:[%s4440 + $0x98] sm:$0xff]
        %v4642 = vld [vmem:[%s4440 + $0xa0] sm:$0xff]
        %v4643 = vld [vmem:[%s4440 + $0xa8] sm:$0xff]
        %v4644 = vld [vmem:[%s4440 + $0xb0] sm:$0xff]
        %v4645 = vld [vmem:[%s4440 + $0xb8] sm:$0xff]
        %v4646 = vld [vmem:[%s4440 + $0xc0] sm:$0xff]
        %v4647 = vld [vmem:[%s4440 + $0xc8] sm:$0xff]
        %v4648 = vld [vmem:[%s4440 + $0xd0] sm:$0xff]
        %v4649 = vld [vmem:[%s4440 + $0xd8] sm:$0xff]
        %v4650 = vld [vmem:[%s4440 + $0xe0] sm:$0xff]
        %v4651 = vld [vmem:[%s4440 + $0xe8] sm:$0xff]
        %v4652 = vld [vmem:[%s4440 + $0xf0] sm:$0xff]
        %v4653 = vld [vmem:[%s4440 + $0xf8] sm:$0xff]
        %v4654 = vld [vmem:[%s4440 + $0x100] sm:$0xff]
        %v4655 = vld [vmem:[%s4440 + $0x108] sm:$0xff]
        %v4656 = vld [vmem:[%s4440 + $0x110] sm:$0xff]
        %v4657 = vld [vmem:[%s4440 + $0x118] sm:$0xff]
        %v4658 = vld [vmem:[%s4440 + $0x120] sm:$0xff]
        %v4659 = vld [vmem:[%s4440 + $0x128] sm:$0xff]
        %v4660 = vld [vmem:[%s4440 + $0x130] sm:$0xff]
        %v4661 = vld [vmem:[%s4440 + $0x138] sm:$0xff]
        %v4662 = vld [vmem:[%s4440 + $0x140] sm:$0xff]
        %v4663 = vld [vmem:[%s4440 + $0x148] sm:$0xff]
        %v4664 = vld [vmem:[%s4440 + $0x150] sm:$0xff]
        %v4665 = vld [vmem:[%s4440 + $0x158] sm:$0xff]
        %v4666 = vld [vmem:[%s4440 + $0x160] sm:$0xff]
        %v4667 = vld [vmem:[%s4440 + $0x168] sm:$0xff]
        %v4668 = vld [vmem:[%s4440 + $0x170] sm:$0xff]
        %v4669 = vld [vmem:[%s4440 + $0x178] sm:$0xff]
        %v4670 = vld [vmem:[%s4440 + $0x180] sm:$0xff]
        %v4671 = vld [vmem:[%s4440 + $0x188] sm:$0xff]
        %v4672 = vld [vmem:[%s4440 + $0x190] sm:$0xff]
        %v4673 = vld [vmem:[%s4440 + $0x198] sm:$0xff]
        %v4674 = vld [vmem:[%s4440 + $0x1a0] sm:$0xff]
        %v4675 = vld [vmem:[%s4440 + $0x1a8] sm:$0xff]
        %v4676 = vld [vmem:[%s4440 + $0x1b0] sm:$0xff]
        %v4677 = vld [vmem:[%s4440 + $0x1b8] sm:$0xff]
        %v4678 = vld [vmem:[%s4440 + $0x1c0] sm:$0xff]
        %v4679 = vld [vmem:[%s4440 + $0x1c8] sm:$0xff]
        %v4680 = vld [vmem:[%s4440 + $0x1d0] sm:$0xff]
        %v4681 = vld [vmem:[%s4440 + $0x1d8] sm:$0xff]
        %v4682 = vld [vmem:[%s4440 + $0x1e0] sm:$0xff]
        %v4683 = vld [vmem:[%s4440 + $0x1e8] sm:$0xff]
        %v4684 = vld [vmem:[%s4440 + $0x1f0] sm:$0xff]
        %v4685 = vld [vmem:[%s4440 + $0x1f8] sm:$0xff]
        %v4686 = vld [vmem:[%s4440 + $0x200] sm:$0xff]
        %v4687 = vld [vmem:[%s4440 + $0x208] sm:$0xff]
        %v4688 = vld [vmem:[%s4440 + $0x210] sm:$0xff]
        %v4689 = vld [vmem:[%s4440 + $0x218] sm:$0xff]
        %v4690 = vld [vmem:[%s4440 + $0x220] sm:$0xff]
        %v4691 = vld [vmem:[%s4440 + $0x228] sm:$0xff]
        %v4692 = vld [vmem:[%s4440 + $0x230] sm:$0xff]
        %v4693 = vld [vmem:[%s4440 + $0x238] sm:$0xff]
        %v4694 = vld [vmem:[%s4440 + $0x240] sm:$0xff]
        %v4695 = vld [vmem:[%s4440 + $0x248] sm:$0xff]
        %v4696 = vld [vmem:[%s4440 + $0x250] sm:$0xff]
        %v4697 = vld [vmem:[%s4440 + $0x258] sm:$0xff]
        %v4698 = vld [vmem:[%s4440 + $0x260] sm:$0xff]
        %v4699 = vld [vmem:[%s4440 + $0x268] sm:$0xff]
        %v4700 = vld [vmem:[%s4440 + $0x270] sm:$0xff]
        %v4701 = vld [vmem:[%s4440 + $0x278] sm:$0xff]
        %v4702 = vld [vmem:[%s4440 + $0x280] sm:$0xff]
        %v4703 = vld [vmem:[%s4440 + $0x288] sm:$0xff]
        %v4704 = vld [vmem:[%s4440 + $0x290] sm:$0xff]
        %v4705 = vld [vmem:[%s4440 + $0x298] sm:$0xff]
        %v4706 = vld [vmem:[%s4440 + $0x2a0] sm:$0xff]
        %v4707 = vld [vmem:[%s4440 + $0x2a8] sm:$0xff]
        %v4708 = vld [vmem:[%s4440 + $0x2b0] sm:$0xff]
        %v4709 = vld [vmem:[%s4440 + $0x2b8] sm:$0xff]
        %v4710 = vld [vmem:[%s4440 + $0x2c0] sm:$0xff]
        %v4711 = vld [vmem:[%s4440 + $0x2c8] sm:$0xff]
        %v4712 = vld [vmem:[%s4440 + $0x2d0] sm:$0xff]
        %v4713 = vld [vmem:[%s4440 + $0x2d8] sm:$0xff]
        %v4714 = vld [vmem:[%s4440 + $0x2e0] sm:$0xff]
        %v4715 = vld [vmem:[%s4440 + $0x2e8] sm:$0xff]
        %v4716 = vld [vmem:[%s4440 + $0x2f0] sm:$0xff]
        %v4717 = vld [vmem:[%s4440 + $0x2f8] sm:$0xff]
        %v4718 = vld [vmem:[%s4440 + $0x300] sm:$0xff]
        %v4719 = vld [vmem:[%s4440 + $0x308] sm:$0xff]
        %v4720 = vld [vmem:[%s4440 + $0x310] sm:$0xff]
        %v4721 = vld [vmem:[%s4440 + $0x318] sm:$0xff]
        %v4722 = vld [vmem:[%s4440 + $0x320] sm:$0xff]
        %v4723 = vld [vmem:[%s4440 + $0x328] sm:$0xff]
        %v4724 = vld [vmem:[%s4440 + $0x330] sm:$0xff]
        %v4725 = vld [vmem:[%s4440 + $0x338] sm:$0xff]
        %v4726 = vld [vmem:[%s4440 + $0x340] sm:$0xff]
        %v4727 = vld [vmem:[%s4440 + $0x348] sm:$0xff]
        %v4728 = vld [vmem:[%s4440 + $0x350] sm:$0xff]
        %v4729 = vld [vmem:[%s4440 + $0x358] sm:$0xff]
        %v4730 = vld [vmem:[%s4440 + $0x360] sm:$0xff]
        %v4731 = vld [vmem:[%s4440 + $0x368] sm:$0xff]
        %v4732 = vld [vmem:[%s4440 + $0x370] sm:$0xff]
        %v4733 = vld [vmem:[%s4440 + $0x378] sm:$0xff]
        %v4734 = vld [vmem:[%s4440 + $0x380] sm:$0xff]
        %v4735 = vld [vmem:[%s4440 + $0x388] sm:$0xff]
        %v4736 = vld [vmem:[%s4440 + $0x390] sm:$0xff]
        %v4737 = vld [vmem:[%s4440 + $0x398] sm:$0xff]
        %v4738 = vld [vmem:[%s4440 + $0x3a0] sm:$0xff]
        %v4739 = vld [vmem:[%s4440 + $0x3a8] sm:$0xff]
        %v4740 = vld [vmem:[%s4440 + $0x3b0] sm:$0xff]
        %v4741 = vld [vmem:[%s4440 + $0x3b8] sm:$0xff]
        %v4742 = vld [vmem:[%s4440 + $0x3c0] sm:$0xff]
        %v4743 = vld [vmem:[%s4440 + $0x3c8] sm:$0xff]
        %v4744 = vld [vmem:[%s4440 + $0x3d0] sm:$0xff]
        %v4745 = vld [vmem:[%s4440 + $0x3d8] sm:$0xff]
        %v4746 = vld [vmem:[%s4440 + $0x3e0] sm:$0xff]
        %v4747 = vld [vmem:[%s4440 + $0x3e8] sm:$0xff]
        %v4748 = vld [vmem:[%s4440 + $0x3f0] sm:$0xff]
        %v4749 = vld [vmem:[%s4440 + $0x3f8] sm:$0xff]
        %v4750 = vld [vmem:[%s4440 + $0x400] sm:$0xff]
        %v4751 = vld [vmem:[%s4440 + $0x408] sm:$0xff]
        %v4752 = vld [vmem:[%s4440 + $0x410] sm:$0xff]
        %v4753 = vld [vmem:[%s4440 + $0x418] sm:$0xff]
        %v4754 = vld [vmem:[%s4440 + $0x420] sm:$0xff]
        %v4755 = vld [vmem:[%s4440 + $0x428] sm:$0xff]
        %v4756 = vld [vmem:[%s4440 + $0x430] sm:$0xff]
        %v4757 = vld [vmem:[%s4440 + $0x438] sm:$0xff]
        %v4758 = vld [vmem:[%s4440 + $0x440] sm:$0xff]
        %v4759 = vld [vmem:[%s4440 + $0x448] sm:$0xff]
        %v4760 = vld [vmem:[%s4440 + $0x450] sm:$0xff]
        %v4761 = vld [vmem:[%s4440 + $0x458] sm:$0xff]
        %v4762 = vld [vmem:[%s4440 + $0x460] sm:$0xff]
        %v4763 = vld [vmem:[%s4440 + $0x468] sm:$0xff]
        %v4764 = vld [vmem:[%s4440 + $0x470] sm:$0xff]
        %v4765 = vld [vmem:[%s4440 + $0x478] sm:$0xff]
        %v4766 = vld [vmem:[%s4440 + $0x480] sm:$0xff]
        %v4767 = vld [vmem:[%s4440 + $0x488] sm:$0xff]
        %v4768 = vld [vmem:[%s4440 + $0x490] sm:$0xff]
        %v4769 = vld [vmem:[%s4440 + $0x498] sm:$0xff]
        %v4770 = vld [vmem:[%s4440 + $0x4a0] sm:$0xff]
        %v4771 = vld [vmem:[%s4440 + $0x4a8] sm:$0xff]
        %v4772 = vld [vmem:[%s4440 + $0x4b0] sm:$0xff]
        %v4773 = vld [vmem:[%s4440 + $0x4b8] sm:$0xff]
        %v4774 = vld [vmem:[%s4440 + $0x4c0] sm:$0xff]
        %v4775 = vld [vmem:[%s4440 + $0x4c8] sm:$0xff]
        %v4776 = vld [vmem:[%s4440 + $0x4d0] sm:$0xff]
        %v4777 = vld [vmem:[%s4440 + $0x4d8] sm:$0xff]
        %v4778 = vld [vmem:[%s4440 + $0x4e0] sm:$0xff]
        %v4779 = vld [vmem:[%s4440 + $0x4e8] sm:$0xff]
        %v4780 = vld [vmem:[%s4440 + $0x4f0] sm:$0xff]
        %v4781 = vld [vmem:[%s4440 + $0x4f8] sm:$0xff]
        %v4782 = vld [vmem:[%s4440 + $0x500] sm:$0xff]
        %v4783 = vld [vmem:[%s4440 + $0x508] sm:$0xff]
        %v4784 = vld [vmem:[%s4440 + $0x510] sm:$0xff]
        %v4785 = vld [vmem:[%s4440 + $0x518] sm:$0xff]
        %v4786 = vld [vmem:[%s4440 + $0x520] sm:$0xff]
        %v4787 = vld [vmem:[%s4440 + $0x528] sm:$0xff]
        %v4788 = vld [vmem:[%s4440 + $0x530] sm:$0xff]
        %v4789 = vld [vmem:[%s4440 + $0x538] sm:$0xff]
        %v4790 = vld [vmem:[%s4440 + $0x540] sm:$0xff]
        %v4791 = vld [vmem:[%s4440 + $0x548] sm:$0xff]
        %v4792 = vld [vmem:[%s4440 + $0x550] sm:$0xff]
        %v4793 = vld [vmem:[%s4440 + $0x558] sm:$0xff]
        %v4794 = vld [vmem:[%s4440 + $0x560] sm:$0xff]
        %v4795 = vld [vmem:[%s4440 + $0x568] sm:$0xff]
        %v4796 = vld [vmem:[%s4440 + $0x570] sm:$0xff]
        %v4797 = vld [vmem:[%s4440 + $0x578] sm:$0xff]
        %v4798 = vld [vmem:[%s4440 + $0x580] sm:$0xff]
        %v4799 = vld [vmem:[%s4440 + $0x588] sm:$0xff]
        %v4800 = vld [vmem:[%s4440 + $0x590] sm:$0xff]
        %v4801 = vld [vmem:[%s4440 + $0x598] sm:$0xff]
        %v4802 = vld [vmem:[%s4440 + $0x5a0] sm:$0xff]
        %v4803 = vld [vmem:[%s4440 + $0x5a8] sm:$0xff]
        %v4804 = vld [vmem:[%s4440 + $0x5b0] sm:$0xff]
        %v4805 = vld [vmem:[%s4440 + $0x5b8] sm:$0xff]
        %v4806 = vld [vmem:[%s4440 + $0x5c0] sm:$0xff]
        %v4807 = vld [vmem:[%s4440 + $0x5c8] sm:$0xff]
        %v4808 = vld [vmem:[%s4440 + $0x5d0] sm:$0xff]
        %v4809 = vld [vmem:[%s4440 + $0x5d8] sm:$0xff]
        %v4810 = vld [vmem:[%s4440 + $0x5e0] sm:$0xff]
        %v4811 = vld [vmem:[%s4440 + $0x5e8] sm:$0xff]
        %v4812 = vld [vmem:[%s4440 + $0x5f0] sm:$0xff]
        %v4813 = vld [vmem:[%s4440 + $0x5f8] sm:$0xff]
        %v4814 = vld [vmem:[%s4440 + $0x600] sm:$0xff]
        %v4815 = vld [vmem:[%s4440 + $0x608] sm:$0xff]
        %v4816 = vld [vmem:[%s4440 + $0x610] sm:$0xff]
        %v4817 = vld [vmem:[%s4440 + $0x618] sm:$0xff]
        %v4818 = vld [vmem:[%s4440 + $0x620] sm:$0xff]
        %v4819 = vld [vmem:[%s4440 + $0x628] sm:$0xff]
        %v4820 = vld [vmem:[%s4440 + $0x630] sm:$0xff]
        %v4821 = vld [vmem:[%s4440 + $0x638] sm:$0xff]
        %v4822 = vld [vmem:[%s4440 + $0x640] sm:$0xff]
        %v4823 = vld [vmem:[%s4440 + $0x648] sm:$0xff]
        %v4824 = vld [vmem:[%s4440 + $0x650] sm:$0xff]
        %v4825 = vld [vmem:[%s4440 + $0x658] sm:$0xff]
        %v4826 = vld [vmem:[%s4440 + $0x660] sm:$0xff]
        %v4827 = vld [vmem:[%s4440 + $0x668] sm:$0xff]
        %v4828 = vld [vmem:[%s4440 + $0x670] sm:$0xff]
        %v4829 = vld [vmem:[%s4440 + $0x678] sm:$0xff]
        %v4830 = vld [vmem:[%s4440 + $0x680] sm:$0xff]
        %v4831 = vld [vmem:[%s4440 + $0x688] sm:$0xff]
        %v4832 = vld [vmem:[%s4440 + $0x690] sm:$0xff]
        %v4833 = vld [vmem:[%s4440 + $0x698] sm:$0xff]
        %v4834 = vld [vmem:[%s4440 + $0x6a0] sm:$0xff]
        %v4835 = vld [vmem:[%s4440 + $0x6a8] sm:$0xff]
        %v4836 = vld [vmem:[%s4440 + $0x6b0] sm:$0xff]
        %v4837 = vld [vmem:[%s4440 + $0x6b8] sm:$0xff]
        %v4838 = vld [vmem:[%s4440 + $0x6c0] sm:$0xff]
        %v4839 = vld [vmem:[%s4440 + $0x6c8] sm:$0xff]
        %v4840 = vld [vmem:[%s4440 + $0x6d0] sm:$0xff]
        %v4841 = vld [vmem:[%s4440 + $0x6d8] sm:$0xff]
        %v4842 = vld [vmem:[%s4440 + $0x6e0] sm:$0xff]
        %v4843 = vld [vmem:[%s4440 + $0x6e8] sm:$0xff]
        %v4844 = vld [vmem:[%s4440 + $0x6f0] sm:$0xff]
        %v4845 = vld [vmem:[%s4440 + $0x6f8] sm:$0xff]
        %v4846 = vld [vmem:[%s4440 + $0x700] sm:$0xff]
        %v4847 = vld [vmem:[%s4440 + $0x708] sm:$0xff]
        %v4848 = vld [vmem:[%s4440 + $0x710] sm:$0xff]
        %v4849 = vld [vmem:[%s4440 + $0x718] sm:$0xff]
        %v4850 = vld [vmem:[%s4440 + $0x720] sm:$0xff]
        %v4851 = vld [vmem:[%s4440 + $0x728] sm:$0xff]
        %v4852 = vld [vmem:[%s4440 + $0x730] sm:$0xff]
        %v4853 = vld [vmem:[%s4440 + $0x738] sm:$0xff]
        %v4854 = vld [vmem:[%s4440 + $0x740] sm:$0xff]
        %v4855 = vld [vmem:[%s4440 + $0x748] sm:$0xff]
        %v4856 = vld [vmem:[%s4440 + $0x750] sm:$0xff]
        %v4857 = vld [vmem:[%s4440 + $0x758] sm:$0xff]
        %v4858 = vld [vmem:[%s4440 + $0x760] sm:$0xff]
        %v4859 = vld [vmem:[%s4440 + $0x768] sm:$0xff]
        %v4860 = vld [vmem:[%s4440 + $0x770] sm:$0xff]
        %v4861 = vld [vmem:[%s4440 + $0x778] sm:$0xff]
        %v4862 = vld [vmem:[%s4440 + $0x780] sm:$0xff]
        %v4863 = vld [vmem:[%s4440 + $0x788] sm:$0xff]
        %v4864 = vld [vmem:[%s4440 + $0x790] sm:$0xff]
        %v4865 = vld [vmem:[%s4440 + $0x798] sm:$0xff]
        %v4866 = vld [vmem:[%s4440 + $0x7a0] sm:$0xff]
        %v4867 = vld [vmem:[%s4440 + $0x7a8] sm:$0xff]
        %v4868 = vld [vmem:[%s4440 + $0x7b0] sm:$0xff]
        %v4869 = vld [vmem:[%s4440 + $0x7b8] sm:$0xff]
        %v4870 = vld [vmem:[%s4440 + $0x7c0] sm:$0xff]
        %v4871 = vld [vmem:[%s4440 + $0x7c8] sm:$0xff]
        %v4872 = vld [vmem:[%s4440 + $0x7d0] sm:$0xff]
        %v4873 = vld [vmem:[%s4440 + $0x7d8] sm:$0xff]
        %v4874 = vld [vmem:[%s4440 + $0x7e0] sm:$0xff]
        %v4875 = vld [vmem:[%s4440 + $0x7e8] sm:$0xff]
        %v4876 = vld [vmem:[%s4440 + $0x7f0] sm:$0xff]
        %v4877 = vld [vmem:[%s4440 + $0x7f8] sm:$0xff]
        %v4878 = vld [vmem:[%s4440 + $0x800] sm:$0xff]
        %v4879 = vld [vmem:[%s4440 + $0x808] sm:$0xff]
        %v4880 = vld [vmem:[%s4440 + $0x810] sm:$0xff]
        %v4881 = vld [vmem:[%s4440 + $0x818] sm:$0xff]
        %v4882 = vld [vmem:[%s4440 + $0x820] sm:$0xff]
        %v4883 = vld [vmem:[%s4440 + $0x828] sm:$0xff]
        %v4884 = vld [vmem:[%s4440 + $0x830] sm:$0xff]
        %v4885 = vld [vmem:[%s4440 + $0x838] sm:$0xff]
        %v4886 = vld [vmem:[%s4440 + $0x840] sm:$0xff]
        %v4887 = vld [vmem:[%s4440 + $0x848] sm:$0xff]
        %v4888 = vld [vmem:[%s4440 + $0x850] sm:$0xff]
        %v4889 = vld [vmem:[%s4440 + $0x858] sm:$0xff]
        %v4890 = vld [vmem:[%s4440 + $0x860] sm:$0xff]
        %v4891 = vld [vmem:[%s4440 + $0x868] sm:$0xff]
        %v4892 = vld [vmem:[%s4440 + $0x870] sm:$0xff]
        %v4893 = vld [vmem:[%s4440 + $0x878] sm:$0xff]
        %v4894 = vld [vmem:[%s4440 + $0x880] sm:$0xff]
        %v4895 = vld [vmem:[%s4440 + $0x888] sm:$0xff]
        %v4896 = vld [vmem:[%s4440 + $0x890] sm:$0xff]
        %v4897 = vld [vmem:[%s4440 + $0x898] sm:$0xff]
        %v4898 = vld [vmem:[%s4440 + $0x8a0] sm:$0xff]
        %v4899 = vld [vmem:[%s4440 + $0x8a8] sm:$0xff]
        %v4900 = vld [vmem:[%s4440 + $0x8b0] sm:$0xff]
        %v4901 = vld [vmem:[%s4440 + $0x8b8] sm:$0xff]
        %v4902 = vld [vmem:[%s4440 + $0x8c0] sm:$0xff]
        %v4903 = vld [vmem:[%s4440 + $0x8c8] sm:$0xff]
        %v4904 = vld [vmem:[%s4440 + $0x8d0] sm:$0xff]
        %v4905 = vld [vmem:[%s4440 + $0x8d8] sm:$0xff]
        %v4906 = vld [vmem:[%s4440 + $0x8e0] sm:$0xff]
        %v4907 = vld [vmem:[%s4440 + $0x8e8] sm:$0xff]
        %v4908 = vld [vmem:[%s4440 + $0x8f0] sm:$0xff]
        %v4909 = vld [vmem:[%s4440 + $0x8f8] sm:$0xff]
        %v4910 = vld [vmem:[%s4440 + $0x900] sm:$0xff]
        %v4911 = vld [vmem:[%s4440 + $0x908] sm:$0xff]
        %v4912 = vld [vmem:[%s4440 + $0x910] sm:$0xff]
        %v4913 = vld [vmem:[%s4440 + $0x918] sm:$0xff]
        %v4914 = vld [vmem:[%s4440 + $0x920] sm:$0xff]
        %v4915 = vld [vmem:[%s4440 + $0x928] sm:$0xff]
        %v4916 = vld [vmem:[%s4440 + $0x930] sm:$0xff]
        %v4917 = vld [vmem:[%s4440 + $0x938] sm:$0xff]
        %v4918 = vld [vmem:[%s4440 + $0x940] sm:$0xff]
        %v4919 = vld [vmem:[%s4440 + $0x948] sm:$0xff]
        %v4920 = vld [vmem:[%s4440 + $0x950] sm:$0xff]
        %v4921 = vld [vmem:[%s4440 + $0x958] sm:$0xff]
        %v4922 = vld [vmem:[%s4440 + $0x960] sm:$0xff]
        %v4923 = vld [vmem:[%s4440 + $0x968] sm:$0xff]
        %v4924 = vld [vmem:[%s4440 + $0x970] sm:$0xff]
        %v4925 = vld [vmem:[%s4440 + $0x978] sm:$0xff]
        %v4926 = vld [vmem:[%s4440 + $0x980] sm:$0xff]
        %v4927 = vld [vmem:[%s4440 + $0x988] sm:$0xff]
        %v4928 = vld [vmem:[%s4440 + $0x990] sm:$0xff]
        %v4929 = vld [vmem:[%s4440 + $0x998] sm:$0xff]
        %v4930 = vld [vmem:[%s4440 + $0x9a0] sm:$0xff]
        %v4931 = vld [vmem:[%s4440 + $0x9a8] sm:$0xff]
        %v4932 = vld [vmem:[%s4440 + $0x9b0] sm:$0xff]
        %v4933 = vld [vmem:[%s4440 + $0x9b8] sm:$0xff]
        %v4934 = vld [vmem:[%s4440 + $0x9c0] sm:$0xff]
        %v4935 = vld [vmem:[%s4440 + $0x9c8] sm:$0xff]
        %v4936 = vld [vmem:[%s4440 + $0x9d0] sm:$0xff]
        %v4937 = vld [vmem:[%s4440 + $0x9d8] sm:$0xff]
        %v4938 = vld [vmem:[%s4440 + $0x9e0] sm:$0xff]
        %v4939 = vld [vmem:[%s4440 + $0x9e8] sm:$0xff]
        %v4940 = vld [vmem:[%s4440 + $0x9f0] sm:$0xff]
        %v4941 = vld [vmem:[%s4440 + $0x9f8] sm:$0xff]
        %v4942 = vld [vmem:[%s4440 + $0xa00] sm:$0xff]
        %v4943 = vld [vmem:[%s4440 + $0xa08] sm:$0xff]
        %v4944 = vld [vmem:[%s4440 + $0xa10] sm:$0xff]
        %v4945 = vld [vmem:[%s4440 + $0xa18] sm:$0xff]
        %v4946 = vld [vmem:[%s4440 + $0xa20] sm:$0xff]
        %v4947 = vld [vmem:[%s4440 + $0xa28] sm:$0xff]
        %v4948 = vld [vmem:[%s4440 + $0xa30] sm:$0xff]
        %v4949 = vld [vmem:[%s4440 + $0xa38] sm:$0xff]
        %v4950 = vld [vmem:[%s4440 + $0xa40] sm:$0xff]
        %v4951 = vld [vmem:[%s4440 + $0xa48] sm:$0xff]
        %v4952 = vld [vmem:[%s4440 + $0xa50] sm:$0xff]
        %v4953 = vld [vmem:[%s4440 + $0xa58] sm:$0xff]
        %v4954 = vld [vmem:[%s4440 + $0xa60] sm:$0xff]
        %v4955 = vld [vmem:[%s4440 + $0xa68] sm:$0xff]
        %v4956 = vld [vmem:[%s4440 + $0xa70] sm:$0xff]
        %v4957 = vld [vmem:[%s4440 + $0xa78] sm:$0xff]
        %v4958 = vld [vmem:[%s4440 + $0xa80] sm:$0xff]
        %v4959 = vld [vmem:[%s4440 + $0xa88] sm:$0xff]
        %v4960 = vld [vmem:[%s4440 + $0xa90] sm:$0xff]
        %v4961 = vld [vmem:[%s4440 + $0xa98] sm:$0xff]
        %v4962 = vld [vmem:[%s4440 + $0xaa0] sm:$0xff]
        %v4963 = vld [vmem:[%s4440 + $0xaa8] sm:$0xff]
        %v4964 = vld [vmem:[%s4440 + $0xab0] sm:$0xff]
        %v4965 = vld [vmem:[%s4440 + $0xab8] sm:$0xff]
        %v4966 = vld [vmem:[%s4440 + $0xac0] sm:$0xff]
        %v4967 = vld [vmem:[%s4440 + $0xac8] sm:$0xff]
        %v4968 = vld [vmem:[%s4440 + $0xad0] sm:$0xff]
        %v4969 = vld [vmem:[%s4440 + $0xad8] sm:$0xff]
        %v4970 = vld [vmem:[%s4440 + $0xae0] sm:$0xff]
        %v4971 = vld [vmem:[%s4440 + $0xae8] sm:$0xff]
        %v4972 = vld [vmem:[%s4440 + $0xaf0] sm:$0xff]
        %v4973 = vld [vmem:[%s4440 + $0xaf8] sm:$0xff]
        %v4974 = vld [vmem:[%s4440 + $0xb00] sm:$0xff]
        %v4975 = vld [vmem:[%s4440 + $0xb08] sm:$0xff]
        %v4976 = vld [vmem:[%s4440 + $0xb10] sm:$0xff]
        %v4977 = vld [vmem:[%s4440 + $0xb18] sm:$0xff]
        %v4978 = vld [vmem:[%s4440 + $0xb20] sm:$0xff]
        %v4979 = vld [vmem:[%s4440 + $0xb28] sm:$0xff]
        %v4980 = vld [vmem:[%s4440 + $0xb30] sm:$0xff]
        %v4981 = vld [vmem:[%s4440 + $0xb38] sm:$0xff]
        %v4982 = vld [vmem:[%s4440 + $0xb40] sm:$0xff]
        %v4983 = vld [vmem:[%s4440 + $0xb48] sm:$0xff]
        %v4984 = vld [vmem:[%s4440 + $0xb50] sm:$0xff]
        %v4985 = vld [vmem:[%s4440 + $0xb58] sm:$0xff]
        %v4986 = vld [vmem:[%s4440 + $0xb60] sm:$0xff]
        %v4987 = vld [vmem:[%s4440 + $0xb68] sm:$0xff]
        %v4988 = vld [vmem:[%s4440 + $0xb70] sm:$0xff]
        %v4989 = vld [vmem:[%s4440 + $0xb78] sm:$0xff]
        %v4990 = vld [vmem:[%s4440 + $0xb80] sm:$0xff]
        %v4991 = vld [vmem:[%s4440 + $0xb88] sm:$0xff]
        %v4992 = vld [vmem:[%s4440 + $0xb90] sm:$0xff]
        %v4993 = vld [vmem:[%s4440 + $0xb98] sm:$0xff]
        %v4994 = vld [vmem:[%s4440 + $0xba0] sm:$0xff]
        %v4995 = vld [vmem:[%s4440 + $0xba8] sm:$0xff]
        %v4996 = vld [vmem:[%s4440 + $0xbb0] sm:$0xff]
        %v4997 = vld [vmem:[%s4440 + $0xbb8] sm:$0xff]
        %v4998 = vld [vmem:[%s4440 + $0xbc0] sm:$0xff]
        %v4999 = vld [vmem:[%s4440 + $0xbc8] sm:$0xff]
        %v5000 = vld [vmem:[%s4440 + $0xbd0] sm:$0xff]
        %v5001 = vld [vmem:[%s4440 + $0xbd8] sm:$0xff]
        %v5002 = vld [vmem:[%s4440 + $0xbe0] sm:$0xff]
        %v5003 = vld [vmem:[%s4440 + $0xbe8] sm:$0xff]
        %v5004 = vld [vmem:[%s4440 + $0xbf0] sm:$0xff]
        %v5005 = vld [vmem:[%s4440 + $0xbf8] sm:$0xff]
        %v5006 = vld [vmem:[%s4440 + $0xc00] sm:$0xff]
        %v5007 = vld [vmem:[%s4440 + $0xc08] sm:$0xff]
        %v5008 = vld [vmem:[%s4440 + $0xc10] sm:$0xff]
        %v5009 = vld [vmem:[%s4440 + $0xc18] sm:$0xff]
        %v5010 = vld [vmem:[%s4440 + $0xc20] sm:$0xff]
        %v5011 = vld [vmem:[%s4440 + $0xc28] sm:$0xff]
        %v5012 = vld [vmem:[%s4440 + $0xc30] sm:$0xff]
        %v5013 = vld [vmem:[%s4440 + $0xc38] sm:$0xff]
        %v5014 = vld [vmem:[%s4440 + $0xc40] sm:$0xff]
        %v5015 = vld [vmem:[%s4440 + $0xc48] sm:$0xff]
        %v5016 = vld [vmem:[%s4440 + $0xc50] sm:$0xff]
        %v5017 = vld [vmem:[%s4440 + $0xc58] sm:$0xff]
        %v5018 = vld [vmem:[%s4440 + $0xc60] sm:$0xff]
        %v5019 = vld [vmem:[%s4440 + $0xc68] sm:$0xff]
        %v5020 = vld [vmem:[%s4440 + $0xc70] sm:$0xff]
        %v5021 = vld [vmem:[%s4440 + $0xc78] sm:$0xff]
        %v5022 = vld [vmem:[%s4440 + $0xc80] sm:$0xff]
        %v5023 = vld [vmem:[%s4440 + $0xc88] sm:$0xff]
        %v5024 = vld [vmem:[%s4440 + $0xc90] sm:$0xff]
        %v5025 = vld [vmem:[%s4440 + $0xc98] sm:$0xff]
        %v5026 = vld [vmem:[%s4440 + $0xca0] sm:$0xff]
        %v5027 = vld [vmem:[%s4440 + $0xca8] sm:$0xff]
        %v5028 = vld [vmem:[%s4440 + $0xcb0] sm:$0xff]
        %v5029 = vld [vmem:[%s4440 + $0xcb8] sm:$0xff]
        %v5030 = vld [vmem:[%s4440 + $0xcc0] sm:$0xff]
        %v5031 = vld [vmem:[%s4440 + $0xcc8] sm:$0xff]
        %v5032 = vld [vmem:[%s4440 + $0xcd0] sm:$0xff]
        %v5033 = vld [vmem:[%s4440 + $0xcd8] sm:$0xff]
        %v5034 = vld [vmem:[%s4440 + $0xce0] sm:$0xff]
        %v5035 = vld [vmem:[%s4440 + $0xce8] sm:$0xff]
        %v5036 = vld [vmem:[%s4440 + $0xcf0] sm:$0xff]
        %v5037 = vld [vmem:[%s4440 + $0xcf8] sm:$0xff]
        %v5038 = vld [vmem:[%s4440 + $0xd00] sm:$0xff]
        %v5039 = vld [vmem:[%s4440 + $0xd08] sm:$0xff]
        %v5040 = vld [vmem:[%s4440 + $0xd10] sm:$0xff]
        %v5041 = vld [vmem:[%s4440 + $0xd18] sm:$0xff]
        %v5042 = vld [vmem:[%s4440 + $0xd20] sm:$0xff]
        %v5043 = vld [vmem:[%s4440 + $0xd28] sm:$0xff]
        %v5044 = vld [vmem:[%s4440 + $0xd30] sm:$0xff]
        %v5045 = vld [vmem:[%s4440 + $0xd38] sm:$0xff]
        %v5046 = vld [vmem:[%s4440 + $0xd40] sm:$0xff]
        %v5047 = vld [vmem:[%s4440 + $0xd48] sm:$0xff]
        %v5048 = vld [vmem:[%s4440 + $0xd50] sm:$0xff]
        %v5049 = vld [vmem:[%s4440 + $0xd58] sm:$0xff]
        %v5050 = vld [vmem:[%s4440 + $0xd60] sm:$0xff]
        %v5051 = vld [vmem:[%s4440 + $0xd68] sm:$0xff]
        %v5052 = vld [vmem:[%s4440 + $0xd70] sm:$0xff]
        %v5053 = vld [vmem:[%s4440 + $0xd78] sm:$0xff]
        %v5054 = vld [vmem:[%s4440 + $0xd80] sm:$0xff]
        %v5055 = vld [vmem:[%s4440 + $0xd88] sm:$0xff]
        %v5056 = vld [vmem:[%s4440 + $0xd90] sm:$0xff]
        %v5057 = vld [vmem:[%s4440 + $0xd98] sm:$0xff]
        %v5058 = vld [vmem:[%s4440 + $0xda0] sm:$0xff]
        %v5059 = vld [vmem:[%s4440 + $0xda8] sm:$0xff]
        %v5060 = vld [vmem:[%s4440 + $0xdb0] sm:$0xff]
        %v5061 = vld [vmem:[%s4440 + $0xdb8] sm:$0xff]
        %v5062 = vld [vmem:[%s4440 + $0xdc0] sm:$0xff]
        %v5063 = vld [vmem:[%s4440 + $0xdc8] sm:$0xff]
        %v5064 = vld [vmem:[%s4440 + $0xdd0] sm:$0xff]
        %v5065 = vld [vmem:[%s4440 + $0xdd8] sm:$0xff]
        %v5066 = vld [vmem:[%s4440 + $0xde0] sm:$0xff]
        %v5067 = vld [vmem:[%s4440 + $0xde8] sm:$0xff]
        %v5068 = vld [vmem:[%s4440 + $0xdf0] sm:$0xff]
        %v5069 = vld [vmem:[%s4440 + $0xdf8] sm:$0xff]
        %v5070 = vld [vmem:[%s4440 + $0xe00] sm:$0xff]
        %v5071 = vld [vmem:[%s4440 + $0xe08] sm:$0xff]
        %v5072 = vld [vmem:[%s4440 + $0xe10] sm:$0xff]
        %v5073 = vld [vmem:[%s4440 + $0xe18] sm:$0xff]
        %v5074 = vld [vmem:[%s4440 + $0xe20] sm:$0xff]
        %v5075 = vld [vmem:[%s4440 + $0xe28] sm:$0xff]
        %v5076 = vld [vmem:[%s4440 + $0xe30] sm:$0xff]
        %v5077 = vld [vmem:[%s4440 + $0xe38] sm:$0xff]
        %v5078 = vld [vmem:[%s4440 + $0xe40] sm:$0xff]
        %v5079 = vld [vmem:[%s4440 + $0xe48] sm:$0xff]
        %v5080 = vld [vmem:[%s4440 + $0xe50] sm:$0xff]
        %v5081 = vld [vmem:[%s4440 + $0xe58] sm:$0xff]
        %v5082 = vld [vmem:[%s4440 + $0xe60] sm:$0xff]
        %v5083 = vld [vmem:[%s4440 + $0xe68] sm:$0xff]
        %v5084 = vld [vmem:[%s4440 + $0xe70] sm:$0xff]
        %v5085 = vld [vmem:[%s4440 + $0xe78] sm:$0xff]
        %v5086 = vld [vmem:[%s4440 + $0xe80] sm:$0xff]
        %v5087 = vld [vmem:[%s4440 + $0xe88] sm:$0xff]
        %v5088 = vld [vmem:[%s4440 + $0xe90] sm:$0xff]
        %v5089 = vld [vmem:[%s4440 + $0xe98] sm:$0xff]
        %v5090 = vld [vmem:[%s4440 + $0xea0] sm:$0xff]
        %v5091 = vld [vmem:[%s4440 + $0xea8] sm:$0xff]
        %v5092 = vld [vmem:[%s4440 + $0xeb0] sm:$0xff]
        %v5093 = vld [vmem:[%s4440 + $0xeb8] sm:$0xff]
        %v5094 = vld [vmem:[%s4440 + $0xec0] sm:$0xff]
        %v5095 = vld [vmem:[%s4440 + $0xec8] sm:$0xff]
        %v5096 = vld [vmem:[%s4440 + $0xed0] sm:$0xff]
        %v5097 = vld [vmem:[%s4440 + $0xed8] sm:$0xff]
        %v5098 = vld [vmem:[%s4440 + $0xee0] sm:$0xff]
        %v5099 = vld [vmem:[%s4440 + $0xee8] sm:$0xff]
        %v5100 = vld [vmem:[%s4440 + $0xef0] sm:$0xff]
        %v5101 = vld [vmem:[%s4440 + $0xef8] sm:$0xff]
        %v5102 = vld [vmem:[%s4440 + $0xf00] sm:$0xff]
        %v5103 = vld [vmem:[%s4440 + $0xf08] sm:$0xff]
        %v5104 = vld [vmem:[%s4440 + $0xf10] sm:$0xff]
        %v5105 = vld [vmem:[%s4440 + $0xf18] sm:$0xff]
        %v5106 = vld [vmem:[%s4440 + $0xf20] sm:$0xff]
        %v5107 = vld [vmem:[%s4440 + $0xf28] sm:$0xff]
        %v5108 = vld [vmem:[%s4440 + $0xf30] sm:$0xff]
        %v5109 = vld [vmem:[%s4440 + $0xf38] sm:$0xff]
        %v5110 = vld [vmem:[%s4440 + $0xf40] sm:$0xff]
        %v5111 = vld [vmem:[%s4440 + $0xf48] sm:$0xff]
        %v5112 = vld [vmem:[%s4440 + $0xf50] sm:$0xff]
        %v5113 = vld [vmem:[%s4440 + $0xf58] sm:$0xff]
        %v5114 = vld [vmem:[%s4440 + $0xf60] sm:$0xff]
        %v5115 = vld [vmem:[%s4440 + $0xf68] sm:$0xff]
        %v5116 = vld [vmem:[%s4440 + $0xf70] sm:$0xff]
        %v5117 = vld [vmem:[%s4440 + $0xf78] sm:$0xff]
        %v5118 = vld [vmem:[%s4440 + $0xf80] sm:$0xff]
        %v5119 = vld [vmem:[%s4440 + $0xf88] sm:$0xff]
        %v5120 = vld [vmem:[%s4440 + $0xf90] sm:$0xff]
        %v5121 = vld [vmem:[%s4440 + $0xf98] sm:$0xff]
        %v5122 = vld [vmem:[%s4440 + $0xfa0] sm:$0xff]
        %v5123 = vld [vmem:[%s4440 + $0xfa8] sm:$0xff]
        %v5124 = vld [vmem:[%s4440 + $0xfb0] sm:$0xff]
        %v5125 = vld [vmem:[%s4440 + $0xfb8] sm:$0xff]
        %v5126 = vld [vmem:[%s4440 + $0xfc0] sm:$0xff]
        %v5127 = vld [vmem:[%s4440 + $0xfc8] sm:$0xff]
        %v5128 = vld [vmem:[%s4440 + $0xfd0] sm:$0xff]
        %v5129 = vld [vmem:[%s4440 + $0xfd8] sm:$0xff]
        %v5130 = vld [vmem:[%s4440 + $0xfe0] sm:$0xff]
        %v5131 = vld [vmem:[%s4440 + $0xfe8] sm:$0xff]
        %v5132 = vld [vmem:[%s4440 + $0xff0] sm:$0xff]
        %v5133 = vld [vmem:[%s4440 + $0xff8] sm:$0xff]
        %v5134 = vld [vmem:[%s4440 + $0x1000] sm:$0xff]
        %v5135 = vld [vmem:[%s4440 + $0x1008] sm:$0xff]
        %v5136 = vld [vmem:[%s4440 + $0x1010] sm:$0xff]
        %v5137 = vld [vmem:[%s4440 + $0x1018] sm:$0xff]
        %v5138 = vld [vmem:[%s4440 + $0x1020] sm:$0xff]
        %v5139 = vld [vmem:[%s4440 + $0x1028] sm:$0xff]
        %v5140 = vld [vmem:[%s4440 + $0x1030] sm:$0xff]
        %v5141 = vld [vmem:[%s4440 + $0x1038] sm:$0xff]
        %v5142 = vld [vmem:[%s4440 + $0x1040] sm:$0xff]
        %v5143 = vld [vmem:[%s4440 + $0x1048] sm:$0xff]
        %v5144 = vld [vmem:[%s4440 + $0x1050] sm:$0xff]
        %v5145 = vld [vmem:[%s4440 + $0x1058] sm:$0xff]
        %v5146 = vld [vmem:[%s4440 + $0x1060] sm:$0xff]
        %v5147 = vld [vmem:[%s4440 + $0x1068] sm:$0xff]
        %v5148 = vld [vmem:[%s4440 + $0x1070] sm:$0xff]
        %v5149 = vld [vmem:[%s4440 + $0x1078] sm:$0xff]
        %v5286 = vunpack.c.l.b16 %v4486
        %v5287 = vunpack.c.h.b16 %v4486
        %v5288 = vunpack.c.l.b16 %v4487
        %v5289 = vunpack.c.h.b16 %v4487
        %v5290 = vunpack.c.l.b16 %v4488
        %v5291 = vunpack.c.h.b16 %v4488
        %v5292 = vunpack.c.l.b16 %v4489
        %v5293 = vunpack.c.h.b16 %v4489
        %v5294 = vunpack.c.l.b16 %v4490
        %v5295 = vunpack.c.h.b16 %v4490
        %v5296 = vunpack.c.l.b16 %v4491
        %v5297 = vunpack.c.h.b16 %v4491
        %v5298 = vunpack.c.l.b16 %v4492
        %v5299 = vunpack.c.h.b16 %v4492
        %v5300 = vunpack.c.l.b16 %v4493
        %v5301 = vunpack.c.h.b16 %v4493
        %v5302 = vunpack.c.l.b16 %v4494
        %v5303 = vunpack.c.h.b16 %v4494
        %v5304 = vunpack.c.l.b16 %v4495
        %v5305 = vunpack.c.h.b16 %v4495
        %v5306 = vunpack.c.l.b16 %v4496
        %v5307 = vunpack.c.h.b16 %v4496
        %v5308 = vunpack.c.l.b16 %v4497
        %v5309 = vunpack.c.h.b16 %v4497
        %v5310 = vunpack.c.l.b16 %v4498
        %v5311 = vunpack.c.h.b16 %v4498
        %v5312 = vunpack.c.l.b16 %v4499
        %v5313 = vunpack.c.h.b16 %v4499
        %v5314 = vunpack.c.l.b16 %v4500
        %v5315 = vunpack.c.h.b16 %v4500
        %v5316 = vunpack.c.l.b16 %v4501
        %v5317 = vunpack.c.h.b16 %v4501
        %v5318 = vunpack.c.l.b16 %v4502
        %v5319 = vunpack.c.l.b16 %v4503
        %v5320 = vunpack.c.h.b16 %v4503
        %v5321 = vunpack.c.l.b16 %v4504
        %v5322 = vunpack.c.h.b16 %v4504
        %v5323 = vunpack.c.l.b16 %v4505
        %v5324 = vunpack.c.h.b16 %v4505
        %v5325 = vunpack.c.l.b16 %v4506
        %v5326 = vunpack.c.h.b16 %v4506
        %v5327 = vunpack.c.l.b16 %v4507
        %v5328 = vunpack.c.h.b16 %v4507
        %v5329 = vunpack.c.l.b16 %v4508
        %v5330 = vunpack.c.h.b16 %v4508
        %v5331 = vunpack.c.l.b16 %v4509
        %v5332 = vunpack.c.h.b16 %v4509
        %v5333 = vunpack.c.l.b16 %v4510
        %v5334 = vunpack.c.h.b16 %v4510
        %v5335 = vunpack.c.l.b16 %v4511
        %v5336 = vunpack.c.h.b16 %v4511
        %v5337 = vunpack.c.l.b16 %v4512
        %v5338 = vunpack.c.h.b16 %v4512
        %v5339 = vunpack.c.l.b16 %v4513
        %v5340 = vunpack.c.h.b16 %v4513
        %v5341 = vunpack.c.l.b16 %v4514
        %v5342 = vunpack.c.h.b16 %v4514
        %v5343 = vunpack.c.l.b16 %v4515
        %v5344 = vunpack.c.h.b16 %v4515
        %v5345 = vunpack.c.l.b16 %v4516
        %v5346 = vunpack.c.h.b16 %v4516
        %v5347 = vunpack.c.l.b16 %v4517
        %v5348 = vunpack.c.h.b16 %v4517
        %v5349 = vunpack.c.l.b16 %v4518
        %v5350 = vunpack.c.h.b16 %v4518
        %v5351 = vunpack.c.l.b16 %v4519
        %v5352 = vunpack.c.l.b16 %v4520
        %v5353 = vunpack.c.h.b16 %v4520
        %v5354 = vunpack.c.l.b16 %v4521
        %v5355 = vunpack.c.h.b16 %v4521
        %v5356 = vunpack.c.l.b16 %v4522
        %v5357 = vunpack.c.h.b16 %v4522
        %v5358 = vunpack.c.l.b16 %v4523
        %v5359 = vunpack.c.h.b16 %v4523
        %v5360 = vunpack.c.l.b16 %v4524
        %v5361 = vunpack.c.h.b16 %v4524
        %v5362 = vunpack.c.l.b16 %v4525
        %v5363 = vunpack.c.h.b16 %v4525
        %v5364 = vunpack.c.l.b16 %v4526
        %v5365 = vunpack.c.h.b16 %v4526
        %v5366 = vunpack.c.l.b16 %v4527
        %v5367 = vunpack.c.h.b16 %v4527
        %v5368 = vunpack.c.l.b16 %v4528
        %v5369 = vunpack.c.h.b16 %v4528
        %v5370 = vunpack.c.l.b16 %v4529
        %v5371 = vunpack.c.h.b16 %v4529
        %v5372 = vunpack.c.l.b16 %v4530
        %v5373 = vunpack.c.h.b16 %v4530
        %v5374 = vunpack.c.l.b16 %v4531
        %v5375 = vunpack.c.h.b16 %v4531
        %v5376 = vunpack.c.l.b16 %v4532
        %v5377 = vunpack.c.h.b16 %v4532
        %v5378 = vunpack.c.l.b16 %v4533
        %v5379 = vunpack.c.h.b16 %v4533
        %v5380 = vunpack.c.l.b16 %v4534
        %v5381 = vunpack.c.h.b16 %v4534
        %v5382 = vunpack.c.l.b16 %v4535
        %v5383 = vunpack.c.h.b16 %v4535
        %v5384 = vunpack.c.l.b16 %v4536
        %v5385 = vunpack.c.l.b16 %v4537
        %v5386 = vunpack.c.h.b16 %v4537
        %v5387 = vunpack.c.l.b16 %v4538
        %v5388 = vunpack.c.h.b16 %v4538
        %v5389 = vunpack.c.l.b16 %v4539
        %v5390 = vunpack.c.h.b16 %v4539
        %v5391 = vunpack.c.l.b16 %v4540
        %v5392 = vunpack.c.h.b16 %v4540
        %v5393 = vunpack.c.l.b16 %v4541
        %v5394 = vunpack.c.h.b16 %v4541
        %v5395 = vunpack.c.l.b16 %v4542
        %v5396 = vunpack.c.h.b16 %v4542
        %v5397 = vunpack.c.l.b16 %v4543
        %v5398 = vunpack.c.h.b16 %v4543
        %v5399 = vunpack.c.l.b16 %v4544
        %v5400 = vunpack.c.h.b16 %v4544
        %v5401 = vunpack.c.l.b16 %v4545
        %v5402 = vunpack.c.h.b16 %v4545
        %v5403 = vunpack.c.l.b16 %v4546
        %v5404 = vunpack.c.h.b16 %v4546
        %v5405 = vunpack.c.l.b16 %v4547
        %v5406 = vunpack.c.h.b16 %v4547
        %v5407 = vunpack.c.l.b16 %v4548
        %v5408 = vunpack.c.h.b16 %v4548
        %v5409 = vunpack.c.l.b16 %v4549
        %v5410 = vunpack.c.h.b16 %v4549
        %v5411 = vunpack.c.l.b16 %v4550
        %v5412 = vunpack.c.h.b16 %v4550
        %v5413 = vunpack.c.l.b16 %v4551
        %v5414 = vunpack.c.h.b16 %v4551
        %v5415 = vunpack.c.l.b16 %v4552
        %v5416 = vunpack.c.h.b16 %v4552
        %v5417 = vunpack.c.l.b16 %v4553
        %v5418 = vunpack.c.l.b16 %v4554
        %v5419 = vunpack.c.h.b16 %v4554
        %v5420 = vunpack.c.l.b16 %v4555
        %v5421 = vunpack.c.h.b16 %v4555
        %v5422 = vunpack.c.l.b16 %v4556
        %v5423 = vunpack.c.h.b16 %v4556
        %v5424 = vunpack.c.l.b16 %v4557
        %v5425 = vunpack.c.h.b16 %v4557
        %v5426 = vunpack.c.l.b16 %v4558
        %v5427 = vunpack.c.h.b16 %v4558
        %v5428 = vunpack.c.l.b16 %v4559
        %v5429 = vunpack.c.h.b16 %v4559
        %v5430 = vunpack.c.l.b16 %v4560
        %v5431 = vunpack.c.h.b16 %v4560
        %v5432 = vunpack.c.l.b16 %v4561
        %v5433 = vunpack.c.h.b16 %v4561
        %v5434 = vunpack.c.l.b16 %v4562
        %v5435 = vunpack.c.h.b16 %v4562
        %v5436 = vunpack.c.l.b16 %v4563
        %v5437 = vunpack.c.h.b16 %v4563
        %v5438 = vunpack.c.l.b16 %v4564
        %v5439 = vunpack.c.h.b16 %v4564
        %v5440 = vunpack.c.l.b16 %v4565
        %v5441 = vunpack.c.h.b16 %v4565
        %v5442 = vunpack.c.l.b16 %v4566
        %v5443 = vunpack.c.h.b16 %v4566
        %v5444 = vunpack.c.l.b16 %v4567
        %v5445 = vunpack.c.h.b16 %v4567
        %v5446 = vunpack.c.l.b16 %v4568
        %v5447 = vunpack.c.h.b16 %v4568
        %v5448 = vunpack.c.l.b16 %v4569
        %v5449 = vunpack.c.h.b16 %v4569
        %v5450 = vunpack.c.l.b16 %v4570
        %v5451 = vunpack.c.l.b16 %v4571
        %v5452 = vunpack.c.h.b16 %v4571
        %v5453 = vunpack.c.l.b16 %v4572
        %v5454 = vunpack.c.h.b16 %v4572
        %v5455 = vunpack.c.l.b16 %v4573
        %v5456 = vunpack.c.h.b16 %v4573
        %v5457 = vunpack.c.l.b16 %v4574
        %v5458 = vunpack.c.h.b16 %v4574
        %v5459 = vunpack.c.l.b16 %v4575
        %v5460 = vunpack.c.h.b16 %v4575
        %v5461 = vunpack.c.l.b16 %v4576
        %v5462 = vunpack.c.h.b16 %v4576
        %v5463 = vunpack.c.l.b16 %v4577
        %v5464 = vunpack.c.h.b16 %v4577
        %v5465 = vunpack.c.l.b16 %v4578
        %v5466 = vunpack.c.h.b16 %v4578
        %v5467 = vunpack.c.l.b16 %v4579
        %v5468 = vunpack.c.h.b16 %v4579
        %v5469 = vunpack.c.l.b16 %v4580
        %v5470 = vunpack.c.h.b16 %v4580
        %v5471 = vunpack.c.l.b16 %v4581
        %v5472 = vunpack.c.h.b16 %v4581
        %v5473 = vunpack.c.l.b16 %v4582
        %v5474 = vunpack.c.h.b16 %v4582
        %v5475 = vunpack.c.l.b16 %v4583
        %v5476 = vunpack.c.h.b16 %v4583
        %v5477 = vunpack.c.l.b16 %v4584
        %v5478 = vunpack.c.h.b16 %v4584
        %v5479 = vunpack.c.l.b16 %v4585
        %v5480 = vunpack.c.h.b16 %v4585
        %v5481 = vunpack.c.l.b16 %v4586
        %v5482 = vunpack.c.h.b16 %v4586
        %v5483 = vunpack.c.l.b16 %v4587
        %v5484 = vunpack.c.l.b16 %v4588
        %v5485 = vunpack.c.h.b16 %v4588
        %v5486 = vunpack.c.l.b16 %v4589
        %v5487 = vunpack.c.h.b16 %v4589
        %v5488 = vunpack.c.l.b16 %v4590
        %v5489 = vunpack.c.h.b16 %v4590
        %v5490 = vunpack.c.l.b16 %v4591
        %v5491 = vunpack.c.h.b16 %v4591
        %v5492 = vunpack.c.l.b16 %v4592
        %v5493 = vunpack.c.h.b16 %v4592
        %v5494 = vunpack.c.l.b16 %v4593
        %v5495 = vunpack.c.h.b16 %v4593
        %v5496 = vunpack.c.l.b16 %v4594
        %v5497 = vunpack.c.h.b16 %v4594
        %v5498 = vunpack.c.l.b16 %v4595
        %v5499 = vunpack.c.h.b16 %v4595
        %v5500 = vunpack.c.l.b16 %v4596
        %v5501 = vunpack.c.h.b16 %v4596
        %v5502 = vunpack.c.l.b16 %v4597
        %v5503 = vunpack.c.h.b16 %v4597
        %v5504 = vunpack.c.l.b16 %v4598
        %v5505 = vunpack.c.h.b16 %v4598
        %v5506 = vunpack.c.l.b16 %v4599
        %v5507 = vunpack.c.h.b16 %v4599
        %v5508 = vunpack.c.l.b16 %v4600
        %v5509 = vunpack.c.h.b16 %v4600
        %v5510 = vunpack.c.l.b16 %v4601
        %v5511 = vunpack.c.h.b16 %v4601
        %v5512 = vunpack.c.l.b16 %v4602
        %v5513 = vunpack.c.h.b16 %v4602
        %v5514 = vunpack.c.l.b16 %v4603
        %v5515 = vunpack.c.h.b16 %v4603
        %v5516 = vunpack.c.l.b16 %v4604
        %v5517 = vunpack.c.l.b16 %v4605
        %v5518 = vunpack.c.h.b16 %v4605
        %v5519 = vunpack.c.l.b16 %v4606
        %v5520 = vunpack.c.h.b16 %v4606
        %v5521 = vunpack.c.l.b16 %v4607
        %v5522 = vunpack.c.h.b16 %v4607
        %v5523 = vunpack.c.l.b16 %v4608
        %v5524 = vunpack.c.h.b16 %v4608
        %v5525 = vunpack.c.l.b16 %v4609
        %v5526 = vunpack.c.h.b16 %v4609
        %v5527 = vunpack.c.l.b16 %v4610
        %v5528 = vunpack.c.h.b16 %v4610
        %v5529 = vunpack.c.l.b16 %v4611
        %v5530 = vunpack.c.h.b16 %v4611
        %v5531 = vunpack.c.l.b16 %v4612
        %v5532 = vunpack.c.h.b16 %v4612
        %v5533 = vunpack.c.l.b16 %v4613
        %v5534 = vunpack.c.h.b16 %v4613
        %v5535 = vunpack.c.l.b16 %v4614
        %v5536 = vunpack.c.h.b16 %v4614
        %v5537 = vunpack.c.l.b16 %v4615
        %v5538 = vunpack.c.h.b16 %v4615
        %v5539 = vunpack.c.l.b16 %v4616
        %v5540 = vunpack.c.h.b16 %v4616
        %v5541 = vunpack.c.l.b16 %v4617
        %v5542 = vunpack.c.h.b16 %v4617
        %v5543 = vunpack.c.l.b16 %v4618
        %v5544 = vunpack.c.h.b16 %v4618
        %v5545 = vunpack.c.l.b16 %v4619
        %v5546 = vunpack.c.h.b16 %v4619
        %v5547 = vunpack.c.l.b16 %v4620
        %v5548 = vunpack.c.h.b16 %v4620
        %v5549 = vunpack.c.l.b16 %v4621
        %v5550 = vpack.c.b16 %v5319, %v5286
        %v5551 = vpack.c.b16 %v5320, %v5287
        %v5552 = vpack.c.b16 %v5321, %v5288
        %v5553 = vpack.c.b16 %v5322, %v5289
        %v5554 = vpack.c.b16 %v5323, %v5290
        %v5555 = vpack.c.b16 %v5324, %v5291
        %v5556 = vpack.c.b16 %v5325, %v5292
        %v5557 = vpack.c.b16 %v5326, %v5293
        %v5558 = vpack.c.b16 %v5327, %v5294
        %v5559 = vpack.c.b16 %v5328, %v5295
        %v5560 = vpack.c.b16 %v5329, %v5296
        %v5561 = vpack.c.b16 %v5330, %v5297
        %v5562 = vpack.c.b16 %v5331, %v5298
        %v5563 = vpack.c.b16 %v5332, %v5299
        %v5564 = vpack.c.b16 %v5333, %v5300
        %v5565 = vpack.c.b16 %v5334, %v5301
        %v5566 = vpack.c.b16 %v5335, %v5302
        %v5567 = vpack.c.b16 %v5336, %v5303
        %v5568 = vpack.c.b16 %v5337, %v5304
        %v5569 = vpack.c.b16 %v5338, %v5305
        %v5570 = vpack.c.b16 %v5339, %v5306
        %v5571 = vpack.c.b16 %v5340, %v5307
        %v5572 = vpack.c.b16 %v5341, %v5308
        %v5573 = vpack.c.b16 %v5342, %v5309
        %v5574 = vpack.c.b16 %v5343, %v5310
        %v5575 = vpack.c.b16 %v5344, %v5311
        %v5576 = vpack.c.b16 %v5345, %v5312
        %v5577 = vpack.c.b16 %v5346, %v5313
        %v5578 = vpack.c.b16 %v5347, %v5314
        %v5579 = vpack.c.b16 %v5348, %v5315
        %v5580 = vpack.c.b16 %v5349, %v5316
        %v5581 = vpack.c.b16 %v5350, %v5317
        %v5582 = vpack.c.b16 %v5351, %v5318
        %v5583 = vpack.c.b16 %v5385, %v5352
        %v5584 = vpack.c.b16 %v5386, %v5353
        %v5585 = vpack.c.b16 %v5387, %v5354
        %v5586 = vpack.c.b16 %v5388, %v5355
        %v5587 = vpack.c.b16 %v5389, %v5356
        %v5588 = vpack.c.b16 %v5390, %v5357
        %v5589 = vpack.c.b16 %v5391, %v5358
        %v5590 = vpack.c.b16 %v5392, %v5359
        %v5591 = vpack.c.b16 %v5393, %v5360
        %v5592 = vpack.c.b16 %v5394, %v5361
        %v5593 = vpack.c.b16 %v5395, %v5362
        %v5594 = vpack.c.b16 %v5396, %v5363
        %v5595 = vpack.c.b16 %v5397, %v5364
        %v5596 = vpack.c.b16 %v5398, %v5365
        %v5597 = vpack.c.b16 %v5399, %v5366
        %v5598 = vpack.c.b16 %v5400, %v5367
        %v5599 = vpack.c.b16 %v5401, %v5368
        %v5600 = vpack.c.b16 %v5402, %v5369
        %v5601 = vpack.c.b16 %v5403, %v5370
        %v5602 = vpack.c.b16 %v5404, %v5371
        %v5603 = vpack.c.b16 %v5405, %v5372
        %v5604 = vpack.c.b16 %v5406, %v5373
        %v5605 = vpack.c.b16 %v5407, %v5374
        %v5606 = vpack.c.b16 %v5408, %v5375
        %v5607 = vpack.c.b16 %v5409, %v5376
        %v5608 = vpack.c.b16 %v5410, %v5377
        %v5609 = vpack.c.b16 %v5411, %v5378
        %v5610 = vpack.c.b16 %v5412, %v5379
        %v5611 = vpack.c.b16 %v5413, %v5380
        %v5612 = vpack.c.b16 %v5414, %v5381
        %v5613 = vpack.c.b16 %v5415, %v5382
        %v5614 = vpack.c.b16 %v5416, %v5383
        %v5615 = vpack.c.b16 %v5417, %v5384
        %v5616 = vpack.c.b16 %v5451, %v5418
        %v5617 = vpack.c.b16 %v5452, %v5419
        %v5618 = vpack.c.b16 %v5453, %v5420
        %v5619 = vpack.c.b16 %v5454, %v5421
        %v5620 = vpack.c.b16 %v5455, %v5422
        %v5621 = vpack.c.b16 %v5456, %v5423
        %v5622 = vpack.c.b16 %v5457, %v5424
        %v5623 = vpack.c.b16 %v5458, %v5425
        %v5624 = vpack.c.b16 %v5459, %v5426
        %v5625 = vpack.c.b16 %v5460, %v5427
        %v5626 = vpack.c.b16 %v5461, %v5428
        %v5627 = vpack.c.b16 %v5462, %v5429
        %v5628 = vpack.c.b16 %v5463, %v5430
        %v5629 = vpack.c.b16 %v5464, %v5431
        %v5630 = vpack.c.b16 %v5465, %v5432
        %v5631 = vpack.c.b16 %v5466, %v5433
        %v5632 = vpack.c.b16 %v5467, %v5434
        %v5633 = vpack.c.b16 %v5468, %v5435
        %v5634 = vpack.c.b16 %v5469, %v5436
        %v5635 = vpack.c.b16 %v5470, %v5437
        %v5636 = vpack.c.b16 %v5471, %v5438
        %v5637 = vpack.c.b16 %v5472, %v5439
        %v5638 = vpack.c.b16 %v5473, %v5440
        %v5639 = vpack.c.b16 %v5474, %v5441
        %v5640 = vpack.c.b16 %v5475, %v5442
        %v5641 = vpack.c.b16 %v5476, %v5443
        %v5642 = vpack.c.b16 %v5477, %v5444
        %v5643 = vpack.c.b16 %v5478, %v5445
        %v5644 = vpack.c.b16 %v5479, %v5446
        %v5645 = vpack.c.b16 %v5480, %v5447
        %v5646 = vpack.c.b16 %v5481, %v5448
        %v5647 = vpack.c.b16 %v5482, %v5449
        %v5648 = vpack.c.b16 %v5483, %v5450
        %v5649 = vpack.c.b16 %v5517, %v5484
        %v5650 = vpack.c.b16 %v5518, %v5485
        %v5651 = vpack.c.b16 %v5519, %v5486
        %v5652 = vpack.c.b16 %v5520, %v5487
        %v5653 = vpack.c.b16 %v5521, %v5488
        %v5654 = vpack.c.b16 %v5522, %v5489
        %v5655 = vpack.c.b16 %v5523, %v5490
        %v5656 = vpack.c.b16 %v5524, %v5491
        %v5657 = vpack.c.b16 %v5525, %v5492
        %v5658 = vpack.c.b16 %v5526, %v5493
        %v5659 = vpack.c.b16 %v5527, %v5494
        %v5660 = vpack.c.b16 %v5528, %v5495
        %v5661 = vpack.c.b16 %v5529, %v5496
        %v5662 = vpack.c.b16 %v5530, %v5497
        %v5663 = vpack.c.b16 %v5531, %v5498
        %v5664 = vpack.c.b16 %v5532, %v5499
        %v5665 = vpack.c.b16 %v5533, %v5500
        %v5666 = vpack.c.b16 %v5534, %v5501
        %v5667 = vpack.c.b16 %v5535, %v5502
        %v5668 = vpack.c.b16 %v5536, %v5503
        %v5669 = vpack.c.b16 %v5537, %v5504
        %v5670 = vpack.c.b16 %v5538, %v5505
        %v5671 = vpack.c.b16 %v5539, %v5506
        %v5672 = vpack.c.b16 %v5540, %v5507
        %v5673 = vpack.c.b16 %v5541, %v5508
        %v5674 = vpack.c.b16 %v5542, %v5509
        %v5675 = vpack.c.b16 %v5543, %v5510
        %v5676 = vpack.c.b16 %v5544, %v5511
        %v5677 = vpack.c.b16 %v5545, %v5512
        %v5678 = vpack.c.b16 %v5546, %v5513
        %v5679 = vpack.c.b16 %v5547, %v5514
        %v5680 = vpack.c.b16 %v5548, %v5515
        %v5681 = vpack.c.b16 %v5549, %v5516
        %v6342 = vunpack.c.l.b16 %v4622
        %v6343 = vunpack.c.h.b16 %v4622
        %v6344 = vunpack.c.l.b16 %v4623
        %v6345 = vunpack.c.h.b16 %v4623
        %v6346 = vunpack.c.l.b16 %v4624
        %v6347 = vunpack.c.h.b16 %v4624
        %v6348 = vunpack.c.l.b16 %v4625
        %v6349 = vunpack.c.h.b16 %v4625
        %v6350 = vunpack.c.l.b16 %v4626
        %v6351 = vunpack.c.h.b16 %v4626
        %v6352 = vunpack.c.l.b16 %v4627
        %v6353 = vunpack.c.h.b16 %v4627
        %v6354 = vunpack.c.l.b16 %v4628
        %v6355 = vunpack.c.h.b16 %v4628
        %v6356 = vunpack.c.l.b16 %v4629
        %v6357 = vunpack.c.h.b16 %v4629
        %v6358 = vunpack.c.l.b16 %v4630
        %v6359 = vunpack.c.h.b16 %v4630
        %v6360 = vunpack.c.l.b16 %v4631
        %v6361 = vunpack.c.h.b16 %v4631
        %v6362 = vunpack.c.l.b16 %v4632
        %v6363 = vunpack.c.h.b16 %v4632
        %v6364 = vunpack.c.l.b16 %v4633
        %v6365 = vunpack.c.h.b16 %v4633
        %v6366 = vunpack.c.l.b16 %v4634
        %v6367 = vunpack.c.h.b16 %v4634
        %v6368 = vunpack.c.l.b16 %v4635
        %v6369 = vunpack.c.h.b16 %v4635
        %v6370 = vunpack.c.l.b16 %v4636
        %v6371 = vunpack.c.h.b16 %v4636
        %v6372 = vunpack.c.l.b16 %v4637
        %v6373 = vunpack.c.h.b16 %v4637
        %v6374 = vunpack.c.l.b16 %v4638
        %v6375 = vunpack.c.h.b16 %v4638
        %v6376 = vunpack.c.l.b16 %v4639
        %v6377 = vunpack.c.h.b16 %v4639
        %v6378 = vunpack.c.l.b16 %v4640
        %v6379 = vunpack.c.h.b16 %v4640
        %v6380 = vunpack.c.l.b16 %v4641
        %v6381 = vunpack.c.h.b16 %v4641
        %v6382 = vunpack.c.l.b16 %v4642
        %v6383 = vunpack.c.h.b16 %v4642
        %v6384 = vunpack.c.l.b16 %v4643
        %v6385 = vunpack.c.h.b16 %v4643
        %v6386 = vunpack.c.l.b16 %v4644
        %v6387 = vunpack.c.h.b16 %v4644
        %v6388 = vunpack.c.l.b16 %v4645
        %v6389 = vunpack.c.h.b16 %v4645
        %v6390 = vunpack.c.l.b16 %v4646
        %v6391 = vunpack.c.h.b16 %v4646
        %v6392 = vunpack.c.l.b16 %v4647
        %v6393 = vunpack.c.h.b16 %v4647
        %v6394 = vunpack.c.l.b16 %v4648
        %v6395 = vunpack.c.h.b16 %v4648
        %v6396 = vunpack.c.l.b16 %v4649
        %v6397 = vunpack.c.h.b16 %v4649
        %v6398 = vunpack.c.l.b16 %v4650
        %v6399 = vunpack.c.h.b16 %v4650
        %v6400 = vunpack.c.l.b16 %v4651
        %v6401 = vunpack.c.h.b16 %v4651
        %v6402 = vunpack.c.l.b16 %v4652
        %v6403 = vunpack.c.h.b16 %v4652
        %v6404 = vunpack.c.l.b16 %v4653
        %v6405 = vunpack.c.h.b16 %v4653
        %v6406 = vunpack.c.l.b16 %v4654
        %v6407 = vunpack.c.h.b16 %v4654
        %v6408 = vunpack.c.l.b16 %v4655
        %v6409 = vunpack.c.h.b16 %v4655
        %v6410 = vunpack.c.l.b16 %v4656
        %v6411 = vunpack.c.h.b16 %v4656
        %v6412 = vunpack.c.l.b16 %v4657
        %v6413 = vunpack.c.h.b16 %v4657
        %v6414 = vunpack.c.l.b16 %v4658
        %v6415 = vunpack.c.h.b16 %v4658
        %v6416 = vunpack.c.l.b16 %v4659
        %v6417 = vunpack.c.h.b16 %v4659
        %v6418 = vunpack.c.l.b16 %v4660
        %v6419 = vunpack.c.h.b16 %v4660
        %v6420 = vunpack.c.l.b16 %v4661
        %v6421 = vunpack.c.h.b16 %v4661
        %v6422 = vunpack.c.l.b16 %v4662
        %v6423 = vunpack.c.h.b16 %v4662
        %v6424 = vunpack.c.l.b16 %v4663
        %v6425 = vunpack.c.h.b16 %v4663
        %v6426 = vunpack.c.l.b16 %v4664
        %v6427 = vunpack.c.h.b16 %v4664
        %v6428 = vunpack.c.l.b16 %v4665
        %v6429 = vunpack.c.h.b16 %v4665
        %v6430 = vunpack.c.l.b16 %v4666
        %v6431 = vunpack.c.h.b16 %v4666
        %v6432 = vunpack.c.l.b16 %v4667
        %v6433 = vunpack.c.h.b16 %v4667
        %v6434 = vunpack.c.l.b16 %v4668
        %v6435 = vunpack.c.h.b16 %v4668
        %v6436 = vunpack.c.l.b16 %v4669
        %v6437 = vunpack.c.h.b16 %v4669
        %v6438 = vunpack.c.l.b16 %v4670
        %v6439 = vunpack.c.h.b16 %v4670
        %v6440 = vunpack.c.l.b16 %v4671
        %v6441 = vunpack.c.h.b16 %v4671
        %v6442 = vunpack.c.l.b16 %v4672
        %v6443 = vunpack.c.h.b16 %v4672
        %v6444 = vunpack.c.l.b16 %v4673
        %v6445 = vunpack.c.h.b16 %v4673
        %v6446 = vunpack.c.l.b16 %v4674
        %v6447 = vunpack.c.h.b16 %v4674
        %v6448 = vunpack.c.l.b16 %v4675
        %v6449 = vunpack.c.h.b16 %v4675
        %v6450 = vunpack.c.l.b16 %v4676
        %v6451 = vunpack.c.h.b16 %v4676
        %v6452 = vunpack.c.l.b16 %v4677
        %v6453 = vunpack.c.h.b16 %v4677
        %v6454 = vunpack.c.l.b16 %v4678
        %v6455 = vunpack.c.h.b16 %v4678
        %v6456 = vunpack.c.l.b16 %v4679
        %v6457 = vunpack.c.h.b16 %v4679
        %v6458 = vunpack.c.l.b16 %v4680
        %v6459 = vunpack.c.h.b16 %v4680
        %v6460 = vunpack.c.l.b16 %v4681
        %v6461 = vunpack.c.h.b16 %v4681
        %v6462 = vunpack.c.l.b16 %v4682
        %v6463 = vunpack.c.h.b16 %v4682
        %v6464 = vunpack.c.l.b16 %v4683
        %v6465 = vunpack.c.h.b16 %v4683
        %v6466 = vunpack.c.l.b16 %v4684
        %v6467 = vunpack.c.h.b16 %v4684
        %v6468 = vunpack.c.l.b16 %v4685
        %v6469 = vunpack.c.h.b16 %v4685
        %v6470 = vunpack.c.l.b16 %v4686
        %v6471 = vunpack.c.h.b16 %v4686
        %v6472 = vunpack.c.l.b16 %v4687
        %v6473 = vunpack.c.h.b16 %v4687
        %v6474 = vunpack.c.l.b16 %v4688
        %v6475 = vunpack.c.h.b16 %v4688
        %v6476 = vunpack.c.l.b16 %v4689
        %v6477 = vunpack.c.h.b16 %v4689
        %v6478 = vunpack.c.l.b16 %v4690
        %v6479 = vunpack.c.h.b16 %v4690
        %v6480 = vunpack.c.l.b16 %v4691
        %v6481 = vunpack.c.h.b16 %v4691
        %v6482 = vunpack.c.l.b16 %v4692
        %v6483 = vunpack.c.h.b16 %v4692
        %v6484 = vunpack.c.l.b16 %v4693
        %v6485 = vunpack.c.h.b16 %v4693
        %v6486 = vunpack.c.l.b16 %v4694
        %v6487 = vunpack.c.h.b16 %v4694
        %v6488 = vunpack.c.l.b16 %v4695
        %v6489 = vunpack.c.h.b16 %v4695
        %v6490 = vunpack.c.l.b16 %v4696
        %v6491 = vunpack.c.h.b16 %v4696
        %v6492 = vunpack.c.l.b16 %v4697
        %v6493 = vunpack.c.h.b16 %v4697
        %v6494 = vunpack.c.l.b16 %v4698
        %v6495 = vunpack.c.h.b16 %v4698
        %v6496 = vunpack.c.l.b16 %v4699
        %v6497 = vunpack.c.h.b16 %v4699
        %v6498 = vunpack.c.l.b16 %v4700
        %v6499 = vunpack.c.h.b16 %v4700
        %v6500 = vunpack.c.l.b16 %v4701
        %v6501 = vunpack.c.h.b16 %v4701
        %v6502 = vunpack.c.l.b16 %v4702
        %v6503 = vunpack.c.h.b16 %v4702
        %v6504 = vunpack.c.l.b16 %v4703
        %v6505 = vunpack.c.h.b16 %v4703
        %v6506 = vunpack.c.l.b16 %v4704
        %v6507 = vunpack.c.h.b16 %v4704
        %v6508 = vunpack.c.l.b16 %v4705
        %v6509 = vunpack.c.h.b16 %v4705
        %v6510 = vunpack.c.l.b16 %v4706
        %v6511 = vunpack.c.h.b16 %v4706
        %v6512 = vunpack.c.l.b16 %v4707
        %v6513 = vunpack.c.h.b16 %v4707
        %v6514 = vunpack.c.l.b16 %v4708
        %v6515 = vunpack.c.h.b16 %v4708
        %v6516 = vunpack.c.l.b16 %v4709
        %v6517 = vunpack.c.h.b16 %v4709
        %v6518 = vunpack.c.l.b16 %v4710
        %v6519 = vunpack.c.h.b16 %v4710
        %v6520 = vunpack.c.l.b16 %v4711
        %v6521 = vunpack.c.h.b16 %v4711
        %v6522 = vunpack.c.l.b16 %v4712
        %v6523 = vunpack.c.h.b16 %v4712
        %v6524 = vunpack.c.l.b16 %v4713
        %v6525 = vunpack.c.h.b16 %v4713
        %v6526 = vunpack.c.l.b16 %v4714
        %v6527 = vunpack.c.h.b16 %v4714
        %v6528 = vunpack.c.l.b16 %v4715
        %v6529 = vunpack.c.h.b16 %v4715
        %v6530 = vunpack.c.l.b16 %v4716
        %v6531 = vunpack.c.h.b16 %v4716
        %v6532 = vunpack.c.l.b16 %v4717
        %v6533 = vunpack.c.h.b16 %v4717
        %v6534 = vunpack.c.l.b16 %v4718
        %v6535 = vunpack.c.h.b16 %v4718
        %v6536 = vunpack.c.l.b16 %v4719
        %v6537 = vunpack.c.h.b16 %v4719
        %v6538 = vunpack.c.l.b16 %v4720
        %v6539 = vunpack.c.h.b16 %v4720
        %v6540 = vunpack.c.l.b16 %v4721
        %v6541 = vunpack.c.h.b16 %v4721
        %v6542 = vunpack.c.l.b16 %v4722
        %v6543 = vunpack.c.h.b16 %v4722
        %v6544 = vunpack.c.l.b16 %v4723
        %v6545 = vunpack.c.h.b16 %v4723
        %v6546 = vunpack.c.l.b16 %v4724
        %v6547 = vunpack.c.h.b16 %v4724
        %v6548 = vunpack.c.l.b16 %v4725
        %v6549 = vunpack.c.h.b16 %v4725
        %v6550 = vunpack.c.l.b16 %v4726
        %v6551 = vunpack.c.h.b16 %v4726
        %v6552 = vunpack.c.l.b16 %v4727
        %v6553 = vunpack.c.h.b16 %v4727
        %v6554 = vunpack.c.l.b16 %v4728
        %v6555 = vunpack.c.h.b16 %v4728
        %v6556 = vunpack.c.l.b16 %v4729
        %v6557 = vunpack.c.h.b16 %v4729
        %v6558 = vunpack.c.l.b16 %v4730
        %v6559 = vunpack.c.h.b16 %v4730
        %v6560 = vunpack.c.l.b16 %v4731
        %v6561 = vunpack.c.h.b16 %v4731
        %v6562 = vunpack.c.l.b16 %v4732
        %v6563 = vunpack.c.h.b16 %v4732
        %v6564 = vunpack.c.l.b16 %v4733
        %v6565 = vunpack.c.h.b16 %v4733
        %v6566 = vunpack.c.l.b16 %v4734
        %v6567 = vunpack.c.h.b16 %v4734
        %v6568 = vunpack.c.l.b16 %v4735
        %v6569 = vunpack.c.h.b16 %v4735
        %v6570 = vunpack.c.l.b16 %v4736
        %v6571 = vunpack.c.h.b16 %v4736
        %v6572 = vunpack.c.l.b16 %v4737
        %v6573 = vunpack.c.h.b16 %v4737
        %v6574 = vunpack.c.l.b16 %v4738
        %v6575 = vunpack.c.h.b16 %v4738
        %v6576 = vunpack.c.l.b16 %v4739
        %v6577 = vunpack.c.h.b16 %v4739
        %v6578 = vunpack.c.l.b16 %v4740
        %v6579 = vunpack.c.h.b16 %v4740
        %v6580 = vunpack.c.l.b16 %v4741
        %v6581 = vunpack.c.h.b16 %v4741
        %v6582 = vunpack.c.l.b16 %v4742
        %v6583 = vunpack.c.h.b16 %v4742
        %v6584 = vunpack.c.l.b16 %v4743
        %v6585 = vunpack.c.h.b16 %v4743
        %v6586 = vunpack.c.l.b16 %v4744
        %v6587 = vunpack.c.h.b16 %v4744
        %v6588 = vunpack.c.l.b16 %v4745
        %v6589 = vunpack.c.h.b16 %v4745
        %v6590 = vunpack.c.l.b16 %v4746
        %v6591 = vunpack.c.h.b16 %v4746
        %v6592 = vunpack.c.l.b16 %v4747
        %v6593 = vunpack.c.h.b16 %v4747
        %v6594 = vunpack.c.l.b16 %v4748
        %v6595 = vunpack.c.h.b16 %v4748
        %v6596 = vunpack.c.l.b16 %v4749
        %v6597 = vunpack.c.h.b16 %v4749
        %v6598 = vunpack.c.l.b16 %v4750
        %v6599 = vunpack.c.h.b16 %v4750
        %v6600 = vunpack.c.l.b16 %v4751
        %v6601 = vunpack.c.h.b16 %v4751
        %v6602 = vunpack.c.l.b16 %v4752
        %v6603 = vunpack.c.h.b16 %v4752
        %v6604 = vunpack.c.l.b16 %v4753
        %v6605 = vunpack.c.h.b16 %v4753
        %v6606 = vunpack.c.l.b16 %v4754
        %v6607 = vunpack.c.h.b16 %v4754
        %v6608 = vunpack.c.l.b16 %v4755
        %v6609 = vunpack.c.h.b16 %v4755
        %v6610 = vunpack.c.l.b16 %v4756
        %v6611 = vunpack.c.h.b16 %v4756
        %v6612 = vunpack.c.l.b16 %v4757
        %v6613 = vunpack.c.h.b16 %v4757
        %v6614 = vunpack.c.l.b16 %v4758
        %v6615 = vunpack.c.h.b16 %v4758
        %v6616 = vunpack.c.l.b16 %v4759
        %v6617 = vunpack.c.h.b16 %v4759
        %v6618 = vunpack.c.l.b16 %v4760
        %v6619 = vunpack.c.h.b16 %v4760
        %v6620 = vunpack.c.l.b16 %v4761
        %v6621 = vunpack.c.h.b16 %v4761
        %v6622 = vunpack.c.l.b16 %v4762
        %v6623 = vunpack.c.h.b16 %v4762
        %v6624 = vunpack.c.l.b16 %v4763
        %v6625 = vunpack.c.h.b16 %v4763
        %v6626 = vunpack.c.l.b16 %v4764
        %v6627 = vunpack.c.h.b16 %v4764
        %v6628 = vunpack.c.l.b16 %v4765
        %v6629 = vunpack.c.h.b16 %v4765
        %v6630 = vunpack.c.l.b16 %v4766
        %v6631 = vunpack.c.h.b16 %v4766
        %v6632 = vunpack.c.l.b16 %v4767
        %v6633 = vunpack.c.h.b16 %v4767
        %v6634 = vunpack.c.l.b16 %v4768
        %v6635 = vunpack.c.h.b16 %v4768
        %v6636 = vunpack.c.l.b16 %v4769
        %v6637 = vunpack.c.h.b16 %v4769
        %v6638 = vunpack.c.l.b16 %v4770
        %v6639 = vunpack.c.h.b16 %v4770
        %v6640 = vunpack.c.l.b16 %v4771
        %v6641 = vunpack.c.h.b16 %v4771
        %v6642 = vunpack.c.l.b16 %v4772
        %v6643 = vunpack.c.h.b16 %v4772
        %v6644 = vunpack.c.l.b16 %v4773
        %v6645 = vunpack.c.h.b16 %v4773
        %v6646 = vunpack.c.l.b16 %v4774
        %v6647 = vunpack.c.h.b16 %v4774
        %v6648 = vunpack.c.l.b16 %v4775
        %v6649 = vunpack.c.h.b16 %v4775
        %v6650 = vunpack.c.l.b16 %v4776
        %v6651 = vunpack.c.h.b16 %v4776
        %v6652 = vunpack.c.l.b16 %v4777
        %v6653 = vunpack.c.h.b16 %v4777
        %v6654 = vunpack.c.l.b16 %v4778
        %v6655 = vunpack.c.h.b16 %v4778
        %v6656 = vunpack.c.l.b16 %v4779
        %v6657 = vunpack.c.h.b16 %v4779
        %v6658 = vunpack.c.l.b16 %v4780
        %v6659 = vunpack.c.h.b16 %v4780
        %v6660 = vunpack.c.l.b16 %v4781
        %v6661 = vunpack.c.h.b16 %v4781
        %v6662 = vunpack.c.l.b16 %v4782
        %v6663 = vunpack.c.h.b16 %v4782
        %v6664 = vunpack.c.l.b16 %v4783
        %v6665 = vunpack.c.h.b16 %v4783
        %v6666 = vunpack.c.l.b16 %v4784
        %v6667 = vunpack.c.h.b16 %v4784
        %v6668 = vunpack.c.l.b16 %v4785
        %v6669 = vunpack.c.h.b16 %v4785
        %v6670 = vunpack.c.l.b16 %v4786
        %v6671 = vunpack.c.h.b16 %v4786
        %v6672 = vunpack.c.l.b16 %v4787
        %v6673 = vunpack.c.h.b16 %v4787
        %v6674 = vunpack.c.l.b16 %v4788
        %v6675 = vunpack.c.h.b16 %v4788
        %v6676 = vunpack.c.l.b16 %v4789
        %v6677 = vunpack.c.h.b16 %v4789
        %v6678 = vunpack.c.l.b16 %v4790
        %v6679 = vunpack.c.h.b16 %v4790
        %v6680 = vunpack.c.l.b16 %v4791
        %v6681 = vunpack.c.h.b16 %v4791
        %v6682 = vunpack.c.l.b16 %v4792
        %v6683 = vunpack.c.h.b16 %v4792
        %v6684 = vunpack.c.l.b16 %v4793
        %v6685 = vunpack.c.h.b16 %v4793
        %v6686 = vunpack.c.l.b16 %v4794
        %v6687 = vunpack.c.h.b16 %v4794
        %v6688 = vunpack.c.l.b16 %v4795
        %v6689 = vunpack.c.h.b16 %v4795
        %v6690 = vunpack.c.l.b16 %v4796
        %v6691 = vunpack.c.h.b16 %v4796
        %v6692 = vunpack.c.l.b16 %v4797
        %v6693 = vunpack.c.h.b16 %v4797
        %v6694 = vunpack.c.l.b16 %v4798
        %v6695 = vunpack.c.h.b16 %v4798
        %v6696 = vunpack.c.l.b16 %v4799
        %v6697 = vunpack.c.h.b16 %v4799
        %v6698 = vunpack.c.l.b16 %v4800
        %v6699 = vunpack.c.h.b16 %v4800
        %v6700 = vunpack.c.l.b16 %v4801
        %v6701 = vunpack.c.h.b16 %v4801
        %v6702 = vunpack.c.l.b16 %v4802
        %v6703 = vunpack.c.h.b16 %v4802
        %v6704 = vunpack.c.l.b16 %v4803
        %v6705 = vunpack.c.h.b16 %v4803
        %v6706 = vunpack.c.l.b16 %v4804
        %v6707 = vunpack.c.h.b16 %v4804
        %v6708 = vunpack.c.l.b16 %v4805
        %v6709 = vunpack.c.h.b16 %v4805
        %v6710 = vunpack.c.l.b16 %v4806
        %v6711 = vunpack.c.h.b16 %v4806
        %v6712 = vunpack.c.l.b16 %v4807
        %v6713 = vunpack.c.h.b16 %v4807
        %v6714 = vunpack.c.l.b16 %v4808
        %v6715 = vunpack.c.h.b16 %v4808
        %v6716 = vunpack.c.l.b16 %v4809
        %v6717 = vunpack.c.h.b16 %v4809
        %v6718 = vunpack.c.l.b16 %v4810
        %v6719 = vunpack.c.h.b16 %v4810
        %v6720 = vunpack.c.l.b16 %v4811
        %v6721 = vunpack.c.h.b16 %v4811
        %v6722 = vunpack.c.l.b16 %v4812
        %v6723 = vunpack.c.h.b16 %v4812
        %v6724 = vunpack.c.l.b16 %v4813
        %v6725 = vunpack.c.h.b16 %v4813
        %v6726 = vunpack.c.l.b16 %v4814
        %v6727 = vunpack.c.h.b16 %v4814
        %v6728 = vunpack.c.l.b16 %v4815
        %v6729 = vunpack.c.h.b16 %v4815
        %v6730 = vunpack.c.l.b16 %v4816
        %v6731 = vunpack.c.h.b16 %v4816
        %v6732 = vunpack.c.l.b16 %v4817
        %v6733 = vunpack.c.h.b16 %v4817
        %v6734 = vunpack.c.l.b16 %v4818
        %v6735 = vunpack.c.h.b16 %v4818
        %v6736 = vunpack.c.l.b16 %v4819
        %v6737 = vunpack.c.h.b16 %v4819
        %v6738 = vunpack.c.l.b16 %v4820
        %v6739 = vunpack.c.h.b16 %v4820
        %v6740 = vunpack.c.l.b16 %v4821
        %v6741 = vunpack.c.h.b16 %v4821
        %v6742 = vunpack.c.l.b16 %v4822
        %v6743 = vunpack.c.h.b16 %v4822
        %v6744 = vunpack.c.l.b16 %v4823
        %v6745 = vunpack.c.h.b16 %v4823
        %v6746 = vunpack.c.l.b16 %v4824
        %v6747 = vunpack.c.h.b16 %v4824
        %v6748 = vunpack.c.l.b16 %v4825
        %v6749 = vunpack.c.h.b16 %v4825
        %v6750 = vunpack.c.l.b16 %v4826
        %v6751 = vunpack.c.h.b16 %v4826
        %v6752 = vunpack.c.l.b16 %v4827
        %v6753 = vunpack.c.h.b16 %v4827
        %v6754 = vunpack.c.l.b16 %v4828
        %v6755 = vunpack.c.h.b16 %v4828
        %v6756 = vunpack.c.l.b16 %v4829
        %v6757 = vunpack.c.h.b16 %v4829
        %v6758 = vunpack.c.l.b16 %v4830
        %v6759 = vunpack.c.h.b16 %v4830
        %v6760 = vunpack.c.l.b16 %v4831
        %v6761 = vunpack.c.h.b16 %v4831
        %v6762 = vunpack.c.l.b16 %v4832
        %v6763 = vunpack.c.h.b16 %v4832
        %v6764 = vunpack.c.l.b16 %v4833
        %v6765 = vunpack.c.h.b16 %v4833
        %v6766 = vunpack.c.l.b16 %v4834
        %v6767 = vunpack.c.h.b16 %v4834
        %v6768 = vunpack.c.l.b16 %v4835
        %v6769 = vunpack.c.h.b16 %v4835
        %v6770 = vunpack.c.l.b16 %v4836
        %v6771 = vunpack.c.h.b16 %v4836
        %v6772 = vunpack.c.l.b16 %v4837
        %v6773 = vunpack.c.h.b16 %v4837
        %v6774 = vunpack.c.l.b16 %v4838
        %v6775 = vunpack.c.h.b16 %v4838
        %v6776 = vunpack.c.l.b16 %v4839
        %v6777 = vunpack.c.h.b16 %v4839
        %v6778 = vunpack.c.l.b16 %v4840
        %v6779 = vunpack.c.h.b16 %v4840
        %v6780 = vunpack.c.l.b16 %v4841
        %v6781 = vunpack.c.h.b16 %v4841
        %v6782 = vunpack.c.l.b16 %v4842
        %v6783 = vunpack.c.h.b16 %v4842
        %v6784 = vunpack.c.l.b16 %v4843
        %v6785 = vunpack.c.h.b16 %v4843
        %v6786 = vunpack.c.l.b16 %v4844
        %v6787 = vunpack.c.h.b16 %v4844
        %v6788 = vunpack.c.l.b16 %v4845
        %v6789 = vunpack.c.h.b16 %v4845
        %v6790 = vunpack.c.l.b16 %v4846
        %v6791 = vunpack.c.h.b16 %v4846
        %v6792 = vunpack.c.l.b16 %v4847
        %v6793 = vunpack.c.h.b16 %v4847
        %v6794 = vunpack.c.l.b16 %v4848
        %v6795 = vunpack.c.h.b16 %v4848
        %v6796 = vunpack.c.l.b16 %v4849
        %v6797 = vunpack.c.h.b16 %v4849
        %v6798 = vunpack.c.l.b16 %v4850
        %v6799 = vunpack.c.h.b16 %v4850
        %v6800 = vunpack.c.l.b16 %v4851
        %v6801 = vunpack.c.h.b16 %v4851
        %v6802 = vunpack.c.l.b16 %v4852
        %v6803 = vunpack.c.h.b16 %v4852
        %v6804 = vunpack.c.l.b16 %v4853
        %v6805 = vunpack.c.h.b16 %v4853
        %v6806 = vunpack.c.l.b16 %v4854
        %v6807 = vunpack.c.h.b16 %v4854
        %v6808 = vunpack.c.l.b16 %v4855
        %v6809 = vunpack.c.h.b16 %v4855
        %v6810 = vunpack.c.l.b16 %v4856
        %v6811 = vunpack.c.h.b16 %v4856
        %v6812 = vunpack.c.l.b16 %v4857
        %v6813 = vunpack.c.h.b16 %v4857
        %v6814 = vunpack.c.l.b16 %v4858
        %v6815 = vunpack.c.h.b16 %v4858
        %v6816 = vunpack.c.l.b16 %v4859
        %v6817 = vunpack.c.h.b16 %v4859
        %v6818 = vunpack.c.l.b16 %v4860
        %v6819 = vunpack.c.h.b16 %v4860
        %v6820 = vunpack.c.l.b16 %v4861
        %v6821 = vunpack.c.h.b16 %v4861
        %v6822 = vunpack.c.l.b16 %v4862
        %v6823 = vunpack.c.h.b16 %v4862
        %v6824 = vunpack.c.l.b16 %v4863
        %v6825 = vunpack.c.h.b16 %v4863
        %v6826 = vunpack.c.l.b16 %v4864
        %v6827 = vunpack.c.h.b16 %v4864
        %v6828 = vunpack.c.l.b16 %v4865
        %v6829 = vunpack.c.h.b16 %v4865
        %v6830 = vunpack.c.l.b16 %v4866
        %v6831 = vunpack.c.h.b16 %v4866
        %v6832 = vunpack.c.l.b16 %v4867
        %v6833 = vunpack.c.h.b16 %v4867
        %v6834 = vunpack.c.l.b16 %v4868
        %v6835 = vunpack.c.h.b16 %v4868
        %v6836 = vunpack.c.l.b16 %v4869
        %v6837 = vunpack.c.h.b16 %v4869
        %v6838 = vunpack.c.l.b16 %v4870
        %v6839 = vunpack.c.h.b16 %v4870
        %v6840 = vunpack.c.l.b16 %v4871
        %v6841 = vunpack.c.h.b16 %v4871
        %v6842 = vunpack.c.l.b16 %v4872
        %v6843 = vunpack.c.h.b16 %v4872
        %v6844 = vunpack.c.l.b16 %v4873
        %v6845 = vunpack.c.h.b16 %v4873
        %v6846 = vunpack.c.l.b16 %v4874
        %v6847 = vunpack.c.h.b16 %v4874
        %v6848 = vunpack.c.l.b16 %v4875
        %v6849 = vunpack.c.h.b16 %v4875
        %v6850 = vunpack.c.l.b16 %v4876
        %v6851 = vunpack.c.h.b16 %v4876
        %v6852 = vunpack.c.l.b16 %v4877
        %v6853 = vunpack.c.h.b16 %v4877
        %v6854 = vunpack.c.l.b16 %v4878
        %v6855 = vunpack.c.h.b16 %v4878
        %v6856 = vunpack.c.l.b16 %v4879
        %v6857 = vunpack.c.h.b16 %v4879
        %v6858 = vunpack.c.l.b16 %v4880
        %v6859 = vunpack.c.h.b16 %v4880
        %v6860 = vunpack.c.l.b16 %v4881
        %v6861 = vunpack.c.h.b16 %v4881
        %v6862 = vunpack.c.l.b16 %v4882
        %v6863 = vunpack.c.h.b16 %v4882
        %v6864 = vunpack.c.l.b16 %v4883
        %v6865 = vunpack.c.h.b16 %v4883
        %v6866 = vunpack.c.l.b16 %v4884
        %v6867 = vunpack.c.h.b16 %v4884
        %v6868 = vunpack.c.l.b16 %v4885
        %v6869 = vunpack.c.h.b16 %v4885
        %v6870 = vunpack.c.l.b16 %v4886
        %v6871 = vunpack.c.h.b16 %v4886
        %v6872 = vunpack.c.l.b16 %v4887
        %v6873 = vunpack.c.h.b16 %v4887
        %v6874 = vunpack.c.l.b16 %v4888
        %v6875 = vunpack.c.h.b16 %v4888
        %v6876 = vunpack.c.l.b16 %v4889
        %v6877 = vunpack.c.h.b16 %v4889
        %v6878 = vunpack.c.l.b16 %v4890
        %v6879 = vunpack.c.h.b16 %v4890
        %v6880 = vunpack.c.l.b16 %v4891
        %v6881 = vunpack.c.h.b16 %v4891
        %v6882 = vunpack.c.l.b16 %v4892
        %v6883 = vunpack.c.h.b16 %v4892
        %v6884 = vunpack.c.l.b16 %v4893
        %v6885 = vunpack.c.h.b16 %v4893
        %v6886 = vunpack.c.l.b16 %v4894
        %v6887 = vunpack.c.h.b16 %v4894
        %v6888 = vunpack.c.l.b16 %v4895
        %v6889 = vunpack.c.h.b16 %v4895
        %v6890 = vunpack.c.l.b16 %v4896
        %v6891 = vunpack.c.h.b16 %v4896
        %v6892 = vunpack.c.l.b16 %v4897
        %v6893 = vunpack.c.h.b16 %v4897
        %v6894 = vunpack.c.l.b16 %v4898
        %v6895 = vunpack.c.h.b16 %v4898
        %v6896 = vunpack.c.l.b16 %v4899
        %v6897 = vunpack.c.h.b16 %v4899
        %v6898 = vunpack.c.l.b16 %v4900
        %v6899 = vunpack.c.h.b16 %v4900
        %v6900 = vunpack.c.l.b16 %v4901
        %v6901 = vunpack.c.h.b16 %v4901
        %v6902 = vunpack.c.l.b16 %v4902
        %v6903 = vunpack.c.h.b16 %v4902
        %v6904 = vunpack.c.l.b16 %v4903
        %v6905 = vunpack.c.h.b16 %v4903
        %v6906 = vunpack.c.l.b16 %v4904
        %v6907 = vunpack.c.h.b16 %v4904
        %v6908 = vunpack.c.l.b16 %v4905
        %v6909 = vunpack.c.h.b16 %v4905
        %v6910 = vunpack.c.l.b16 %v4906
        %v6911 = vunpack.c.h.b16 %v4906
        %v6912 = vunpack.c.l.b16 %v4907
        %v6913 = vunpack.c.h.b16 %v4907
        %v6914 = vunpack.c.l.b16 %v4908
        %v6915 = vunpack.c.h.b16 %v4908
        %v6916 = vunpack.c.l.b16 %v4909
        %v6917 = vunpack.c.h.b16 %v4909
        %v6918 = vunpack.c.l.b16 %v4910
        %v6919 = vunpack.c.h.b16 %v4910
        %v6920 = vunpack.c.l.b16 %v4911
        %v6921 = vunpack.c.h.b16 %v4911
        %v6922 = vunpack.c.l.b16 %v4912
        %v6923 = vunpack.c.h.b16 %v4912
        %v6924 = vunpack.c.l.b16 %v4913
        %v6925 = vunpack.c.h.b16 %v4913
        %v6926 = vunpack.c.l.b16 %v4914
        %v6927 = vunpack.c.h.b16 %v4914
        %v6928 = vunpack.c.l.b16 %v4915
        %v6929 = vunpack.c.h.b16 %v4915
        %v6930 = vunpack.c.l.b16 %v4916
        %v6931 = vunpack.c.h.b16 %v4916
        %v6932 = vunpack.c.l.b16 %v4917
        %v6933 = vunpack.c.h.b16 %v4917
        %v6934 = vunpack.c.l.b16 %v4918
        %v6935 = vunpack.c.h.b16 %v4918
        %v6936 = vunpack.c.l.b16 %v4919
        %v6937 = vunpack.c.h.b16 %v4919
        %v6938 = vunpack.c.l.b16 %v4920
        %v6939 = vunpack.c.h.b16 %v4920
        %v6940 = vunpack.c.l.b16 %v4921
        %v6941 = vunpack.c.h.b16 %v4921
        %v6942 = vunpack.c.l.b16 %v4922
        %v6943 = vunpack.c.h.b16 %v4922
        %v6944 = vunpack.c.l.b16 %v4923
        %v6945 = vunpack.c.h.b16 %v4923
        %v6946 = vunpack.c.l.b16 %v4924
        %v6947 = vunpack.c.h.b16 %v4924
        %v6948 = vunpack.c.l.b16 %v4925
        %v6949 = vunpack.c.h.b16 %v4925
        %v6950 = vunpack.c.l.b16 %v4926
        %v6951 = vunpack.c.h.b16 %v4926
        %v6952 = vunpack.c.l.b16 %v4927
        %v6953 = vunpack.c.h.b16 %v4927
        %v6954 = vunpack.c.l.b16 %v4928
        %v6955 = vunpack.c.h.b16 %v4928
        %v6956 = vunpack.c.l.b16 %v4929
        %v6957 = vunpack.c.h.b16 %v4929
        %v6958 = vunpack.c.l.b16 %v4930
        %v6959 = vunpack.c.h.b16 %v4930
        %v6960 = vunpack.c.l.b16 %v4931
        %v6961 = vunpack.c.h.b16 %v4931
        %v6962 = vunpack.c.l.b16 %v4932
        %v6963 = vunpack.c.h.b16 %v4932
        %v6964 = vunpack.c.l.b16 %v4933
        %v6965 = vunpack.c.h.b16 %v4933
        %v6966 = vunpack.c.l.b16 %v4934
        %v6967 = vunpack.c.h.b16 %v4934
        %v6968 = vunpack.c.l.b16 %v4935
        %v6969 = vunpack.c.h.b16 %v4935
        %v6970 = vunpack.c.l.b16 %v4936
        %v6971 = vunpack.c.h.b16 %v4936
        %v6972 = vunpack.c.l.b16 %v4937
        %v6973 = vunpack.c.h.b16 %v4937
        %v6974 = vunpack.c.l.b16 %v4938
        %v6975 = vunpack.c.h.b16 %v4938
        %v6976 = vunpack.c.l.b16 %v4939
        %v6977 = vunpack.c.h.b16 %v4939
        %v6978 = vunpack.c.l.b16 %v4940
        %v6979 = vunpack.c.h.b16 %v4940
        %v6980 = vunpack.c.l.b16 %v4941
        %v6981 = vunpack.c.h.b16 %v4941
        %v6982 = vunpack.c.l.b16 %v4942
        %v6983 = vunpack.c.h.b16 %v4942
        %v6984 = vunpack.c.l.b16 %v4943
        %v6985 = vunpack.c.h.b16 %v4943
        %v6986 = vunpack.c.l.b16 %v4944
        %v6987 = vunpack.c.h.b16 %v4944
        %v6988 = vunpack.c.l.b16 %v4945
        %v6989 = vunpack.c.h.b16 %v4945
        %v6990 = vunpack.c.l.b16 %v4946
        %v6991 = vunpack.c.h.b16 %v4946
        %v6992 = vunpack.c.l.b16 %v4947
        %v6993 = vunpack.c.h.b16 %v4947
        %v6994 = vunpack.c.l.b16 %v4948
        %v6995 = vunpack.c.h.b16 %v4948
        %v6996 = vunpack.c.l.b16 %v4949
        %v6997 = vunpack.c.h.b16 %v4949
        %v6998 = vunpack.c.l.b16 %v4950
        %v6999 = vunpack.c.h.b16 %v4950
        %v7000 = vunpack.c.l.b16 %v4951
        %v7001 = vunpack.c.h.b16 %v4951
        %v7002 = vunpack.c.l.b16 %v4952
        %v7003 = vunpack.c.h.b16 %v4952
        %v7004 = vunpack.c.l.b16 %v4953
        %v7005 = vunpack.c.h.b16 %v4953
        %v7006 = vunpack.c.l.b16 %v4954
        %v7007 = vunpack.c.h.b16 %v4954
        %v7008 = vunpack.c.l.b16 %v4955
        %v7009 = vunpack.c.h.b16 %v4955
        %v7010 = vunpack.c.l.b16 %v4956
        %v7011 = vunpack.c.h.b16 %v4956
        %v7012 = vunpack.c.l.b16 %v4957
        %v7013 = vunpack.c.h.b16 %v4957
        %v7014 = vunpack.c.l.b16 %v4958
        %v7015 = vunpack.c.h.b16 %v4958
        %v7016 = vunpack.c.l.b16 %v4959
        %v7017 = vunpack.c.h.b16 %v4959
        %v7018 = vunpack.c.l.b16 %v4960
        %v7019 = vunpack.c.h.b16 %v4960
        %v7020 = vunpack.c.l.b16 %v4961
        %v7021 = vunpack.c.h.b16 %v4961
        %v7022 = vunpack.c.l.b16 %v4962
        %v7023 = vunpack.c.h.b16 %v4962
        %v7024 = vunpack.c.l.b16 %v4963
        %v7025 = vunpack.c.h.b16 %v4963
        %v7026 = vunpack.c.l.b16 %v4964
        %v7027 = vunpack.c.h.b16 %v4964
        %v7028 = vunpack.c.l.b16 %v4965
        %v7029 = vunpack.c.h.b16 %v4965
        %v7030 = vunpack.c.l.b16 %v4966
        %v7031 = vunpack.c.h.b16 %v4966
        %v7032 = vunpack.c.l.b16 %v4967
        %v7033 = vunpack.c.h.b16 %v4967
        %v7034 = vunpack.c.l.b16 %v4968
        %v7035 = vunpack.c.h.b16 %v4968
        %v7036 = vunpack.c.l.b16 %v4969
        %v7037 = vunpack.c.h.b16 %v4969
        %v7038 = vunpack.c.l.b16 %v4970
        %v7039 = vunpack.c.h.b16 %v4970
        %v7040 = vunpack.c.l.b16 %v4971
        %v7041 = vunpack.c.h.b16 %v4971
        %v7042 = vunpack.c.l.b16 %v4972
        %v7043 = vunpack.c.h.b16 %v4972
        %v7044 = vunpack.c.l.b16 %v4973
        %v7045 = vunpack.c.h.b16 %v4973
        %v7046 = vunpack.c.l.b16 %v4974
        %v7047 = vunpack.c.h.b16 %v4974
        %v7048 = vunpack.c.l.b16 %v4975
        %v7049 = vunpack.c.h.b16 %v4975
        %v7050 = vunpack.c.l.b16 %v4976
        %v7051 = vunpack.c.h.b16 %v4976
        %v7052 = vunpack.c.l.b16 %v4977
        %v7053 = vunpack.c.h.b16 %v4977
        %v7054 = vunpack.c.l.b16 %v4978
        %v7055 = vunpack.c.h.b16 %v4978
        %v7056 = vunpack.c.l.b16 %v4979
        %v7057 = vunpack.c.h.b16 %v4979
        %v7058 = vunpack.c.l.b16 %v4980
        %v7059 = vunpack.c.h.b16 %v4980
        %v7060 = vunpack.c.l.b16 %v4981
        %v7061 = vunpack.c.h.b16 %v4981
        %v7062 = vunpack.c.l.b16 %v4982
        %v7063 = vunpack.c.h.b16 %v4982
        %v7064 = vunpack.c.l.b16 %v4983
        %v7065 = vunpack.c.h.b16 %v4983
        %v7066 = vunpack.c.l.b16 %v4984
        %v7067 = vunpack.c.h.b16 %v4984
        %v7068 = vunpack.c.l.b16 %v4985
        %v7069 = vunpack.c.h.b16 %v4985
        %v7070 = vunpack.c.l.b16 %v4986
        %v7071 = vunpack.c.h.b16 %v4986
        %v7072 = vunpack.c.l.b16 %v4987
        %v7073 = vunpack.c.h.b16 %v4987
        %v7074 = vunpack.c.l.b16 %v4988
        %v7075 = vunpack.c.h.b16 %v4988
        %v7076 = vunpack.c.l.b16 %v4989
        %v7077 = vunpack.c.h.b16 %v4989
        %v7078 = vunpack.c.l.b16 %v4990
        %v7079 = vunpack.c.h.b16 %v4990
        %v7080 = vunpack.c.l.b16 %v4991
        %v7081 = vunpack.c.h.b16 %v4991
        %v7082 = vunpack.c.l.b16 %v4992
        %v7083 = vunpack.c.h.b16 %v4992
        %v7084 = vunpack.c.l.b16 %v4993
        %v7085 = vunpack.c.h.b16 %v4993
        %v7086 = vunpack.c.l.b16 %v4994
        %v7087 = vunpack.c.h.b16 %v4994
        %v7088 = vunpack.c.l.b16 %v4995
        %v7089 = vunpack.c.h.b16 %v4995
        %v7090 = vunpack.c.l.b16 %v4996
        %v7091 = vunpack.c.h.b16 %v4996
        %v7092 = vunpack.c.l.b16 %v4997
        %v7093 = vunpack.c.h.b16 %v4997
        %v7094 = vunpack.c.l.b16 %v4998
        %v7095 = vunpack.c.h.b16 %v4998
        %v7096 = vunpack.c.l.b16 %v4999
        %v7097 = vunpack.c.h.b16 %v4999
        %v7098 = vunpack.c.l.b16 %v5000
        %v7099 = vunpack.c.h.b16 %v5000
        %v7100 = vunpack.c.l.b16 %v5001
        %v7101 = vunpack.c.h.b16 %v5001
        %v7102 = vunpack.c.l.b16 %v5002
        %v7103 = vunpack.c.h.b16 %v5002
        %v7104 = vunpack.c.l.b16 %v5003
        %v7105 = vunpack.c.h.b16 %v5003
        %v7106 = vunpack.c.l.b16 %v5004
        %v7107 = vunpack.c.h.b16 %v5004
        %v7108 = vunpack.c.l.b16 %v5005
        %v7109 = vunpack.c.h.b16 %v5005
        %v7110 = vunpack.c.l.b16 %v5006
        %v7111 = vunpack.c.h.b16 %v5006
        %v7112 = vunpack.c.l.b16 %v5007
        %v7113 = vunpack.c.h.b16 %v5007
        %v7114 = vunpack.c.l.b16 %v5008
        %v7115 = vunpack.c.h.b16 %v5008
        %v7116 = vunpack.c.l.b16 %v5009
        %v7117 = vunpack.c.h.b16 %v5009
        %v7118 = vunpack.c.l.b16 %v5010
        %v7119 = vunpack.c.h.b16 %v5010
        %v7120 = vunpack.c.l.b16 %v5011
        %v7121 = vunpack.c.h.b16 %v5011
        %v7122 = vunpack.c.l.b16 %v5012
        %v7123 = vunpack.c.h.b16 %v5012
        %v7124 = vunpack.c.l.b16 %v5013
        %v7125 = vunpack.c.h.b16 %v5013
        %v7126 = vunpack.c.l.b16 %v5014
        %v7127 = vunpack.c.h.b16 %v5014
        %v7128 = vunpack.c.l.b16 %v5015
        %v7129 = vunpack.c.h.b16 %v5015
        %v7130 = vunpack.c.l.b16 %v5016
        %v7131 = vunpack.c.h.b16 %v5016
        %v7132 = vunpack.c.l.b16 %v5017
        %v7133 = vunpack.c.h.b16 %v5017
        %v7134 = vunpack.c.l.b16 %v5018
        %v7135 = vunpack.c.h.b16 %v5018
        %v7136 = vunpack.c.l.b16 %v5019
        %v7137 = vunpack.c.h.b16 %v5019
        %v7138 = vunpack.c.l.b16 %v5020
        %v7139 = vunpack.c.h.b16 %v5020
        %v7140 = vunpack.c.l.b16 %v5021
        %v7141 = vunpack.c.h.b16 %v5021
        %v7142 = vunpack.c.l.b16 %v5022
        %v7143 = vunpack.c.h.b16 %v5022
        %v7144 = vunpack.c.l.b16 %v5023
        %v7145 = vunpack.c.h.b16 %v5023
        %v7146 = vunpack.c.l.b16 %v5024
        %v7147 = vunpack.c.h.b16 %v5024
        %v7148 = vunpack.c.l.b16 %v5025
        %v7149 = vunpack.c.h.b16 %v5025
        %v7150 = vunpack.c.l.b16 %v5026
        %v7151 = vunpack.c.h.b16 %v5026
        %v7152 = vunpack.c.l.b16 %v5027
        %v7153 = vunpack.c.h.b16 %v5027
        %v7154 = vunpack.c.l.b16 %v5028
        %v7155 = vunpack.c.h.b16 %v5028
        %v7156 = vunpack.c.l.b16 %v5029
        %v7157 = vunpack.c.h.b16 %v5029
        %v7158 = vunpack.c.l.b16 %v5030
        %v7159 = vunpack.c.h.b16 %v5030
        %v7160 = vunpack.c.l.b16 %v5031
        %v7161 = vunpack.c.h.b16 %v5031
        %v7162 = vunpack.c.l.b16 %v5032
        %v7163 = vunpack.c.h.b16 %v5032
        %v7164 = vunpack.c.l.b16 %v5033
        %v7165 = vunpack.c.h.b16 %v5033
        %v7166 = vunpack.c.l.b16 %v5034
        %v7167 = vunpack.c.h.b16 %v5034
        %v7168 = vunpack.c.l.b16 %v5035
        %v7169 = vunpack.c.h.b16 %v5035
        %v7170 = vunpack.c.l.b16 %v5036
        %v7171 = vunpack.c.h.b16 %v5036
        %v7172 = vunpack.c.l.b16 %v5037
        %v7173 = vunpack.c.h.b16 %v5037
        %v7174 = vunpack.c.l.b16 %v5038
        %v7175 = vunpack.c.h.b16 %v5038
        %v7176 = vunpack.c.l.b16 %v5039
        %v7177 = vunpack.c.h.b16 %v5039
        %v7178 = vunpack.c.l.b16 %v5040
        %v7179 = vunpack.c.h.b16 %v5040
        %v7180 = vunpack.c.l.b16 %v5041
        %v7181 = vunpack.c.h.b16 %v5041
        %v7182 = vunpack.c.l.b16 %v5042
        %v7183 = vunpack.c.h.b16 %v5042
        %v7184 = vunpack.c.l.b16 %v5043
        %v7185 = vunpack.c.h.b16 %v5043
        %v7186 = vunpack.c.l.b16 %v5044
        %v7187 = vunpack.c.h.b16 %v5044
        %v7188 = vunpack.c.l.b16 %v5045
        %v7189 = vunpack.c.h.b16 %v5045
        %v7190 = vunpack.c.l.b16 %v5046
        %v7191 = vunpack.c.h.b16 %v5046
        %v7192 = vunpack.c.l.b16 %v5047
        %v7193 = vunpack.c.h.b16 %v5047
        %v7194 = vunpack.c.l.b16 %v5048
        %v7195 = vunpack.c.h.b16 %v5048
        %v7196 = vunpack.c.l.b16 %v5049
        %v7197 = vunpack.c.h.b16 %v5049
        %v7198 = vunpack.c.l.b16 %v5050
        %v7199 = vunpack.c.h.b16 %v5050
        %v7200 = vunpack.c.l.b16 %v5051
        %v7201 = vunpack.c.h.b16 %v5051
        %v7202 = vunpack.c.l.b16 %v5052
        %v7203 = vunpack.c.h.b16 %v5052
        %v7204 = vunpack.c.l.b16 %v5053
        %v7205 = vunpack.c.h.b16 %v5053
        %v7206 = vunpack.c.l.b16 %v5054
        %v7207 = vunpack.c.h.b16 %v5054
        %v7208 = vunpack.c.l.b16 %v5055
        %v7209 = vunpack.c.h.b16 %v5055
        %v7210 = vunpack.c.l.b16 %v5056
        %v7211 = vunpack.c.h.b16 %v5056
        %v7212 = vunpack.c.l.b16 %v5057
        %v7213 = vunpack.c.h.b16 %v5057
        %v7214 = vunpack.c.l.b16 %v5058
        %v7215 = vunpack.c.h.b16 %v5058
        %v7216 = vunpack.c.l.b16 %v5059
        %v7217 = vunpack.c.h.b16 %v5059
        %v7218 = vunpack.c.l.b16 %v5060
        %v7219 = vunpack.c.h.b16 %v5060
        %v7220 = vunpack.c.l.b16 %v5061
        %v7221 = vunpack.c.h.b16 %v5061
        %v7222 = vunpack.c.l.b16 %v5062
        %v7223 = vunpack.c.h.b16 %v5062
        %v7224 = vunpack.c.l.b16 %v5063
        %v7225 = vunpack.c.h.b16 %v5063
        %v7226 = vunpack.c.l.b16 %v5064
        %v7227 = vunpack.c.h.b16 %v5064
        %v7228 = vunpack.c.l.b16 %v5065
        %v7229 = vunpack.c.h.b16 %v5065
        %v7230 = vunpack.c.l.b16 %v5066
        %v7231 = vunpack.c.h.b16 %v5066
        %v7232 = vunpack.c.l.b16 %v5067
        %v7233 = vunpack.c.h.b16 %v5067
        %v7234 = vunpack.c.l.b16 %v5068
        %v7235 = vunpack.c.h.b16 %v5068
        %v7236 = vunpack.c.l.b16 %v5069
        %v7237 = vunpack.c.h.b16 %v5069
        %v7238 = vunpack.c.l.b16 %v5070
        %v7239 = vunpack.c.h.b16 %v5070
        %v7240 = vunpack.c.l.b16 %v5071
        %v7241 = vunpack.c.h.b16 %v5071
        %v7242 = vunpack.c.l.b16 %v5072
        %v7243 = vunpack.c.h.b16 %v5072
        %v7244 = vunpack.c.l.b16 %v5073
        %v7245 = vunpack.c.h.b16 %v5073
        %v7246 = vunpack.c.l.b16 %v5074
        %v7247 = vunpack.c.h.b16 %v5074
        %v7248 = vunpack.c.l.b16 %v5075
        %v7249 = vunpack.c.h.b16 %v5075
        %v7250 = vunpack.c.l.b16 %v5076
        %v7251 = vunpack.c.h.b16 %v5076
        %v7252 = vunpack.c.l.b16 %v5077
        %v7253 = vunpack.c.h.b16 %v5077
        %v7254 = vunpack.c.l.b16 %v5078
        %v7255 = vunpack.c.h.b16 %v5078
        %v7256 = vunpack.c.l.b16 %v5079
        %v7257 = vunpack.c.h.b16 %v5079
        %v7258 = vunpack.c.l.b16 %v5080
        %v7259 = vunpack.c.h.b16 %v5080
        %v7260 = vunpack.c.l.b16 %v5081
        %v7261 = vunpack.c.h.b16 %v5081
        %v7262 = vunpack.c.l.b16 %v5082
        %v7263 = vunpack.c.h.b16 %v5082
        %v7264 = vunpack.c.l.b16 %v5083
        %v7265 = vunpack.c.h.b16 %v5083
        %v7266 = vunpack.c.l.b16 %v5084
        %v7267 = vunpack.c.h.b16 %v5084
        %v7268 = vunpack.c.l.b16 %v5085
        %v7269 = vunpack.c.h.b16 %v5085
        %v7270 = vunpack.c.l.b16 %v5086
        %v7271 = vunpack.c.h.b16 %v5086
        %v7272 = vunpack.c.l.b16 %v5087
        %v7273 = vunpack.c.h.b16 %v5087
        %v7274 = vunpack.c.l.b16 %v5088
        %v7275 = vunpack.c.h.b16 %v5088
        %v7276 = vunpack.c.l.b16 %v5089
        %v7277 = vunpack.c.h.b16 %v5089
        %v7278 = vunpack.c.l.b16 %v5090
        %v7279 = vunpack.c.h.b16 %v5090
        %v7280 = vunpack.c.l.b16 %v5091
        %v7281 = vunpack.c.h.b16 %v5091
        %v7282 = vunpack.c.l.b16 %v5092
        %v7283 = vunpack.c.h.b16 %v5092
        %v7284 = vunpack.c.l.b16 %v5093
        %v7285 = vunpack.c.h.b16 %v5093
        %v7286 = vunpack.c.l.b16 %v5094
        %v7287 = vunpack.c.h.b16 %v5094
        %v7288 = vunpack.c.l.b16 %v5095
        %v7289 = vunpack.c.h.b16 %v5095
        %v7290 = vunpack.c.l.b16 %v5096
        %v7291 = vunpack.c.h.b16 %v5096
        %v7292 = vunpack.c.l.b16 %v5097
        %v7293 = vunpack.c.h.b16 %v5097
        %v7294 = vunpack.c.l.b16 %v5098
        %v7295 = vunpack.c.h.b16 %v5098
        %v7296 = vunpack.c.l.b16 %v5099
        %v7297 = vunpack.c.h.b16 %v5099
        %v7298 = vunpack.c.l.b16 %v5100
        %v7299 = vunpack.c.h.b16 %v5100
        %v7300 = vunpack.c.l.b16 %v5101
        %v7301 = vunpack.c.h.b16 %v5101
        %v7302 = vunpack.c.l.b16 %v5102
        %v7303 = vunpack.c.h.b16 %v5102
        %v7304 = vunpack.c.l.b16 %v5103
        %v7305 = vunpack.c.h.b16 %v5103
        %v7306 = vunpack.c.l.b16 %v5104
        %v7307 = vunpack.c.h.b16 %v5104
        %v7308 = vunpack.c.l.b16 %v5105
        %v7309 = vunpack.c.h.b16 %v5105
        %v7310 = vunpack.c.l.b16 %v5106
        %v7311 = vunpack.c.h.b16 %v5106
        %v7312 = vunpack.c.l.b16 %v5107
        %v7313 = vunpack.c.h.b16 %v5107
        %v7314 = vunpack.c.l.b16 %v5108
        %v7315 = vunpack.c.h.b16 %v5108
        %v7316 = vunpack.c.l.b16 %v5109
        %v7317 = vunpack.c.h.b16 %v5109
        %v7318 = vunpack.c.l.b16 %v5110
        %v7319 = vunpack.c.h.b16 %v5110
        %v7320 = vunpack.c.l.b16 %v5111
        %v7321 = vunpack.c.h.b16 %v5111
        %v7322 = vunpack.c.l.b16 %v5112
        %v7323 = vunpack.c.h.b16 %v5112
        %v7324 = vunpack.c.l.b16 %v5113
        %v7325 = vunpack.c.h.b16 %v5113
        %v7326 = vunpack.c.l.b16 %v5114
        %v7327 = vunpack.c.h.b16 %v5114
        %v7328 = vunpack.c.l.b16 %v5115
        %v7329 = vunpack.c.h.b16 %v5115
        %v7330 = vunpack.c.l.b16 %v5116
        %v7331 = vunpack.c.h.b16 %v5116
        %v7332 = vunpack.c.l.b16 %v5117
        %v7333 = vunpack.c.h.b16 %v5117
        %v7334 = vunpack.c.l.b16 %v5118
        %v7335 = vunpack.c.h.b16 %v5118
        %v7336 = vunpack.c.l.b16 %v5119
        %v7337 = vunpack.c.h.b16 %v5119
        %v7338 = vunpack.c.l.b16 %v5120
        %v7339 = vunpack.c.h.b16 %v5120
        %v7340 = vunpack.c.l.b16 %v5121
        %v7341 = vunpack.c.h.b16 %v5121
        %v7342 = vunpack.c.l.b16 %v5122
        %v7343 = vunpack.c.h.b16 %v5122
        %v7344 = vunpack.c.l.b16 %v5123
        %v7345 = vunpack.c.h.b16 %v5123
        %v7346 = vunpack.c.l.b16 %v5124
        %v7347 = vunpack.c.h.b16 %v5124
        %v7348 = vunpack.c.l.b16 %v5125
        %v7349 = vunpack.c.h.b16 %v5125
        %v7350 = vunpack.c.l.b16 %v5126
        %v7351 = vunpack.c.h.b16 %v5126
        %v7352 = vunpack.c.l.b16 %v5127
        %v7353 = vunpack.c.h.b16 %v5127
        %v7354 = vunpack.c.l.b16 %v5128
        %v7355 = vunpack.c.h.b16 %v5128
        %v7356 = vunpack.c.l.b16 %v5129
        %v7357 = vunpack.c.h.b16 %v5129
        %v7358 = vunpack.c.l.b16 %v5130
        %v7359 = vunpack.c.h.b16 %v5130
        %v7360 = vunpack.c.l.b16 %v5131
        %v7361 = vunpack.c.h.b16 %v5131
        %v7362 = vunpack.c.l.b16 %v5132
        %v7363 = vunpack.c.h.b16 %v5132
        %v7364 = vunpack.c.l.b16 %v5133
        %v7365 = vunpack.c.h.b16 %v5133
        %v7366 = vunpack.c.l.b16 %v5134
        %v7367 = vunpack.c.h.b16 %v5134
        %v7368 = vunpack.c.l.b16 %v5135
        %v7369 = vunpack.c.h.b16 %v5135
        %v7370 = vunpack.c.l.b16 %v5136
        %v7371 = vunpack.c.h.b16 %v5136
        %v7372 = vunpack.c.l.b16 %v5137
        %v7373 = vunpack.c.h.b16 %v5137
        %v7374 = vunpack.c.l.b16 %v5138
        %v7375 = vunpack.c.h.b16 %v5138
        %v7376 = vunpack.c.l.b16 %v5139
        %v7377 = vunpack.c.h.b16 %v5139
        %v7378 = vunpack.c.l.b16 %v5140
        %v7379 = vunpack.c.h.b16 %v5140
        %v7380 = vunpack.c.l.b16 %v5141
        %v7381 = vunpack.c.h.b16 %v5141
        %v7382 = vunpack.c.l.b16 %v5142
        %v7383 = vunpack.c.h.b16 %v5142
        %v7384 = vunpack.c.l.b16 %v5143
        %v7385 = vunpack.c.h.b16 %v5143
        %v7386 = vunpack.c.l.b16 %v5144
        %v7387 = vunpack.c.h.b16 %v5144
        %v7388 = vunpack.c.l.b16 %v5145
        %v7389 = vunpack.c.h.b16 %v5145
        %v7390 = vunpack.c.l.b16 %v5146
        %v7391 = vunpack.c.h.b16 %v5146
        %v7392 = vunpack.c.l.b16 %v5147
        %v7393 = vunpack.c.h.b16 %v5147
        %v7394 = vunpack.c.l.b16 %v5148
        %v7395 = vunpack.c.h.b16 %v5148
        %v7396 = vunpack.c.l.b16 %v5149
        %v7397 = vunpack.c.h.b16 %v5149
        %v7398 = vpack.c.b16 %v6344, %v6342
        %v7399 = vpack.c.b16 %v6345, %v6343
        %v7400 = vpack.c.b16 %v6348, %v6346
        %v7401 = vpack.c.b16 %v6349, %v6347
        %v7402 = vpack.c.b16 %v6352, %v6350
        %v7403 = vpack.c.b16 %v6353, %v6351
        %v7404 = vpack.c.b16 %v6356, %v6354
        %v7405 = vpack.c.b16 %v6357, %v6355
        %v7406 = vpack.c.b16 %v6360, %v6358
        %v7407 = vpack.c.b16 %v6361, %v6359
        %v7408 = vpack.c.b16 %v6364, %v6362
        %v7409 = vpack.c.b16 %v6365, %v6363
        %v7410 = vpack.c.b16 %v6368, %v6366
        %v7411 = vpack.c.b16 %v6369, %v6367
        %v7412 = vpack.c.b16 %v6372, %v6370
        %v7413 = vpack.c.b16 %v6373, %v6371
        %v7414 = vpack.c.b16 %v6376, %v6374
        %v7415 = vpack.c.b16 %v6377, %v6375
        %v7416 = vpack.c.b16 %v6380, %v6378
        %v7417 = vpack.c.b16 %v6381, %v6379
        %v7418 = vpack.c.b16 %v6384, %v6382
        %v7419 = vpack.c.b16 %v6385, %v6383
        %v7420 = vpack.c.b16 %v6388, %v6386
        %v7421 = vpack.c.b16 %v6389, %v6387
        %v7422 = vpack.c.b16 %v6392, %v6390
        %v7423 = vpack.c.b16 %v6393, %v6391
        %v7424 = vpack.c.b16 %v6396, %v6394
        %v7425 = vpack.c.b16 %v6397, %v6395
        %v7426 = vpack.c.b16 %v6400, %v6398
        %v7427 = vpack.c.b16 %v6401, %v6399
        %v7428 = vpack.c.b16 %v6404, %v6402
        %v7429 = vpack.c.b16 %v6405, %v6403
        %v7430 = vpack.c.b16 %v6408, %v6406
        %v7431 = vpack.c.b16 %v6409, %v6407
        %v7432 = vpack.c.b16 %v6412, %v6410
        %v7433 = vpack.c.b16 %v6413, %v6411
        %v7434 = vpack.c.b16 %v6416, %v6414
        %v7435 = vpack.c.b16 %v6417, %v6415
        %v7436 = vpack.c.b16 %v6420, %v6418
        %v7437 = vpack.c.b16 %v6421, %v6419
        %v7438 = vpack.c.b16 %v6424, %v6422
        %v7439 = vpack.c.b16 %v6425, %v6423
        %v7440 = vpack.c.b16 %v6428, %v6426
        %v7441 = vpack.c.b16 %v6429, %v6427
        %v7442 = vpack.c.b16 %v6432, %v6430
        %v7443 = vpack.c.b16 %v6433, %v6431
        %v7444 = vpack.c.b16 %v6436, %v6434
        %v7445 = vpack.c.b16 %v6437, %v6435
        %v7446 = vpack.c.b16 %v6440, %v6438
        %v7447 = vpack.c.b16 %v6441, %v6439
        %v7448 = vpack.c.b16 %v6444, %v6442
        %v7449 = vpack.c.b16 %v6445, %v6443
        %v7450 = vpack.c.b16 %v6448, %v6446
        %v7451 = vpack.c.b16 %v6449, %v6447
        %v7452 = vpack.c.b16 %v6452, %v6450
        %v7453 = vpack.c.b16 %v6453, %v6451
        %v7454 = vpack.c.b16 %v6456, %v6454
        %v7455 = vpack.c.b16 %v6457, %v6455
        %v7456 = vpack.c.b16 %v6460, %v6458
        %v7457 = vpack.c.b16 %v6461, %v6459
        %v7458 = vpack.c.b16 %v6464, %v6462
        %v7459 = vpack.c.b16 %v6465, %v6463
        %v7460 = vpack.c.b16 %v6468, %v6466
        %v7461 = vpack.c.b16 %v6469, %v6467
        %v7462 = vpack.c.b16 %v6472, %v6470
        %v7463 = vpack.c.b16 %v6473, %v6471
        %v7464 = vpack.c.b16 %v6476, %v6474
        %v7465 = vpack.c.b16 %v6477, %v6475
        %v7466 = vpack.c.b16 %v6480, %v6478
        %v7467 = vpack.c.b16 %v6481, %v6479
        %v7468 = vpack.c.b16 %v6484, %v6482
        %v7469 = vpack.c.b16 %v6485, %v6483
        %v7470 = vpack.c.b16 %v6488, %v6486
        %v7471 = vpack.c.b16 %v6489, %v6487
        %v7472 = vpack.c.b16 %v6492, %v6490
        %v7473 = vpack.c.b16 %v6493, %v6491
        %v7474 = vpack.c.b16 %v6496, %v6494
        %v7475 = vpack.c.b16 %v6497, %v6495
        %v7476 = vpack.c.b16 %v6500, %v6498
        %v7477 = vpack.c.b16 %v6501, %v6499
        %v7478 = vpack.c.b16 %v6504, %v6502
        %v7479 = vpack.c.b16 %v6505, %v6503
        %v7480 = vpack.c.b16 %v6508, %v6506
        %v7481 = vpack.c.b16 %v6509, %v6507
        %v7482 = vpack.c.b16 %v6512, %v6510
        %v7483 = vpack.c.b16 %v6513, %v6511
        %v7484 = vpack.c.b16 %v6516, %v6514
        %v7485 = vpack.c.b16 %v6517, %v6515
        %v7486 = vpack.c.b16 %v6520, %v6518
        %v7487 = vpack.c.b16 %v6521, %v6519
        %v7488 = vpack.c.b16 %v6524, %v6522
        %v7489 = vpack.c.b16 %v6525, %v6523
        %v7490 = vpack.c.b16 %v6528, %v6526
        %v7491 = vpack.c.b16 %v6529, %v6527
        %v7492 = vpack.c.b16 %v6532, %v6530
        %v7493 = vpack.c.b16 %v6533, %v6531
        %v7494 = vpack.c.b16 %v6536, %v6534
        %v7495 = vpack.c.b16 %v6537, %v6535
        %v7496 = vpack.c.b16 %v6540, %v6538
        %v7497 = vpack.c.b16 %v6541, %v6539
        %v7498 = vpack.c.b16 %v6544, %v6542
        %v7499 = vpack.c.b16 %v6545, %v6543
        %v7500 = vpack.c.b16 %v6548, %v6546
        %v7501 = vpack.c.b16 %v6549, %v6547
        %v7502 = vpack.c.b16 %v6552, %v6550
        %v7503 = vpack.c.b16 %v6553, %v6551
        %v7504 = vpack.c.b16 %v6556, %v6554
        %v7505 = vpack.c.b16 %v6557, %v6555
        %v7506 = vpack.c.b16 %v6560, %v6558
        %v7507 = vpack.c.b16 %v6561, %v6559
        %v7508 = vpack.c.b16 %v6564, %v6562
        %v7509 = vpack.c.b16 %v6565, %v6563
        %v7510 = vpack.c.b16 %v6568, %v6566
        %v7511 = vpack.c.b16 %v6569, %v6567
        %v7512 = vpack.c.b16 %v6572, %v6570
        %v7513 = vpack.c.b16 %v6573, %v6571
        %v7514 = vpack.c.b16 %v6576, %v6574
        %v7515 = vpack.c.b16 %v6577, %v6575
        %v7516 = vpack.c.b16 %v6580, %v6578
        %v7517 = vpack.c.b16 %v6581, %v6579
        %v7518 = vpack.c.b16 %v6584, %v6582
        %v7519 = vpack.c.b16 %v6585, %v6583
        %v7520 = vpack.c.b16 %v6588, %v6586
        %v7521 = vpack.c.b16 %v6589, %v6587
        %v7522 = vpack.c.b16 %v6592, %v6590
        %v7523 = vpack.c.b16 %v6593, %v6591
        %v7524 = vpack.c.b16 %v6596, %v6594
        %v7525 = vpack.c.b16 %v6597, %v6595
        %v7526 = vpack.c.b16 %v6600, %v6598
        %v7527 = vpack.c.b16 %v6601, %v6599
        %v7528 = vpack.c.b16 %v6604, %v6602
        %v7529 = vpack.c.b16 %v6605, %v6603
        %v7530 = vpack.c.b16 %v6608, %v6606
        %v7531 = vpack.c.b16 %v6609, %v6607
        %v7532 = vpack.c.b16 %v6612, %v6610
        %v7533 = vpack.c.b16 %v6613, %v6611
        %v7534 = vpack.c.b16 %v6616, %v6614
        %v7535 = vpack.c.b16 %v6617, %v6615
        %v7536 = vpack.c.b16 %v6620, %v6618
        %v7537 = vpack.c.b16 %v6621, %v6619
        %v7538 = vpack.c.b16 %v6624, %v6622
        %v7539 = vpack.c.b16 %v6625, %v6623
        %v7540 = vpack.c.b16 %v6628, %v6626
        %v7541 = vpack.c.b16 %v6629, %v6627
        %v7542 = vpack.c.b16 %v6632, %v6630
        %v7543 = vpack.c.b16 %v6633, %v6631
        %v7544 = vpack.c.b16 %v6636, %v6634
        %v7545 = vpack.c.b16 %v6637, %v6635
        %v7546 = vpack.c.b16 %v6640, %v6638
        %v7547 = vpack.c.b16 %v6641, %v6639
        %v7548 = vpack.c.b16 %v6644, %v6642
        %v7549 = vpack.c.b16 %v6645, %v6643
        %v7550 = vpack.c.b16 %v6648, %v6646
        %v7551 = vpack.c.b16 %v6649, %v6647
        %v7552 = vpack.c.b16 %v6652, %v6650
        %v7553 = vpack.c.b16 %v6653, %v6651
        %v7554 = vpack.c.b16 %v6656, %v6654
        %v7555 = vpack.c.b16 %v6657, %v6655
        %v7556 = vpack.c.b16 %v6660, %v6658
        %v7557 = vpack.c.b16 %v6661, %v6659
        %v7558 = vpack.c.b16 %v6664, %v6662
        %v7559 = vpack.c.b16 %v6665, %v6663
        %v7560 = vpack.c.b16 %v6668, %v6666
        %v7561 = vpack.c.b16 %v6669, %v6667
        %v7562 = vpack.c.b16 %v6672, %v6670
        %v7563 = vpack.c.b16 %v6673, %v6671
        %v7564 = vpack.c.b16 %v6676, %v6674
        %v7565 = vpack.c.b16 %v6677, %v6675
        %v7566 = vpack.c.b16 %v6680, %v6678
        %v7567 = vpack.c.b16 %v6681, %v6679
        %v7568 = vpack.c.b16 %v6684, %v6682
        %v7569 = vpack.c.b16 %v6685, %v6683
        %v7570 = vpack.c.b16 %v6688, %v6686
        %v7571 = vpack.c.b16 %v6689, %v6687
        %v7572 = vpack.c.b16 %v6692, %v6690
        %v7573 = vpack.c.b16 %v6693, %v6691
        %v7574 = vpack.c.b16 %v6696, %v6694
        %v7575 = vpack.c.b16 %v6697, %v6695
        %v7576 = vpack.c.b16 %v6700, %v6698
        %v7577 = vpack.c.b16 %v6701, %v6699
        %v7578 = vpack.c.b16 %v6704, %v6702
        %v7579 = vpack.c.b16 %v6705, %v6703
        %v7580 = vpack.c.b16 %v6708, %v6706
        %v7581 = vpack.c.b16 %v6709, %v6707
        %v7582 = vpack.c.b16 %v6712, %v6710
        %v7583 = vpack.c.b16 %v6713, %v6711
        %v7584 = vpack.c.b16 %v6716, %v6714
        %v7585 = vpack.c.b16 %v6717, %v6715
        %v7586 = vpack.c.b16 %v6720, %v6718
        %v7587 = vpack.c.b16 %v6721, %v6719
        %v7588 = vpack.c.b16 %v6724, %v6722
        %v7589 = vpack.c.b16 %v6725, %v6723
        %v7590 = vpack.c.b16 %v6728, %v6726
        %v7591 = vpack.c.b16 %v6729, %v6727
        %v7592 = vpack.c.b16 %v6732, %v6730
        %v7593 = vpack.c.b16 %v6733, %v6731
        %v7594 = vpack.c.b16 %v6736, %v6734
        %v7595 = vpack.c.b16 %v6737, %v6735
        %v7596 = vpack.c.b16 %v6740, %v6738
        %v7597 = vpack.c.b16 %v6741, %v6739
        %v7598 = vpack.c.b16 %v6744, %v6742
        %v7599 = vpack.c.b16 %v6745, %v6743
        %v7600 = vpack.c.b16 %v6748, %v6746
        %v7601 = vpack.c.b16 %v6749, %v6747
        %v7602 = vpack.c.b16 %v6752, %v6750
        %v7603 = vpack.c.b16 %v6753, %v6751
        %v7604 = vpack.c.b16 %v6756, %v6754
        %v7605 = vpack.c.b16 %v6757, %v6755
        %v7606 = vpack.c.b16 %v6760, %v6758
        %v7607 = vpack.c.b16 %v6761, %v6759
        %v7608 = vpack.c.b16 %v6764, %v6762
        %v7609 = vpack.c.b16 %v6765, %v6763
        %v7610 = vpack.c.b16 %v6768, %v6766
        %v7611 = vpack.c.b16 %v6769, %v6767
        %v7612 = vpack.c.b16 %v6772, %v6770
        %v7613 = vpack.c.b16 %v6773, %v6771
        %v7614 = vpack.c.b16 %v6776, %v6774
        %v7615 = vpack.c.b16 %v6777, %v6775
        %v7616 = vpack.c.b16 %v6780, %v6778
        %v7617 = vpack.c.b16 %v6781, %v6779
        %v7618 = vpack.c.b16 %v6784, %v6782
        %v7619 = vpack.c.b16 %v6785, %v6783
        %v7620 = vpack.c.b16 %v6788, %v6786
        %v7621 = vpack.c.b16 %v6789, %v6787
        %v7622 = vpack.c.b16 %v6792, %v6790
        %v7623 = vpack.c.b16 %v6793, %v6791
        %v7624 = vpack.c.b16 %v6796, %v6794
        %v7625 = vpack.c.b16 %v6797, %v6795
        %v7626 = vpack.c.b16 %v6800, %v6798
        %v7627 = vpack.c.b16 %v6801, %v6799
        %v7628 = vpack.c.b16 %v6804, %v6802
        %v7629 = vpack.c.b16 %v6805, %v6803
        %v7630 = vpack.c.b16 %v6808, %v6806
        %v7631 = vpack.c.b16 %v6809, %v6807
        %v7632 = vpack.c.b16 %v6812, %v6810
        %v7633 = vpack.c.b16 %v6813, %v6811
        %v7634 = vpack.c.b16 %v6816, %v6814
        %v7635 = vpack.c.b16 %v6817, %v6815
        %v7636 = vpack.c.b16 %v6820, %v6818
        %v7637 = vpack.c.b16 %v6821, %v6819
        %v7638 = vpack.c.b16 %v6824, %v6822
        %v7639 = vpack.c.b16 %v6825, %v6823
        %v7640 = vpack.c.b16 %v6828, %v6826
        %v7641 = vpack.c.b16 %v6829, %v6827
        %v7642 = vpack.c.b16 %v6832, %v6830
        %v7643 = vpack.c.b16 %v6833, %v6831
        %v7644 = vpack.c.b16 %v6836, %v6834
        %v7645 = vpack.c.b16 %v6837, %v6835
        %v7646 = vpack.c.b16 %v6840, %v6838
        %v7647 = vpack.c.b16 %v6841, %v6839
        %v7648 = vpack.c.b16 %v6844, %v6842
        %v7649 = vpack.c.b16 %v6845, %v6843
        %v7650 = vpack.c.b16 %v6848, %v6846
        %v7651 = vpack.c.b16 %v6849, %v6847
        %v7652 = vpack.c.b16 %v6852, %v6850
        %v7653 = vpack.c.b16 %v6853, %v6851
        %v7654 = vpack.c.b16 %v6856, %v6854
        %v7655 = vpack.c.b16 %v6857, %v6855
        %v7656 = vpack.c.b16 %v6860, %v6858
        %v7657 = vpack.c.b16 %v6861, %v6859
        %v7658 = vpack.c.b16 %v6864, %v6862
        %v7659 = vpack.c.b16 %v6865, %v6863
        %v7660 = vpack.c.b16 %v6868, %v6866
        %v7661 = vpack.c.b16 %v6869, %v6867
        %v7662 = vpack.c.b16 %v6872, %v6870
        %v7663 = vpack.c.b16 %v6873, %v6871
        %v7664 = vpack.c.b16 %v6876, %v6874
        %v7665 = vpack.c.b16 %v6877, %v6875
        %v7666 = vpack.c.b16 %v6880, %v6878
        %v7667 = vpack.c.b16 %v6881, %v6879
        %v7668 = vpack.c.b16 %v6884, %v6882
        %v7669 = vpack.c.b16 %v6885, %v6883
        %v7670 = vpack.c.b16 %v6888, %v6886
        %v7671 = vpack.c.b16 %v6889, %v6887
        %v7672 = vpack.c.b16 %v6892, %v6890
        %v7673 = vpack.c.b16 %v6893, %v6891
        %v7674 = vpack.c.b16 %v6896, %v6894
        %v7675 = vpack.c.b16 %v6897, %v6895
        %v7676 = vpack.c.b16 %v6900, %v6898
        %v7677 = vpack.c.b16 %v6901, %v6899
        %v7678 = vpack.c.b16 %v6904, %v6902
        %v7679 = vpack.c.b16 %v6905, %v6903
        %v7680 = vpack.c.b16 %v6908, %v6906
        %v7681 = vpack.c.b16 %v6909, %v6907
        %v7682 = vpack.c.b16 %v6912, %v6910
        %v7683 = vpack.c.b16 %v6913, %v6911
        %v7684 = vpack.c.b16 %v6916, %v6914
        %v7685 = vpack.c.b16 %v6917, %v6915
        %v7686 = vpack.c.b16 %v6920, %v6918
        %v7687 = vpack.c.b16 %v6921, %v6919
        %v7688 = vpack.c.b16 %v6924, %v6922
        %v7689 = vpack.c.b16 %v6925, %v6923
        %v7690 = vpack.c.b16 %v6928, %v6926
        %v7691 = vpack.c.b16 %v6929, %v6927
        %v7692 = vpack.c.b16 %v6932, %v6930
        %v7693 = vpack.c.b16 %v6933, %v6931
        %v7694 = vpack.c.b16 %v6936, %v6934
        %v7695 = vpack.c.b16 %v6937, %v6935
        %v7696 = vpack.c.b16 %v6940, %v6938
        %v7697 = vpack.c.b16 %v6941, %v6939
        %v7698 = vpack.c.b16 %v6944, %v6942
        %v7699 = vpack.c.b16 %v6945, %v6943
        %v7700 = vpack.c.b16 %v6948, %v6946
        %v7701 = vpack.c.b16 %v6949, %v6947
        %v7702 = vpack.c.b16 %v6952, %v6950
        %v7703 = vpack.c.b16 %v6953, %v6951
        %v7704 = vpack.c.b16 %v6956, %v6954
        %v7705 = vpack.c.b16 %v6957, %v6955
        %v7706 = vpack.c.b16 %v6960, %v6958
        %v7707 = vpack.c.b16 %v6961, %v6959
        %v7708 = vpack.c.b16 %v6964, %v6962
        %v7709 = vpack.c.b16 %v6965, %v6963
        %v7710 = vpack.c.b16 %v6968, %v6966
        %v7711 = vpack.c.b16 %v6969, %v6967
        %v7712 = vpack.c.b16 %v6972, %v6970
        %v7713 = vpack.c.b16 %v6973, %v6971
        %v7714 = vpack.c.b16 %v6976, %v6974
        %v7715 = vpack.c.b16 %v6977, %v6975
        %v7716 = vpack.c.b16 %v6980, %v6978
        %v7717 = vpack.c.b16 %v6981, %v6979
        %v7718 = vpack.c.b16 %v6984, %v6982
        %v7719 = vpack.c.b16 %v6985, %v6983
        %v7720 = vpack.c.b16 %v6988, %v6986
        %v7721 = vpack.c.b16 %v6989, %v6987
        %v7722 = vpack.c.b16 %v6992, %v6990
        %v7723 = vpack.c.b16 %v6993, %v6991
        %v7724 = vpack.c.b16 %v6996, %v6994
        %v7725 = vpack.c.b16 %v6997, %v6995
        %v7726 = vpack.c.b16 %v7000, %v6998
        %v7727 = vpack.c.b16 %v7001, %v6999
        %v7728 = vpack.c.b16 %v7004, %v7002
        %v7729 = vpack.c.b16 %v7005, %v7003
        %v7730 = vpack.c.b16 %v7008, %v7006
        %v7731 = vpack.c.b16 %v7009, %v7007
        %v7732 = vpack.c.b16 %v7012, %v7010
        %v7733 = vpack.c.b16 %v7013, %v7011
        %v7734 = vpack.c.b16 %v7016, %v7014
        %v7735 = vpack.c.b16 %v7017, %v7015
        %v7736 = vpack.c.b16 %v7020, %v7018
        %v7737 = vpack.c.b16 %v7021, %v7019
        %v7738 = vpack.c.b16 %v7024, %v7022
        %v7739 = vpack.c.b16 %v7025, %v7023
        %v7740 = vpack.c.b16 %v7028, %v7026
        %v7741 = vpack.c.b16 %v7029, %v7027
        %v7742 = vpack.c.b16 %v7032, %v7030
        %v7743 = vpack.c.b16 %v7033, %v7031
        %v7744 = vpack.c.b16 %v7036, %v7034
        %v7745 = vpack.c.b16 %v7037, %v7035
        %v7746 = vpack.c.b16 %v7040, %v7038
        %v7747 = vpack.c.b16 %v7041, %v7039
        %v7748 = vpack.c.b16 %v7044, %v7042
        %v7749 = vpack.c.b16 %v7045, %v7043
        %v7750 = vpack.c.b16 %v7048, %v7046
        %v7751 = vpack.c.b16 %v7049, %v7047
        %v7752 = vpack.c.b16 %v7052, %v7050
        %v7753 = vpack.c.b16 %v7053, %v7051
        %v7754 = vpack.c.b16 %v7056, %v7054
        %v7755 = vpack.c.b16 %v7057, %v7055
        %v7756 = vpack.c.b16 %v7060, %v7058
        %v7757 = vpack.c.b16 %v7061, %v7059
        %v7758 = vpack.c.b16 %v7064, %v7062
        %v7759 = vpack.c.b16 %v7065, %v7063
        %v7760 = vpack.c.b16 %v7068, %v7066
        %v7761 = vpack.c.b16 %v7069, %v7067
        %v7762 = vpack.c.b16 %v7072, %v7070
        %v7763 = vpack.c.b16 %v7073, %v7071
        %v7764 = vpack.c.b16 %v7076, %v7074
        %v7765 = vpack.c.b16 %v7077, %v7075
        %v7766 = vpack.c.b16 %v7080, %v7078
        %v7767 = vpack.c.b16 %v7081, %v7079
        %v7768 = vpack.c.b16 %v7084, %v7082
        %v7769 = vpack.c.b16 %v7085, %v7083
        %v7770 = vpack.c.b16 %v7088, %v7086
        %v7771 = vpack.c.b16 %v7089, %v7087
        %v7772 = vpack.c.b16 %v7092, %v7090
        %v7773 = vpack.c.b16 %v7093, %v7091
        %v7774 = vpack.c.b16 %v7096, %v7094
        %v7775 = vpack.c.b16 %v7097, %v7095
        %v7776 = vpack.c.b16 %v7100, %v7098
        %v7777 = vpack.c.b16 %v7101, %v7099
        %v7778 = vpack.c.b16 %v7104, %v7102
        %v7779 = vpack.c.b16 %v7105, %v7103
        %v7780 = vpack.c.b16 %v7108, %v7106
        %v7781 = vpack.c.b16 %v7109, %v7107
        %v7782 = vpack.c.b16 %v7112, %v7110
        %v7783 = vpack.c.b16 %v7113, %v7111
        %v7784 = vpack.c.b16 %v7116, %v7114
        %v7785 = vpack.c.b16 %v7117, %v7115
        %v7786 = vpack.c.b16 %v7120, %v7118
        %v7787 = vpack.c.b16 %v7121, %v7119
        %v7788 = vpack.c.b16 %v7124, %v7122
        %v7789 = vpack.c.b16 %v7125, %v7123
        %v7790 = vpack.c.b16 %v7128, %v7126
        %v7791 = vpack.c.b16 %v7129, %v7127
        %v7792 = vpack.c.b16 %v7132, %v7130
        %v7793 = vpack.c.b16 %v7133, %v7131
        %v7794 = vpack.c.b16 %v7136, %v7134
        %v7795 = vpack.c.b16 %v7137, %v7135
        %v7796 = vpack.c.b16 %v7140, %v7138
        %v7797 = vpack.c.b16 %v7141, %v7139
        %v7798 = vpack.c.b16 %v7144, %v7142
        %v7799 = vpack.c.b16 %v7145, %v7143
        %v7800 = vpack.c.b16 %v7148, %v7146
        %v7801 = vpack.c.b16 %v7149, %v7147
        %v7802 = vpack.c.b16 %v7152, %v7150
        %v7803 = vpack.c.b16 %v7153, %v7151
        %v7804 = vpack.c.b16 %v7156, %v7154
        %v7805 = vpack.c.b16 %v7157, %v7155
        %v7806 = vpack.c.b16 %v7160, %v7158
        %v7807 = vpack.c.b16 %v7161, %v7159
        %v7808 = vpack.c.b16 %v7164, %v7162
        %v7809 = vpack.c.b16 %v7165, %v7163
        %v7810 = vpack.c.b16 %v7168, %v7166
        %v7811 = vpack.c.b16 %v7169, %v7167
        %v7812 = vpack.c.b16 %v7172, %v7170
        %v7813 = vpack.c.b16 %v7173, %v7171
        %v7814 = vpack.c.b16 %v7176, %v7174
        %v7815 = vpack.c.b16 %v7177, %v7175
        %v7816 = vpack.c.b16 %v7180, %v7178
        %v7817 = vpack.c.b16 %v7181, %v7179
        %v7818 = vpack.c.b16 %v7184, %v7182
        %v7819 = vpack.c.b16 %v7185, %v7183
        %v7820 = vpack.c.b16 %v7188, %v7186
        %v7821 = vpack.c.b16 %v7189, %v7187
        %v7822 = vpack.c.b16 %v7192, %v7190
        %v7823 = vpack.c.b16 %v7193, %v7191
        %v7824 = vpack.c.b16 %v7196, %v7194
        %v7825 = vpack.c.b16 %v7197, %v7195
        %v7826 = vpack.c.b16 %v7200, %v7198
        %v7827 = vpack.c.b16 %v7201, %v7199
        %v7828 = vpack.c.b16 %v7204, %v7202
        %v7829 = vpack.c.b16 %v7205, %v7203
        %v7830 = vpack.c.b16 %v7208, %v7206
        %v7831 = vpack.c.b16 %v7209, %v7207
        %v7832 = vpack.c.b16 %v7212, %v7210
        %v7833 = vpack.c.b16 %v7213, %v7211
        %v7834 = vpack.c.b16 %v7216, %v7214
        %v7835 = vpack.c.b16 %v7217, %v7215
        %v7836 = vpack.c.b16 %v7220, %v7218
        %v7837 = vpack.c.b16 %v7221, %v7219
        %v7838 = vpack.c.b16 %v7224, %v7222
        %v7839 = vpack.c.b16 %v7225, %v7223
        %v7840 = vpack.c.b16 %v7228, %v7226
        %v7841 = vpack.c.b16 %v7229, %v7227
        %v7842 = vpack.c.b16 %v7232, %v7230
        %v7843 = vpack.c.b16 %v7233, %v7231
        %v7844 = vpack.c.b16 %v7236, %v7234
        %v7845 = vpack.c.b16 %v7237, %v7235
        %v7846 = vpack.c.b16 %v7240, %v7238
        %v7847 = vpack.c.b16 %v7241, %v7239
        %v7848 = vpack.c.b16 %v7244, %v7242
        %v7849 = vpack.c.b16 %v7245, %v7243
        %v7850 = vpack.c.b16 %v7248, %v7246
        %v7851 = vpack.c.b16 %v7249, %v7247
        %v7852 = vpack.c.b16 %v7252, %v7250
        %v7853 = vpack.c.b16 %v7253, %v7251
        %v7854 = vpack.c.b16 %v7256, %v7254
        %v7855 = vpack.c.b16 %v7257, %v7255
        %v7856 = vpack.c.b16 %v7260, %v7258
        %v7857 = vpack.c.b16 %v7261, %v7259
        %v7858 = vpack.c.b16 %v7264, %v7262
        %v7859 = vpack.c.b16 %v7265, %v7263
        %v7860 = vpack.c.b16 %v7268, %v7266
        %v7861 = vpack.c.b16 %v7269, %v7267
        %v7862 = vpack.c.b16 %v7272, %v7270
        %v7863 = vpack.c.b16 %v7273, %v7271
        %v7864 = vpack.c.b16 %v7276, %v7274
        %v7865 = vpack.c.b16 %v7277, %v7275
        %v7866 = vpack.c.b16 %v7280, %v7278
        %v7867 = vpack.c.b16 %v7281, %v7279
        %v7868 = vpack.c.b16 %v7284, %v7282
        %v7869 = vpack.c.b16 %v7285, %v7283
        %v7870 = vpack.c.b16 %v7288, %v7286
        %v7871 = vpack.c.b16 %v7289, %v7287
        %v7872 = vpack.c.b16 %v7292, %v7290
        %v7873 = vpack.c.b16 %v7293, %v7291
        %v7874 = vpack.c.b16 %v7296, %v7294
        %v7875 = vpack.c.b16 %v7297, %v7295
        %v7876 = vpack.c.b16 %v7300, %v7298
        %v7877 = vpack.c.b16 %v7301, %v7299
        %v7878 = vpack.c.b16 %v7304, %v7302
        %v7879 = vpack.c.b16 %v7305, %v7303
        %v7880 = vpack.c.b16 %v7308, %v7306
        %v7881 = vpack.c.b16 %v7309, %v7307
        %v7882 = vpack.c.b16 %v7312, %v7310
        %v7883 = vpack.c.b16 %v7313, %v7311
        %v7884 = vpack.c.b16 %v7316, %v7314
        %v7885 = vpack.c.b16 %v7317, %v7315
        %v7886 = vpack.c.b16 %v7320, %v7318
        %v7887 = vpack.c.b16 %v7321, %v7319
        %v7888 = vpack.c.b16 %v7324, %v7322
        %v7889 = vpack.c.b16 %v7325, %v7323
        %v7890 = vpack.c.b16 %v7328, %v7326
        %v7891 = vpack.c.b16 %v7329, %v7327
        %v7892 = vpack.c.b16 %v7332, %v7330
        %v7893 = vpack.c.b16 %v7333, %v7331
        %v7894 = vpack.c.b16 %v7336, %v7334
        %v7895 = vpack.c.b16 %v7337, %v7335
        %v7896 = vpack.c.b16 %v7340, %v7338
        %v7897 = vpack.c.b16 %v7341, %v7339
        %v7898 = vpack.c.b16 %v7344, %v7342
        %v7899 = vpack.c.b16 %v7345, %v7343
        %v7900 = vpack.c.b16 %v7348, %v7346
        %v7901 = vpack.c.b16 %v7349, %v7347
        %v7902 = vpack.c.b16 %v7352, %v7350
        %v7903 = vpack.c.b16 %v7353, %v7351
        %v7904 = vpack.c.b16 %v7356, %v7354
        %v7905 = vpack.c.b16 %v7357, %v7355
        %v7906 = vpack.c.b16 %v7360, %v7358
        %v7907 = vpack.c.b16 %v7361, %v7359
        %v7908 = vpack.c.b16 %v7364, %v7362
        %v7909 = vpack.c.b16 %v7365, %v7363
        %v7910 = vpack.c.b16 %v7368, %v7366
        %v7911 = vpack.c.b16 %v7369, %v7367
        %v7912 = vpack.c.b16 %v7372, %v7370
        %v7913 = vpack.c.b16 %v7373, %v7371
        %v7914 = vpack.c.b16 %v7376, %v7374
        %v7915 = vpack.c.b16 %v7377, %v7375
        %v7916 = vpack.c.b16 %v7380, %v7378
        %v7917 = vpack.c.b16 %v7381, %v7379
        %v7918 = vpack.c.b16 %v7384, %v7382
        %v7919 = vpack.c.b16 %v7385, %v7383
        %v7920 = vpack.c.b16 %v7388, %v7386
        %v7921 = vpack.c.b16 %v7389, %v7387
        %v7922 = vpack.c.b16 %v7392, %v7390
        %v7923 = vpack.c.b16 %v7393, %v7391
        %v7924 = vpack.c.b16 %v7396, %v7394
        %v7925 = vpack.c.b16 %v7397, %v7395
        %8454 = vmatprep.subr.bf16.mxu0 %v7399
        %8455 = vmatpush1.bf16.msra.mxu0 %v7398
        %8456 = vmatprep.subr.bf16.mxu0 %v7401
        %8457 = vmatpush1.bf16.msra.mxu0 %v7400
        %8458 = vmatprep.subr.bf16.mxu0 %v7403
        %8459 = vmatpush1.bf16.msra.mxu0 %v7402
        %8460 = vmatprep.subr.bf16.mxu0 %v7405
        %8461 = vmatpush1.bf16.msra.mxu0 %v7404
        %8462 = vmatprep.subr.bf16.mxu0 %v7407
        %8463 = vmatpush1.bf16.msra.mxu0 %v7406
        %8464 = vmatprep.subr.bf16.mxu0 %v7409
        %8465 = vmatpush1.bf16.msra.mxu0 %v7408
        %8466 = vmatprep.subr.bf16.mxu0 %v7411
        %8467 = vmatpush1.bf16.msra.mxu0 %v7410
        %8468 = vmatprep.subr.bf16.mxu0 %v7413
        %8469 = vmatpush1.bf16.msra.mxu0 %v7412
        %8470 = vmatprep.subr.bf16.mxu0 %v7415
        %8471 = vmatpush1.bf16.msra.mxu0 %v7414
        %8472 = vmatprep.subr.bf16.mxu0 %v7417
        %8473 = vmatpush1.bf16.msra.mxu0 %v7416
        %8474 = vmatprep.subr.bf16.mxu0 %v7419
        %8475 = vmatpush1.bf16.msra.mxu0 %v7418
        %8476 = vmatprep.subr.bf16.mxu0 %v7421
        %8477 = vmatpush1.bf16.msra.mxu0 %v7420
        %8478 = vmatprep.subr.bf16.mxu0 %v7423
        %8479 = vmatpush1.bf16.msra.mxu0 %v7422
        %8480 = vmatprep.subr.bf16.mxu0 %v7425
        %8481 = vmatpush1.bf16.msra.mxu0 %v7424
        %8482 = vmatprep.subr.bf16.mxu0 %v7427
        %8483 = vmatpush1.bf16.msra.mxu0 %v7426
        %8484 = vmatprep.subr.bf16.mxu0 %v7429
        %8485 = vmatpush1.bf16.msra.mxu0 %v7428
        %8486 = vmatprep.mubr.bf16.mxu0 %v5551
        %8487 = vmatmul.mubr.bf16.gmra.mrb[0].mxu0 %v5550
        %v8488 = vpop.f32.mrb[0].mxu0
        %v8489 = vadd.f32 0.0, %v8488
        %v8490 = vpop.f32.mrb[0].mxu0
        %v8491 = vadd.f32 0.0, %v8490
        %v8492 = vpop.f32.mrb[0].mxu0
        %v8493 = vadd.f32 0.0, %v8492
        %v8494 = vpop.f32.mrb[0].mxu0
        %v8495 = vadd.f32 0.0, %v8494
        %8496 = vmatprep.mubr.bf16.mxu0 %v5584
        %8497 = vmatmul.mubr.bf16.gmra.mrb[0].mxu0 %v5583
        %v8498 = vpop.f32.mrb[0].mxu0
        %v8499 = vadd.f32 0.0, %v8498
        %v8500 = vpop.f32.mrb[0].mxu0
        %v8501 = vadd.f32 0.0, %v8500
        %v8502 = vpop.f32.mrb[0].mxu0
        %v8503 = vadd.f32 0.0, %v8502
        %v8504 = vpop.f32.mrb[0].mxu0
        %v8505 = vadd.f32 0.0, %v8504
        %8506 = vmatprep.mubr.bf16.mxu0 %v5617
        %8507 = vmatmul.mubr.bf16.gmra.mrb[0].mxu0 %v5616
        %v8508 = vpop.f32.mrb[0].mxu0
        %v8509 = vadd.f32 0.0, %v8508
        %v8510 = vpop.f32.mrb[0].mxu0
        %v8511 = vadd.f32 0.0, %v8510
        %v8512 = vpop.f32.mrb[0].mxu0
        %v8513 = vadd.f32 0.0, %v8512
        %v8514 = vpop.f32.mrb[0].mxu0
        %v8515 = vadd.f32 0.0, %v8514
        %8516 = vmatprep.mubr.bf16.mxu0 %v5650
        %8517 = vmatmul.mubr.bf16.gmra.mrb[0].mxu0 %v5649
        %v8518 = vpop.f32.mrb[0].mxu0
        %v8519 = vadd.f32 0.0, %v8518
        %v8520 = vpop.f32.mrb[0].mxu0
        %v8521 = vadd.f32 0.0, %v8520
        %v8522 = vpop.f32.mrb[0].mxu0
        %v8523 = vadd.f32 0.0, %v8522
        %v8524 = vpop.f32.mrb[0].mxu0
        %v8525 = vadd.f32 0.0, %v8524
        %8526 = vdwg.mxu0
        %8527 = vmatprep.subr.bf16.mxu0 %v7431
        %8528 = vmatpush1.bf16.msra.mxu0 %v7430
        %8529 = vmatprep.subr.bf16.mxu0 %v7433
        %8530 = vmatpush1.bf16.msra.mxu0 %v7432
        %8531 = vmatprep.subr.bf16.mxu0 %v7435
        %8532 = vmatpush1.bf16.msra.mxu0 %v7434
        %8533 = vmatprep.subr.bf16.mxu0 %v7437
        %8534 = vmatpush1.bf16.msra.mxu0 %v7436
        %8535 = vmatprep.subr.bf16.mxu0 %v7439
        %8536 = vmatpush1.bf16.msra.mxu0 %v7438
        %8537 = vmatprep.subr.bf16.mxu0 %v7441
        %8538 = vmatpush1.bf16.msra.mxu0 %v7440
        %8539 = vmatprep.subr.bf16.mxu0 %v7443
        %8540 = vmatpush1.bf16.msra.mxu0 %v7442
        %8541 = vmatprep.subr.bf16.mxu0 %v7445
        %8542 = vmatpush1.bf16.msra.mxu0 %v7444
        %8543 = vmatprep.subr.bf16.mxu0 %v7447
        %8544 = vmatpush1.bf16.msra.mxu0 %v7446
        %8545 = vmatprep.subr.bf16.mxu0 %v7449
        %8546 = vmatpush1.bf16.msra.mxu0 %v7448
        %8547 = vmatprep.subr.bf16.mxu0 %v7451
        %8548 = vmatpush1.bf16.msra.mxu0 %v7450
        %8549 = vmatprep.subr.bf16.mxu0 %v7453
        %8550 = vmatpush1.bf16.msra.mxu0 %v7452
        %8551 = vmatprep.subr.bf16.mxu0 %v7455
        %8552 = vmatpush1.bf16.msra.mxu0 %v7454
        %8553 = vmatprep.subr.bf16.mxu0 %v7457
        %8554 = vmatpush1.bf16.msra.mxu0 %v7456
        %8555 = vmatprep.subr.bf16.mxu0 %v7459
        %8556 = vmatpush1.bf16.msra.mxu0 %v7458
        %8557 = vmatprep.subr.bf16.mxu0 %v7461
        %8558 = vmatpush1.bf16.msra.mxu0 %v7460
        %8559 = vmatprep.mubr.bf16.mxu0 %v5553
        %8560 = vmatmul.mubr.bf16.gmra.mrb[0].mxu0 %v5552
        %v8561 = vpop.f32.mrb[0].mxu0
        %v8562 = vadd.f32 %v8489, %v8561
        %v8563 = vpop.f32.mrb[0].mxu0
        %v8564 = vadd.f32 %v8491, %v8563
        %v8565 = vpop.f32.mrb[0].mxu0
        %v8566 = vadd.f32 %v8493, %v8565
        %v8567 = vpop.f32.mrb[0].mxu0
        %v8568 = vadd.f32 %v8495, %v8567
        %8569 = vmatprep.mubr.bf16.mxu0 %v5586
        %8570 = vmatmul.mubr.bf16.gmra.mrb[0].mxu0 %v5585
        %v8571 = vpop.f32.mrb[0].mxu0
        %v8572 = vadd.f32 %v8499, %v8571
        %v8573 = vpop.f32.mrb[0].mxu0
        %v8574 = vadd.f32 %v8501, %v8573
        %v8575 = vpop.f32.mrb[0].mxu0
        %v8576 = vadd.f32 %v8503, %v8575
        %v8577 = vpop.f32.mrb[0].mxu0
        %v8578 = vadd.f32 %v8505, %v8577
        %8579 = vmatprep.mubr.bf16.mxu0 %v5619
        %8580 = vmatmul.mubr.bf16.gmra.mrb[0].mxu0 %v5618
        %v8581 = vpop.f32.mrb[0].mxu0
        %v8582 = vadd.f32 %v8509, %v8581
        %v8583 = vpop.f32.mrb[0].mxu0
        %v8584 = vadd.f32 %v8511, %v8583
        %v8585 = vpop.f32.mrb[0].mxu0
        %v8586 = vadd.f32 %v8513, %v8585
        %v8587 = vpop.f32.mrb[0].mxu0
        %v8588 = vadd.f32 %v8515, %v8587
        %8589 = vmatprep.mubr.bf16.mxu0 %v5652
        %8590 = vmatmul.mubr.bf16.gmra.mrb[0].mxu0 %v5651
        %v8591 = vpop.f32.mrb[0].mxu0
        %v8592 = vadd.f32 %v8519, %v8591
        %v8593 = vpop.f32.mrb[0].mxu0
        %v8594 = vadd.f32 %v8521, %v8593
        %v8595 = vpop.f32.mrb[0].mxu0
        %v8596 = vadd.f32 %v8523, %v8595
        %v8597 = vpop.f32.mrb[0].mxu0
        %v8598 = vadd.f32 %v8525, %v8597
        %8599 = vdwg.mxu0
        %8600 = vmatprep.subr.bf16.mxu0 %v7463
        %8601 = vmatpush1.bf16.msra.mxu0 %v7462
        %8602 = vmatprep.subr.bf16.mxu0 %v7465
        %8603 = vmatpush1.bf16.msra.mxu0 %v7464
        %8604 = vmatprep.subr.bf16.mxu0 %v7467
        %8605 = vmatpush1.bf16.msra.mxu0 %v7466
        %8606 = vmatprep.subr.bf16.mxu0 %v7469
        %8607 = vmatpush1.bf16.msra.mxu0 %v7468
        %8608 = vmatprep.subr.bf16.mxu0 %v7471
        %8609 = vmatpush1.bf16.msra.mxu0 %v7470
        %8610 = vmatprep.subr.bf16.mxu0 %v7473
        %8611 = vmatpush1.bf16.msra.mxu0 %v7472
        %8612 = vmatprep.subr.bf16.mxu0 %v7475
        %8613 = vmatpush1.bf16.msra.mxu0 %v7474
        %8614 = vmatprep.subr.bf16.mxu0 %v7477
        %8615 = vmatpush1.bf16.msra.mxu0 %v7476
        %8616 = vmatprep.subr.bf16.mxu0 %v7479
        %8617 = vmatpush1.bf16.msra.mxu0 %v7478
        %8618 = vmatprep.subr.bf16.mxu0 %v7481
        %8619 = vmatpush1.bf16.msra.mxu0 %v7480
        %8620 = vmatprep.subr.bf16.mxu0 %v7483
        %8621 = vmatpush1.bf16.msra.mxu0 %v7482
        %8622 = vmatprep.subr.bf16.mxu0 %v7485
        %8623 = vmatpush1.bf16.msra.mxu0 %v7484
        %8624 = vmatprep.subr.bf16.mxu0 %v7487
        %8625 = vmatpush1.bf16.msra.mxu0 %v7486
        %8626 = vmatprep.subr.bf16.mxu0 %v7489
        %8627 = vmatpush1.bf16.msra.mxu0 %v7488
        %8628 = vmatprep.subr.bf16.mxu0 %v7491
        %8629 = vmatpush1.bf16.msra.mxu0 %v7490
        %8630 = vmatprep.subr.bf16.mxu0 %v7493
        %8631 = vmatpush1.bf16.msra.mxu0 %v7492
        %8632 = vmatprep.mubr.bf16.mxu0 %v5555
        %8633 = vmatmul.mubr.bf16.gmra.mrb[0].mxu0 %v5554
        %v8634 = vpop.f32.mrb[0].mxu0
        %v8635 = vadd.f32 %v8562, %v8634
        %v8636 = vpop.f32.mrb[0].mxu0
        %v8637 = vadd.f32 %v8564, %v8636
        %v8638 = vpop.f32.mrb[0].mxu0
        %v8639 = vadd.f32 %v8566, %v8638
        %v8640 = vpop.f32.mrb[0].mxu0
        %v8641 = vadd.f32 %v8568, %v8640
        %8642 = vmatprep.mubr.bf16.mxu0 %v5588
        %8643 = vmatmul.mubr.bf16.gmra.mrb[0].mxu0 %v5587
        %v8644 = vpop.f32.mrb[0].mxu0
        %v8645 = vadd.f32 %v8572, %v8644
        %v8646 = vpop.f32.mrb[0].mxu0
        %v8647 = vadd.f32 %v8574, %v8646
        %v8648 = vpop.f32.mrb[0].mxu0
        %v8649 = vadd.f32 %v8576, %v8648
        %v8650 = vpop.f32.mrb[0].mxu0
        %v8651 = vadd.f32 %v8578, %v8650
        %8652 = vmatprep.mubr.bf16.mxu0 %v5621
        %8653 = vmatmul.mubr.bf16.gmra.mrb[0].mxu0 %v5620
        %v8654 = vpop.f32.mrb[0].mxu0
        %v8655 = vadd.f32 %v8582, %v8654
        %v8656 = vpop.f32.mrb[0].mxu0
        %v8657 = vadd.f32 %v8584, %v8656
        %v8658 = vpop.f32.mrb[0].mxu0
        %v8659 = vadd.f32 %v8586, %v8658
        %v8660 = vpop.f32.mrb[0].mxu0
        %v8661 = vadd.f32 %v8588, %v8660
        %8662 = vmatprep.mubr.bf16.mxu0 %v5654
        %8663 = vmatmul.mubr.bf16.gmra.mrb[0].mxu0 %v5653
        %v8664 = vpop.f32.mrb[0].mxu0
        %v8665 = vadd.f32 %v8592, %v8664
        %v8666 = vpop.f32.mrb[0].mxu0
        %v8667 = vadd.f32 %v8594, %v8666
        %v8668 = vpop.f32.mrb[0].mxu0
        %v8669 = vadd.f32 %v8596, %v8668
        %v8670 = vpop.f32.mrb[0].mxu0
        %v8671 = vadd.f32 %v8598, %v8670
        %8672 = vdwg.mxu0
        %8673 = vmatprep.subr.bf16.mxu0 %v7495
        %8674 = vmatpush1.bf16.msra.mxu0 %v7494
        %8675 = vmatprep.subr.bf16.mxu0 %v7497
        %8676 = vmatpush1.bf16.msra.mxu0 %v7496
        %8677 = vmatprep.subr.bf16.mxu0 %v7499
        %8678 = vmatpush1.bf16.msra.mxu0 %v7498
        %8679 = vmatprep.subr.bf16.mxu0 %v7501
        %8680 = vmatpush1.bf16.msra.mxu0 %v7500
        %8681 = vmatprep.subr.bf16.mxu0 %v7503
        %8682 = vmatpush1.bf16.msra.mxu0 %v7502
        %8683 = vmatprep.subr.bf16.mxu0 %v7505
        %8684 = vmatpush1.bf16.msra.mxu0 %v7504
        %8685 = vmatprep.subr.bf16.mxu0 %v7507
        %8686 = vmatpush1.bf16.msra.mxu0 %v7506
        %8687 = vmatprep.subr.bf16.mxu0 %v7509
        %8688 = vmatpush1.bf16.msra.mxu0 %v7508
        %8689 = vmatprep.subr.bf16.mxu0 %v7511
        %8690 = vmatpush1.bf16.msra.mxu0 %v7510
        %8691 = vmatprep.subr.bf16.mxu0 %v7513
        %8692 = vmatpush1.bf16.msra.mxu0 %v7512
        %8693 = vmatprep.subr.bf16.mxu0 %v7515
        %8694 = vmatpush1.bf16.msra.mxu0 %v7514
        %8695 = vmatprep.subr.bf16.mxu0 %v7517
        %8696 = vmatpush1.bf16.msra.mxu0 %v7516
        %8697 = vmatprep.subr.bf16.mxu0 %v7519
        %8698 = vmatpush1.bf16.msra.mxu0 %v7518
        %8699 = vmatprep.subr.bf16.mxu0 %v7521
        %8700 = vmatpush1.bf16.msra.mxu0 %v7520
        %8701 = vmatprep.subr.bf16.mxu0 %v7523
        %8702 = vmatpush1.bf16.msra.mxu0 %v7522
        %8703 = vmatprep.subr.bf16.mxu0 %v7525
        %8704 = vmatpush1.bf16.msra.mxu0 %v7524
        %8705 = vmatprep.mubr.bf16.mxu0 %v5557
        %8706 = vmatmul.mubr.bf16.gmra.mrb[0].mxu0 %v5556
        %v8707 = vpop.f32.mrb[0].mxu0
        %v8708 = vadd.f32 %v8635, %v8707
        %v8709 = vpop.f32.mrb[0].mxu0
        %v8710 = vadd.f32 %v8637, %v8709
        %v8711 = vpop.f32.mrb[0].mxu0
        %v8712 = vadd.f32 %v8639, %v8711
        %v8713 = vpop.f32.mrb[0].mxu0
        %v8714 = vadd.f32 %v8641, %v8713
        %8715 = vmatprep.mubr.bf16.mxu0 %v5590
        %8716 = vmatmul.mubr.bf16.gmra.mrb[0].mxu0 %v5589
        %v8717 = vpop.f32.mrb[0].mxu0
        %v8718 = vadd.f32 %v8645, %v8717
        %v8719 = vpop.f32.mrb[0].mxu0
        %v8720 = vadd.f32 %v8647, %v8719
        %v8721 = vpop.f32.mrb[0].mxu0
        %v8722 = vadd.f32 %v8649, %v8721
        %v8723 = vpop.f32.mrb[0].mxu0
        %v8724 = vadd.f32 %v8651, %v8723
        %8725 = vmatprep.mubr.bf16.mxu0 %v5623
        %8726 = vmatmul.mubr.bf16.gmra.mrb[0].mxu0 %v5622
        %v8727 = vpop.f32.mrb[0].mxu0
        %v8728 = vadd.f32 %v8655, %v8727
        %v8729 = vpop.f32.mrb[0].mxu0
        %v8730 = vadd.f32 %v8657, %v8729
        %v8731 = vpop.f32.mrb[0].mxu0
        %v8732 = vadd.f32 %v8659, %v8731
        %v8733 = vpop.f32.mrb[0].mxu0
        %v8734 = vadd.f32 %v8661, %v8733
        %8735 = vmatprep.mubr.bf16.mxu0 %v5656
        %8736 = vmatmul.mubr.bf16.gmra.mrb[0].mxu0 %v5655
        %v8737 = vpop.f32.mrb[0].mxu0
        %v8738 = vadd.f32 %v8665, %v8737
        %v8739 = vpop.f32.mrb[0].mxu0
        %v8740 = vadd.f32 %v8667, %v8739
        %v8741 = vpop.f32.mrb[0].mxu0
        %v8742 = vadd.f32 %v8669, %v8741
        %v8743 = vpop.f32.mrb[0].mxu0
        %v8744 = vadd.f32 %v8671, %v8743
        %8745 = vdwg.mxu0
        %8746 = vmatprep.subr.bf16.mxu0 %v7527
        %8747 = vmatpush1.bf16.msra.mxu0 %v7526
        %8748 = vmatprep.subr.bf16.mxu0 %v7529
        %8749 = vmatpush1.bf16.msra.mxu0 %v7528
        %8750 = vmatprep.subr.bf16.mxu0 %v7531
        %8751 = vmatpush1.bf16.msra.mxu0 %v7530
        %8752 = vmatprep.subr.bf16.mxu0 %v7533
        %8753 = vmatpush1.bf16.msra.mxu0 %v7532
        %8754 = vmatprep.subr.bf16.mxu0 %v7535
        %8755 = vmatpush1.bf16.msra.mxu0 %v7534
        %8756 = vmatprep.subr.bf16.mxu0 %v7537
        %8757 = vmatpush1.bf16.msra.mxu0 %v7536
        %8758 = vmatprep.subr.bf16.mxu0 %v7539
        %8759 = vmatpush1.bf16.msra.mxu0 %v7538
        %8760 = vmatprep.subr.bf16.mxu0 %v7541
        %8761 = vmatpush1.bf16.msra.mxu0 %v7540
        %8762 = vmatprep.subr.bf16.mxu0 %v7543
        %8763 = vmatpush1.bf16.msra.mxu0 %v7542
        %8764 = vmatprep.subr.bf16.mxu0 %v7545
        %8765 = vmatpush1.bf16.msra.mxu0 %v7544
        %8766 = vmatprep.subr.bf16.mxu0 %v7547
        %8767 = vmatpush1.bf16.msra.mxu0 %v7546
        %8768 = vmatprep.subr.bf16.mxu0 %v7549
        %8769 = vmatpush1.bf16.msra.mxu0 %v7548
        %8770 = vmatprep.subr.bf16.mxu0 %v7551
        %8771 = vmatpush1.bf16.msra.mxu0 %v7550
        %8772 = vmatprep.subr.bf16.mxu0 %v7553
        %8773 = vmatpush1.bf16.msra.mxu0 %v7552
        %8774 = vmatprep.subr.bf16.mxu0 %v7555
        %8775 = vmatpush1.bf16.msra.mxu0 %v7554
        %8776 = vmatprep.subr.bf16.mxu0 %v7557
        %8777 = vmatpush1.bf16.msra.mxu0 %v7556
        %8778 = vmatprep.mubr.bf16.mxu0 %v5559
        %8779 = vmatmul.mubr.bf16.gmra.mrb[0].mxu0 %v5558
        %v8780 = vpop.f32.mrb[0].mxu0
        %v8781 = vadd.f32 %v8708, %v8780
        %v8782 = vpop.f32.mrb[0].mxu0
        %v8783 = vadd.f32 %v8710, %v8782
        %v8784 = vpop.f32.mrb[0].mxu0
        %v8785 = vadd.f32 %v8712, %v8784
        %v8786 = vpop.f32.mrb[0].mxu0
        %v8787 = vadd.f32 %v8714, %v8786
        %8788 = vmatprep.mubr.bf16.mxu0 %v5592
        %8789 = vmatmul.mubr.bf16.gmra.mrb[0].mxu0 %v5591
        %v8790 = vpop.f32.mrb[0].mxu0
        %v8791 = vadd.f32 %v8718, %v8790
        %v8792 = vpop.f32.mrb[0].mxu0
        %v8793 = vadd.f32 %v8720, %v8792
        %v8794 = vpop.f32.mrb[0].mxu0
        %v8795 = vadd.f32 %v8722, %v8794
        %v8796 = vpop.f32.mrb[0].mxu0
        %v8797 = vadd.f32 %v8724, %v8796
        %8798 = vmatprep.mubr.bf16.mxu0 %v5625
        %8799 = vmatmul.mubr.bf16.gmra.mrb[0].mxu0 %v5624
        %v8800 = vpop.f32.mrb[0].mxu0
        %v8801 = vadd.f32 %v8728, %v8800
        %v8802 = vpop.f32.mrb[0].mxu0
        %v8803 = vadd.f32 %v8730, %v8802
        %v8804 = vpop.f32.mrb[0].mxu0
        %v8805 = vadd.f32 %v8732, %v8804
        %v8806 = vpop.f32.mrb[0].mxu0
        %v8807 = vadd.f32 %v8734, %v8806
        %8808 = vmatprep.mubr.bf16.mxu0 %v5658
        %8809 = vmatmul.mubr.bf16.gmra.mrb[0].mxu0 %v5657
        %v8810 = vpop.f32.mrb[0].mxu0
        %v8811 = vadd.f32 %v8738, %v8810
        %v8812 = vpop.f32.mrb[0].mxu0
        %v8813 = vadd.f32 %v8740, %v8812
        %v8814 = vpop.f32.mrb[0].mxu0
        %v8815 = vadd.f32 %v8742, %v8814
        %v8816 = vpop.f32.mrb[0].mxu0
        %v8817 = vadd.f32 %v8744, %v8816
        %8818 = vdwg.mxu0
        %8819 = vmatprep.subr.bf16.mxu0 %v7559
        %8820 = vmatpush1.bf16.msra.mxu0 %v7558
        %8821 = vmatprep.subr.bf16.mxu0 %v7561
        %8822 = vmatpush1.bf16.msra.mxu0 %v7560
        %8823 = vmatprep.subr.bf16.mxu0 %v7563
        %8824 = vmatpush1.bf16.msra.mxu0 %v7562
        %8825 = vmatprep.subr.bf16.mxu0 %v7565
        %8826 = vmatpush1.bf16.msra.mxu0 %v7564
        %8827 = vmatprep.subr.bf16.mxu0 %v7567
        %8828 = vmatpush1.bf16.msra.mxu0 %v7566
        %8829 = vmatprep.subr.bf16.mxu0 %v7569
        %8830 = vmatpush1.bf16.msra.mxu0 %v7568
        %8831 = vmatprep.subr.bf16.mxu0 %v7571
        %8832 = vmatpush1.bf16.msra.mxu0 %v7570
        %8833 = vmatprep.subr.bf16.mxu0 %v7573
        %8834 = vmatpush1.bf16.msra.mxu0 %v7572
        %8835 = vmatprep.subr.bf16.mxu0 %v7575
        %8836 = vmatpush1.bf16.msra.mxu0 %v7574
        %8837 = vmatprep.subr.bf16.mxu0 %v7577
        %8838 = vmatpush1.bf16.msra.mxu0 %v7576
        %8839 = vmatprep.subr.bf16.mxu0 %v7579
        %8840 = vmatpush1.bf16.msra.mxu0 %v7578
        %8841 = vmatprep.subr.bf16.mxu0 %v7581
        %8842 = vmatpush1.bf16.msra.mxu0 %v7580
        %8843 = vmatprep.subr.bf16.mxu0 %v7583
        %8844 = vmatpush1.bf16.msra.mxu0 %v7582
        %8845 = vmatprep.subr.bf16.mxu0 %v7585
        %8846 = vmatpush1.bf16.msra.mxu0 %v7584
        %8847 = vmatprep.subr.bf16.mxu0 %v7587
        %8848 = vmatpush1.bf16.msra.mxu0 %v7586
        %8849 = vmatprep.subr.bf16.mxu0 %v7589
        %8850 = vmatpush1.bf16.msra.mxu0 %v7588
        %8851 = vmatprep.mubr.bf16.mxu0 %v5561
        %8852 = vmatmul.mubr.bf16.gmra.mrb[0].mxu0 %v5560
        %v8853 = vpop.f32.mrb[0].mxu0
        %v8854 = vadd.f32 %v8781, %v8853
        %v8855 = vpop.f32.mrb[0].mxu0
        %v8856 = vadd.f32 %v8783, %v8855
        %v8857 = vpop.f32.mrb[0].mxu0
        %v8858 = vadd.f32 %v8785, %v8857
        %v8859 = vpop.f32.mrb[0].mxu0
        %v8860 = vadd.f32 %v8787, %v8859
        %8861 = vmatprep.mubr.bf16.mxu0 %v5594
        %8862 = vmatmul.mubr.bf16.gmra.mrb[0].mxu0 %v5593
        %v8863 = vpop.f32.mrb[0].mxu0
        %v8864 = vadd.f32 %v8791, %v8863
        %v8865 = vpop.f32.mrb[0].mxu0
        %v8866 = vadd.f32 %v8793, %v8865
        %v8867 = vpop.f32.mrb[0].mxu0
        %v8868 = vadd.f32 %v8795, %v8867
        %v8869 = vpop.f32.mrb[0].mxu0
        %v8870 = vadd.f32 %v8797, %v8869
        %8871 = vmatprep.mubr.bf16.mxu0 %v5627
        %8872 = vmatmul.mubr.bf16.gmra.mrb[0].mxu0 %v5626
        %v8873 = vpop.f32.mrb[0].mxu0
        %v8874 = vadd.f32 %v8801, %v8873
        %v8875 = vpop.f32.mrb[0].mxu0
        %v8876 = vadd.f32 %v8803, %v8875
        %v8877 = vpop.f32.mrb[0].mxu0
        %v8878 = vadd.f32 %v8805, %v8877
        %v8879 = vpop.f32.mrb[0].mxu0
        %v8880 = vadd.f32 %v8807, %v8879
        %8881 = vmatprep.mubr.bf16.mxu0 %v5660
        %8882 = vmatmul.mubr.bf16.gmra.mrb[0].mxu0 %v5659
        %v8883 = vpop.f32.mrb[0].mxu0
        %v8884 = vadd.f32 %v8811, %v8883
        %v8885 = vpop.f32.mrb[0].mxu0
        %v8886 = vadd.f32 %v8813, %v8885
        %v8887 = vpop.f32.mrb[0].mxu0
        %v8888 = vadd.f32 %v8815, %v8887
        %v8889 = vpop.f32.mrb[0].mxu0
        %v8890 = vadd.f32 %v8817, %v8889
        %8891 = vdwg.mxu0
        %8892 = vmatprep.subr.bf16.mxu0 %v7591
        %8893 = vmatpush1.bf16.msra.mxu0 %v7590
        %8894 = vmatprep.subr.bf16.mxu0 %v7593
        %8895 = vmatpush1.bf16.msra.mxu0 %v7592
        %8896 = vmatprep.subr.bf16.mxu0 %v7595
        %8897 = vmatpush1.bf16.msra.mxu0 %v7594
        %8898 = vmatprep.subr.bf16.mxu0 %v7597
        %8899 = vmatpush1.bf16.msra.mxu0 %v7596
        %8900 = vmatprep.subr.bf16.mxu0 %v7599
        %8901 = vmatpush1.bf16.msra.mxu0 %v7598
        %8902 = vmatprep.subr.bf16.mxu0 %v7601
        %8903 = vmatpush1.bf16.msra.mxu0 %v7600
        %8904 = vmatprep.subr.bf16.mxu0 %v7603
        %8905 = vmatpush1.bf16.msra.mxu0 %v7602
        %8906 = vmatprep.subr.bf16.mxu0 %v7605
        %8907 = vmatpush1.bf16.msra.mxu0 %v7604
        %8908 = vmatprep.subr.bf16.mxu0 %v7607
        %8909 = vmatpush1.bf16.msra.mxu0 %v7606
        %8910 = vmatprep.subr.bf16.mxu0 %v7609
        %8911 = vmatpush1.bf16.msra.mxu0 %v7608
        %8912 = vmatprep.subr.bf16.mxu0 %v7611
        %8913 = vmatpush1.bf16.msra.mxu0 %v7610
        %8914 = vmatprep.subr.bf16.mxu0 %v7613
        %8915 = vmatpush1.bf16.msra.mxu0 %v7612
        %8916 = vmatprep.subr.bf16.mxu0 %v7615
        %8917 = vmatpush1.bf16.msra.mxu0 %v7614
        %8918 = vmatprep.subr.bf16.mxu0 %v7617
        %8919 = vmatpush1.bf16.msra.mxu0 %v7616
        %8920 = vmatprep.subr.bf16.mxu0 %v7619
        %8921 = vmatpush1.bf16.msra.mxu0 %v7618
        %8922 = vmatprep.subr.bf16.mxu0 %v7621
        %8923 = vmatpush1.bf16.msra.mxu0 %v7620
        %8924 = vmatprep.mubr.bf16.mxu0 %v5563
        %8925 = vmatmul.mubr.bf16.gmra.mrb[0].mxu0 %v5562
        %v8926 = vpop.f32.mrb[0].mxu0
        %v8927 = vadd.f32 %v8854, %v8926
        %v8928 = vpop.f32.mrb[0].mxu0
        %v8929 = vadd.f32 %v8856, %v8928
        %v8930 = vpop.f32.mrb[0].mxu0
        %v8931 = vadd.f32 %v8858, %v8930
        %v8932 = vpop.f32.mrb[0].mxu0
        %v8933 = vadd.f32 %v8860, %v8932
        %8934 = vmatprep.mubr.bf16.mxu0 %v5596
        %8935 = vmatmul.mubr.bf16.gmra.mrb[0].mxu0 %v5595
        %v8936 = vpop.f32.mrb[0].mxu0
        %v8937 = vadd.f32 %v8864, %v8936
        %v8938 = vpop.f32.mrb[0].mxu0
        %v8939 = vadd.f32 %v8866, %v8938
        %v8940 = vpop.f32.mrb[0].mxu0
        %v8941 = vadd.f32 %v8868, %v8940
        %v8942 = vpop.f32.mrb[0].mxu0
        %v8943 = vadd.f32 %v8870, %v8942
        %8944 = vmatprep.mubr.bf16.mxu0 %v5629
        %8945 = vmatmul.mubr.bf16.gmra.mrb[0].mxu0 %v5628
        %v8946 = vpop.f32.mrb[0].mxu0
        %v8947 = vadd.f32 %v8874, %v8946
        %v8948 = vpop.f32.mrb[0].mxu0
        %v8949 = vadd.f32 %v8876, %v8948
        %v8950 = vpop.f32.mrb[0].mxu0
        %v8951 = vadd.f32 %v8878, %v8950
        %v8952 = vpop.f32.mrb[0].mxu0
        %v8953 = vadd.f32 %v8880, %v8952
        %8954 = vmatprep.mubr.bf16.mxu0 %v5662
        %8955 = vmatmul.mubr.bf16.gmra.mrb[0].mxu0 %v5661
        %v8956 = vpop.f32.mrb[0].mxu0
        %v8957 = vadd.f32 %v8884, %v8956
        %v8958 = vpop.f32.mrb[0].mxu0
        %v8959 = vadd.f32 %v8886, %v8958
        %v8960 = vpop.f32.mrb[0].mxu0
        %v8961 = vadd.f32 %v8888, %v8960
        %v8962 = vpop.f32.mrb[0].mxu0
        %v8963 = vadd.f32 %v8890, %v8962
        %8964 = vdwg.mxu0
        %8965 = vmatprep.subr.bf16.mxu0 %v7623
        %8966 = vmatpush1.bf16.msra.mxu0 %v7622
        %8967 = vmatprep.subr.bf16.mxu0 %v7625
        %8968 = vmatpush1.bf16.msra.mxu0 %v7624
        %8969 = vmatprep.subr.bf16.mxu0 %v7627
        %8970 = vmatpush1.bf16.msra.mxu0 %v7626
        %8971 = vmatprep.subr.bf16.mxu0 %v7629
        %8972 = vmatpush1.bf16.msra.mxu0 %v7628
        %8973 = vmatprep.subr.bf16.mxu0 %v7631
        %8974 = vmatpush1.bf16.msra.mxu0 %v7630
        %8975 = vmatprep.subr.bf16.mxu0 %v7633
        %8976 = vmatpush1.bf16.msra.mxu0 %v7632
        %8977 = vmatprep.subr.bf16.mxu0 %v7635
        %8978 = vmatpush1.bf16.msra.mxu0 %v7634
        %8979 = vmatprep.subr.bf16.mxu0 %v7637
        %8980 = vmatpush1.bf16.msra.mxu0 %v7636
        %8981 = vmatprep.subr.bf16.mxu0 %v7639
        %8982 = vmatpush1.bf16.msra.mxu0 %v7638
        %8983 = vmatprep.subr.bf16.mxu0 %v7641
        %8984 = vmatpush1.bf16.msra.mxu0 %v7640
        %8985 = vmatprep.subr.bf16.mxu0 %v7643
        %8986 = vmatpush1.bf16.msra.mxu0 %v7642
        %8987 = vmatprep.subr.bf16.mxu0 %v7645
        %8988 = vmatpush1.bf16.msra.mxu0 %v7644
        %8989 = vmatprep.subr.bf16.mxu0 %v7647
        %8990 = vmatpush1.bf16.msra.mxu0 %v7646
        %8991 = vmatprep.subr.bf16.mxu0 %v7649
        %8992 = vmatpush1.bf16.msra.mxu0 %v7648
        %8993 = vmatprep.subr.bf16.mxu0 %v7651
        %8994 = vmatpush1.bf16.msra.mxu0 %v7650
        %8995 = vmatprep.subr.bf16.mxu0 %v7653
        %8996 = vmatpush1.bf16.msra.mxu0 %v7652
        %8997 = vmatprep.mubr.bf16.mxu0 %v5565
        %8998 = vmatmul.mubr.bf16.gmra.mrb[0].mxu0 %v5564
        %v8999 = vpop.f32.mrb[0].mxu0
        %v9000 = vadd.f32 %v8927, %v8999
        %v9001 = vpop.f32.mrb[0].mxu0
        %v9002 = vadd.f32 %v8929, %v9001
        %v9003 = vpop.f32.mrb[0].mxu0
        %v9004 = vadd.f32 %v8931, %v9003
        %v9005 = vpop.f32.mrb[0].mxu0
        %v9006 = vadd.f32 %v8933, %v9005
        %9007 = vmatprep.mubr.bf16.mxu0 %v5598
        %9008 = vmatmul.mubr.bf16.gmra.mrb[0].mxu0 %v5597
        %v9009 = vpop.f32.mrb[0].mxu0
        %v9010 = vadd.f32 %v8937, %v9009
        %v9011 = vpop.f32.mrb[0].mxu0
        %v9012 = vadd.f32 %v8939, %v9011
        %v9013 = vpop.f32.mrb[0].mxu0
        %v9014 = vadd.f32 %v8941, %v9013
        %v9015 = vpop.f32.mrb[0].mxu0
        %v9016 = vadd.f32 %v8943, %v9015
        %9017 = vmatprep.mubr.bf16.mxu0 %v5631
        %9018 = vmatmul.mubr.bf16.gmra.mrb[0].mxu0 %v5630
        %v9019 = vpop.f32.mrb[0].mxu0
        %v9020 = vadd.f32 %v8947, %v9019
        %v9021 = vpop.f32.mrb[0].mxu0
        %v9022 = vadd.f32 %v8949, %v9021
        %v9023 = vpop.f32.mrb[0].mxu0
        %v9024 = vadd.f32 %v8951, %v9023
        %v9025 = vpop.f32.mrb[0].mxu0
        %v9026 = vadd.f32 %v8953, %v9025
        %9027 = vmatprep.mubr.bf16.mxu0 %v5664
        %9028 = vmatmul.mubr.bf16.gmra.mrb[0].mxu0 %v5663
        %v9029 = vpop.f32.mrb[0].mxu0
        %v9030 = vadd.f32 %v8957, %v9029
        %v9031 = vpop.f32.mrb[0].mxu0
        %v9032 = vadd.f32 %v8959, %v9031
        %v9033 = vpop.f32.mrb[0].mxu0
        %v9034 = vadd.f32 %v8961, %v9033
        %v9035 = vpop.f32.mrb[0].mxu0
        %v9036 = vadd.f32 %v8963, %v9035
        %9037 = vdwg.mxu0
        %9038 = vmatprep.subr.bf16.mxu0 %v7655
        %9039 = vmatpush1.bf16.msra.mxu0 %v7654
        %9040 = vmatprep.subr.bf16.mxu0 %v7657
        %9041 = vmatpush1.bf16.msra.mxu0 %v7656
        %9042 = vmatprep.subr.bf16.mxu0 %v7659
        %9043 = vmatpush1.bf16.msra.mxu0 %v7658
        %9044 = vmatprep.subr.bf16.mxu0 %v7661
        %9045 = vmatpush1.bf16.msra.mxu0 %v7660
        %9046 = vmatprep.subr.bf16.mxu0 %v7663
        %9047 = vmatpush1.bf16.msra.mxu0 %v7662
        %9048 = vmatprep.subr.bf16.mxu0 %v7665
        %9049 = vmatpush1.bf16.msra.mxu0 %v7664
        %9050 = vmatprep.subr.bf16.mxu0 %v7667
        %9051 = vmatpush1.bf16.msra.mxu0 %v7666
        %9052 = vmatprep.subr.bf16.mxu0 %v7669
        %9053 = vmatpush1.bf16.msra.mxu0 %v7668
        %9054 = vmatprep.subr.bf16.mxu0 %v7671
        %9055 = vmatpush1.bf16.msra.mxu0 %v7670
        %9056 = vmatprep.subr.bf16.mxu0 %v7673
        %9057 = vmatpush1.bf16.msra.mxu0 %v7672
        %9058 = vmatprep.subr.bf16.mxu0 %v7675
        %9059 = vmatpush1.bf16.msra.mxu0 %v7674
        %9060 = vmatprep.subr.bf16.mxu0 %v7677
        %9061 = vmatpush1.bf16.msra.mxu0 %v7676
        %9062 = vmatprep.subr.bf16.mxu0 %v7679
        %9063 = vmatpush1.bf16.msra.mxu0 %v7678
        %9064 = vmatprep.subr.bf16.mxu0 %v7681
        %9065 = vmatpush1.bf16.msra.mxu0 %v7680
        %9066 = vmatprep.subr.bf16.mxu0 %v7683
        %9067 = vmatpush1.bf16.msra.mxu0 %v7682
        %9068 = vmatprep.subr.bf16.mxu0 %v7685
        %9069 = vmatpush1.bf16.msra.mxu0 %v7684
        %9070 = vmatprep.mubr.bf16.mxu0 %v5567
        %9071 = vmatmul.mubr.bf16.gmra.mrb[0].mxu0 %v5566
        %v9072 = vpop.f32.mrb[0].mxu0
        %v9073 = vadd.f32 %v9000, %v9072
        %v9074 = vpop.f32.mrb[0].mxu0
        %v9075 = vadd.f32 %v9002, %v9074
        %v9076 = vpop.f32.mrb[0].mxu0
        %v9077 = vadd.f32 %v9004, %v9076
        %v9078 = vpop.f32.mrb[0].mxu0
        %v9079 = vadd.f32 %v9006, %v9078
        %9080 = vmatprep.mubr.bf16.mxu0 %v5600
        %9081 = vmatmul.mubr.bf16.gmra.mrb[0].mxu0 %v5599
        %v9082 = vpop.f32.mrb[0].mxu0
        %v9083 = vadd.f32 %v9010, %v9082
        %v9084 = vpop.f32.mrb[0].mxu0
        %v9085 = vadd.f32 %v9012, %v9084
        %v9086 = vpop.f32.mrb[0].mxu0
        %v9087 = vadd.f32 %v9014, %v9086
        %v9088 = vpop.f32.mrb[0].mxu0
        %v9089 = vadd.f32 %v9016, %v9088
        %9090 = vmatprep.mubr.bf16.mxu0 %v5633
        %9091 = vmatmul.mubr.bf16.gmra.mrb[0].mxu0 %v5632
        %v9092 = vpop.f32.mrb[0].mxu0
        %v9093 = vadd.f32 %v9020, %v9092
        %v9094 = vpop.f32.mrb[0].mxu0
        %v9095 = vadd.f32 %v9022, %v9094
        %v9096 = vpop.f32.mrb[0].mxu0
        %v9097 = vadd.f32 %v9024, %v9096
        %v9098 = vpop.f32.mrb[0].mxu0
        %v9099 = vadd.f32 %v9026, %v9098
        %9100 = vmatprep.mubr.bf16.mxu0 %v5666
        %9101 = vmatmul.mubr.bf16.gmra.mrb[0].mxu0 %v5665
        %v9102 = vpop.f32.mrb[0].mxu0
        %v9103 = vadd.f32 %v9030, %v9102
        %v9104 = vpop.f32.mrb[0].mxu0
        %v9105 = vadd.f32 %v9032, %v9104
        %v9106 = vpop.f32.mrb[0].mxu0
        %v9107 = vadd.f32 %v9034, %v9106
        %v9108 = vpop.f32.mrb[0].mxu0
        %v9109 = vadd.f32 %v9036, %v9108
        %9110 = vdwg.mxu0
        %9111 = vmatprep.subr.bf16.mxu0 %v7687
        %9112 = vmatpush1.bf16.msra.mxu0 %v7686
        %9113 = vmatprep.subr.bf16.mxu0 %v7689
        %9114 = vmatpush1.bf16.msra.mxu0 %v7688
        %9115 = vmatprep.subr.bf16.mxu0 %v7691
        %9116 = vmatpush1.bf16.msra.mxu0 %v7690
        %9117 = vmatprep.subr.bf16.mxu0 %v7693
        %9118 = vmatpush1.bf16.msra.mxu0 %v7692
        %9119 = vmatprep.subr.bf16.mxu0 %v7695
        %9120 = vmatpush1.bf16.msra.mxu0 %v7694
        %9121 = vmatprep.subr.bf16.mxu0 %v7697
        %9122 = vmatpush1.bf16.msra.mxu0 %v7696
        %9123 = vmatprep.subr.bf16.mxu0 %v7699
        %9124 = vmatpush1.bf16.msra.mxu0 %v7698
        %9125 = vmatprep.subr.bf16.mxu0 %v7701
        %9126 = vmatpush1.bf16.msra.mxu0 %v7700
        %9127 = vmatprep.subr.bf16.mxu0 %v7703
        %9128 = vmatpush1.bf16.msra.mxu0 %v7702
        %9129 = vmatprep.subr.bf16.mxu0 %v7705
        %9130 = vmatpush1.bf16.msra.mxu0 %v7704
        %9131 = vmatprep.subr.bf16.mxu0 %v7707
        %9132 = vmatpush1.bf16.msra.mxu0 %v7706
        %9133 = vmatprep.subr.bf16.mxu0 %v7709
        %9134 = vmatpush1.bf16.msra.mxu0 %v7708
        %9135 = vmatprep.subr.bf16.mxu0 %v7711
        %9136 = vmatpush1.bf16.msra.mxu0 %v7710
        %9137 = vmatprep.subr.bf16.mxu0 %v7713
        %9138 = vmatpush1.bf16.msra.mxu0 %v7712
        %9139 = vmatprep.subr.bf16.mxu0 %v7715
        %9140 = vmatpush1.bf16.msra.mxu0 %v7714
        %9141 = vmatprep.subr.bf16.mxu0 %v7717
        %9142 = vmatpush1.bf16.msra.mxu0 %v7716
        %9143 = vmatprep.mubr.bf16.mxu0 %v5569
        %9144 = vmatmul.mubr.bf16.gmra.mrb[0].mxu0 %v5568
        %v9145 = vpop.f32.mrb[0].mxu0
        %v9146 = vadd.f32 %v9073, %v9145
        %v9147 = vpop.f32.mrb[0].mxu0
        %v9148 = vadd.f32 %v9075, %v9147
        %v9149 = vpop.f32.mrb[0].mxu0
        %v9150 = vadd.f32 %v9077, %v9149
        %v9151 = vpop.f32.mrb[0].mxu0
        %v9152 = vadd.f32 %v9079, %v9151
        %9153 = vmatprep.mubr.bf16.mxu0 %v5602
        %9154 = vmatmul.mubr.bf16.gmra.mrb[0].mxu0 %v5601
        %v9155 = vpop.f32.mrb[0].mxu0
        %v9156 = vadd.f32 %v9083, %v9155
        %v9157 = vpop.f32.mrb[0].mxu0
        %v9158 = vadd.f32 %v9085, %v9157
        %v9159 = vpop.f32.mrb[0].mxu0
        %v9160 = vadd.f32 %v9087, %v9159
        %v9161 = vpop.f32.mrb[0].mxu0
        %v9162 = vadd.f32 %v9089, %v9161
        %9163 = vmatprep.mubr.bf16.mxu0 %v5635
        %9164 = vmatmul.mubr.bf16.gmra.mrb[0].mxu0 %v5634
        %v9165 = vpop.f32.mrb[0].mxu0
        %v9166 = vadd.f32 %v9093, %v9165
        %v9167 = vpop.f32.mrb[0].mxu0
        %v9168 = vadd.f32 %v9095, %v9167
        %v9169 = vpop.f32.mrb[0].mxu0
        %v9170 = vadd.f32 %v9097, %v9169
        %v9171 = vpop.f32.mrb[0].mxu0
        %v9172 = vadd.f32 %v9099, %v9171
        %9173 = vmatprep.mubr.bf16.mxu0 %v5668
        %9174 = vmatmul.mubr.bf16.gmra.mrb[0].mxu0 %v5667
        %v9175 = vpop.f32.mrb[0].mxu0
        %v9176 = vadd.f32 %v9103, %v9175
        %v9177 = vpop.f32.mrb[0].mxu0
        %v9178 = vadd.f32 %v9105, %v9177
        %v9179 = vpop.f32.mrb[0].mxu0
        %v9180 = vadd.f32 %v9107, %v9179
        %v9181 = vpop.f32.mrb[0].mxu0
        %v9182 = vadd.f32 %v9109, %v9181
        %9183 = vdwg.mxu0
        %9184 = vmatprep.subr.bf16.mxu0 %v7719
        %9185 = vmatpush1.bf16.msra.mxu0 %v7718
        %9186 = vmatprep.subr.bf16.mxu0 %v7721
        %9187 = vmatpush1.bf16.msra.mxu0 %v7720
        %9188 = vmatprep.subr.bf16.mxu0 %v7723
        %9189 = vmatpush1.bf16.msra.mxu0 %v7722
        %9190 = vmatprep.subr.bf16.mxu0 %v7725
        %9191 = vmatpush1.bf16.msra.mxu0 %v7724
        %9192 = vmatprep.subr.bf16.mxu0 %v7727
        %9193 = vmatpush1.bf16.msra.mxu0 %v7726
        %9194 = vmatprep.subr.bf16.mxu0 %v7729
        %9195 = vmatpush1.bf16.msra.mxu0 %v7728
        %9196 = vmatprep.subr.bf16.mxu0 %v7731
        %9197 = vmatpush1.bf16.msra.mxu0 %v7730
        %9198 = vmatprep.subr.bf16.mxu0 %v7733
        %9199 = vmatpush1.bf16.msra.mxu0 %v7732
        %9200 = vmatprep.subr.bf16.mxu0 %v7735
        %9201 = vmatpush1.bf16.msra.mxu0 %v7734
        %9202 = vmatprep.subr.bf16.mxu0 %v7737
        %9203 = vmatpush1.bf16.msra.mxu0 %v7736
        %9204 = vmatprep.subr.bf16.mxu0 %v7739
        %9205 = vmatpush1.bf16.msra.mxu0 %v7738
        %9206 = vmatprep.subr.bf16.mxu0 %v7741
        %9207 = vmatpush1.bf16.msra.mxu0 %v7740
        %9208 = vmatprep.subr.bf16.mxu0 %v7743
        %9209 = vmatpush1.bf16.msra.mxu0 %v7742
        %9210 = vmatprep.subr.bf16.mxu0 %v7745
        %9211 = vmatpush1.bf16.msra.mxu0 %v7744
        %9212 = vmatprep.subr.bf16.mxu0 %v7747
        %9213 = vmatpush1.bf16.msra.mxu0 %v7746
        %9214 = vmatprep.subr.bf16.mxu0 %v7749
        %9215 = vmatpush1.bf16.msra.mxu0 %v7748
        %9216 = vmatprep.mubr.bf16.mxu0 %v5571
        %9217 = vmatmul.mubr.bf16.gmra.mrb[0].mxu0 %v5570
        %v9218 = vpop.f32.mrb[0].mxu0
        %v9219 = vadd.f32 %v9146, %v9218
        %v9220 = vpop.f32.mrb[0].mxu0
        %v9221 = vadd.f32 %v9148, %v9220
        %v9222 = vpop.f32.mrb[0].mxu0
        %v9223 = vadd.f32 %v9150, %v9222
        %v9224 = vpop.f32.mrb[0].mxu0
        %v9225 = vadd.f32 %v9152, %v9224
        %9226 = vmatprep.mubr.bf16.mxu0 %v5604
        %9227 = vmatmul.mubr.bf16.gmra.mrb[0].mxu0 %v5603
        %v9228 = vpop.f32.mrb[0].mxu0
        %v9229 = vadd.f32 %v9156, %v9228
        %v9230 = vpop.f32.mrb[0].mxu0
        %v9231 = vadd.f32 %v9158, %v9230
        %v9232 = vpop.f32.mrb[0].mxu0
        %v9233 = vadd.f32 %v9160, %v9232
        %v9234 = vpop.f32.mrb[0].mxu0
        %v9235 = vadd.f32 %v9162, %v9234
        %9236 = vmatprep.mubr.bf16.mxu0 %v5637
        %9237 = vmatmul.mubr.bf16.gmra.mrb[0].mxu0 %v5636
        %v9238 = vpop.f32.mrb[0].mxu0
        %v9239 = vadd.f32 %v9166, %v9238
        %v9240 = vpop.f32.mrb[0].mxu0
        %v9241 = vadd.f32 %v9168, %v9240
        %v9242 = vpop.f32.mrb[0].mxu0
        %v9243 = vadd.f32 %v9170, %v9242
        %v9244 = vpop.f32.mrb[0].mxu0
        %v9245 = vadd.f32 %v9172, %v9244
        %9246 = vmatprep.mubr.bf16.mxu0 %v5670
        %9247 = vmatmul.mubr.bf16.gmra.mrb[0].mxu0 %v5669
        %v9248 = vpop.f32.mrb[0].mxu0
        %v9249 = vadd.f32 %v9176, %v9248
        %v9250 = vpop.f32.mrb[0].mxu0
        %v9251 = vadd.f32 %v9178, %v9250
        %v9252 = vpop.f32.mrb[0].mxu0
        %v9253 = vadd.f32 %v9180, %v9252
        %v9254 = vpop.f32.mrb[0].mxu0
        %v9255 = vadd.f32 %v9182, %v9254
        %9256 = vdwg.mxu0
        %9257 = vmatprep.subr.bf16.mxu0 %v7751
        %9258 = vmatpush1.bf16.msra.mxu0 %v7750
        %9259 = vmatprep.subr.bf16.mxu0 %v7753
        %9260 = vmatpush1.bf16.msra.mxu0 %v7752
        %9261 = vmatprep.subr.bf16.mxu0 %v7755
        %9262 = vmatpush1.bf16.msra.mxu0 %v7754
        %9263 = vmatprep.subr.bf16.mxu0 %v7757
        %9264 = vmatpush1.bf16.msra.mxu0 %v7756
        %9265 = vmatprep.subr.bf16.mxu0 %v7759
        %9266 = vmatpush1.bf16.msra.mxu0 %v7758
        %9267 = vmatprep.subr.bf16.mxu0 %v7761
        %9268 = vmatpush1.bf16.msra.mxu0 %v7760
        %9269 = vmatprep.subr.bf16.mxu0 %v7763
        %9270 = vmatpush1.bf16.msra.mxu0 %v7762
        %9271 = vmatprep.subr.bf16.mxu0 %v7765
        %9272 = vmatpush1.bf16.msra.mxu0 %v7764
        %9273 = vmatprep.subr.bf16.mxu0 %v7767
        %9274 = vmatpush1.bf16.msra.mxu0 %v7766
        %9275 = vmatprep.subr.bf16.mxu0 %v7769
        %9276 = vmatpush1.bf16.msra.mxu0 %v7768
        %9277 = vmatprep.subr.bf16.mxu0 %v7771
        %9278 = vmatpush1.bf16.msra.mxu0 %v7770
        %9279 = vmatprep.subr.bf16.mxu0 %v7773
        %9280 = vmatpush1.bf16.msra.mxu0 %v7772
        %9281 = vmatprep.subr.bf16.mxu0 %v7775
        %9282 = vmatpush1.bf16.msra.mxu0 %v7774
        %9283 = vmatprep.subr.bf16.mxu0 %v7777
        %9284 = vmatpush1.bf16.msra.mxu0 %v7776
        %9285 = vmatprep.subr.bf16.mxu0 %v7779
        %9286 = vmatpush1.bf16.msra.mxu0 %v7778
        %9287 = vmatprep.subr.bf16.mxu0 %v7781
        %9288 = vmatpush1.bf16.msra.mxu0 %v7780
        %9289 = vmatprep.mubr.bf16.mxu0 %v5573
        %9290 = vmatmul.mubr.bf16.gmra.mrb[0].mxu0 %v5572
        %v9291 = vpop.f32.mrb[0].mxu0
        %v9292 = vadd.f32 %v9219, %v9291
        %v9293 = vpop.f32.mrb[0].mxu0
        %v9294 = vadd.f32 %v9221, %v9293
        %v9295 = vpop.f32.mrb[0].mxu0
        %v9296 = vadd.f32 %v9223, %v9295
        %v9297 = vpop.f32.mrb[0].mxu0
        %v9298 = vadd.f32 %v9225, %v9297
        %9299 = vmatprep.mubr.bf16.mxu0 %v5606
        %9300 = vmatmul.mubr.bf16.gmra.mrb[0].mxu0 %v5605
        %v9301 = vpop.f32.mrb[0].mxu0
        %v9302 = vadd.f32 %v9229, %v9301
        %v9303 = vpop.f32.mrb[0].mxu0
        %v9304 = vadd.f32 %v9231, %v9303
        %v9305 = vpop.f32.mrb[0].mxu0
        %v9306 = vadd.f32 %v9233, %v9305
        %v9307 = vpop.f32.mrb[0].mxu0
        %v9308 = vadd.f32 %v9235, %v9307
        %9309 = vmatprep.mubr.bf16.mxu0 %v5639
        %9310 = vmatmul.mubr.bf16.gmra.mrb[0].mxu0 %v5638
        %v9311 = vpop.f32.mrb[0].mxu0
        %v9312 = vadd.f32 %v9239, %v9311
        %v9313 = vpop.f32.mrb[0].mxu0
        %v9314 = vadd.f32 %v9241, %v9313
        %v9315 = vpop.f32.mrb[0].mxu0
        %v9316 = vadd.f32 %v9243, %v9315
        %v9317 = vpop.f32.mrb[0].mxu0
        %v9318 = vadd.f32 %v9245, %v9317
        %9319 = vmatprep.mubr.bf16.mxu0 %v5672
        %9320 = vmatmul.mubr.bf16.gmra.mrb[0].mxu0 %v5671
        %v9321 = vpop.f32.mrb[0].mxu0
        %v9322 = vadd.f32 %v9249, %v9321
        %v9323 = vpop.f32.mrb[0].mxu0
        %v9324 = vadd.f32 %v9251, %v9323
        %v9325 = vpop.f32.mrb[0].mxu0
        %v9326 = vadd.f32 %v9253, %v9325
        %v9327 = vpop.f32.mrb[0].mxu0
        %v9328 = vadd.f32 %v9255, %v9327
        %9329 = vdwg.mxu0
        %9330 = vmatprep.subr.bf16.mxu0 %v7783
        %9331 = vmatpush1.bf16.msra.mxu0 %v7782
        %9332 = vmatprep.subr.bf16.mxu0 %v7785
        %9333 = vmatpush1.bf16.msra.mxu0 %v7784
        %9334 = vmatprep.subr.bf16.mxu0 %v7787
        %9335 = vmatpush1.bf16.msra.mxu0 %v7786
        %9336 = vmatprep.subr.bf16.mxu0 %v7789
        %9337 = vmatpush1.bf16.msra.mxu0 %v7788
        %9338 = vmatprep.subr.bf16.mxu0 %v7791
        %9339 = vmatpush1.bf16.msra.mxu0 %v7790
        %9340 = vmatprep.subr.bf16.mxu0 %v7793
        %9341 = vmatpush1.bf16.msra.mxu0 %v7792
        %9342 = vmatprep.subr.bf16.mxu0 %v7795
        %9343 = vmatpush1.bf16.msra.mxu0 %v7794
        %9344 = vmatprep.subr.bf16.mxu0 %v7797
        %9345 = vmatpush1.bf16.msra.mxu0 %v7796
        %9346 = vmatprep.subr.bf16.mxu0 %v7799
        %9347 = vmatpush1.bf16.msra.mxu0 %v7798
        %9348 = vmatprep.subr.bf16.mxu0 %v7801
        %9349 = vmatpush1.bf16.msra.mxu0 %v7800
        %9350 = vmatprep.subr.bf16.mxu0 %v7803
        %9351 = vmatpush1.bf16.msra.mxu0 %v7802
        %9352 = vmatprep.subr.bf16.mxu0 %v7805
        %9353 = vmatpush1.bf16.msra.mxu0 %v7804
        %9354 = vmatprep.subr.bf16.mxu0 %v7807
        %9355 = vmatpush1.bf16.msra.mxu0 %v7806
        %9356 = vmatprep.subr.bf16.mxu0 %v7809
        %9357 = vmatpush1.bf16.msra.mxu0 %v7808
        %9358 = vmatprep.subr.bf16.mxu0 %v7811
        %9359 = vmatpush1.bf16.msra.mxu0 %v7810
        %9360 = vmatprep.subr.bf16.mxu0 %v7813
        %9361 = vmatpush1.bf16.msra.mxu0 %v7812
        %9362 = vmatprep.mubr.bf16.mxu0 %v5575
        %9363 = vmatmul.mubr.bf16.gmra.mrb[0].mxu0 %v5574
        %v9364 = vpop.f32.mrb[0].mxu0
        %v9365 = vadd.f32 %v9292, %v9364
        %v9366 = vpop.f32.mrb[0].mxu0
        %v9367 = vadd.f32 %v9294, %v9366
        %v9368 = vpop.f32.mrb[0].mxu0
        %v9369 = vadd.f32 %v9296, %v9368
        %v9370 = vpop.f32.mrb[0].mxu0
        %v9371 = vadd.f32 %v9298, %v9370
        %9372 = vmatprep.mubr.bf16.mxu0 %v5608
        %9373 = vmatmul.mubr.bf16.gmra.mrb[0].mxu0 %v5607
        %v9374 = vpop.f32.mrb[0].mxu0
        %v9375 = vadd.f32 %v9302, %v9374
        %v9376 = vpop.f32.mrb[0].mxu0
        %v9377 = vadd.f32 %v9304, %v9376
        %v9378 = vpop.f32.mrb[0].mxu0
        %v9379 = vadd.f32 %v9306, %v9378
        %v9380 = vpop.f32.mrb[0].mxu0
        %v9381 = vadd.f32 %v9308, %v9380
        %9382 = vmatprep.mubr.bf16.mxu0 %v5641
        %9383 = vmatmul.mubr.bf16.gmra.mrb[0].mxu0 %v5640
        %v9384 = vpop.f32.mrb[0].mxu0
        %v9385 = vadd.f32 %v9312, %v9384
        %v9386 = vpop.f32.mrb[0].mxu0
        %v9387 = vadd.f32 %v9314, %v9386
        %v9388 = vpop.f32.mrb[0].mxu0
        %v9389 = vadd.f32 %v9316, %v9388
        %v9390 = vpop.f32.mrb[0].mxu0
        %v9391 = vadd.f32 %v9318, %v9390
        %9392 = vmatprep.mubr.bf16.mxu0 %v5674
        %9393 = vmatmul.mubr.bf16.gmra.mrb[0].mxu0 %v5673
        %v9394 = vpop.f32.mrb[0].mxu0
        %v9395 = vadd.f32 %v9322, %v9394
        %v9396 = vpop.f32.mrb[0].mxu0
        %v9397 = vadd.f32 %v9324, %v9396
        %v9398 = vpop.f32.mrb[0].mxu0
        %v9399 = vadd.f32 %v9326, %v9398
        %v9400 = vpop.f32.mrb[0].mxu0
        %v9401 = vadd.f32 %v9328, %v9400
        %9402 = vdwg.mxu0
        %9403 = vmatprep.subr.bf16.mxu0 %v7815
        %9404 = vmatpush1.bf16.msra.mxu0 %v7814
        %9405 = vmatprep.subr.bf16.mxu0 %v7817
        %9406 = vmatpush1.bf16.msra.mxu0 %v7816
        %9407 = vmatprep.subr.bf16.mxu0 %v7819
        %9408 = vmatpush1.bf16.msra.mxu0 %v7818
        %9409 = vmatprep.subr.bf16.mxu0 %v7821
        %9410 = vmatpush1.bf16.msra.mxu0 %v7820
        %9411 = vmatprep.subr.bf16.mxu0 %v7823
        %9412 = vmatpush1.bf16.msra.mxu0 %v7822
        %9413 = vmatprep.subr.bf16.mxu0 %v7825
        %9414 = vmatpush1.bf16.msra.mxu0 %v7824
        %9415 = vmatprep.subr.bf16.mxu0 %v7827
        %9416 = vmatpush1.bf16.msra.mxu0 %v7826
        %9417 = vmatprep.subr.bf16.mxu0 %v7829
        %9418 = vmatpush1.bf16.msra.mxu0 %v7828
        %9419 = vmatprep.subr.bf16.mxu0 %v7831
        %9420 = vmatpush1.bf16.msra.mxu0 %v7830
        %9421 = vmatprep.subr.bf16.mxu0 %v7833
        %9422 = vmatpush1.bf16.msra.mxu0 %v7832
        %9423 = vmatprep.subr.bf16.mxu0 %v7835
        %9424 = vmatpush1.bf16.msra.mxu0 %v7834
        %9425 = vmatprep.subr.bf16.mxu0 %v7837
        %9426 = vmatpush1.bf16.msra.mxu0 %v7836
        %9427 = vmatprep.subr.bf16.mxu0 %v7839
        %9428 = vmatpush1.bf16.msra.mxu0 %v7838
        %9429 = vmatprep.subr.bf16.mxu0 %v7841
        %9430 = vmatpush1.bf16.msra.mxu0 %v7840
        %9431 = vmatprep.subr.bf16.mxu0 %v7843
        %9432 = vmatpush1.bf16.msra.mxu0 %v7842
        %9433 = vmatprep.subr.bf16.mxu0 %v7845
        %9434 = vmatpush1.bf16.msra.mxu0 %v7844
        %9435 = vmatprep.mubr.bf16.mxu0 %v5577
        %9436 = vmatmul.mubr.bf16.gmra.mrb[0].mxu0 %v5576
        %v9437 = vpop.f32.mrb[0].mxu0
        %v9438 = vadd.f32 %v9365, %v9437
        %v9439 = vpop.f32.mrb[0].mxu0
        %v9440 = vadd.f32 %v9367, %v9439
        %v9441 = vpop.f32.mrb[0].mxu0
        %v9442 = vadd.f32 %v9369, %v9441
        %v9443 = vpop.f32.mrb[0].mxu0
        %v9444 = vadd.f32 %v9371, %v9443
        %9445 = vmatprep.mubr.bf16.mxu0 %v5610
        %9446 = vmatmul.mubr.bf16.gmra.mrb[0].mxu0 %v5609
        %v9447 = vpop.f32.mrb[0].mxu0
        %v9448 = vadd.f32 %v9375, %v9447
        %v9449 = vpop.f32.mrb[0].mxu0
        %v9450 = vadd.f32 %v9377, %v9449
        %v9451 = vpop.f32.mrb[0].mxu0
        %v9452 = vadd.f32 %v9379, %v9451
        %v9453 = vpop.f32.mrb[0].mxu0
        %v9454 = vadd.f32 %v9381, %v9453
        %9455 = vmatprep.mubr.bf16.mxu0 %v5643
        %9456 = vmatmul.mubr.bf16.gmra.mrb[0].mxu0 %v5642
        %v9457 = vpop.f32.mrb[0].mxu0
        %v9458 = vadd.f32 %v9385, %v9457
        %v9459 = vpop.f32.mrb[0].mxu0
        %v9460 = vadd.f32 %v9387, %v9459
        %v9461 = vpop.f32.mrb[0].mxu0
        %v9462 = vadd.f32 %v9389, %v9461
        %v9463 = vpop.f32.mrb[0].mxu0
        %v9464 = vadd.f32 %v9391, %v9463
        %9465 = vmatprep.mubr.bf16.mxu0 %v5676
        %9466 = vmatmul.mubr.bf16.gmra.mrb[0].mxu0 %v5675
        %v9467 = vpop.f32.mrb[0].mxu0
        %v9468 = vadd.f32 %v9395, %v9467
        %v9469 = vpop.f32.mrb[0].mxu0
        %v9470 = vadd.f32 %v9397, %v9469
        %v9471 = vpop.f32.mrb[0].mxu0
        %v9472 = vadd.f32 %v9399, %v9471
        %v9473 = vpop.f32.mrb[0].mxu0
        %v9474 = vadd.f32 %v9401, %v9473
        %9475 = vdwg.mxu0
        %9476 = vmatprep.subr.bf16.mxu0 %v7847
        %9477 = vmatpush1.bf16.msra.mxu0 %v7846
        %9478 = vmatprep.subr.bf16.mxu0 %v7849
        %9479 = vmatpush1.bf16.msra.mxu0 %v7848
        %9480 = vmatprep.subr.bf16.mxu0 %v7851
        %9481 = vmatpush1.bf16.msra.mxu0 %v7850
        %9482 = vmatprep.subr.bf16.mxu0 %v7853
        %9483 = vmatpush1.bf16.msra.mxu0 %v7852
        %9484 = vmatprep.subr.bf16.mxu0 %v7855
        %9485 = vmatpush1.bf16.msra.mxu0 %v7854
        %9486 = vmatprep.subr.bf16.mxu0 %v7857
        %9487 = vmatpush1.bf16.msra.mxu0 %v7856
        %9488 = vmatprep.subr.bf16.mxu0 %v7859
        %9489 = vmatpush1.bf16.msra.mxu0 %v7858
        %9490 = vmatprep.subr.bf16.mxu0 %v7861
        %9491 = vmatpush1.bf16.msra.mxu0 %v7860
        %9492 = vmatprep.subr.bf16.mxu0 %v7863
        %9493 = vmatpush1.bf16.msra.mxu0 %v7862
        %9494 = vmatprep.subr.bf16.mxu0 %v7865
        %9495 = vmatpush1.bf16.msra.mxu0 %v7864
        %9496 = vmatprep.subr.bf16.mxu0 %v7867
        %9497 = vmatpush1.bf16.msra.mxu0 %v7866
        %9498 = vmatprep.subr.bf16.mxu0 %v7869
        %9499 = vmatpush1.bf16.msra.mxu0 %v7868
        %9500 = vmatprep.subr.bf16.mxu0 %v7871
        %9501 = vmatpush1.bf16.msra.mxu0 %v7870
        %9502 = vmatprep.subr.bf16.mxu0 %v7873
        %9503 = vmatpush1.bf16.msra.mxu0 %v7872
        %9504 = vmatprep.subr.bf16.mxu0 %v7875
        %9505 = vmatpush1.bf16.msra.mxu0 %v7874
        %9506 = vmatprep.subr.bf16.mxu0 %v7877
        %9507 = vmatpush1.bf16.msra.mxu0 %v7876
        %9508 = vmatprep.mubr.bf16.mxu0 %v5579
        %9509 = vmatmul.mubr.bf16.gmra.mrb[0].mxu0 %v5578
        %v9510 = vpop.f32.mrb[0].mxu0
        %v9511 = vadd.f32 %v9438, %v9510
        %v9512 = vpop.f32.mrb[0].mxu0
        %v9513 = vadd.f32 %v9440, %v9512
        %v9514 = vpop.f32.mrb[0].mxu0
        %v9515 = vadd.f32 %v9442, %v9514
        %v9516 = vpop.f32.mrb[0].mxu0
        %v9517 = vadd.f32 %v9444, %v9516
        %9518 = vmatprep.mubr.bf16.mxu0 %v5612
        %9519 = vmatmul.mubr.bf16.gmra.mrb[0].mxu0 %v5611
        %v9520 = vpop.f32.mrb[0].mxu0
        %v9521 = vadd.f32 %v9448, %v9520
        %v9522 = vpop.f32.mrb[0].mxu0
        %v9523 = vadd.f32 %v9450, %v9522
        %v9524 = vpop.f32.mrb[0].mxu0
        %v9525 = vadd.f32 %v9452, %v9524
        %v9526 = vpop.f32.mrb[0].mxu0
        %v9527 = vadd.f32 %v9454, %v9526
        %9528 = vmatprep.mubr.bf16.mxu0 %v5645
        %9529 = vmatmul.mubr.bf16.gmra.mrb[0].mxu0 %v5644
        %v9530 = vpop.f32.mrb[0].mxu0
        %v9531 = vadd.f32 %v9458, %v9530
        %v9532 = vpop.f32.mrb[0].mxu0
        %v9533 = vadd.f32 %v9460, %v9532
        %v9534 = vpop.f32.mrb[0].mxu0
        %v9535 = vadd.f32 %v9462, %v9534
        %v9536 = vpop.f32.mrb[0].mxu0
        %v9537 = vadd.f32 %v9464, %v9536
        %9538 = vmatprep.mubr.bf16.mxu0 %v5678
        %9539 = vmatmul.mubr.bf16.gmra.mrb[0].mxu0 %v5677
        %v9540 = vpop.f32.mrb[0].mxu0
        %v9541 = vadd.f32 %v9468, %v9540
        %v9542 = vpop.f32.mrb[0].mxu0
        %v9543 = vadd.f32 %v9470, %v9542
        %v9544 = vpop.f32.mrb[0].mxu0
        %v9545 = vadd.f32 %v9472, %v9544
        %v9546 = vpop.f32.mrb[0].mxu0
        %v9547 = vadd.f32 %v9474, %v9546
        %9548 = vdwg.mxu0
        %9549 = vmatprep.subr.bf16.mxu0 %v7879
        %9550 = vmatpush1.bf16.msra.mxu0 %v7878
        %9551 = vmatprep.subr.bf16.mxu0 %v7881
        %9552 = vmatpush1.bf16.msra.mxu0 %v7880
        %9553 = vmatprep.subr.bf16.mxu0 %v7883
        %9554 = vmatpush1.bf16.msra.mxu0 %v7882
        %9555 = vmatprep.subr.bf16.mxu0 %v7885
        %9556 = vmatpush1.bf16.msra.mxu0 %v7884
        %9557 = vmatprep.subr.bf16.mxu0 %v7887
        %9558 = vmatpush1.bf16.msra.mxu0 %v7886
        %9559 = vmatprep.subr.bf16.mxu0 %v7889
        %9560 = vmatpush1.bf16.msra.mxu0 %v7888
        %9561 = vmatprep.subr.bf16.mxu0 %v7891
        %9562 = vmatpush1.bf16.msra.mxu0 %v7890
        %9563 = vmatprep.subr.bf16.mxu0 %v7893
        %9564 = vmatpush1.bf16.msra.mxu0 %v7892
        %9565 = vmatprep.subr.bf16.mxu0 %v7895
        %9566 = vmatpush1.bf16.msra.mxu0 %v7894
        %9567 = vmatprep.subr.bf16.mxu0 %v7897
        %9568 = vmatpush1.bf16.msra.mxu0 %v7896
        %9569 = vmatprep.subr.bf16.mxu0 %v7899
        %9570 = vmatpush1.bf16.msra.mxu0 %v7898
        %9571 = vmatprep.subr.bf16.mxu0 %v7901
        %9572 = vmatpush1.bf16.msra.mxu0 %v7900
        %9573 = vmatprep.subr.bf16.mxu0 %v7903
        %9574 = vmatpush1.bf16.msra.mxu0 %v7902
        %9575 = vmatprep.subr.bf16.mxu0 %v7905
        %9576 = vmatpush1.bf16.msra.mxu0 %v7904
        %9577 = vmatprep.subr.bf16.mxu0 %v7907
        %9578 = vmatpush1.bf16.msra.mxu0 %v7906
        %9579 = vmatprep.subr.bf16.mxu0 %v7909
        %9580 = vmatpush1.bf16.msra.mxu0 %v7908
        %9581 = vmatprep.mubr.bf16.mxu0 %v5581
        %9582 = vmatmul.mubr.bf16.gmra.mrb[0].mxu0 %v5580
        %v9583 = vpop.f32.mrb[0].mxu0
        %v9584 = vadd.f32 %v9511, %v9583
        %v9585 = vpop.f32.mrb[0].mxu0
        %v9586 = vadd.f32 %v9513, %v9585
        %v9587 = vpop.f32.mrb[0].mxu0
        %v9588 = vadd.f32 %v9515, %v9587
        %v9589 = vpop.f32.mrb[0].mxu0
        %v9590 = vadd.f32 %v9517, %v9589
        %9591 = vmatprep.mubr.bf16.mxu0 %v5614
        %9592 = vmatmul.mubr.bf16.gmra.mrb[0].mxu0 %v5613
        %v9593 = vpop.f32.mrb[0].mxu0
        %v9594 = vadd.f32 %v9521, %v9593
        %v9595 = vpop.f32.mrb[0].mxu0
        %v9596 = vadd.f32 %v9523, %v9595
        %v9597 = vpop.f32.mrb[0].mxu0
        %v9598 = vadd.f32 %v9525, %v9597
        %v9599 = vpop.f32.mrb[0].mxu0
        %v9600 = vadd.f32 %v9527, %v9599
        %9601 = vmatprep.mubr.bf16.mxu0 %v5647
        %9602 = vmatmul.mubr.bf16.gmra.mrb[0].mxu0 %v5646
        %v9603 = vpop.f32.mrb[0].mxu0
        %v9604 = vadd.f32 %v9531, %v9603
        %v9605 = vpop.f32.mrb[0].mxu0
        %v9606 = vadd.f32 %v9533, %v9605
        %v9607 = vpop.f32.mrb[0].mxu0
        %v9608 = vadd.f32 %v9535, %v9607
        %v9609 = vpop.f32.mrb[0].mxu0
        %v9610 = vadd.f32 %v9537, %v9609
        %9611 = vmatprep.mubr.bf16.mxu0 %v5680
        %9612 = vmatmul.mubr.bf16.gmra.mrb[0].mxu0 %v5679
        %v9613 = vpop.f32.mrb[0].mxu0
        %v9614 = vadd.f32 %v9541, %v9613
        %v9615 = vpop.f32.mrb[0].mxu0
        %v9616 = vadd.f32 %v9543, %v9615
        %v9617 = vpop.f32.mrb[0].mxu0
        %v9618 = vadd.f32 %v9545, %v9617
        %v9619 = vpop.f32.mrb[0].mxu0
        %v9620 = vadd.f32 %v9547, %v9619
        %9621 = vdwg.mxu0
        %9622 = vmatprep.subr.bf16.mxu0 %v7911
        %9623 = vmatpush1.bf16.msra.mxu0 %v7910
        %9624 = vmatprep.subr.bf16.mxu0 %v7913
        %9625 = vmatpush1.bf16.msra.mxu0 %v7912
        %9626 = vmatprep.subr.bf16.mxu0 %v7915
        %9627 = vmatpush1.bf16.msra.mxu0 %v7914
        %9628 = vmatprep.subr.bf16.mxu0 %v7917
        %9629 = vmatpush1.bf16.msra.mxu0 %v7916
        %9630 = vmatprep.subr.bf16.mxu0 %v7919
        %9631 = vmatpush1.bf16.msra.mxu0 %v7918
        %9632 = vmatprep.subr.bf16.mxu0 %v7921
        %9633 = vmatpush1.bf16.msra.mxu0 %v7920
        %9634 = vmatprep.subr.bf16.mxu0 %v7923
        %9635 = vmatpush1.bf16.msra.mxu0 %v7922
        %9636 = vmatprep.subr.bf16.mxu0 %v7925
        %9637 = vmatpush1.bf16.msra.mxu0 %v7924
        %9638 = vmatprep.subr.bf16.mxu0 0
        %9639 = vmatpush1.bf16.msra.mxu0 0
        %9640 = vmatprep.subr.bf16.mxu0 0
        %9641 = vmatpush1.bf16.msra.mxu0 0
        %9642 = vmatprep.subr.bf16.mxu0 0
        %9643 = vmatpush1.bf16.msra.mxu0 0
        %9644 = vmatprep.subr.bf16.mxu0 0
        %9645 = vmatpush1.bf16.msra.mxu0 0
        %9646 = vmatprep.subr.bf16.mxu0 0
        %9647 = vmatpush1.bf16.msra.mxu0 0
        %9648 = vmatprep.subr.bf16.mxu0 0
        %9649 = vmatpush1.bf16.msra.mxu0 0
        %9650 = vmatprep.subr.bf16.mxu0 0
        %9651 = vmatpush1.bf16.msra.mxu0 0
        %9652 = vmatprep.subr.bf16.mxu0 0
        %9653 = vmatpush1.bf16.msra.mxu0 0
        %9654 = vmatprep.mubr.bf16.mxu0 0
        %9655 = vmatmul.mubr.bf16.gmra.mrb[0].mxu0 %v5582
        %v9656 = vpop.f32.mrb[0].mxu0
        %v9657 = vadd.f32 %v9584, %v9656
        %v9658 = vpop.f32.mrb[0].mxu0
        %v9659 = vadd.f32 %v9586, %v9658
        %v9660 = vpop.f32.mrb[0].mxu0
        %v9661 = vadd.f32 %v9588, %v9660
        %v9662 = vpop.f32.mrb[0].mxu0
        %v9663 = vadd.f32 %v9590, %v9662
        %9664 = vmatprep.mubr.bf16.mxu0 0
        %9665 = vmatmul.mubr.bf16.gmra.mrb[0].mxu0 %v5615
        %v9666 = vpop.f32.mrb[0].mxu0
        %v9667 = vadd.f32 %v9594, %v9666
        %v9668 = vpop.f32.mrb[0].mxu0
        %v9669 = vadd.f32 %v9596, %v9668
        %v9670 = vpop.f32.mrb[0].mxu0
        %v9671 = vadd.f32 %v9598, %v9670
        %v9672 = vpop.f32.mrb[0].mxu0
        %v9673 = vadd.f32 %v9600, %v9672
        %9674 = vmatprep.mubr.bf16.mxu0 0
        %9675 = vmatmul.mubr.bf16.gmra.mrb[0].mxu0 %v5648
        %v9676 = vpop.f32.mrb[0].mxu0
        %v9677 = vadd.f32 %v9604, %v9676
        %v9678 = vpop.f32.mrb[0].mxu0
        %v9679 = vadd.f32 %v9606, %v9678
        %v9680 = vpop.f32.mrb[0].mxu0
        %v9681 = vadd.f32 %v9608, %v9680
        %v9682 = vpop.f32.mrb[0].mxu0
        %v9683 = vadd.f32 %v9610, %v9682
        %9684 = vmatprep.mubr.bf16.mxu0 0
        %9685 = vmatmul.mubr.bf16.gmra.mrb[0].mxu0 %v5681
        %v9686 = vpop.f32.mrb[0].mxu0
        %v9687 = vadd.f32 %v9614, %v9686
        %v9688 = vpop.f32.mrb[0].mxu0
        %v9689 = vadd.f32 %v9616, %v9688
        %v9690 = vpop.f32.mrb[0].mxu0
        %v9691 = vadd.f32 %v9618, %v9690
        %v9692 = vpop.f32.mrb[0].mxu0
        %v9693 = vadd.f32 %v9620, %v9692
        %9694 = vdwg.mxu0
        %v9695 = vadd.f32 %v9657, %v9661
        %v9696 = vadd.f32 %v9695, %v9667
        %v9697 = vadd.f32 %v9696, %v9671
        %v9698 = vadd.f32 %v9697, %v9677
        %v9699 = vadd.f32 %v9698, %v9681
        %v9700 = vadd.f32 %v9699, %v9687
        %v9701 = vadd.f32 %v9700, %v9691
        %v9702 = vrot.slane %v9701, 4
        %v9703 = vadd.f32 %v9701, %v9702
        %v9704 = vrot.slane %v9703, 2
        %v9705 = vadd.f32 %v9703, %v9704
        %v9706 = vrot.slane %v9705, 1
        %v9707 = vadd.f32 %v9705, %v9706
        %v9708 = vadd.f32 %v9659, %v9663
        %v9709 = vadd.f32 %v9708, %v9669
        %v9710 = vadd.f32 %v9709, %v9673
        %v9711 = vadd.f32 %v9710, %v9679
        %v9712 = vadd.f32 %v9711, %v9683
        %v9713 = vadd.f32 %v9712, %v9689
        %v9714 = vadd.f32 %v9713, %v9693
        %v9715 = vrot.slane %v9714, 4
        %v9716 = vadd.f32 %v9714, %v9715
        %v9717 = vrot.slane %v9716, 2
        %v9718 = vadd.f32 %v9716, %v9717
        %v9719 = vrot.slane %v9718, 1
        %v9720 = vadd.f32 %v9718, %v9719
        %v9721 = vmul.f32 %v9707, 0.015625
        %v9722 = vmul.f32 %v9720, 0.015625
        %v9725 = vcombine.low %v9721, %v9722
        %v9727 = vunpack.c.l.s4 1966171168
        %v9728 = vunpack.c.0.s8 %v9727
        %v9729 = vlaneseq
        %v9730 = vshrl.u32 %v9729, 7
        %v9731 = vsub.s32 %v9728, %v9730
        %v9732 = vrot.slane %v9725, %v9731
        %v9734 = vunpack.c.l.s4 1966171168
        %v9735 = vunpack.c.0.s8 %v9734
        %v9736 = vlaneseq
        %v9737 = vshrl.u32 %v9736, 7
        %v9738 = vsub.s32 %v9735, %v9737
        %v9739 = vrot.slane %v9732, %v9738
        %v9741 = vlaneseq
        %vm9742 = vcmp.ge.s32.totalorder %v9741, 0
        %vm9743 = vcmp.lt.s32.totalorder %v9741, 256
        %vm9744 = vmand %vm9742, %vm9743
        %9745 = vst.msk [vmem:[%s4483] sm:$0x3] %vm9744, %v9739
        %s9746 = smul.u32 2, %s17
        %p9747 = scmp.lt.s32.totalorder %s18, 1
        %s9748 = scalar_select %p9747, %s18, 1
        %p9749 = scmp.lt.s32.totalorder %s9746, 15
        %s9750 = scalar_select %p9749, %s9746, 15
        %s9751 = smul.addr %s9748, 16
        %s9752 = sadd.s32 %s9750, %s9751
        %s9753 = scalar_lea.vmem %s2, %s9752
        // Predicated region
        $region81: #{partial_inception_network.1} parent=75 // pred_check
          %p9754 = pneg %p97
        $region82: #{partial_inception_network.1} parent=75 // pred_check_branch
          %9756 = sbr.rel (%p9754) target = $region84
        $region83: #{partial_inception_network.1} parent=75 // pred_region
          %s9757 = smul.u32 2, %s17
        $region84: #{partial_inception_network.1} parent=75 // pred_fallthru
          _
      $region76: #{partial_inception_network.1} parent=5 // pred_fallthru
        _
      %p9758 = scmp.le.s32.totalorder 2, %s8
      // Predicated region
      $region85: #{partial_inception_network.1} parent=5 // pred_check
        %p9759 = pneg %p9758
      $region86: #{partial_inception_network.1} parent=5 // pred_check_branch
        %9761 = sbr.rel (%p9759) target = $region88
      $region87: #{partial_inception_network.1} parent=5 // pred_region
        %s9762 = ssub.s32 %s8, 2
        // Predicated region
        $region89: #{partial_inception_network.1} parent=87 // pred_check
          %p9763 = pneg %p103
        $region90: #{partial_inception_network.1} parent=87 // pred_check_branch
          %9765 = sbr.rel (%p9763) target = $region92
        $region91: #{partial_inception_network.1} parent=87 // pred_region
          %s9766 = smul.u32 2, %s19
          %p9767 = scmp.lt.s32.totalorder %s20, 1
          %s9768 = scalar_select %p9767, %s20, 1
          %p9769 = scmp.lt.s32.totalorder %s9766, 15
          %s9770 = scalar_select %p9769, %s9766, 15
          %s9771 = smul.addr %s9768, 16
          %s9772 = sadd.s32 %s9770, %s9771
          %s9773 = scalar_lea.vmem %s2, %s9772
        $region92: #{partial_inception_network.1} parent=87 // pred_fallthru
          _
      $region88: #{partial_inception_network.1} parent=5 // pred_fallthru
        _
    $region6: #{partial_inception_network.1} parent=1 // loop_footer
      %s12 = sadd.s32 1, %s8
    $region7: #{partial_inception_network.1} parent=1 // loop_footer_branch
      %7 = sbr.rel target = $region3
    $region8: #{partial_inception_network.1} parent=1 // loop_exit
      _

</llo_original>
